<compile_context>
chip_gen: v6e
topology: v6e:2x2x1
jax: 0.10.0
libtpu: 0.0.40
codegen_flags: <defaults>
</compile_context>

<pallas_src>
import functools

import jax
import jax.numpy as jnp
from jax.experimental import pallas as pl
from jax.experimental.pallas import tpu as pltpu

LANE = 128   # pad every conv's Cout to a multiple of this (lane-dense stores)
SUB = 16     # row alignment for the bf16 s2w layout (16 sublanes per bf16 vreg)


def _round_up(x, m):
    return ((x + m - 1) // m) * m


# ----------------------------- Pallas kernels ------------------------------ #

def _conv_s2_kernel(x_ref, w_ref, o_ref, st_ref, *, Wq):
    """One image of a 4x4 / stride-2 / pad-1 conv as 2 MXU taps over a
    space-to-depth input layout, with fused BatchNorm batch-statistics
    (per-channel sum and sum-of-squares) as the epilogue.

      x_ref : (1, (Ho+1)*Wq, 8*Cin_p)  bf16   s2w input rows
      w_ref : (2, 8*Cin_p, Cout_p)     bf16   rearranged conv weights
      o_ref : (1, Ho*Wq, Cout_p)       f32    raw conv output (pre-BN / pre-act)
      st_ref: (1, 2, Cout_p)           f32    [sum, sum of squares]
    """
    m_out = o_ref.shape[1]
    a0 = x_ref[0, pl.ds(0, m_out), :]      # tap dr = 0   (aligned: offset 0)
    a1 = x_ref[0, pl.ds(Wq, m_out), :]     # tap dr = 1   (aligned: Wq % 16 == 0)
    y = jnp.dot(a0, w_ref[0], preferred_element_type=jnp.float32)
    y = y + jnp.dot(a1, w_ref[1], preferred_element_type=jnp.float32)
    o_ref[0] = y
    # Columns >= Wo of the s2w input are zero-padded, so y is exactly zero
    # there and these sums equal the sums over the N*Ho*Wo valid positions.
    st_ref[0, 0:1, :] = jnp.sum(y, axis=0, keepdims=True)
    st_ref[0, 1:2, :] = jnp.sum(y * y, axis=0, keepdims=True)


def _head_kernel(a_ref, w_ref, o_ref):
    """Final 4x4 valid conv (flattened dot, lane-padded to 128) + sigmoid."""
    y = jnp.dot(a_ref[...], w_ref[...], preferred_element_type=jnp.float32)
    o_ref[...] = jax.nn.sigmoid(y)


# ----------------------------- pallas_call wrappers ------------------------ #

def _conv4x4_s2(s2w, w2, Ho, Wq):
    """s2w: (N, (Ho+1)*Wq, 8*Cin_p) bf16;  w2: (2, 8*Cin_p, Cout_p) bf16."""
    N, m_in, K = s2w.shape
    cout_p = w2.shape[2]
    m_out = Ho * Wq
    out, stats = pl.pallas_call(
        functools.partial(_conv_s2_kernel, Wq=Wq),
        out_shape=(jax.ShapeDtypeStruct((N, m_out, cout_p), jnp.float32),
                   jax.ShapeDtypeStruct((N, 2, cout_p), jnp.float32)),
        grid_spec=pltpu.PrefetchScalarGridSpec(
            num_scalar_prefetch=0,
            grid=(N,),
            in_specs=[pl.BlockSpec((1, m_in, K), lambda n: (n, 0, 0)),
                      pl.BlockSpec((2, K, cout_p), lambda n: (0, 0, 0))],
            out_specs=[pl.BlockSpec((1, m_out, cout_p), lambda n: (n, 0, 0)),
                       pl.BlockSpec((1, 2, cout_p), lambda n: (n, 0, 0))]),
        compiler_params=pltpu.CompilerParams(
            dimension_semantics=("parallel",),
            vmem_limit_bytes=32 * 1024 * 1024),
    )(s2w, w2)
    return out, stats


def _head_pallas(a_flat, w_mat):
    N, Kf = a_flat.shape
    n_p = w_mat.shape[1]
    return pl.pallas_call(
        _head_kernel,
        out_shape=jax.ShapeDtypeStruct((N, n_p), jnp.float32),
        grid_spec=pltpu.PrefetchScalarGridSpec(
            num_scalar_prefetch=0,
            grid=(1,),
            in_specs=[pl.BlockSpec((N, Kf), lambda i: (0, 0)),
                      pl.BlockSpec((Kf, n_p), lambda i: (0, 0))],
            out_specs=pl.BlockSpec((N, n_p), lambda i: (0, 0))),
    )(a_flat, w_mat)


# ------------------------------- JAX glue ---------------------------------- #

def _lrelu(t):
    return jnp.where(t > 0, t, 0.2 * t)


def _build_s2w(a, cp):
    """Space-to-depth row layout of the zero-padded activation for a 4x4/s2/p1
    conv.  a: (N, H, W, cp) post-activation input (f32).  Row r*Wq + c of the
    result holds the 2x4 input window rows {2r,2r+1} x cols {2c..2c+3}
    (channels fastest), cast to bf16.  Returns (s2w, (Ho, Wo, Wq))."""
    N, H, W, _ = a.shape
    Ho, Wo = H // 2, W // 2
    Wq = _round_up(Wo, SUB)
    R = Ho + 1
    ap = jnp.pad(a, ((0, 0), (1, 1), (1, 1), (0, 0)))
    blk = ap.reshape(N, R, 2, Wo + 1, 2, cp).transpose(0, 1, 3, 2, 4, 5)
    blk = blk.reshape(N, R, Wo + 1, 4 * cp)               # 2x2 pixel block per (r, c)
    wide = jnp.concatenate([blk[:, :, :Wo, :], blk[:, :, 1:Wo + 1, :]], axis=-1)
    if Wq != Wo:
        wide = jnp.pad(wide, ((0, 0), (0, 0), (0, Wq - Wo), (0, 0)))
    return wide.reshape(N, R * Wq, 8 * cp).astype(jnp.bfloat16), (Ho, Wo, Wq)


def _prep_conv_weight(w, cin_p, cout_p):
    """(Cout, Cin, 4, 4) -> (2, 8*cin_p, cout_p) bf16 matching the s2w layout."""
    cout, cin = w.shape[0], w.shape[1]
    wp = jnp.zeros((cout_p, cin_p, 4, 4), jnp.float32).at[:cout, :cin].set(w)
    w6 = wp.reshape(cout_p, cin_p, 2, 2, 2, 2)            # [co, ci, dr, pi, dc, pj]
    w6 = jnp.transpose(w6, (2, 4, 3, 5, 1, 0))            # [dr, dc, pi, pj, ci, co]
    return w6.reshape(2, 8 * cin_p, cout_p).astype(jnp.bfloat16)


def _bn_scale_shift(stats, count, gamma, beta, cout_p):
    """Fold training-mode batch stats + gamma/beta into per-channel scale/shift
    (channel-padded entries get scale = shift = 0)."""
    s = jnp.sum(stats, axis=0)                            # (2, cout_p)
    mean = s[0] / count
    var = jnp.maximum(s[1] / count - mean * mean, 0.0)
    g = jnp.zeros((cout_p,), jnp.float32).at[:gamma.shape[0]].set(gamma)
    b = jnp.zeros((cout_p,), jnp.float32).at[:beta.shape[0]].set(beta)
    scale = g * jax.lax.rsqrt(var + 1e-5)
    shift = b - mean * scale
    return scale, shift


def discriminator_pallas(x_nchw, p):
    """Forward pass.  Input NCHW (PyTorch convention), output (N, 1, 1, 1)."""
    x = jnp.transpose(x_nchw, (0, 2, 3, 1)).astype(jnp.float32)   # -> NHWC
    N = x.shape[0]

    layers = (("w1", None, None), ("w2", "g2", "b2"),
              ("w3", "g3", "b3"), ("w4", "g4", "b4"))
    a, cin_p = x, x.shape[-1]           # post-activation input of the next conv
    for wk, gk, bk in layers:
        w = p[wk]
        cout_p = _round_up(w.shape[0], LANE)
        s2w, (Ho, Wo, Wq) = _build_s2w(a, cin_p)
        h, st = _conv4x4_s2(s2w, _prep_conv_weight(w, cin_p, cout_p), Ho, Wq)
        h = h.reshape(N, Ho, Wq, cout_p)[:, :, :Wo, :]    # drop zero-padded columns
        if gk is None:                                    # layer 1: LeakyReLU only
            a = _lrelu(h)
        else:                                             # BatchNorm (batch stats) + LeakyReLU
            scale, shift = _bn_scale_shift(st, N * Ho * Wo, p[gk], p[bk], cout_p)
            a = _lrelu(h * scale + shift)
        cin_p = cout_p

    # conv5: 4x4 valid conv -> 1 channel, as a lane-padded flattened dot + sigmoid.
    Hh, Wh = a.shape[1], a.shape[2]                       # 4, 4
    a_flat = a.reshape(N, Hh * Wh * cin_p).astype(jnp.bfloat16)
    w5 = p["w5"]                                          # (1, ndf*8, 4, 4)
    w5_hwc = jnp.zeros((Hh, Wh, cin_p), jnp.float32).at[:, :, :w5.shape[1]].set(
        jnp.transpose(w5[0], (1, 2, 0)))
    w5_mat = jnp.zeros((Hh * Wh * cin_p, LANE), jnp.float32)
    w5_mat = w5_mat.at[:, 0].set(w5_hwc.reshape(-1)).astype(jnp.bfloat16)
    out = _head_pallas(a_flat, w5_mat)[:, :1]
    return out.reshape(N, 1, 1, 1)


# --------------------------- params & pure-JAX reference -------------------- #

def init_params(key, nc, ndf):
    ks = jax.random.split(key, 5)
    def w(k, cout, cin):
        return (0.02 * jax.random.normal(k, (cout, cin, 4, 4))).astype(jnp.float32)
    return {
        "w1": w(ks[0], ndf, nc),
        "w2": w(ks[1], ndf * 2, ndf),
        "g2": jnp.ones((ndf * 2,), jnp.float32), "b2": jnp.zeros((ndf * 2,), jnp.float32),
        "w3": w(ks[2], ndf * 4, ndf * 2),
        "g3": jnp.ones((ndf * 4,), jnp.float32), "b3": jnp.zeros((ndf * 4,), jnp.float32),
        "w4": w(ks[3], ndf * 8, ndf * 4),
        "g4": jnp.ones((ndf * 8,), jnp.float32), "b4": jnp.zeros((ndf * 8,), jnp.float32),
        "w5": w(ks[4], 1, ndf * 8),
    }


def discriminator_ref(x_nchw, p):
    def conv(x, w, stride, pad):
        return jax.lax.conv_general_dilated(
            x, w, window_strides=(stride, stride),
            padding=[(pad, pad), (pad, pad)],
            dimension_numbers=("NCHW", "OIHW", "NCHW"),
            precision=jax.lax.Precision.HIGHEST)

    def bn(x, g, b):
        m = jnp.mean(x, axis=(0, 2, 3), keepdims=True)
        v = jnp.mean((x - m) ** 2, axis=(0, 2, 3), keepdims=True)
        xn = (x - m) * jax.lax.rsqrt(v + 1e-5)
        return xn * g.reshape(1, -1, 1, 1) + b.reshape(1, -1, 1, 1)

    lrelu = lambda t: jnp.where(t > 0, t, 0.2 * t)

    h = lrelu(conv(x_nchw, p["w1"], 2, 1))
    h = lrelu(bn(conv(h, p["w2"], 2, 1), p["g2"], p["b2"]))
    h = lrelu(bn(conv(h, p["w3"], 2, 1), p["g3"], p["b3"]))
    h = lrelu(bn(conv(h, p["w4"], 2, 1), p["g4"], p["b4"]))
    h = jax.nn.sigmoid(conv(h, p["w5"], 1, 0))
    return h


# --------------------------------- main ------------------------------------ #

if __name__ == "__main__":
    # Architecture requires 64x64 spatial input (4 stride-2 convs, then 4x4 valid conv).
    N, nc, ndf, S = 2, 3, 8, 64
    key = jax.random.PRNGKey(0)
    k_x, k_p = jax.random.split(key)
    x = jax.random.normal(k_x, (N, nc, S, S), dtype=jnp.float32)   # NCHW like PyTorch
    params = init_params(k_p, nc, ndf)

    fwd = jax.jit(discriminator_pallas)
    out = jax.block_until_ready(fwd(x, params))
    ref = jax.block_until_ready(discriminator_ref(x, params))

    assert out.shape == (N, 1, 1, 1), out.shape
    err = float(jnp.max(jnp.abs(out - ref)))
    # bf16 MXU operands (per perf review) vs. the f32 reference: tolerance is
    # bf16-aware but far below any real layout / BatchNorm bug (~1e-1).
    assert err < 5e-3, f"max abs error {err}"
    print("KERNEL_OK")
</pallas_src>

<mosaic_0001>
module attributes {stable_mosaic.version = 11 : i64} {
  func.func @_conv_s2_kernel(%arg0: i32, %arg1: memref<1x1056x24xbf16, #tpu.memory_space<vmem>>, %arg2: memref<2x24x128xbf16, #tpu.memory_space<vmem>>, %arg3: memref<1x1024x128xf32, #tpu.memory_space<vmem>>, %arg4: memref<1x2x128xf32, #tpu.memory_space<vmem>>) attributes {dimension_semantics = [#tpu.dimension_semantics<parallel>], iteration_bounds = array<i64: 2>, scalar_prefetch = 0 : i64, scratch_operands = 0 : i64, tpu.core_type = #tpu.core_type<tc>, window_params = [{transform_indices = @transform_0, window_bounds = array<i64: 1, 1056, 24>}, {pipeline_mode = #tpu.pipeline_mode<synchronous>, transform_indices = @transform_1, window_bounds = array<i64: 2, 24, 128>}, {transform_indices = @transform_2, window_bounds = array<i64: 1, 1024, 128>}, {transform_indices = @transform_3, window_bounds = array<i64: 1, 2, 128>}]} {
    %c0 = arith.constant 0 : index
    %c0_0 = arith.constant 0 : index
    %c0_1 = arith.constant 0 : index
    %0 = vector.load %arg1[%c0, %c0_0, %c0_1] : memref<1x1056x24xbf16, #tpu.memory_space<vmem>>, vector<1x1024x24xbf16>
    %1 = vector.shape_cast %0 : vector<1x1024x24xbf16> to vector<1024x24xbf16>
    %c0_2 = arith.constant 0 : index
    %c32 = arith.constant 32 : index
    %c0_3 = arith.constant 0 : index
    %2 = vector.load %arg1[%c0_2, %c32, %c0_3] : memref<1x1056x24xbf16, #tpu.memory_space<vmem>>, vector<1x1024x24xbf16>
    %3 = vector.shape_cast %2 : vector<1x1024x24xbf16> to vector<1024x24xbf16>
    %c0_4 = arith.constant 0 : index
    %c0_5 = arith.constant 0 : index
    %c0_6 = arith.constant 0 : index
    %4 = vector.load %arg2[%c0_4, %c0_5, %c0_6] : memref<2x24x128xbf16, #tpu.memory_space<vmem>>, vector<1x24x128xbf16>
    %5 = vector.shape_cast %4 : vector<1x24x128xbf16> to vector<24x128xbf16>
    %cst = arith.constant dense<0.000000e+00> : vector<1024x128xf32>
    %6 = tpu.matmul %1, %5, %cst {dimension_numbers = #tpu.dot_dimension_numbers<[1], [0], [0], [1], [0, 0, 1, 1], [], []>} : vector<1024x24xbf16>, vector<24x128xbf16>, vector<1024x128xf32> -> vector<1024x128xf32>
    %c1 = arith.constant 1 : index
    %c0_7 = arith.constant 0 : index
    %c0_8 = arith.constant 0 : index
    %7 = vector.load %arg2[%c1, %c0_7, %c0_8] : memref<2x24x128xbf16, #tpu.memory_space<vmem>>, vector<1x24x128xbf16>
    %8 = vector.shape_cast %7 : vector<1x24x128xbf16> to vector<24x128xbf16>
    %cst_9 = arith.constant dense<0.000000e+00> : vector<1024x128xf32>
    %9 = tpu.matmul %3, %8, %cst_9 {dimension_numbers = #tpu.dot_dimension_numbers<[1], [0], [0], [1], [0, 0, 1, 1], [], []>} : vector<1024x24xbf16>, vector<24x128xbf16>, vector<1024x128xf32> -> vector<1024x128xf32>
    %10 = arith.addf %6, %9 : vector<1024x128xf32>
    %c0_10 = arith.constant 0 : index
    %c0_11 = arith.constant 0 : index
    %c0_12 = arith.constant 0 : index
    %11 = vector.load %arg3[%c0_10, %c0_11, %c0_12] : memref<1x1024x128xf32, #tpu.memory_space<vmem>>, vector<1x1024x128xf32>
    %12 = vector.shape_cast %11 : vector<1x1024x128xf32> to vector<1024x128xf32>
    %13 = vector.shape_cast %10 : vector<1024x128xf32> to vector<1x1024x128xf32>
    tpu.vector_store %arg3[%c0_10, %c0_11, %c0_12], %13 {strides = array<i32>} : memref<1x1024x128xf32, #tpu.memory_space<vmem>>, vector<1x1024x128xf32>,
    %cst_13 = arith.constant dense<0.000000e+00> : vector<128xf32>
    %14 = vector.multi_reduction <add>, %10, %cst_13 [0] : vector<1024x128xf32> to vector<128xf32>
    %15 = vector.shape_cast %14 : vector<128xf32> to vector<1x128xf32>
    %c0_14 = arith.constant 0 : index
    %c0_15 = arith.constant 0 : index
    %c0_16 = arith.constant 0 : index
    %16 = vector.load %arg4[%c0_14, %c0_15, %c0_16] : memref<1x2x128xf32, #tpu.memory_space<vmem>>, vector<1x1x128xf32>
    %17 = vector.shape_cast %16 : vector<1x1x128xf32> to vector<1x128xf32>
    %18 = vector.shape_cast %15 : vector<1x128xf32> to vector<1x1x128xf32>
    tpu.vector_store %arg4[%c0_14, %c0_15, %c0_16], %18 {strides = array<i32>} : memref<1x2x128xf32, #tpu.memory_space<vmem>>, vector<1x1x128xf32>,
    %19 = arith.mulf %10, %10 : vector<1024x128xf32>
    %cst_17 = arith.constant dense<0.000000e+00> : vector<128xf32>
    %20 = vector.multi_reduction <add>, %19, %cst_17 [0] : vector<1024x128xf32> to vector<128xf32>
    %21 = vector.shape_cast %20 : vector<128xf32> to vector<1x128xf32>
    %c0_18 = arith.constant 0 : index
    %c1_19 = arith.constant 1 : index
    %c0_20 = arith.constant 0 : index
    %22 = vector.load %arg4[%c0_18, %c1_19, %c0_20] : memref<1x2x128xf32, #tpu.memory_space<vmem>>, vector<1x1x128xf32>
    %23 = vector.shape_cast %22 : vector<1x1x128xf32> to vector<1x128xf32>
    %24 = vector.shape_cast %21 : vector<1x128xf32> to vector<1x1x128xf32>
    tpu.vector_store %arg4[%c0_18, %c1_19, %c0_20], %24 {strides = array<i32>} : memref<1x2x128xf32, #tpu.memory_space<vmem>>, vector<1x1x128xf32>,
    return
  }
  func.func @transform_0(%arg0: i32) -> (i32, i32, i32) {
    %c0_i32 = arith.constant 0 : i32
    %c0_i32_0 = arith.constant 0 : i32
    %c0_i32_1 = arith.constant 0 : i32
    return %arg0, %c0_i32, %c0_i32_0 : i32, i32, i32
  }
  func.func @transform_1(%arg0: i32) -> (i32, i32, i32) {
    %c0_i32 = arith.constant 0 : i32
    %c0_i32_0 = arith.constant 0 : i32
    %c0_i32_1 = arith.constant 0 : i32
    %c0_i32_2 = arith.constant 0 : i32
    return %c0_i32, %c0_i32_0, %c0_i32_1 : i32, i32, i32
  }
  func.func @transform_2(%arg0: i32) -> (i32, i32, i32) {
    %c0_i32 = arith.constant 0 : i32
    %c0_i32_0 = arith.constant 0 : i32
    %c0_i32_1 = arith.constant 0 : i32
    return %arg0, %c0_i32, %c0_i32_0 : i32, i32, i32
  }
  func.func @transform_3(%arg0: i32) -> (i32, i32, i32) {
    %c0_i32 = arith.constant 0 : i32
    %c0_i32_0 = arith.constant 0 : i32
    %c0_i32_1 = arith.constant 0 : i32
    return %arg0, %c0_i32, %c0_i32_0 : i32, i32, i32
  }
}

module attributes {stable_mosaic.version = 11 : i64} {
  func.func @_conv_s2_kernel(%arg0: i32, %arg1: memref<1x272x1024xbf16, #tpu.memory_space<vmem>>, %arg2: memref<2x1024x128xbf16, #tpu.memory_space<vmem>>, %arg3: memref<1x256x128xf32, #tpu.memory_space<vmem>>, %arg4: memref<1x2x128xf32, #tpu.memory_space<vmem>>) attributes {dimension_semantics = [#tpu.dimension_semantics<parallel>], iteration_bounds = array<i64: 2>, scalar_prefetch = 0 : i64, scratch_operands = 0 : i64, tpu.core_type = #tpu.core_type<tc>, window_params = [{transform_indices = @transform_0, window_bounds = array<i64: 1, 272, 1024>}, {pipeline_mode = #tpu.pipeline_mode<synchronous>, transform_indices = @transform_1, window_bounds = array<i64: 2, 1024, 128>}, {transform_indices = @transform_2, window_bounds = array<i64: 1, 256, 128>}, {transform_indices = @transform_3, window_bounds = array<i64: 1, 2, 128>}]} {
    %c0 = arith.constant 0 : index
    %c0_0 = arith.constant 0 : index
    %c0_1 = arith.constant 0 : index
    %0 = vector.load %arg1[%c0, %c0_0, %c0_1] : memref<1x272x1024xbf16, #tpu.memory_space<vmem>>, vector<1x256x1024xbf16>
    %1 = vector.shape_cast %0 : vector<1x256x1024xbf16> to vector<256x1024xbf16>
    %c0_2 = arith.constant 0 : index
    %c16 = arith.constant 16 : index
    %c0_3 = arith.constant 0 : index
    %2 = vector.load %arg1[%c0_2, %c16, %c0_3] : memref<1x272x1024xbf16, #tpu.memory_space<vmem>>, vector<1x256x1024xbf16>
    %3 = vector.shape_cast %2 : vector<1x256x1024xbf16> to vector<256x1024xbf16>
    %c0_4 = arith.constant 0 : index
    %c0_5 = arith.constant 0 : index
    %c0_6 = arith.constant 0 : index
    %4 = vector.load %arg2[%c0_4, %c0_5, %c0_6] : memref<2x1024x128xbf16, #tpu.memory_space<vmem>>, vector<1x1024x128xbf16>
    %5 = vector.shape_cast %4 : vector<1x1024x128xbf16> to vector<1024x128xbf16>
    %cst = arith.constant dense<0.000000e+00> : vector<256x128xf32>
    %6 = tpu.matmul %1, %5, %cst {dimension_numbers = #tpu.dot_dimension_numbers<[1], [0], [0], [1], [0, 0, 1, 1], [], []>} : vector<256x1024xbf16>, vector<1024x128xbf16>, vector<256x128xf32> -> vector<256x128xf32>
    %c1 = arith.constant 1 : index
    %c0_7 = arith.constant 0 : index
    %c0_8 = arith.constant 0 : index
    %7 = vector.load %arg2[%c1, %c0_7, %c0_8] : memref<2x1024x128xbf16, #tpu.memory_space<vmem>>, vector<1x1024x128xbf16>
    %8 = vector.shape_cast %7 : vector<1x1024x128xbf16> to vector<1024x128xbf16>
    %cst_9 = arith.constant dense<0.000000e+00> : vector<256x128xf32>
    %9 = tpu.matmul %3, %8, %cst_9 {dimension_numbers = #tpu.dot_dimension_numbers<[1], [0], [0], [1], [0, 0, 1, 1], [], []>} : vector<256x1024xbf16>, vector<1024x128xbf16>, vector<256x128xf32> -> vector<256x128xf32>
    %10 = arith.addf %6, %9 : vector<256x128xf32>
    %c0_10 = arith.constant 0 : index
    %c0_11 = arith.constant 0 : index
    %c0_12 = arith.constant 0 : index
    %11 = vector.load %arg3[%c0_10, %c0_11, %c0_12] : memref<1x256x128xf32, #tpu.memory_space<vmem>>, vector<1x256x128xf32>
    %12 = vector.shape_cast %11 : vector<1x256x128xf32> to vector<256x128xf32>
    %13 = vector.shape_cast %10 : vector<256x128xf32> to vector<1x256x128xf32>
    tpu.vector_store %arg3[%c0_10, %c0_11, %c0_12], %13 {strides = array<i32>} : memref<1x256x128xf32, #tpu.memory_space<vmem>>, vector<1x256x128xf32>,
    %cst_13 = arith.constant dense<0.000000e+00> : vector<128xf32>
    %14 = vector.multi_reduction <add>, %10, %cst_13 [0] : vector<256x128xf32> to vector<128xf32>
    %15 = vector.shape_cast %14 : vector<128xf32> to vector<1x128xf32>
    %c0_14 = arith.constant 0 : index
    %c0_15 = arith.constant 0 : index
    %c0_16 = arith.constant 0 : index
    %16 = vector.load %arg4[%c0_14, %c0_15, %c0_16] : memref<1x2x128xf32, #tpu.memory_space<vmem>>, vector<1x1x128xf32>
    %17 = vector.shape_cast %16 : vector<1x1x128xf32> to vector<1x128xf32>
    %18 = vector.shape_cast %15 : vector<1x128xf32> to vector<1x1x128xf32>
    tpu.vector_store %arg4[%c0_14, %c0_15, %c0_16], %18 {strides = array<i32>} : memref<1x2x128xf32, #tpu.memory_space<vmem>>, vector<1x1x128xf32>,
    %19 = arith.mulf %10, %10 : vector<256x128xf32>
    %cst_17 = arith.constant dense<0.000000e+00> : vector<128xf32>
    %20 = vector.multi_reduction <add>, %19, %cst_17 [0] : vector<256x128xf32> to vector<128xf32>
    %21 = vector.shape_cast %20 : vector<128xf32> to vector<1x128xf32>
    %c0_18 = arith.constant 0 : index
    %c1_19 = arith.constant 1 : index
    %c0_20 = arith.constant 0 : index
    %22 = vector.load %arg4[%c0_18, %c1_19, %c0_20] : memref<1x2x128xf32, #tpu.memory_space<vmem>>, vector<1x1x128xf32>
    %23 = vector.shape_cast %22 : vector<1x1x128xf32> to vector<1x128xf32>
    %24 = vector.shape_cast %21 : vector<1x128xf32> to vector<1x1x128xf32>
    tpu.vector_store %arg4[%c0_18, %c1_19, %c0_20], %24 {strides = array<i32>} : memref<1x2x128xf32, #tpu.memory_space<vmem>>, vector<1x1x128xf32>,
    return
  }
  func.func @transform_0(%arg0: i32) -> (i32, i32, i32) {
    %c0_i32 = arith.constant 0 : i32
    %c0_i32_0 = arith.constant 0 : i32
    %c0_i32_1 = arith.constant 0 : i32
    return %arg0, %c0_i32, %c0_i32_0 : i32, i32, i32
  }
  func.func @transform_1(%arg0: i32) -> (i32, i32, i32) {
    %c0_i32 = arith.constant 0 : i32
    %c0_i32_0 = arith.constant 0 : i32
    %c0_i32_1 = arith.constant 0 : i32
    %c0_i32_2 = arith.constant 0 : i32
    return %c0_i32, %c0_i32_0, %c0_i32_1 : i32, i32, i32
  }
  func.func @transform_2(%arg0: i32) -> (i32, i32, i32) {
    %c0_i32 = arith.constant 0 : i32
    %c0_i32_0 = arith.constant 0 : i32
    %c0_i32_1 = arith.constant 0 : i32
    return %arg0, %c0_i32, %c0_i32_0 : i32, i32, i32
  }
  func.func @transform_3(%arg0: i32) -> (i32, i32, i32) {
    %c0_i32 = arith.constant 0 : i32
    %c0_i32_0 = arith.constant 0 : i32
    %c0_i32_1 = arith.constant 0 : i32
    return %arg0, %c0_i32, %c0_i32_0 : i32, i32, i32
  }
}

module attributes {stable_mosaic.version = 11 : i64} {
  func.func @_conv_s2_kernel(%arg0: i32, %arg1: memref<1x144x1024xbf16, #tpu.memory_space<vmem>>, %arg2: memref<2x1024x128xbf16, #tpu.memory_space<vmem>>, %arg3: memref<1x128x128xf32, #tpu.memory_space<vmem>>, %arg4: memref<1x2x128xf32, #tpu.memory_space<vmem>>) attributes {dimension_semantics = [#tpu.dimension_semantics<parallel>], iteration_bounds = array<i64: 2>, scalar_prefetch = 0 : i64, scratch_operands = 0 : i64, tpu.core_type = #tpu.core_type<tc>, window_params = [{transform_indices = @transform_0, window_bounds = array<i64: 1, 144, 1024>}, {pipeline_mode = #tpu.pipeline_mode<synchronous>, transform_indices = @transform_1, window_bounds = array<i64: 2, 1024, 128>}, {transform_indices = @transform_2, window_bounds = array<i64: 1, 128, 128>}, {transform_indices = @transform_3, window_bounds = array<i64: 1, 2, 128>}]} {
    %c0 = arith.constant 0 : index
    %c0_0 = arith.constant 0 : index
    %c0_1 = arith.constant 0 : index
    %0 = vector.load %arg1[%c0, %c0_0, %c0_1] : memref<1x144x1024xbf16, #tpu.memory_space<vmem>>, vector<1x128x1024xbf16>
    %1 = vector.shape_cast %0 : vector<1x128x1024xbf16> to vector<128x1024xbf16>
    %c0_2 = arith.constant 0 : index
    %c16 = arith.constant 16 : index
    %c0_3 = arith.constant 0 : index
    %2 = vector.load %arg1[%c0_2, %c16, %c0_3] : memref<1x144x1024xbf16, #tpu.memory_space<vmem>>, vector<1x128x1024xbf16>
    %3 = vector.shape_cast %2 : vector<1x128x1024xbf16> to vector<128x1024xbf16>
    %c0_4 = arith.constant 0 : index
    %c0_5 = arith.constant 0 : index
    %c0_6 = arith.constant 0 : index
    %4 = vector.load %arg2[%c0_4, %c0_5, %c0_6] : memref<2x1024x128xbf16, #tpu.memory_space<vmem>>, vector<1x1024x128xbf16>
    %5 = vector.shape_cast %4 : vector<1x1024x128xbf16> to vector<1024x128xbf16>
    %cst = arith.constant dense<0.000000e+00> : vector<128x128xf32>
    %6 = tpu.matmul %1, %5, %cst {dimension_numbers = #tpu.dot_dimension_numbers<[1], [0], [0], [1], [0, 0, 1, 1], [], []>} : vector<128x1024xbf16>, vector<1024x128xbf16>, vector<128x128xf32> -> vector<128x128xf32>
    %c1 = arith.constant 1 : index
    %c0_7 = arith.constant 0 : index
    %c0_8 = arith.constant 0 : index
    %7 = vector.load %arg2[%c1, %c0_7, %c0_8] : memref<2x1024x128xbf16, #tpu.memory_space<vmem>>, vector<1x1024x128xbf16>
    %8 = vector.shape_cast %7 : vector<1x1024x128xbf16> to vector<1024x128xbf16>
    %cst_9 = arith.constant dense<0.000000e+00> : vector<128x128xf32>
    %9 = tpu.matmul %3, %8, %cst_9 {dimension_numbers = #tpu.dot_dimension_numbers<[1], [0], [0], [1], [0, 0, 1, 1], [], []>} : vector<128x1024xbf16>, vector<1024x128xbf16>, vector<128x128xf32> -> vector<128x128xf32>
    %10 = arith.addf %6, %9 : vector<128x128xf32>
    %c0_10 = arith.constant 0 : index
    %c0_11 = arith.constant 0 : index
    %c0_12 = arith.constant 0 : index
    %11 = vector.load %arg3[%c0_10, %c0_11, %c0_12] : memref<1x128x128xf32, #tpu.memory_space<vmem>>, vector<1x128x128xf32>
    %12 = vector.shape_cast %11 : vector<1x128x128xf32> to vector<128x128xf32>
    %13 = vector.shape_cast %10 : vector<128x128xf32> to vector<1x128x128xf32>
    tpu.vector_store %arg3[%c0_10, %c0_11, %c0_12], %13 {strides = array<i32>} : memref<1x128x128xf32, #tpu.memory_space<vmem>>, vector<1x128x128xf32>,
    %cst_13 = arith.constant dense<0.000000e+00> : vector<128xf32>
    %14 = vector.multi_reduction <add>, %10, %cst_13 [0] : vector<128x128xf32> to vector<128xf32>
    %15 = vector.shape_cast %14 : vector<128xf32> to vector<1x128xf32>
    %c0_14 = arith.constant 0 : index
    %c0_15 = arith.constant 0 : index
    %c0_16 = arith.constant 0 : index
    %16 = vector.load %arg4[%c0_14, %c0_15, %c0_16] : memref<1x2x128xf32, #tpu.memory_space<vmem>>, vector<1x1x128xf32>
    %17 = vector.shape_cast %16 : vector<1x1x128xf32> to vector<1x128xf32>
    %18 = vector.shape_cast %15 : vector<1x128xf32> to vector<1x1x128xf32>
    tpu.vector_store %arg4[%c0_14, %c0_15, %c0_16], %18 {strides = array<i32>} : memref<1x2x128xf32, #tpu.memory_space<vmem>>, vector<1x1x128xf32>,
    %19 = arith.mulf %10, %10 : vector<128x128xf32>
    %cst_17 = arith.constant dense<0.000000e+00> : vector<128xf32>
    %20 = vector.multi_reduction <add>, %19, %cst_17 [0] : vector<128x128xf32> to vector<128xf32>
    %21 = vector.shape_cast %20 : vector<128xf32> to vector<1x128xf32>
    %c0_18 = arith.constant 0 : index
    %c1_19 = arith.constant 1 : index
    %c0_20 = arith.constant 0 : index
    %22 = vector.load %arg4[%c0_18, %c1_19, %c0_20] : memref<1x2x128xf32, #tpu.memory_space<vmem>>, vector<1x1x128xf32>
    %23 = vector.shape_cast %22 : vector<1x1x128xf32> to vector<1x128xf32>
    %24 = vector.shape_cast %21 : vector<1x128xf32> to vector<1x1x128xf32>
    tpu.vector_store %arg4[%c0_18, %c1_19, %c0_20], %24 {strides = array<i32>} : memref<1x2x128xf32, #tpu.memory_space<vmem>>, vector<1x1x128xf32>,
    return
  }
  func.func @transform_0(%arg0: i32) -> (i32, i32, i32) {
    %c0_i32 = arith.constant 0 : i32
    %c0_i32_0 = arith.constant 0 : i32
    %c0_i32_1 = arith.constant 0 : i32
    return %arg0, %c0_i32, %c0_i32_0 : i32, i32, i32
  }
  func.func @transform_1(%arg0: i32) -> (i32, i32, i32) {
    %c0_i32 = arith.constant 0 : i32
    %c0_i32_0 = arith.constant 0 : i32
    %c0_i32_1 = arith.constant 0 : i32
    %c0_i32_2 = arith.constant 0 : i32
    return %c0_i32, %c0_i32_0, %c0_i32_1 : i32, i32, i32
  }
  func.func @transform_2(%arg0: i32) -> (i32, i32, i32) {
    %c0_i32 = arith.constant 0 : i32
    %c0_i32_0 = arith.constant 0 : i32
    %c0_i32_1 = arith.constant 0 : i32
    return %arg0, %c0_i32, %c0_i32_0 : i32, i32, i32
  }
  func.func @transform_3(%arg0: i32) -> (i32, i32, i32) {
    %c0_i32 = arith.constant 0 : i32
    %c0_i32_0 = arith.constant 0 : i32
    %c0_i32_1 = arith.constant 0 : i32
    return %arg0, %c0_i32, %c0_i32_0 : i32, i32, i32
  }
}

module attributes {stable_mosaic.version = 11 : i64} {
  func.func @_conv_s2_kernel(%arg0: i32, %arg1: memref<1x80x1024xbf16, #tpu.memory_space<vmem>>, %arg2: memref<2x1024x128xbf16, #tpu.memory_space<vmem>>, %arg3: memref<1x64x128xf32, #tpu.memory_space<vmem>>, %arg4: memref<1x2x128xf32, #tpu.memory_space<vmem>>) attributes {dimension_semantics = [#tpu.dimension_semantics<parallel>], iteration_bounds = array<i64: 2>, scalar_prefetch = 0 : i64, scratch_operands = 0 : i64, tpu.core_type = #tpu.core_type<tc>, window_params = [{transform_indices = @transform_0, window_bounds = array<i64: 1, 80, 1024>}, {pipeline_mode = #tpu.pipeline_mode<synchronous>, transform_indices = @transform_1, window_bounds = array<i64: 2, 1024, 128>}, {transform_indices = @transform_2, window_bounds = array<i64: 1, 64, 128>}, {transform_indices = @transform_3, window_bounds = array<i64: 1, 2, 128>}]} {
    %c0 = arith.constant 0 : index
    %c0_0 = arith.constant 0 : index
    %c0_1 = arith.constant 0 : index
    %0 = vector.load %arg1[%c0, %c0_0, %c0_1] : memref<1x80x1024xbf16, #tpu.memory_space<vmem>>, vector<1x64x1024xbf16>
    %1 = vector.shape_cast %0 : vector<1x64x1024xbf16> to vector<64x1024xbf16>
    %c0_2 = arith.constant 0 : index
    %c16 = arith.constant 16 : index
    %c0_3 = arith.constant 0 : index
    %2 = vector.load %arg1[%c0_2, %c16, %c0_3] : memref<1x80x1024xbf16, #tpu.memory_space<vmem>>, vector<1x64x1024xbf16>
    %3 = vector.shape_cast %2 : vector<1x64x1024xbf16> to vector<64x1024xbf16>
    %c0_4 = arith.constant 0 : index
    %c0_5 = arith.constant 0 : index
    %c0_6 = arith.constant 0 : index
    %4 = vector.load %arg2[%c0_4, %c0_5, %c0_6] : memref<2x1024x128xbf16, #tpu.memory_space<vmem>>, vector<1x1024x128xbf16>
    %5 = vector.shape_cast %4 : vector<1x1024x128xbf16> to vector<1024x128xbf16>
    %cst = arith.constant dense<0.000000e+00> : vector<64x128xf32>
    %6 = tpu.matmul %1, %5, %cst {dimension_numbers = #tpu.dot_dimension_numbers<[1], [0], [0], [1], [0, 0, 1, 1], [], []>} : vector<64x1024xbf16>, vector<1024x128xbf16>, vector<64x128xf32> -> vector<64x128xf32>
    %c1 = arith.constant 1 : index
    %c0_7 = arith.constant 0 : index
    %c0_8 = arith.constant 0 : index
    %7 = vector.load %arg2[%c1, %c0_7, %c0_8] : memref<2x1024x128xbf16, #tpu.memory_space<vmem>>, vector<1x1024x128xbf16>
    %8 = vector.shape_cast %7 : vector<1x1024x128xbf16> to vector<1024x128xbf16>
    %cst_9 = arith.constant dense<0.000000e+00> : vector<64x128xf32>
    %9 = tpu.matmul %3, %8, %cst_9 {dimension_numbers = #tpu.dot_dimension_numbers<[1], [0], [0], [1], [0, 0, 1, 1], [], []>} : vector<64x1024xbf16>, vector<1024x128xbf16>, vector<64x128xf32> -> vector<64x128xf32>
    %10 = arith.addf %6, %9 : vector<64x128xf32>
    %c0_10 = arith.constant 0 : index
    %c0_11 = arith.constant 0 : index
    %c0_12 = arith.constant 0 : index
    %11 = vector.load %arg3[%c0_10, %c0_11, %c0_12] : memref<1x64x128xf32, #tpu.memory_space<vmem>>, vector<1x64x128xf32>
    %12 = vector.shape_cast %11 : vector<1x64x128xf32> to vector<64x128xf32>
    %13 = vector.shape_cast %10 : vector<64x128xf32> to vector<1x64x128xf32>
    tpu.vector_store %arg3[%c0_10, %c0_11, %c0_12], %13 {strides = array<i32>} : memref<1x64x128xf32, #tpu.memory_space<vmem>>, vector<1x64x128xf32>,
    %cst_13 = arith.constant dense<0.000000e+00> : vector<128xf32>
    %14 = vector.multi_reduction <add>, %10, %cst_13 [0] : vector<64x128xf32> to vector<128xf32>
    %15 = vector.shape_cast %14 : vector<128xf32> to vector<1x128xf32>
    %c0_14 = arith.constant 0 : index
    %c0_15 = arith.constant 0 : index
    %c0_16 = arith.constant 0 : index
    %16 = vector.load %arg4[%c0_14, %c0_15, %c0_16] : memref<1x2x128xf32, #tpu.memory_space<vmem>>, vector<1x1x128xf32>
    %17 = vector.shape_cast %16 : vector<1x1x128xf32> to vector<1x128xf32>
    %18 = vector.shape_cast %15 : vector<1x128xf32> to vector<1x1x128xf32>
    tpu.vector_store %arg4[%c0_14, %c0_15, %c0_16], %18 {strides = array<i32>} : memref<1x2x128xf32, #tpu.memory_space<vmem>>, vector<1x1x128xf32>,
    %19 = arith.mulf %10, %10 : vector<64x128xf32>
    %cst_17 = arith.constant dense<0.000000e+00> : vector<128xf32>
    %20 = vector.multi_reduction <add>, %19, %cst_17 [0] : vector<64x128xf32> to vector<128xf32>
    %21 = vector.shape_cast %20 : vector<128xf32> to vector<1x128xf32>
    %c0_18 = arith.constant 0 : index
    %c1_19 = arith.constant 1 : index
    %c0_20 = arith.constant 0 : index
    %22 = vector.load %arg4[%c0_18, %c1_19, %c0_20] : memref<1x2x128xf32, #tpu.memory_space<vmem>>, vector<1x1x128xf32>
    %23 = vector.shape_cast %22 : vector<1x1x128xf32> to vector<1x128xf32>
    %24 = vector.shape_cast %21 : vector<1x128xf32> to vector<1x1x128xf32>
    tpu.vector_store %arg4[%c0_18, %c1_19, %c0_20], %24 {strides = array<i32>} : memref<1x2x128xf32, #tpu.memory_space<vmem>>, vector<1x1x128xf32>,
    return
  }
  func.func @transform_0(%arg0: i32) -> (i32, i32, i32) {
    %c0_i32 = arith.constant 0 : i32
    %c0_i32_0 = arith.constant 0 : i32
    %c0_i32_1 = arith.constant 0 : i32
    return %arg0, %c0_i32, %c0_i32_0 : i32, i32, i32
  }
  func.func @transform_1(%arg0: i32) -> (i32, i32, i32) {
    %c0_i32 = arith.constant 0 : i32
    %c0_i32_0 = arith.constant 0 : i32
    %c0_i32_1 = arith.constant 0 : i32
    %c0_i32_2 = arith.constant 0 : i32
    return %c0_i32, %c0_i32_0, %c0_i32_1 : i32, i32, i32
  }
  func.func @transform_2(%arg0: i32) -> (i32, i32, i32) {
    %c0_i32 = arith.constant 0 : i32
    %c0_i32_0 = arith.constant 0 : i32
    %c0_i32_1 = arith.constant 0 : i32
    return %arg0, %c0_i32, %c0_i32_0 : i32, i32, i32
  }
  func.func @transform_3(%arg0: i32) -> (i32, i32, i32) {
    %c0_i32 = arith.constant 0 : i32
    %c0_i32_0 = arith.constant 0 : i32
    %c0_i32_1 = arith.constant 0 : i32
    return %arg0, %c0_i32, %c0_i32_0 : i32, i32, i32
  }
}

module attributes {stable_mosaic.version = 11 : i64} {
  func.func @_head_kernel(%arg0: i32, %arg1: memref<2x2048xbf16, #tpu.memory_space<vmem>>, %arg2: memref<2048x128xbf16, #tpu.memory_space<vmem>>, %arg3: memref<2x128xf32, #tpu.memory_space<vmem>>) attributes {dimension_semantics = [#tpu.dimension_semantics<arbitrary>], iteration_bounds = array<i64: 1>, scalar_prefetch = 0 : i64, scratch_operands = 0 : i64, tpu.core_type = #tpu.core_type<tc>, window_params = [{pipeline_mode = #tpu.pipeline_mode<synchronous>, transform_indices = @transform_0, window_bounds = array<i64: 2, 2048>}, {pipeline_mode = #tpu.pipeline_mode<synchronous>, transform_indices = @transform_1, window_bounds = array<i64: 2048, 128>}, {pipeline_mode = #tpu.pipeline_mode<synchronous>, transform_indices = @transform_2, window_bounds = array<i64: 2, 128>}]} {
    %c0 = arith.constant 0 : index
    %c0_0 = arith.constant 0 : index
    %0 = vector.load %arg1[%c0, %c0_0] : memref<2x2048xbf16, #tpu.memory_space<vmem>>, vector<2x2048xbf16>
    %c0_1 = arith.constant 0 : index
    %c0_2 = arith.constant 0 : index
    %1 = vector.load %arg2[%c0_1, %c0_2] : memref<2048x128xbf16, #tpu.memory_space<vmem>>, vector<2048x128xbf16>
    %cst = arith.constant dense<0.000000e+00> : vector<2x128xf32>
    %2 = tpu.matmul %0, %1, %cst {dimension_numbers = #tpu.dot_dimension_numbers<[1], [0], [0], [1], [0, 0, 1, 1], [], []>} : vector<2x2048xbf16>, vector<2048x128xbf16>, vector<2x128xf32> -> vector<2x128xf32>
    %3 = arith.negf %2 : vector<2x128xf32>
    %4 = math.exp %3 : vector<2x128xf32>
    %cst_3 = arith.constant 1.000000e+00 : f32
    %5 = vector.broadcast %cst_3 : f32 to vector<2x128xf32>
    %6 = arith.addf %5, %4 : vector<2x128xf32>
    %7 = arith.divf %5, %6 : vector<2x128xf32>
    %c0_4 = arith.constant 0 : index
    %c0_5 = arith.constant 0 : index
    %8 = vector.load %arg3[%c0_4, %c0_5] : memref<2x128xf32, #tpu.memory_space<vmem>>, vector<2x128xf32>
    tpu.vector_store %arg3[%c0_4, %c0_5], %7 {strides = array<i32>} : memref<2x128xf32, #tpu.memory_space<vmem>>, vector<2x128xf32>,
    return
  }
  func.func @transform_0(%arg0: i32) -> (i32, i32) {
    %c0_i32 = arith.constant 0 : i32
    %c0_i32_0 = arith.constant 0 : i32
    %c0_i32_1 = arith.constant 0 : i32
    return %c0_i32, %c0_i32_0 : i32, i32
  }
  func.func @transform_1(%arg0: i32) -> (i32, i32) {
    %c0_i32 = arith.constant 0 : i32
    %c0_i32_0 = arith.constant 0 : i32
    %c0_i32_1 = arith.constant 0 : i32
    return %c0_i32, %c0_i32_0 : i32, i32
  }
  func.func @transform_2(%arg0: i32) -> (i32, i32) {
    %c0_i32 = arith.constant 0 : i32
    %c0_i32_0 = arith.constant 0 : i32
    %c0_i32_1 = arith.constant 0 : i32
    return %c0_i32, %c0_i32_0 : i32, i32
  }
}

</mosaic_0001>

<llo_original>
// kernel: discriminator_pallas.5
$region0: #{discriminator_pallas.5}
  #allocation0 [shape = 'u32[]', space=smem, size = 0x4, offset = 0x4, fixed_abs, tag = 'smem constant byte address 0x4 - core index']
  #allocation1 [shape = 'u32[144,128]{1,0:T(1,128)}', space=vmem, size = 0x12000, scoped, tag = 'internal scratch']
  %s0 = inlined_call_operand.vmem [shape: bf16[2,1056,24], index: 0, kind: input, shape index: {}]
  %s1 = inlined_call_operand.vmem [shape: bf16[2,24,128], index: 1, kind: input, shape index: {}]
  %s2 = inlined_call_operand.vmem [shape: f32[2,1024,128], index: 2, kind: output, shape index: {0}]
  %s3 = inlined_call_operand.hbm [shape: f32[2,2,128], index: 3, kind: output, shape index: {1}]
  %4 = xla_tuple %s2, %s3
  %s5 = sld [smem:[#allocation0]]
  $region49: #{discriminator_pallas.5} parent=0
    _
  %s7 = ssub.s32 1, %s5
  %s8 = scalar_select 0, %s7, %s5
  $region1: #{discriminator_pallas.5} parent=0
    #allocation2 [shape = 'u8[2048]{0}', space=vmem, size = 0x800, scoped, tag = 'output window, operand 1']
    #allocation3 [shape = 's32[2]{0}', space=sflag, size = 0x8, scoped, tag = 'scoped memory for discriminator_pallas.5']
    %9 = vsyncpa [#allocation3], 0
    %s10 = scalar_lea.sflag [#allocation3], 1
    %11 = vsyncpa %s10, 0
    loop: start=0, step=1, limit=4
    $region2: #{discriminator_pallas.5} parent=1 // loop_pre_header
      _
    $region3: #{discriminator_pallas.5} parent=1 // loop_header
      %s13 = sphi 0, %s17
      %p14 = scmp.ge.s32.totalorder %s13, 4
      %s23 = sphi 0, %s25
      %s26 = sphi 0, %s23
      %s27 = sphi 0, %s26
      %s43 = sphi 0, %s27
      %s47 = sphi 0, %s47
      %s49 = sphi 0, %s47
      %s50 = sphi 0, %s49
      %s64 = sphi 0, %s50
      %s70 = sphi 0, %s72
      %s73 = sphi 0, %s70
      %s74 = sphi 0, %s73
      %s90 = sphi 0, %s74
      %s96 = sphi 0, %s98
      %s99 = sphi 0, %s96
      %s100 = sphi 0, %s99
      %s116 = sphi 0, %s100
    $region4: #{discriminator_pallas.5} parent=1 // loop_header_branch
      %16 = sbr.rel (%p14) target = $region8
    $region5: #{discriminator_pallas.5} parent=1 // loop_body
      %s18 = ssub.s32 %s13, 1
      %s19 = ssub.s32 %s13, 2
      %s20 = sadd.s32 %s13, 1
      %s21 = ssub.s32 %s13, %s20
      %p22 = scmp.eq.s32.totalorder %s21, 0
      %s24 = sadd.s32 %s23, 1
      %s25 = scalar_select %p22, %s23, %s24
      %p28 = pneg %p22
      %p29 = scmp.eq.s32.totalorder %s13, 1
      %p30 = por %p28, %p29
      %p31 = scmp.ne.s32.totalorder %s23, %s26
      %p32 = scmp.eq.s32.totalorder %s13, 0
      %p33 = por %p31, %p32
      %p34 = scmp.ne.s32.totalorder %s23, %s26
      %p35 = scmp.eq.s32.totalorder %s18, 1
      %p36 = por %p34, %p35
      %p37 = scmp.ne.s32.totalorder %s26, %s27
      %p38 = scmp.eq.s32.totalorder %s18, 0
      %p39 = por %p37, %p38
      %p40 = scmp.ne.s32.totalorder %s26, %s27
      %p41 = scmp.eq.s32.totalorder %s19, 1
      %p42 = por %p40, %p41
      %p44 = scmp.ne.s32.totalorder %s27, %s43
      %p45 = scmp.eq.s32.totalorder %s19, 0
      %p46 = por %p44, %p45
      %s48 = sadd.s32 %s47, 1
      %p51 = scmp.eq.s32.totalorder %s13, 1
      %p52 = scmp.ne.s32.totalorder %s47, %s49
      %p53 = scmp.eq.s32.totalorder %s13, 0
      %p54 = por %p52, %p53
      %p55 = scmp.ne.s32.totalorder %s47, %s49
      %p56 = scmp.eq.s32.totalorder %s18, 1
      %p57 = por %p55, %p56
      %p58 = scmp.ne.s32.totalorder %s49, %s50
      %p59 = scmp.eq.s32.totalorder %s18, 0
      %p60 = por %p58, %p59
      %p61 = scmp.ne.s32.totalorder %s49, %s50
      %p62 = scmp.eq.s32.totalorder %s19, 1
      %p63 = por %p61, %p62
      %p65 = scmp.ne.s32.totalorder %s50, %s64
      %p66 = scmp.eq.s32.totalorder %s19, 0
      %p67 = por %p65, %p66
      %s68 = ssub.s32 %s13, %s20
      %p69 = scmp.eq.s32.totalorder %s68, 0
      %s71 = sadd.s32 %s70, 1
      %s72 = scalar_select %p69, %s70, %s71
      %p75 = pneg %p69
      %p76 = scmp.eq.s32.totalorder %s13, 1
      %p77 = por %p75, %p76
      %p78 = scmp.ne.s32.totalorder %s70, %s73
      %p79 = scmp.eq.s32.totalorder %s13, 0
      %p80 = por %p78, %p79
      %p81 = scmp.ne.s32.totalorder %s70, %s73
      %p82 = scmp.eq.s32.totalorder %s18, 1
      %p83 = por %p81, %p82
      %p84 = scmp.ne.s32.totalorder %s73, %s74
      %p85 = scmp.eq.s32.totalorder %s18, 0
      %p86 = por %p84, %p85
      %p87 = scmp.ne.s32.totalorder %s73, %s74
      %p88 = scmp.eq.s32.totalorder %s19, 1
      %p89 = por %p87, %p88
      %p91 = scmp.ne.s32.totalorder %s74, %s90
      %p92 = scmp.eq.s32.totalorder %s19, 0
      %p93 = por %p91, %p92
      %s94 = ssub.s32 %s13, %s20
      %p95 = scmp.eq.s32.totalorder %s94, 0
      %s97 = sadd.s32 %s96, 1
      %s98 = scalar_select %p95, %s96, %s97
      %p101 = pneg %p95
      %p102 = scmp.eq.s32.totalorder %s13, 1
      %p103 = por %p101, %p102
      %p104 = scmp.ne.s32.totalorder %s96, %s99
      %p105 = scmp.eq.s32.totalorder %s13, 0
      %p106 = por %p104, %p105
      %p107 = scmp.ne.s32.totalorder %s96, %s99
      %p108 = scmp.eq.s32.totalorder %s18, 1
      %p109 = por %p107, %p108
      %p110 = scmp.ne.s32.totalorder %s99, %s100
      %p111 = scmp.eq.s32.totalorder %s18, 0
      %p112 = por %p110, %p111
      %p113 = scmp.ne.s32.totalorder %s99, %s100
      %p114 = scmp.eq.s32.totalorder %s19, 1
      %p115 = por %p113, %p114
      %p117 = scmp.ne.s32.totalorder %s100, %s116
      %p118 = scmp.eq.s32.totalorder %s19, 0
      %p119 = por %p117, %p118
      %p120 = scmp.le.s32.totalorder 1, %s13
      %p121 = scmp.lt.s32.totalorder %s13, 3
      %p122 = pnand %p120, %p121
      %p123 = pneg %p122
      // Predicated region
      $region9: #{discriminator_pallas.5} parent=5 // pred_check
        _
      $region10: #{discriminator_pallas.5} parent=5 // pred_check_branch
        %125 = sbr.rel (%p122) target = $region12
      $region11: #{discriminator_pallas.5} parent=5 // pred_region
        %s126 = ssub.s32 %s13, 1
        // Predicated region
        $region13: #{discriminator_pallas.5} parent=11 // pred_check
          %p127 = pneg %p60
        $region14: #{discriminator_pallas.5} parent=11 // pred_check_branch
          %129 = sbr.rel (%p127) target = $region16
        $region15: #{discriminator_pallas.5} parent=11 // pred_region
          _
        $region16: #{discriminator_pallas.5} parent=11 // pred_fallthru
          _
      $region12: #{discriminator_pallas.5} parent=5 // pred_fallthru
        _
      %p130 = scmp.lt.s32.totalorder %s13, 2
      // Predicated region
      $region17: #{discriminator_pallas.5} parent=5 // pred_check
        %p131 = pneg %p130
      $region18: #{discriminator_pallas.5} parent=5 // pred_check_branch
        %133 = sbr.rel (%p131) target = $region20
      $region19: #{discriminator_pallas.5} parent=5 // pred_region
        // Predicated region
        $region21: #{discriminator_pallas.5} parent=19 // pred_check
          %p134 = pneg %p33
        $region22: #{discriminator_pallas.5} parent=19 // pred_check_branch
          %136 = sbr.rel (%p134) target = $region24
        $region23: #{discriminator_pallas.5} parent=19 // pred_region
          %p137 = scmp.lt.s32.totalorder %s13, 1
          %s138 = scalar_select %p137, %s13, 1
          %s139 = smul.addr %s138, 132
          %s140 = smul.addr %s139, 4
          %s141 = scalar_lea.vmem %s0, %s140
        $region24: #{discriminator_pallas.5} parent=19 // pred_fallthru
          _
      $region20: #{discriminator_pallas.5} parent=5 // pred_fallthru
        _
      %p142 = scmp.le.s32.totalorder 1, %s13
      %p143 = scmp.lt.s32.totalorder %s13, 3
      %p144 = pnand %p142, %p143
      %p145 = pneg %p144
      // Predicated region
      $region25: #{discriminator_pallas.5} parent=5 // pred_check
        _
      $region26: #{discriminator_pallas.5} parent=5 // pred_check_branch
        %147 = sbr.rel (%p144) target = $region28
      $region27: #{discriminator_pallas.5} parent=5 // pred_region
        %s148 = ssub.s32 %s13, 1
        %p149 = scmp.lt.s32.totalorder %s18, 1
        %s150 = scalar_select %p149, %s18, 1
        %s151 = smul.addr %s150, 132
        %s152 = smul.addr %s151, 4
        %s153 = scalar_lea.vmem %s0, %s152
        %p154 = pneg %p39
        %p155 = pneg %p36
        %p156 = pneg %p60
        %p157 = pneg %p57
        %p158 = pneg %p86
        %p159 = pneg %p83
        %p160 = scmp.lt.s32.totalorder %s18, 1
        %s161 = scalar_select %p160, %s18, 1
        %s162 = smul.addr %s161, 128
        %s163 = smul.addr %s162, 8
        %s164 = scalar_lea.vmem %s2, %s163
        %p165 = pneg %p112
        %p166 = pneg %p109
        %s167 = sand.u32 %s99, 1
        %s168 = scalar_lea.sflag [#allocation3], %s167
        %s169 = sand.u32 %s99, 1
        %s170 = smul.addr %s169, 2
        %s171 = scalar_lea.vmem [#allocation2], %s170
        %p172 = scmp.lt.s32.totalorder %s18, 1
        %s173 = scalar_select %p172, %s18, 1
        %s174 = smul.addr %s173, 132
        %s175 = smul.addr %s174, 4
        %s176 = scalar_lea.vmem %s0, %s175
        %p177 = scmp.lt.s32.totalorder %s18, 1
        %s178 = scalar_select %p177, %s18, 1
        %s179 = smul.addr %s178, 128
        %s180 = smul.addr %s179, 8
        %s181 = scalar_lea.vmem %s2, %s180
        %v183 = vld [vmem:[%s176] sm:$0xf]
        %v184 = vld [vmem:[%s176 + $0x4] sm:$0xf]
        %v185 = vld [vmem:[%s176 + $0x8] sm:$0xf]
        %v186 = vld [vmem:[%s176 + $0xc] sm:$0xf]
        %v187 = vld [vmem:[%s176 + $0x10] sm:$0xf]
        %v188 = vld [vmem:[%s176 + $0x14] sm:$0xf]
        %v189 = vld [vmem:[%s176 + $0x18] sm:$0xf]
        %v190 = vld [vmem:[%s176 + $0x1c] sm:$0xf]
        %v191 = vld [vmem:[%s176 + $0x20] sm:$0xf]
        %v192 = vld [vmem:[%s176 + $0x24] sm:$0xf]
        %v193 = vld [vmem:[%s176 + $0x28] sm:$0xf]
        %v194 = vld [vmem:[%s176 + $0x2c] sm:$0xf]
        %v195 = vld [vmem:[%s176 + $0x30] sm:$0xf]
        %v196 = vld [vmem:[%s176 + $0x34] sm:$0xf]
        %v197 = vld [vmem:[%s176 + $0x38] sm:$0xf]
        %v198 = vld [vmem:[%s176 + $0x3c] sm:$0xf]
        %v199 = vld [vmem:[%s176 + $0x40] sm:$0xf]
        %v200 = vld [vmem:[%s176 + $0x44] sm:$0xf]
        %v201 = vld [vmem:[%s176 + $0x48] sm:$0xf]
        %v202 = vld [vmem:[%s176 + $0x4c] sm:$0xf]
        %v203 = vld [vmem:[%s176 + $0x50] sm:$0xf]
        %v204 = vld [vmem:[%s176 + $0x54] sm:$0xf]
        %v205 = vld [vmem:[%s176 + $0x58] sm:$0xf]
        %v206 = vld [vmem:[%s176 + $0x5c] sm:$0xf]
        %v207 = vld [vmem:[%s176 + $0x60] sm:$0xf]
        %v208 = vld [vmem:[%s176 + $0x64] sm:$0xf]
        %v209 = vld [vmem:[%s176 + $0x68] sm:$0xf]
        %v210 = vld [vmem:[%s176 + $0x6c] sm:$0xf]
        %v211 = vld [vmem:[%s176 + $0x70] sm:$0xf]
        %v212 = vld [vmem:[%s176 + $0x74] sm:$0xf]
        %v213 = vld [vmem:[%s176 + $0x78] sm:$0xf]
        %v214 = vld [vmem:[%s176 + $0x7c] sm:$0xf]
        %v215 = vld [vmem:[%s176 + $0x80] sm:$0xf]
        %v216 = vld [vmem:[%s176 + $0x84] sm:$0xf]
        %v217 = vld [vmem:[%s176 + $0x88] sm:$0xf]
        %v218 = vld [vmem:[%s176 + $0x8c] sm:$0xf]
        %v219 = vld [vmem:[%s176 + $0x90] sm:$0xf]
        %v220 = vld [vmem:[%s176 + $0x94] sm:$0xf]
        %v221 = vld [vmem:[%s176 + $0x98] sm:$0xf]
        %v222 = vld [vmem:[%s176 + $0x9c] sm:$0xf]
        %v223 = vld [vmem:[%s176 + $0xa0] sm:$0xf]
        %v224 = vld [vmem:[%s176 + $0xa4] sm:$0xf]
        %v225 = vld [vmem:[%s176 + $0xa8] sm:$0xf]
        %v226 = vld [vmem:[%s176 + $0xac] sm:$0xf]
        %v227 = vld [vmem:[%s176 + $0xb0] sm:$0xf]
        %v228 = vld [vmem:[%s176 + $0xb4] sm:$0xf]
        %v229 = vld [vmem:[%s176 + $0xb8] sm:$0xf]
        %v230 = vld [vmem:[%s176 + $0xbc] sm:$0xf]
        %v231 = vld [vmem:[%s176 + $0xc0] sm:$0xf]
        %v232 = vld [vmem:[%s176 + $0xc4] sm:$0xf]
        %v233 = vld [vmem:[%s176 + $0xc8] sm:$0xf]
        %v234 = vld [vmem:[%s176 + $0xcc] sm:$0xf]
        %v235 = vld [vmem:[%s176 + $0xd0] sm:$0xf]
        %v236 = vld [vmem:[%s176 + $0xd4] sm:$0xf]
        %v237 = vld [vmem:[%s176 + $0xd8] sm:$0xf]
        %v238 = vld [vmem:[%s176 + $0xdc] sm:$0xf]
        %v239 = vld [vmem:[%s176 + $0xe0] sm:$0xf]
        %v240 = vld [vmem:[%s176 + $0xe4] sm:$0xf]
        %v241 = vld [vmem:[%s176 + $0xe8] sm:$0xf]
        %v242 = vld [vmem:[%s176 + $0xec] sm:$0xf]
        %v243 = vld [vmem:[%s176 + $0xf0] sm:$0xf]
        %v244 = vld [vmem:[%s176 + $0xf4] sm:$0xf]
        %v245 = vld [vmem:[%s176 + $0xf8] sm:$0xf]
        %v246 = vld [vmem:[%s176 + $0xfc] sm:$0xf]
        %v247 = vld [vmem:[%s176 + $0x100] sm:$0xf]
        %v248 = vld [vmem:[%s176 + $0x104] sm:$0xf]
        %v249 = vld [vmem:[%s176 + $0x108] sm:$0xf]
        %v250 = vld [vmem:[%s176 + $0x10c] sm:$0xf]
        %v251 = vld [vmem:[%s176 + $0x110] sm:$0xf]
        %v252 = vld [vmem:[%s176 + $0x114] sm:$0xf]
        %v253 = vld [vmem:[%s176 + $0x118] sm:$0xf]
        %v254 = vld [vmem:[%s176 + $0x11c] sm:$0xf]
        %v255 = vld [vmem:[%s176 + $0x120] sm:$0xf]
        %v256 = vld [vmem:[%s176 + $0x124] sm:$0xf]
        %v257 = vld [vmem:[%s176 + $0x128] sm:$0xf]
        %v258 = vld [vmem:[%s176 + $0x12c] sm:$0xf]
        %v259 = vld [vmem:[%s176 + $0x130] sm:$0xf]
        %v260 = vld [vmem:[%s176 + $0x134] sm:$0xf]
        %v261 = vld [vmem:[%s176 + $0x138] sm:$0xf]
        %v262 = vld [vmem:[%s176 + $0x13c] sm:$0xf]
        %v263 = vld [vmem:[%s176 + $0x140] sm:$0xf]
        %v264 = vld [vmem:[%s176 + $0x144] sm:$0xf]
        %v265 = vld [vmem:[%s176 + $0x148] sm:$0xf]
        %v266 = vld [vmem:[%s176 + $0x14c] sm:$0xf]
        %v267 = vld [vmem:[%s176 + $0x150] sm:$0xf]
        %v268 = vld [vmem:[%s176 + $0x154] sm:$0xf]
        %v269 = vld [vmem:[%s176 + $0x158] sm:$0xf]
        %v270 = vld [vmem:[%s176 + $0x15c] sm:$0xf]
        %v271 = vld [vmem:[%s176 + $0x160] sm:$0xf]
        %v272 = vld [vmem:[%s176 + $0x164] sm:$0xf]
        %v273 = vld [vmem:[%s176 + $0x168] sm:$0xf]
        %v274 = vld [vmem:[%s176 + $0x16c] sm:$0xf]
        %v275 = vld [vmem:[%s176 + $0x170] sm:$0xf]
        %v276 = vld [vmem:[%s176 + $0x174] sm:$0xf]
        %v277 = vld [vmem:[%s176 + $0x178] sm:$0xf]
        %v278 = vld [vmem:[%s176 + $0x17c] sm:$0xf]
        %v279 = vld [vmem:[%s176 + $0x180] sm:$0xf]
        %v280 = vld [vmem:[%s176 + $0x184] sm:$0xf]
        %v281 = vld [vmem:[%s176 + $0x188] sm:$0xf]
        %v282 = vld [vmem:[%s176 + $0x18c] sm:$0xf]
        %v283 = vld [vmem:[%s176 + $0x190] sm:$0xf]
        %v284 = vld [vmem:[%s176 + $0x194] sm:$0xf]
        %v285 = vld [vmem:[%s176 + $0x198] sm:$0xf]
        %v286 = vld [vmem:[%s176 + $0x19c] sm:$0xf]
        %v287 = vld [vmem:[%s176 + $0x1a0] sm:$0xf]
        %v288 = vld [vmem:[%s176 + $0x1a4] sm:$0xf]
        %v289 = vld [vmem:[%s176 + $0x1a8] sm:$0xf]
        %v290 = vld [vmem:[%s176 + $0x1ac] sm:$0xf]
        %v291 = vld [vmem:[%s176 + $0x1b0] sm:$0xf]
        %v292 = vld [vmem:[%s176 + $0x1b4] sm:$0xf]
        %v293 = vld [vmem:[%s176 + $0x1b8] sm:$0xf]
        %v294 = vld [vmem:[%s176 + $0x1bc] sm:$0xf]
        %v295 = vld [vmem:[%s176 + $0x1c0] sm:$0xf]
        %v296 = vld [vmem:[%s176 + $0x1c4] sm:$0xf]
        %v297 = vld [vmem:[%s176 + $0x1c8] sm:$0xf]
        %v298 = vld [vmem:[%s176 + $0x1cc] sm:$0xf]
        %v299 = vld [vmem:[%s176 + $0x1d0] sm:$0xf]
        %v300 = vld [vmem:[%s176 + $0x1d4] sm:$0xf]
        %v301 = vld [vmem:[%s176 + $0x1d8] sm:$0xf]
        %v302 = vld [vmem:[%s176 + $0x1dc] sm:$0xf]
        %v303 = vld [vmem:[%s176 + $0x1e0] sm:$0xf]
        %v304 = vld [vmem:[%s176 + $0x1e4] sm:$0xf]
        %v305 = vld [vmem:[%s176 + $0x1e8] sm:$0xf]
        %v306 = vld [vmem:[%s176 + $0x1ec] sm:$0xf]
        %v307 = vld [vmem:[%s176 + $0x1f0] sm:$0xf]
        %v308 = vld [vmem:[%s176 + $0x1f4] sm:$0xf]
        %v309 = vld [vmem:[%s176 + $0x1f8] sm:$0xf]
        %v310 = vld [vmem:[%s176 + $0x1fc] sm:$0xf]
        %v311 = vld [vmem:[%s176 + $0x200] sm:$0xf]
        %v312 = vld [vmem:[%s176 + $0x204] sm:$0xf]
        %v313 = vld [vmem:[%s176 + $0x208] sm:$0xf]
        %v314 = vld [vmem:[%s176 + $0x20c] sm:$0xf]
        %v315 = vld [vmem:[%s1] sm:$0xf]
        %v316 = vld [vmem:[%s1 + $0x4] sm:$0xf]
        %v317 = vld [vmem:[%s1 + $0x8] sm:$0xf]
        %s318 = scalar_lea.vmem %s1, 12
        %v319 = vld [vmem:[%s318] sm:$0xf]
        %v320 = vld [vmem:[%s318 + $0x4] sm:$0xf]
        %v321 = vld [vmem:[%s318 + $0x8] sm:$0xf]
        %v450 = vunpack.c.l.b16 %v187
        %v451 = vunpack.c.l.b16 %v188
        %v452 = vunpack.c.l.b16 %v189
        %v453 = vunpack.c.l.b16 %v190
        %v454 = vunpack.c.l.b16 %v191
        %v455 = vunpack.c.l.b16 %v192
        %v456 = vunpack.c.l.b16 %v193
        %v457 = vunpack.c.l.b16 %v194
        %v458 = vunpack.c.l.b16 %v195
        %v459 = vunpack.c.l.b16 %v196
        %v460 = vunpack.c.l.b16 %v197
        %v461 = vunpack.c.l.b16 %v198
        %v462 = vunpack.c.l.b16 %v199
        %v463 = vunpack.c.l.b16 %v200
        %v464 = vunpack.c.l.b16 %v201
        %v465 = vunpack.c.l.b16 %v202
        %v466 = vunpack.c.l.b16 %v203
        %v467 = vunpack.c.l.b16 %v204
        %v468 = vunpack.c.l.b16 %v205
        %v469 = vunpack.c.l.b16 %v206
        %v470 = vunpack.c.l.b16 %v207
        %v471 = vunpack.c.l.b16 %v208
        %v472 = vunpack.c.l.b16 %v209
        %v473 = vunpack.c.l.b16 %v210
        %v474 = vunpack.c.l.b16 %v211
        %v475 = vunpack.c.l.b16 %v212
        %v476 = vunpack.c.l.b16 %v213
        %v477 = vunpack.c.l.b16 %v214
        %v478 = vunpack.c.l.b16 %v215
        %v479 = vunpack.c.l.b16 %v216
        %v480 = vunpack.c.l.b16 %v217
        %v481 = vunpack.c.l.b16 %v218
        %v482 = vunpack.c.l.b16 %v219
        %v483 = vunpack.c.l.b16 %v220
        %v484 = vunpack.c.l.b16 %v221
        %v485 = vunpack.c.l.b16 %v222
        %v486 = vunpack.c.l.b16 %v223
        %v487 = vunpack.c.l.b16 %v224
        %v488 = vunpack.c.l.b16 %v225
        %v489 = vunpack.c.l.b16 %v226
        %v490 = vunpack.c.l.b16 %v227
        %v491 = vunpack.c.l.b16 %v228
        %v492 = vunpack.c.l.b16 %v229
        %v493 = vunpack.c.l.b16 %v230
        %v494 = vunpack.c.l.b16 %v231
        %v495 = vunpack.c.l.b16 %v232
        %v496 = vunpack.c.l.b16 %v233
        %v497 = vunpack.c.l.b16 %v234
        %v498 = vunpack.c.l.b16 %v235
        %v499 = vunpack.c.l.b16 %v236
        %v500 = vunpack.c.l.b16 %v237
        %v501 = vunpack.c.l.b16 %v238
        %v502 = vunpack.c.l.b16 %v239
        %v503 = vunpack.c.l.b16 %v240
        %v504 = vunpack.c.l.b16 %v241
        %v505 = vunpack.c.l.b16 %v242
        %v506 = vunpack.c.l.b16 %v243
        %v507 = vunpack.c.l.b16 %v244
        %v508 = vunpack.c.l.b16 %v245
        %v509 = vunpack.c.l.b16 %v246
        %v510 = vunpack.c.l.b16 %v247
        %v511 = vunpack.c.l.b16 %v248
        %v512 = vunpack.c.l.b16 %v249
        %v513 = vunpack.c.l.b16 %v250
        %v514 = vunpack.c.l.b16 %v251
        %v515 = vunpack.c.l.b16 %v252
        %v516 = vunpack.c.l.b16 %v253
        %v517 = vunpack.c.l.b16 %v254
        %v518 = vunpack.c.l.b16 %v255
        %v519 = vunpack.c.l.b16 %v256
        %v520 = vunpack.c.l.b16 %v257
        %v521 = vunpack.c.l.b16 %v258
        %v522 = vunpack.c.l.b16 %v259
        %v523 = vunpack.c.l.b16 %v260
        %v524 = vunpack.c.l.b16 %v261
        %v525 = vunpack.c.l.b16 %v262
        %v526 = vunpack.c.l.b16 %v263
        %v527 = vunpack.c.l.b16 %v264
        %v528 = vunpack.c.l.b16 %v265
        %v529 = vunpack.c.l.b16 %v266
        %v530 = vunpack.c.l.b16 %v267
        %v531 = vunpack.c.l.b16 %v268
        %v532 = vunpack.c.l.b16 %v269
        %v533 = vunpack.c.l.b16 %v270
        %v534 = vunpack.c.l.b16 %v271
        %v535 = vunpack.c.l.b16 %v272
        %v536 = vunpack.c.l.b16 %v273
        %v537 = vunpack.c.l.b16 %v274
        %v538 = vunpack.c.l.b16 %v275
        %v539 = vunpack.c.l.b16 %v276
        %v540 = vunpack.c.l.b16 %v277
        %v541 = vunpack.c.l.b16 %v278
        %v542 = vunpack.c.l.b16 %v279
        %v543 = vunpack.c.l.b16 %v280
        %v544 = vunpack.c.l.b16 %v281
        %v545 = vunpack.c.l.b16 %v282
        %v546 = vunpack.c.l.b16 %v283
        %v547 = vunpack.c.l.b16 %v284
        %v548 = vunpack.c.l.b16 %v285
        %v549 = vunpack.c.l.b16 %v286
        %v550 = vunpack.c.l.b16 %v287
        %v551 = vunpack.c.l.b16 %v288
        %v552 = vunpack.c.l.b16 %v289
        %v553 = vunpack.c.l.b16 %v290
        %v554 = vunpack.c.l.b16 %v291
        %v555 = vunpack.c.l.b16 %v292
        %v556 = vunpack.c.l.b16 %v293
        %v557 = vunpack.c.l.b16 %v294
        %v558 = vunpack.c.l.b16 %v295
        %v559 = vunpack.c.l.b16 %v296
        %v560 = vunpack.c.l.b16 %v297
        %v561 = vunpack.c.l.b16 %v298
        %v562 = vunpack.c.l.b16 %v299
        %v563 = vunpack.c.l.b16 %v300
        %v564 = vunpack.c.l.b16 %v301
        %v565 = vunpack.c.l.b16 %v302
        %v566 = vunpack.c.l.b16 %v303
        %v567 = vunpack.c.l.b16 %v304
        %v568 = vunpack.c.l.b16 %v305
        %v569 = vunpack.c.l.b16 %v306
        %v570 = vunpack.c.l.b16 %v307
        %v571 = vunpack.c.l.b16 %v308
        %v572 = vunpack.c.l.b16 %v309
        %v573 = vunpack.c.l.b16 %v310
        %v574 = vunpack.c.l.b16 %v311
        %v575 = vunpack.c.l.b16 %v312
        %v576 = vunpack.c.l.b16 %v313
        %v577 = vunpack.c.l.b16 %v314
        %v578 = vpack.c.b16 %v451, %v450
        %v579 = vpack.c.b16 %v453, %v452
        %v580 = vpack.c.b16 %v455, %v454
        %v581 = vpack.c.b16 %v457, %v456
        %v582 = vpack.c.b16 %v459, %v458
        %v583 = vpack.c.b16 %v461, %v460
        %v584 = vpack.c.b16 %v463, %v462
        %v585 = vpack.c.b16 %v465, %v464
        %v586 = vpack.c.b16 %v467, %v466
        %v587 = vpack.c.b16 %v469, %v468
        %v588 = vpack.c.b16 %v471, %v470
        %v589 = vpack.c.b16 %v473, %v472
        %v590 = vpack.c.b16 %v475, %v474
        %v591 = vpack.c.b16 %v477, %v476
        %v592 = vpack.c.b16 %v479, %v478
        %v593 = vpack.c.b16 %v481, %v480
        %v594 = vpack.c.b16 %v483, %v482
        %v595 = vpack.c.b16 %v485, %v484
        %v596 = vpack.c.b16 %v487, %v486
        %v597 = vpack.c.b16 %v489, %v488
        %v598 = vpack.c.b16 %v491, %v490
        %v599 = vpack.c.b16 %v493, %v492
        %v600 = vpack.c.b16 %v495, %v494
        %v601 = vpack.c.b16 %v497, %v496
        %v602 = vpack.c.b16 %v499, %v498
        %v603 = vpack.c.b16 %v501, %v500
        %v604 = vpack.c.b16 %v503, %v502
        %v605 = vpack.c.b16 %v505, %v504
        %v606 = vpack.c.b16 %v507, %v506
        %v607 = vpack.c.b16 %v509, %v508
        %v608 = vpack.c.b16 %v511, %v510
        %v609 = vpack.c.b16 %v513, %v512
        %v610 = vpack.c.b16 %v515, %v514
        %v611 = vpack.c.b16 %v517, %v516
        %v612 = vpack.c.b16 %v519, %v518
        %v613 = vpack.c.b16 %v521, %v520
        %v614 = vpack.c.b16 %v523, %v522
        %v615 = vpack.c.b16 %v525, %v524
        %v616 = vpack.c.b16 %v527, %v526
        %v617 = vpack.c.b16 %v529, %v528
        %v618 = vpack.c.b16 %v531, %v530
        %v619 = vpack.c.b16 %v533, %v532
        %v620 = vpack.c.b16 %v535, %v534
        %v621 = vpack.c.b16 %v537, %v536
        %v622 = vpack.c.b16 %v539, %v538
        %v623 = vpack.c.b16 %v541, %v540
        %v624 = vpack.c.b16 %v543, %v542
        %v625 = vpack.c.b16 %v545, %v544
        %v626 = vpack.c.b16 %v547, %v546
        %v627 = vpack.c.b16 %v549, %v548
        %v628 = vpack.c.b16 %v551, %v550
        %v629 = vpack.c.b16 %v553, %v552
        %v630 = vpack.c.b16 %v555, %v554
        %v631 = vpack.c.b16 %v557, %v556
        %v632 = vpack.c.b16 %v559, %v558
        %v633 = vpack.c.b16 %v561, %v560
        %v634 = vpack.c.b16 %v563, %v562
        %v635 = vpack.c.b16 %v565, %v564
        %v636 = vpack.c.b16 %v567, %v566
        %v637 = vpack.c.b16 %v569, %v568
        %v638 = vpack.c.b16 %v571, %v570
        %v639 = vpack.c.b16 %v573, %v572
        %v640 = vpack.c.b16 %v575, %v574
        %v641 = vpack.c.b16 %v577, %v576
        %v645 = vunpack.c.l.b16 %v319
        %v646 = vunpack.c.l.b16 %v320
        %v647 = vunpack.c.l.b16 %v321
        %v648 = vpack.c.b16 %v646, %v645
        %v649 = vpack.c.b16 %v647, %v647
        %vm651 = vcmask 195584
        %v653 = vsel %vm651, %v578, 0
        %v656 = vsel %vm651, %v579, 0
        %v659 = vsel %vm651, %v580, 0
        %v662 = vsel %vm651, %v581, 0
        %v665 = vsel %vm651, %v582, 0
        %v668 = vsel %vm651, %v583, 0
        %v671 = vsel %vm651, %v584, 0
        %v674 = vsel %vm651, %v585, 0
        %v677 = vsel %vm651, %v586, 0
        %v680 = vsel %vm651, %v587, 0
        %v683 = vsel %vm651, %v588, 0
        %v686 = vsel %vm651, %v589, 0
        %v689 = vsel %vm651, %v590, 0
        %v692 = vsel %vm651, %v591, 0
        %v695 = vsel %vm651, %v592, 0
        %v698 = vsel %vm651, %v593, 0
        %v701 = vsel %vm651, %v594, 0
        %v704 = vsel %vm651, %v595, 0
        %v707 = vsel %vm651, %v596, 0
        %v710 = vsel %vm651, %v597, 0
        %v713 = vsel %vm651, %v598, 0
        %v716 = vsel %vm651, %v599, 0
        %v719 = vsel %vm651, %v600, 0
        %v722 = vsel %vm651, %v601, 0
        %v725 = vsel %vm651, %v602, 0
        %v728 = vsel %vm651, %v603, 0
        %v731 = vsel %vm651, %v604, 0
        %v734 = vsel %vm651, %v605, 0
        %v737 = vsel %vm651, %v606, 0
        %v740 = vsel %vm651, %v607, 0
        %v743 = vsel %vm651, %v608, 0
        %v746 = vsel %vm651, %v609, 0
        %v749 = vsel %vm651, %v610, 0
        %v752 = vsel %vm651, %v611, 0
        %v755 = vsel %vm651, %v612, 0
        %v758 = vsel %vm651, %v613, 0
        %v761 = vsel %vm651, %v614, 0
        %v764 = vsel %vm651, %v615, 0
        %v767 = vsel %vm651, %v616, 0
        %v770 = vsel %vm651, %v617, 0
        %v773 = vsel %vm651, %v618, 0
        %v776 = vsel %vm651, %v619, 0
        %v779 = vsel %vm651, %v620, 0
        %v782 = vsel %vm651, %v621, 0
        %v785 = vsel %vm651, %v622, 0
        %v788 = vsel %vm651, %v623, 0
        %v791 = vsel %vm651, %v624, 0
        %v794 = vsel %vm651, %v625, 0
        %v797 = vsel %vm651, %v626, 0
        %v800 = vsel %vm651, %v627, 0
        %v803 = vsel %vm651, %v628, 0
        %v806 = vsel %vm651, %v629, 0
        %v809 = vsel %vm651, %v630, 0
        %v812 = vsel %vm651, %v631, 0
        %v815 = vsel %vm651, %v632, 0
        %v818 = vsel %vm651, %v633, 0
        %v821 = vsel %vm651, %v634, 0
        %v824 = vsel %vm651, %v635, 0
        %v827 = vsel %vm651, %v636, 0
        %v830 = vsel %vm651, %v637, 0
        %v833 = vsel %vm651, %v638, 0
        %v836 = vsel %vm651, %v639, 0
        %v839 = vsel %vm651, %v640, 0
        %v842 = vsel %vm651, %v641, 0
        %vm844 = vcmask 1043456
        %v846 = vsel %vm844, %v649, 0
        %848 = vmatprep.subr.bf16.mxu0 0
        %849 = vmatpush1.bf16.msra.mxu0 0
        %850 = vmatprep.subr.bf16.mxu0 0
        %851 = vmatpush1.bf16.msra.mxu0 0
        %852 = vmatprep.subr.bf16.mxu0 0
        %853 = vmatpush1.bf16.msra.mxu0 0
        %854 = vmatprep.subr.bf16.mxu0 0
        %855 = vmatpush1.bf16.msra.mxu0 0
        %856 = vmatprep.subr.bf16.mxu0 0
        %857 = vmatpush1.bf16.msra.mxu0 0
        %858 = vmatprep.subr.bf16.mxu0 0
        %859 = vmatpush1.bf16.msra.mxu0 0
        %860 = vmatprep.subr.bf16.mxu0 0
        %861 = vmatpush1.bf16.msra.mxu0 %v846
        %862 = vmatprep.subr.bf16.mxu0 0
        %863 = vmatpush1.bf16.msra.mxu0 %v648
        %864 = vmatprep.subr.bf16.mxu0 0
        %865 = vmatpush2.bf16.msra.mxu0 0
        %866 = vmatprep.subr.bf16.mxu0 0
        %867 = vmatpush2.bf16.msra.mxu0 0
        %868 = vmatprep.subr.bf16.mxu0 0
        %869 = vmatpush2.bf16.msra.mxu0 0
        %870 = vmatprep.subr.bf16.mxu0 0
        %871 = vmatpush2.bf16.msra.mxu0 0
        %872 = vmatprep.subr.bf16.mxu0 0
        %873 = vmatpush2.bf16.msra.mxu0 0
        %874 = vmatprep.subr.bf16.mxu0 0
        %875 = vmatpush2.bf16.msra.mxu0 0
        %876 = vmatprep.subr.bf16.mxu0 0
        %877 = vmatpush2.bf16.msra.mxu0 0
        %878 = vmatprep.subr.bf16.mxu0 0
        %879 = vmatpush2.bf16.msra.mxu0 0
        %880 = vmatprep.mubr.bf16.mxu0 0
        %881 = vmatmul.mubr.bf16.gmra.mxu0 %v653
        %v882 = vpop.f32.mrf.mxu0
        %v883 = vadd.f32 0.0, %v882
        %v884 = vpop.f32.mrf.mxu0
        %v885 = vpop.f32.mrf.mxu0
        %v886 = vadd.f32 0.0, %v885
        %v887 = vpop.f32.mrf.mxu0
        %888 = vmatprep.mubr.bf16.mxu0 0
        %889 = vmatmul.mubr.bf16.gmra.mxu0 %v656
        %v890 = vpop.f32.mrf.mxu0
        %v891 = vadd.f32 0.0, %v890
        %v892 = vpop.f32.mrf.mxu0
        %v893 = vpop.f32.mrf.mxu0
        %v894 = vadd.f32 0.0, %v893
        %v895 = vpop.f32.mrf.mxu0
        %896 = vmatprep.mubr.bf16.mxu0 0
        %897 = vmatmul.mubr.bf16.gmra.mxu0 %v659
        %v898 = vpop.f32.mrf.mxu0
        %v899 = vadd.f32 0.0, %v898
        %v900 = vpop.f32.mrf.mxu0
        %v901 = vpop.f32.mrf.mxu0
        %v902 = vadd.f32 0.0, %v901
        %v903 = vpop.f32.mrf.mxu0
        %904 = vmatprep.mubr.bf16.mxu0 0
        %905 = vmatmul.mubr.bf16.gmra.mxu0 %v662
        %v906 = vpop.f32.mrf.mxu0
        %v907 = vadd.f32 0.0, %v906
        %v908 = vpop.f32.mrf.mxu0
        %v909 = vpop.f32.mrf.mxu0
        %v910 = vadd.f32 0.0, %v909
        %v911 = vpop.f32.mrf.mxu0
        %912 = vmatprep.mubr.bf16.mxu0 0
        %913 = vmatmul.mubr.bf16.gmra.mxu0 %v665
        %v914 = vpop.f32.mrf.mxu0
        %v915 = vadd.f32 0.0, %v914
        %v916 = vpop.f32.mrf.mxu0
        %v917 = vpop.f32.mrf.mxu0
        %v918 = vadd.f32 0.0, %v917
        %v919 = vpop.f32.mrf.mxu0
        %920 = vmatprep.mubr.bf16.mxu0 0
        %921 = vmatmul.mubr.bf16.gmra.mxu0 %v668
        %v922 = vpop.f32.mrf.mxu0
        %v923 = vadd.f32 0.0, %v922
        %v924 = vpop.f32.mrf.mxu0
        %v925 = vpop.f32.mrf.mxu0
        %v926 = vadd.f32 0.0, %v925
        %v927 = vpop.f32.mrf.mxu0
        %928 = vmatprep.mubr.bf16.mxu0 0
        %929 = vmatmul.mubr.bf16.gmra.mxu0 %v671
        %v930 = vpop.f32.mrf.mxu0
        %v931 = vadd.f32 0.0, %v930
        %v932 = vpop.f32.mrf.mxu0
        %v933 = vpop.f32.mrf.mxu0
        %v934 = vadd.f32 0.0, %v933
        %v935 = vpop.f32.mrf.mxu0
        %936 = vmatprep.mubr.bf16.mxu0 0
        %937 = vmatmul.mubr.bf16.gmra.mxu0 %v674
        %v938 = vpop.f32.mrf.mxu0
        %v939 = vadd.f32 0.0, %v938
        %v940 = vpop.f32.mrf.mxu0
        %v941 = vpop.f32.mrf.mxu0
        %v942 = vadd.f32 0.0, %v941
        %v943 = vpop.f32.mrf.mxu0
        %944 = vmatprep.mubr.bf16.mxu0 0
        %945 = vmatmul.mubr.bf16.gmra.mxu0 %v677
        %v946 = vpop.f32.mrf.mxu0
        %v947 = vadd.f32 0.0, %v946
        %v948 = vpop.f32.mrf.mxu0
        %v949 = vpop.f32.mrf.mxu0
        %v950 = vadd.f32 0.0, %v949
        %v951 = vpop.f32.mrf.mxu0
        %952 = vmatprep.mubr.bf16.mxu0 0
        %953 = vmatmul.mubr.bf16.gmra.mxu0 %v680
        %v954 = vpop.f32.mrf.mxu0
        %v955 = vadd.f32 0.0, %v954
        %v956 = vpop.f32.mrf.mxu0
        %v957 = vpop.f32.mrf.mxu0
        %v958 = vadd.f32 0.0, %v957
        %v959 = vpop.f32.mrf.mxu0
        %960 = vmatprep.mubr.bf16.mxu0 0
        %961 = vmatmul.mubr.bf16.gmra.mxu0 %v683
        %v962 = vpop.f32.mrf.mxu0
        %v963 = vadd.f32 0.0, %v962
        %v964 = vpop.f32.mrf.mxu0
        %v965 = vpop.f32.mrf.mxu0
        %v966 = vadd.f32 0.0, %v965
        %v967 = vpop.f32.mrf.mxu0
        %968 = vmatprep.mubr.bf16.mxu0 0
        %969 = vmatmul.mubr.bf16.gmra.mxu0 %v686
        %v970 = vpop.f32.mrf.mxu0
        %v971 = vadd.f32 0.0, %v970
        %v972 = vpop.f32.mrf.mxu0
        %v973 = vpop.f32.mrf.mxu0
        %v974 = vadd.f32 0.0, %v973
        %v975 = vpop.f32.mrf.mxu0
        %976 = vmatprep.mubr.bf16.mxu0 0
        %977 = vmatmul.mubr.bf16.gmra.mxu0 %v689
        %v978 = vpop.f32.mrf.mxu0
        %v979 = vadd.f32 0.0, %v978
        %v980 = vpop.f32.mrf.mxu0
        %v981 = vpop.f32.mrf.mxu0
        %v982 = vadd.f32 0.0, %v981
        %v983 = vpop.f32.mrf.mxu0
        %984 = vmatprep.mubr.bf16.mxu0 0
        %985 = vmatmul.mubr.bf16.gmra.mxu0 %v692
        %v986 = vpop.f32.mrf.mxu0
        %v987 = vadd.f32 0.0, %v986
        %v988 = vpop.f32.mrf.mxu0
        %v989 = vpop.f32.mrf.mxu0
        %v990 = vadd.f32 0.0, %v989
        %v991 = vpop.f32.mrf.mxu0
        %992 = vmatprep.mubr.bf16.mxu0 0
        %993 = vmatmul.mubr.bf16.gmra.mxu0 %v695
        %v994 = vpop.f32.mrf.mxu0
        %v995 = vadd.f32 0.0, %v994
        %v996 = vpop.f32.mrf.mxu0
        %v997 = vpop.f32.mrf.mxu0
        %v998 = vadd.f32 0.0, %v997
        %v999 = vpop.f32.mrf.mxu0
        %1000 = vmatprep.mubr.bf16.mxu0 0
        %1001 = vmatmul.mubr.bf16.gmra.mxu0 %v698
        %v1002 = vpop.f32.mrf.mxu0
        %v1003 = vadd.f32 0.0, %v1002
        %v1004 = vpop.f32.mrf.mxu0
        %v1005 = vpop.f32.mrf.mxu0
        %v1006 = vadd.f32 0.0, %v1005
        %v1007 = vpop.f32.mrf.mxu0
        %1008 = vmatprep.mubr.bf16.mxu0 0
        %1009 = vmatmul.mubr.bf16.gmra.mxu0 %v701
        %v1010 = vpop.f32.mrf.mxu0
        %v1011 = vadd.f32 0.0, %v1010
        %v1012 = vpop.f32.mrf.mxu0
        %v1013 = vpop.f32.mrf.mxu0
        %v1014 = vadd.f32 0.0, %v1013
        %v1015 = vpop.f32.mrf.mxu0
        %1016 = vmatprep.mubr.bf16.mxu0 0
        %1017 = vmatmul.mubr.bf16.gmra.mxu0 %v704
        %v1018 = vpop.f32.mrf.mxu0
        %v1019 = vadd.f32 0.0, %v1018
        %v1020 = vpop.f32.mrf.mxu0
        %v1021 = vpop.f32.mrf.mxu0
        %v1022 = vadd.f32 0.0, %v1021
        %v1023 = vpop.f32.mrf.mxu0
        %1024 = vmatprep.mubr.bf16.mxu0 0
        %1025 = vmatmul.mubr.bf16.gmra.mxu0 %v707
        %v1026 = vpop.f32.mrf.mxu0
        %v1027 = vadd.f32 0.0, %v1026
        %v1028 = vpop.f32.mrf.mxu0
        %v1029 = vpop.f32.mrf.mxu0
        %v1030 = vadd.f32 0.0, %v1029
        %v1031 = vpop.f32.mrf.mxu0
        %1032 = vmatprep.mubr.bf16.mxu0 0
        %1033 = vmatmul.mubr.bf16.gmra.mxu0 %v710
        %v1034 = vpop.f32.mrf.mxu0
        %v1035 = vadd.f32 0.0, %v1034
        %v1036 = vpop.f32.mrf.mxu0
        %v1037 = vpop.f32.mrf.mxu0
        %v1038 = vadd.f32 0.0, %v1037
        %v1039 = vpop.f32.mrf.mxu0
        %1040 = vmatprep.mubr.bf16.mxu0 0
        %1041 = vmatmul.mubr.bf16.gmra.mxu0 %v713
        %v1042 = vpop.f32.mrf.mxu0
        %v1043 = vadd.f32 0.0, %v1042
        %v1044 = vpop.f32.mrf.mxu0
        %v1045 = vpop.f32.mrf.mxu0
        %v1046 = vadd.f32 0.0, %v1045
        %v1047 = vpop.f32.mrf.mxu0
        %1048 = vmatprep.mubr.bf16.mxu0 0
        %1049 = vmatmul.mubr.bf16.gmra.mxu0 %v716
        %v1050 = vpop.f32.mrf.mxu0
        %v1051 = vadd.f32 0.0, %v1050
        %v1052 = vpop.f32.mrf.mxu0
        %v1053 = vpop.f32.mrf.mxu0
        %v1054 = vadd.f32 0.0, %v1053
        %v1055 = vpop.f32.mrf.mxu0
        %1056 = vmatprep.mubr.bf16.mxu0 0
        %1057 = vmatmul.mubr.bf16.gmra.mxu0 %v719
        %v1058 = vpop.f32.mrf.mxu0
        %v1059 = vadd.f32 0.0, %v1058
        %v1060 = vpop.f32.mrf.mxu0
        %v1061 = vpop.f32.mrf.mxu0
        %v1062 = vadd.f32 0.0, %v1061
        %v1063 = vpop.f32.mrf.mxu0
        %1064 = vmatprep.mubr.bf16.mxu0 0
        %1065 = vmatmul.mubr.bf16.gmra.mxu0 %v722
        %v1066 = vpop.f32.mrf.mxu0
        %v1067 = vadd.f32 0.0, %v1066
        %v1068 = vpop.f32.mrf.mxu0
        %v1069 = vpop.f32.mrf.mxu0
        %v1070 = vadd.f32 0.0, %v1069
        %v1071 = vpop.f32.mrf.mxu0
        %1072 = vmatprep.mubr.bf16.mxu0 0
        %1073 = vmatmul.mubr.bf16.gmra.mxu0 %v725
        %v1074 = vpop.f32.mrf.mxu0
        %v1075 = vadd.f32 0.0, %v1074
        %v1076 = vpop.f32.mrf.mxu0
        %v1077 = vpop.f32.mrf.mxu0
        %v1078 = vadd.f32 0.0, %v1077
        %v1079 = vpop.f32.mrf.mxu0
        %1080 = vmatprep.mubr.bf16.mxu0 0
        %1081 = vmatmul.mubr.bf16.gmra.mxu0 %v728
        %v1082 = vpop.f32.mrf.mxu0
        %v1083 = vadd.f32 0.0, %v1082
        %v1084 = vpop.f32.mrf.mxu0
        %v1085 = vpop.f32.mrf.mxu0
        %v1086 = vadd.f32 0.0, %v1085
        %v1087 = vpop.f32.mrf.mxu0
        %1088 = vmatprep.mubr.bf16.mxu0 0
        %1089 = vmatmul.mubr.bf16.gmra.mxu0 %v731
        %v1090 = vpop.f32.mrf.mxu0
        %v1091 = vadd.f32 0.0, %v1090
        %v1092 = vpop.f32.mrf.mxu0
        %v1093 = vpop.f32.mrf.mxu0
        %v1094 = vadd.f32 0.0, %v1093
        %v1095 = vpop.f32.mrf.mxu0
        %1096 = vmatprep.mubr.bf16.mxu0 0
        %1097 = vmatmul.mubr.bf16.gmra.mxu0 %v734
        %v1098 = vpop.f32.mrf.mxu0
        %v1099 = vadd.f32 0.0, %v1098
        %v1100 = vpop.f32.mrf.mxu0
        %v1101 = vpop.f32.mrf.mxu0
        %v1102 = vadd.f32 0.0, %v1101
        %v1103 = vpop.f32.mrf.mxu0
        %1104 = vmatprep.mubr.bf16.mxu0 0
        %1105 = vmatmul.mubr.bf16.gmra.mxu0 %v737
        %v1106 = vpop.f32.mrf.mxu0
        %v1107 = vadd.f32 0.0, %v1106
        %v1108 = vpop.f32.mrf.mxu0
        %v1109 = vpop.f32.mrf.mxu0
        %v1110 = vadd.f32 0.0, %v1109
        %v1111 = vpop.f32.mrf.mxu0
        %1112 = vmatprep.mubr.bf16.mxu0 0
        %1113 = vmatmul.mubr.bf16.gmra.mxu0 %v740
        %v1114 = vpop.f32.mrf.mxu0
        %v1115 = vadd.f32 0.0, %v1114
        %v1116 = vpop.f32.mrf.mxu0
        %v1117 = vpop.f32.mrf.mxu0
        %v1118 = vadd.f32 0.0, %v1117
        %v1119 = vpop.f32.mrf.mxu0
        %1120 = vmatprep.mubr.bf16.mxu0 0
        %1121 = vmatmul.mubr.bf16.gmra.mxu0 %v743
        %v1122 = vpop.f32.mrf.mxu0
        %v1123 = vadd.f32 0.0, %v1122
        %v1124 = vpop.f32.mrf.mxu0
        %v1125 = vpop.f32.mrf.mxu0
        %v1126 = vadd.f32 0.0, %v1125
        %v1127 = vpop.f32.mrf.mxu0
        %1128 = vmatprep.mubr.bf16.mxu0 0
        %1129 = vmatmul.mubr.bf16.gmra.mxu0 %v746
        %v1130 = vpop.f32.mrf.mxu0
        %v1131 = vadd.f32 0.0, %v1130
        %v1132 = vpop.f32.mrf.mxu0
        %v1133 = vpop.f32.mrf.mxu0
        %v1134 = vadd.f32 0.0, %v1133
        %v1135 = vpop.f32.mrf.mxu0
        %1136 = vmatprep.mubr.bf16.mxu0 0
        %1137 = vmatmul.mubr.bf16.gmra.mxu0 %v749
        %v1138 = vpop.f32.mrf.mxu0
        %v1139 = vadd.f32 0.0, %v1138
        %v1140 = vpop.f32.mrf.mxu0
        %v1141 = vpop.f32.mrf.mxu0
        %v1142 = vadd.f32 0.0, %v1141
        %v1143 = vpop.f32.mrf.mxu0
        %1144 = vmatprep.mubr.bf16.mxu0 0
        %1145 = vmatmul.mubr.bf16.gmra.mxu0 %v752
        %v1146 = vpop.f32.mrf.mxu0
        %v1147 = vadd.f32 0.0, %v1146
        %v1148 = vpop.f32.mrf.mxu0
        %v1149 = vpop.f32.mrf.mxu0
        %v1150 = vadd.f32 0.0, %v1149
        %v1151 = vpop.f32.mrf.mxu0
        %1152 = vmatprep.mubr.bf16.mxu0 0
        %1153 = vmatmul.mubr.bf16.gmra.mxu0 %v755
        %v1154 = vpop.f32.mrf.mxu0
        %v1155 = vadd.f32 0.0, %v1154
        %v1156 = vpop.f32.mrf.mxu0
        %v1157 = vpop.f32.mrf.mxu0
        %v1158 = vadd.f32 0.0, %v1157
        %v1159 = vpop.f32.mrf.mxu0
        %1160 = vmatprep.mubr.bf16.mxu0 0
        %1161 = vmatmul.mubr.bf16.gmra.mxu0 %v758
        %v1162 = vpop.f32.mrf.mxu0
        %v1163 = vadd.f32 0.0, %v1162
        %v1164 = vpop.f32.mrf.mxu0
        %v1165 = vpop.f32.mrf.mxu0
        %v1166 = vadd.f32 0.0, %v1165
        %v1167 = vpop.f32.mrf.mxu0
        %1168 = vmatprep.mubr.bf16.mxu0 0
        %1169 = vmatmul.mubr.bf16.gmra.mxu0 %v761
        %v1170 = vpop.f32.mrf.mxu0
        %v1171 = vadd.f32 0.0, %v1170
        %v1172 = vpop.f32.mrf.mxu0
        %v1173 = vpop.f32.mrf.mxu0
        %v1174 = vadd.f32 0.0, %v1173
        %v1175 = vpop.f32.mrf.mxu0
        %1176 = vmatprep.mubr.bf16.mxu0 0
        %1177 = vmatmul.mubr.bf16.gmra.mxu0 %v764
        %v1178 = vpop.f32.mrf.mxu0
        %v1179 = vadd.f32 0.0, %v1178
        %v1180 = vpop.f32.mrf.mxu0
        %v1181 = vpop.f32.mrf.mxu0
        %v1182 = vadd.f32 0.0, %v1181
        %v1183 = vpop.f32.mrf.mxu0
        %1184 = vmatprep.mubr.bf16.mxu0 0
        %1185 = vmatmul.mubr.bf16.gmra.mxu0 %v767
        %v1186 = vpop.f32.mrf.mxu0
        %v1187 = vadd.f32 0.0, %v1186
        %v1188 = vpop.f32.mrf.mxu0
        %v1189 = vpop.f32.mrf.mxu0
        %v1190 = vadd.f32 0.0, %v1189
        %v1191 = vpop.f32.mrf.mxu0
        %1192 = vmatprep.mubr.bf16.mxu0 0
        %1193 = vmatmul.mubr.bf16.gmra.mxu0 %v770
        %v1194 = vpop.f32.mrf.mxu0
        %v1195 = vadd.f32 0.0, %v1194
        %v1196 = vpop.f32.mrf.mxu0
        %v1197 = vpop.f32.mrf.mxu0
        %v1198 = vadd.f32 0.0, %v1197
        %v1199 = vpop.f32.mrf.mxu0
        %1200 = vmatprep.mubr.bf16.mxu0 0
        %1201 = vmatmul.mubr.bf16.gmra.mxu0 %v773
        %v1202 = vpop.f32.mrf.mxu0
        %v1203 = vadd.f32 0.0, %v1202
        %v1204 = vpop.f32.mrf.mxu0
        %v1205 = vpop.f32.mrf.mxu0
        %v1206 = vadd.f32 0.0, %v1205
        %v1207 = vpop.f32.mrf.mxu0
        %1208 = vmatprep.mubr.bf16.mxu0 0
        %1209 = vmatmul.mubr.bf16.gmra.mxu0 %v776
        %v1210 = vpop.f32.mrf.mxu0
        %v1211 = vadd.f32 0.0, %v1210
        %v1212 = vpop.f32.mrf.mxu0
        %v1213 = vpop.f32.mrf.mxu0
        %v1214 = vadd.f32 0.0, %v1213
        %v1215 = vpop.f32.mrf.mxu0
        %1216 = vmatprep.mubr.bf16.mxu0 0
        %1217 = vmatmul.mubr.bf16.gmra.mxu0 %v779
        %v1218 = vpop.f32.mrf.mxu0
        %v1219 = vadd.f32 0.0, %v1218
        %v1220 = vpop.f32.mrf.mxu0
        %v1221 = vpop.f32.mrf.mxu0
        %v1222 = vadd.f32 0.0, %v1221
        %v1223 = vpop.f32.mrf.mxu0
        %1224 = vmatprep.mubr.bf16.mxu0 0
        %1225 = vmatmul.mubr.bf16.gmra.mxu0 %v782
        %v1226 = vpop.f32.mrf.mxu0
        %v1227 = vadd.f32 0.0, %v1226
        %v1228 = vpop.f32.mrf.mxu0
        %v1229 = vpop.f32.mrf.mxu0
        %v1230 = vadd.f32 0.0, %v1229
        %v1231 = vpop.f32.mrf.mxu0
        %1232 = vmatprep.mubr.bf16.mxu0 0
        %1233 = vmatmul.mubr.bf16.gmra.mxu0 %v785
        %v1234 = vpop.f32.mrf.mxu0
        %v1235 = vadd.f32 0.0, %v1234
        %v1236 = vpop.f32.mrf.mxu0
        %v1237 = vpop.f32.mrf.mxu0
        %v1238 = vadd.f32 0.0, %v1237
        %v1239 = vpop.f32.mrf.mxu0
        %1240 = vmatprep.mubr.bf16.mxu0 0
        %1241 = vmatmul.mubr.bf16.gmra.mxu0 %v788
        %v1242 = vpop.f32.mrf.mxu0
        %v1243 = vadd.f32 0.0, %v1242
        %v1244 = vpop.f32.mrf.mxu0
        %v1245 = vpop.f32.mrf.mxu0
        %v1246 = vadd.f32 0.0, %v1245
        %v1247 = vpop.f32.mrf.mxu0
        %1248 = vmatprep.mubr.bf16.mxu0 0
        %1249 = vmatmul.mubr.bf16.gmra.mxu0 %v791
        %v1250 = vpop.f32.mrf.mxu0
        %v1251 = vadd.f32 0.0, %v1250
        %v1252 = vpop.f32.mrf.mxu0
        %v1253 = vpop.f32.mrf.mxu0
        %v1254 = vadd.f32 0.0, %v1253
        %v1255 = vpop.f32.mrf.mxu0
        %1256 = vmatprep.mubr.bf16.mxu0 0
        %1257 = vmatmul.mubr.bf16.gmra.mxu0 %v794
        %v1258 = vpop.f32.mrf.mxu0
        %v1259 = vadd.f32 0.0, %v1258
        %v1260 = vpop.f32.mrf.mxu0
        %v1261 = vpop.f32.mrf.mxu0
        %v1262 = vadd.f32 0.0, %v1261
        %v1263 = vpop.f32.mrf.mxu0
        %1264 = vmatprep.mubr.bf16.mxu0 0
        %1265 = vmatmul.mubr.bf16.gmra.mxu0 %v797
        %v1266 = vpop.f32.mrf.mxu0
        %v1267 = vadd.f32 0.0, %v1266
        %v1268 = vpop.f32.mrf.mxu0
        %v1269 = vpop.f32.mrf.mxu0
        %v1270 = vadd.f32 0.0, %v1269
        %v1271 = vpop.f32.mrf.mxu0
        %1272 = vmatprep.mubr.bf16.mxu0 0
        %1273 = vmatmul.mubr.bf16.gmra.mxu0 %v800
        %v1274 = vpop.f32.mrf.mxu0
        %v1275 = vadd.f32 0.0, %v1274
        %v1276 = vpop.f32.mrf.mxu0
        %v1277 = vpop.f32.mrf.mxu0
        %v1278 = vadd.f32 0.0, %v1277
        %v1279 = vpop.f32.mrf.mxu0
        %1280 = vmatprep.mubr.bf16.mxu0 0
        %1281 = vmatmul.mubr.bf16.gmra.mxu0 %v803
        %v1282 = vpop.f32.mrf.mxu0
        %v1283 = vadd.f32 0.0, %v1282
        %v1284 = vpop.f32.mrf.mxu0
        %v1285 = vpop.f32.mrf.mxu0
        %v1286 = vadd.f32 0.0, %v1285
        %v1287 = vpop.f32.mrf.mxu0
        %1288 = vmatprep.mubr.bf16.mxu0 0
        %1289 = vmatmul.mubr.bf16.gmra.mxu0 %v806
        %v1290 = vpop.f32.mrf.mxu0
        %v1291 = vadd.f32 0.0, %v1290
        %v1292 = vpop.f32.mrf.mxu0
        %v1293 = vpop.f32.mrf.mxu0
        %v1294 = vadd.f32 0.0, %v1293
        %v1295 = vpop.f32.mrf.mxu0
        %1296 = vmatprep.mubr.bf16.mxu0 0
        %1297 = vmatmul.mubr.bf16.gmra.mxu0 %v809
        %v1298 = vpop.f32.mrf.mxu0
        %v1299 = vadd.f32 0.0, %v1298
        %v1300 = vpop.f32.mrf.mxu0
        %v1301 = vpop.f32.mrf.mxu0
        %v1302 = vadd.f32 0.0, %v1301
        %v1303 = vpop.f32.mrf.mxu0
        %1304 = vmatprep.mubr.bf16.mxu0 0
        %1305 = vmatmul.mubr.bf16.gmra.mxu0 %v812
        %v1306 = vpop.f32.mrf.mxu0
        %v1307 = vadd.f32 0.0, %v1306
        %v1308 = vpop.f32.mrf.mxu0
        %v1309 = vpop.f32.mrf.mxu0
        %v1310 = vadd.f32 0.0, %v1309
        %v1311 = vpop.f32.mrf.mxu0
        %1312 = vmatprep.mubr.bf16.mxu0 0
        %1313 = vmatmul.mubr.bf16.gmra.mxu0 %v815
        %v1314 = vpop.f32.mrf.mxu0
        %v1315 = vadd.f32 0.0, %v1314
        %v1316 = vpop.f32.mrf.mxu0
        %v1317 = vpop.f32.mrf.mxu0
        %v1318 = vadd.f32 0.0, %v1317
        %v1319 = vpop.f32.mrf.mxu0
        %1320 = vmatprep.mubr.bf16.mxu0 0
        %1321 = vmatmul.mubr.bf16.gmra.mxu0 %v818
        %v1322 = vpop.f32.mrf.mxu0
        %v1323 = vadd.f32 0.0, %v1322
        %v1324 = vpop.f32.mrf.mxu0
        %v1325 = vpop.f32.mrf.mxu0
        %v1326 = vadd.f32 0.0, %v1325
        %v1327 = vpop.f32.mrf.mxu0
        %1328 = vmatprep.mubr.bf16.mxu0 0
        %1329 = vmatmul.mubr.bf16.gmra.mxu0 %v821
        %v1330 = vpop.f32.mrf.mxu0
        %v1331 = vadd.f32 0.0, %v1330
        %v1332 = vpop.f32.mrf.mxu0
        %v1333 = vpop.f32.mrf.mxu0
        %v1334 = vadd.f32 0.0, %v1333
        %v1335 = vpop.f32.mrf.mxu0
        %1336 = vmatprep.mubr.bf16.mxu0 0
        %1337 = vmatmul.mubr.bf16.gmra.mxu0 %v824
        %v1338 = vpop.f32.mrf.mxu0
        %v1339 = vadd.f32 0.0, %v1338
        %v1340 = vpop.f32.mrf.mxu0
        %v1341 = vpop.f32.mrf.mxu0
        %v1342 = vadd.f32 0.0, %v1341
        %v1343 = vpop.f32.mrf.mxu0
        %1344 = vmatprep.mubr.bf16.mxu0 0
        %1345 = vmatmul.mubr.bf16.gmra.mxu0 %v827
        %v1346 = vpop.f32.mrf.mxu0
        %v1347 = vadd.f32 0.0, %v1346
        %v1348 = vpop.f32.mrf.mxu0
        %v1349 = vpop.f32.mrf.mxu0
        %v1350 = vadd.f32 0.0, %v1349
        %v1351 = vpop.f32.mrf.mxu0
        %1352 = vmatprep.mubr.bf16.mxu0 0
        %1353 = vmatmul.mubr.bf16.gmra.mxu0 %v830
        %v1354 = vpop.f32.mrf.mxu0
        %v1355 = vadd.f32 0.0, %v1354
        %v1356 = vpop.f32.mrf.mxu0
        %v1357 = vpop.f32.mrf.mxu0
        %v1358 = vadd.f32 0.0, %v1357
        %v1359 = vpop.f32.mrf.mxu0
        %1360 = vmatprep.mubr.bf16.mxu0 0
        %1361 = vmatmul.mubr.bf16.gmra.mxu0 %v833
        %v1362 = vpop.f32.mrf.mxu0
        %v1363 = vadd.f32 0.0, %v1362
        %v1364 = vpop.f32.mrf.mxu0
        %v1365 = vpop.f32.mrf.mxu0
        %v1366 = vadd.f32 0.0, %v1365
        %v1367 = vpop.f32.mrf.mxu0
        %1368 = vmatprep.mubr.bf16.mxu0 0
        %1369 = vmatmul.mubr.bf16.gmra.mxu0 %v836
        %v1370 = vpop.f32.mrf.mxu0
        %v1371 = vadd.f32 0.0, %v1370
        %v1372 = vpop.f32.mrf.mxu0
        %v1373 = vpop.f32.mrf.mxu0
        %v1374 = vadd.f32 0.0, %v1373
        %v1375 = vpop.f32.mrf.mxu0
        %1376 = vmatprep.mubr.bf16.mxu0 0
        %1377 = vmatmul.mubr.bf16.gmra.mxu0 %v839
        %v1378 = vpop.f32.mrf.mxu0
        %v1379 = vadd.f32 0.0, %v1378
        %v1380 = vpop.f32.mrf.mxu0
        %v1381 = vpop.f32.mrf.mxu0
        %v1382 = vadd.f32 0.0, %v1381
        %v1383 = vpop.f32.mrf.mxu0
        %1384 = vmatprep.mubr.bf16.mxu0 0
        %1385 = vmatmul.mubr.bf16.gmra.mxu0 %v842
        %v1386 = vpop.f32.mrf.mxu0
        %v1387 = vadd.f32 0.0, %v1386
        %v1388 = vpop.f32.mrf.mxu0
        %v1389 = vpop.f32.mrf.mxu0
        %v1390 = vadd.f32 0.0, %v1389
        %v1391 = vpop.f32.mrf.mxu0
        %1392 = vdwg.mxu0
        %v1397 = vunpack.c.l.b16 %v183
        %v1398 = vunpack.c.l.b16 %v184
        %v1399 = vunpack.c.l.b16 %v185
        %v1400 = vunpack.c.l.b16 %v186
        %v1401 = vpack.c.b16 %v1398, %v1397
        %v1402 = vpack.c.b16 %v1400, %v1399
        %v1406 = vunpack.c.l.b16 %v315
        %v1407 = vunpack.c.l.b16 %v316
        %v1408 = vunpack.c.l.b16 %v317
        %v1409 = vpack.c.b16 %v1407, %v1406
        %v1410 = vpack.c.b16 %v1408, %v1408
        %v1413 = vsel %vm651, %v1401, 0
        %v1416 = vsel %vm651, %v1402, 0
        %v1419 = vsel %vm844, %v1410, 0
        %1421 = vmatprep.subr.bf16.mxu0 0
        %1422 = vmatpush1.bf16.msra.mxu0 0
        %1423 = vmatprep.subr.bf16.mxu0 0
        %1424 = vmatpush1.bf16.msra.mxu0 0
        %1425 = vmatprep.subr.bf16.mxu0 0
        %1426 = vmatpush1.bf16.msra.mxu0 0
        %1427 = vmatprep.subr.bf16.mxu0 0
        %1428 = vmatpush1.bf16.msra.mxu0 0
        %1429 = vmatprep.subr.bf16.mxu0 0
        %1430 = vmatpush1.bf16.msra.mxu0 0
        %1431 = vmatprep.subr.bf16.mxu0 0
        %1432 = vmatpush1.bf16.msra.mxu0 0
        %1433 = vmatprep.subr.bf16.mxu0 0
        %1434 = vmatpush1.bf16.msra.mxu0 %v1419
        %1435 = vmatprep.subr.bf16.mxu0 0
        %1436 = vmatpush1.bf16.msra.mxu0 %v1409
        %1437 = vmatprep.subr.bf16.mxu0 0
        %1438 = vmatpush2.bf16.msra.mxu0 0
        %1439 = vmatprep.subr.bf16.mxu0 0
        %1440 = vmatpush2.bf16.msra.mxu0 0
        %1441 = vmatprep.subr.bf16.mxu0 0
        %1442 = vmatpush2.bf16.msra.mxu0 0
        %1443 = vmatprep.subr.bf16.mxu0 0
        %1444 = vmatpush2.bf16.msra.mxu0 0
        %1445 = vmatprep.subr.bf16.mxu0 0
        %1446 = vmatpush2.bf16.msra.mxu0 0
        %1447 = vmatprep.subr.bf16.mxu0 0
        %1448 = vmatpush2.bf16.msra.mxu0 0
        %1449 = vmatprep.subr.bf16.mxu0 0
        %1450 = vmatpush2.bf16.msra.mxu0 0
        %1451 = vmatprep.subr.bf16.mxu0 0
        %1452 = vmatpush2.bf16.msra.mxu0 0
        %1453 = vmatprep.mubr.bf16.mxu0 0
        %1454 = vmatmul.mubr.bf16.gmra.mxu0 %v1413
        %v1455 = vpop.f32.mrf.mxu0
        %v1456 = vadd.f32 %v883, %v1455
        %v1457 = vpop.f32.mrf.mxu0
        %v1458 = vpop.f32.mrf.mxu0
        %v1459 = vadd.f32 %v886, %v1458
        %v1460 = vpop.f32.mrf.mxu0
        %1461 = vmatprep.mubr.bf16.mxu0 0
        %1462 = vmatmul.mubr.bf16.gmra.mxu0 %v1416
        %v1463 = vpop.f32.mrf.mxu0
        %v1464 = vadd.f32 %v891, %v1463
        %v1465 = vpop.f32.mrf.mxu0
        %v1466 = vpop.f32.mrf.mxu0
        %v1467 = vadd.f32 %v894, %v1466
        %v1468 = vpop.f32.mrf.mxu0
        %1469 = vmatprep.mubr.bf16.mxu0 0
        %1470 = vmatmul.mubr.bf16.gmra.mxu0 %v653
        %v1471 = vpop.f32.mrf.mxu0
        %v1472 = vadd.f32 %v899, %v1471
        %v1473 = vpop.f32.mrf.mxu0
        %v1474 = vpop.f32.mrf.mxu0
        %v1475 = vadd.f32 %v902, %v1474
        %v1476 = vpop.f32.mrf.mxu0
        %1477 = vmatprep.mubr.bf16.mxu0 0
        %1478 = vmatmul.mubr.bf16.gmra.mxu0 %v656
        %v1479 = vpop.f32.mrf.mxu0
        %v1480 = vadd.f32 %v907, %v1479
        %v1481 = vpop.f32.mrf.mxu0
        %v1482 = vpop.f32.mrf.mxu0
        %v1483 = vadd.f32 %v910, %v1482
        %v1484 = vpop.f32.mrf.mxu0
        %1485 = vmatprep.mubr.bf16.mxu0 0
        %1486 = vmatmul.mubr.bf16.gmra.mxu0 %v659
        %v1487 = vpop.f32.mrf.mxu0
        %v1488 = vadd.f32 %v915, %v1487
        %v1489 = vpop.f32.mrf.mxu0
        %v1490 = vpop.f32.mrf.mxu0
        %v1491 = vadd.f32 %v918, %v1490
        %v1492 = vpop.f32.mrf.mxu0
        %1493 = vmatprep.mubr.bf16.mxu0 0
        %1494 = vmatmul.mubr.bf16.gmra.mxu0 %v662
        %v1495 = vpop.f32.mrf.mxu0
        %v1496 = vadd.f32 %v923, %v1495
        %v1497 = vpop.f32.mrf.mxu0
        %v1498 = vpop.f32.mrf.mxu0
        %v1499 = vadd.f32 %v926, %v1498
        %v1500 = vpop.f32.mrf.mxu0
        %1501 = vmatprep.mubr.bf16.mxu0 0
        %1502 = vmatmul.mubr.bf16.gmra.mxu0 %v665
        %v1503 = vpop.f32.mrf.mxu0
        %v1504 = vadd.f32 %v931, %v1503
        %v1505 = vpop.f32.mrf.mxu0
        %v1506 = vpop.f32.mrf.mxu0
        %v1507 = vadd.f32 %v934, %v1506
        %v1508 = vpop.f32.mrf.mxu0
        %1509 = vmatprep.mubr.bf16.mxu0 0
        %1510 = vmatmul.mubr.bf16.gmra.mxu0 %v668
        %v1511 = vpop.f32.mrf.mxu0
        %v1512 = vadd.f32 %v939, %v1511
        %v1513 = vpop.f32.mrf.mxu0
        %v1514 = vpop.f32.mrf.mxu0
        %v1515 = vadd.f32 %v942, %v1514
        %v1516 = vpop.f32.mrf.mxu0
        %1517 = vmatprep.mubr.bf16.mxu0 0
        %1518 = vmatmul.mubr.bf16.gmra.mxu0 %v671
        %v1519 = vpop.f32.mrf.mxu0
        %v1520 = vadd.f32 %v947, %v1519
        %v1521 = vpop.f32.mrf.mxu0
        %v1522 = vpop.f32.mrf.mxu0
        %v1523 = vadd.f32 %v950, %v1522
        %v1524 = vpop.f32.mrf.mxu0
        %1525 = vmatprep.mubr.bf16.mxu0 0
        %1526 = vmatmul.mubr.bf16.gmra.mxu0 %v674
        %v1527 = vpop.f32.mrf.mxu0
        %v1528 = vadd.f32 %v955, %v1527
        %v1529 = vpop.f32.mrf.mxu0
        %v1530 = vpop.f32.mrf.mxu0
        %v1531 = vadd.f32 %v958, %v1530
        %v1532 = vpop.f32.mrf.mxu0
        %1533 = vmatprep.mubr.bf16.mxu0 0
        %1534 = vmatmul.mubr.bf16.gmra.mxu0 %v677
        %v1535 = vpop.f32.mrf.mxu0
        %v1536 = vadd.f32 %v963, %v1535
        %v1537 = vpop.f32.mrf.mxu0
        %v1538 = vpop.f32.mrf.mxu0
        %v1539 = vadd.f32 %v966, %v1538
        %v1540 = vpop.f32.mrf.mxu0
        %1541 = vmatprep.mubr.bf16.mxu0 0
        %1542 = vmatmul.mubr.bf16.gmra.mxu0 %v680
        %v1543 = vpop.f32.mrf.mxu0
        %v1544 = vadd.f32 %v971, %v1543
        %v1545 = vpop.f32.mrf.mxu0
        %v1546 = vpop.f32.mrf.mxu0
        %v1547 = vadd.f32 %v974, %v1546
        %v1548 = vpop.f32.mrf.mxu0
        %1549 = vmatprep.mubr.bf16.mxu0 0
        %1550 = vmatmul.mubr.bf16.gmra.mxu0 %v683
        %v1551 = vpop.f32.mrf.mxu0
        %v1552 = vadd.f32 %v979, %v1551
        %v1553 = vpop.f32.mrf.mxu0
        %v1554 = vpop.f32.mrf.mxu0
        %v1555 = vadd.f32 %v982, %v1554
        %v1556 = vpop.f32.mrf.mxu0
        %1557 = vmatprep.mubr.bf16.mxu0 0
        %1558 = vmatmul.mubr.bf16.gmra.mxu0 %v686
        %v1559 = vpop.f32.mrf.mxu0
        %v1560 = vadd.f32 %v987, %v1559
        %v1561 = vpop.f32.mrf.mxu0
        %v1562 = vpop.f32.mrf.mxu0
        %v1563 = vadd.f32 %v990, %v1562
        %v1564 = vpop.f32.mrf.mxu0
        %1565 = vmatprep.mubr.bf16.mxu0 0
        %1566 = vmatmul.mubr.bf16.gmra.mxu0 %v689
        %v1567 = vpop.f32.mrf.mxu0
        %v1568 = vadd.f32 %v995, %v1567
        %v1569 = vpop.f32.mrf.mxu0
        %v1570 = vpop.f32.mrf.mxu0
        %v1571 = vadd.f32 %v998, %v1570
        %v1572 = vpop.f32.mrf.mxu0
        %1573 = vmatprep.mubr.bf16.mxu0 0
        %1574 = vmatmul.mubr.bf16.gmra.mxu0 %v692
        %v1575 = vpop.f32.mrf.mxu0
        %v1576 = vadd.f32 %v1003, %v1575
        %v1577 = vpop.f32.mrf.mxu0
        %v1578 = vpop.f32.mrf.mxu0
        %v1579 = vadd.f32 %v1006, %v1578
        %v1580 = vpop.f32.mrf.mxu0
        %1581 = vmatprep.mubr.bf16.mxu0 0
        %1582 = vmatmul.mubr.bf16.gmra.mxu0 %v695
        %v1583 = vpop.f32.mrf.mxu0
        %v1584 = vadd.f32 %v1011, %v1583
        %v1585 = vpop.f32.mrf.mxu0
        %v1586 = vpop.f32.mrf.mxu0
        %v1587 = vadd.f32 %v1014, %v1586
        %v1588 = vpop.f32.mrf.mxu0
        %1589 = vmatprep.mubr.bf16.mxu0 0
        %1590 = vmatmul.mubr.bf16.gmra.mxu0 %v698
        %v1591 = vpop.f32.mrf.mxu0
        %v1592 = vadd.f32 %v1019, %v1591
        %v1593 = vpop.f32.mrf.mxu0
        %v1594 = vpop.f32.mrf.mxu0
        %v1595 = vadd.f32 %v1022, %v1594
        %v1596 = vpop.f32.mrf.mxu0
        %1597 = vmatprep.mubr.bf16.mxu0 0
        %1598 = vmatmul.mubr.bf16.gmra.mxu0 %v701
        %v1599 = vpop.f32.mrf.mxu0
        %v1600 = vadd.f32 %v1027, %v1599
        %v1601 = vpop.f32.mrf.mxu0
        %v1602 = vpop.f32.mrf.mxu0
        %v1603 = vadd.f32 %v1030, %v1602
        %v1604 = vpop.f32.mrf.mxu0
        %1605 = vmatprep.mubr.bf16.mxu0 0
        %1606 = vmatmul.mubr.bf16.gmra.mxu0 %v704
        %v1607 = vpop.f32.mrf.mxu0
        %v1608 = vadd.f32 %v1035, %v1607
        %v1609 = vpop.f32.mrf.mxu0
        %v1610 = vpop.f32.mrf.mxu0
        %v1611 = vadd.f32 %v1038, %v1610
        %v1612 = vpop.f32.mrf.mxu0
        %1613 = vmatprep.mubr.bf16.mxu0 0
        %1614 = vmatmul.mubr.bf16.gmra.mxu0 %v707
        %v1615 = vpop.f32.mrf.mxu0
        %v1616 = vadd.f32 %v1043, %v1615
        %v1617 = vpop.f32.mrf.mxu0
        %v1618 = vpop.f32.mrf.mxu0
        %v1619 = vadd.f32 %v1046, %v1618
        %v1620 = vpop.f32.mrf.mxu0
        %1621 = vmatprep.mubr.bf16.mxu0 0
        %1622 = vmatmul.mubr.bf16.gmra.mxu0 %v710
        %v1623 = vpop.f32.mrf.mxu0
        %v1624 = vadd.f32 %v1051, %v1623
        %v1625 = vpop.f32.mrf.mxu0
        %v1626 = vpop.f32.mrf.mxu0
        %v1627 = vadd.f32 %v1054, %v1626
        %v1628 = vpop.f32.mrf.mxu0
        %1629 = vmatprep.mubr.bf16.mxu0 0
        %1630 = vmatmul.mubr.bf16.gmra.mxu0 %v713
        %v1631 = vpop.f32.mrf.mxu0
        %v1632 = vadd.f32 %v1059, %v1631
        %v1633 = vpop.f32.mrf.mxu0
        %v1634 = vpop.f32.mrf.mxu0
        %v1635 = vadd.f32 %v1062, %v1634
        %v1636 = vpop.f32.mrf.mxu0
        %1637 = vmatprep.mubr.bf16.mxu0 0
        %1638 = vmatmul.mubr.bf16.gmra.mxu0 %v716
        %v1639 = vpop.f32.mrf.mxu0
        %v1640 = vadd.f32 %v1067, %v1639
        %v1641 = vpop.f32.mrf.mxu0
        %v1642 = vpop.f32.mrf.mxu0
        %v1643 = vadd.f32 %v1070, %v1642
        %v1644 = vpop.f32.mrf.mxu0
        %1645 = vmatprep.mubr.bf16.mxu0 0
        %1646 = vmatmul.mubr.bf16.gmra.mxu0 %v719
        %v1647 = vpop.f32.mrf.mxu0
        %v1648 = vadd.f32 %v1075, %v1647
        %v1649 = vpop.f32.mrf.mxu0
        %v1650 = vpop.f32.mrf.mxu0
        %v1651 = vadd.f32 %v1078, %v1650
        %v1652 = vpop.f32.mrf.mxu0
        %1653 = vmatprep.mubr.bf16.mxu0 0
        %1654 = vmatmul.mubr.bf16.gmra.mxu0 %v722
        %v1655 = vpop.f32.mrf.mxu0
        %v1656 = vadd.f32 %v1083, %v1655
        %v1657 = vpop.f32.mrf.mxu0
        %v1658 = vpop.f32.mrf.mxu0
        %v1659 = vadd.f32 %v1086, %v1658
        %v1660 = vpop.f32.mrf.mxu0
        %1661 = vmatprep.mubr.bf16.mxu0 0
        %1662 = vmatmul.mubr.bf16.gmra.mxu0 %v725
        %v1663 = vpop.f32.mrf.mxu0
        %v1664 = vadd.f32 %v1091, %v1663
        %v1665 = vpop.f32.mrf.mxu0
        %v1666 = vpop.f32.mrf.mxu0
        %v1667 = vadd.f32 %v1094, %v1666
        %v1668 = vpop.f32.mrf.mxu0
        %1669 = vmatprep.mubr.bf16.mxu0 0
        %1670 = vmatmul.mubr.bf16.gmra.mxu0 %v728
        %v1671 = vpop.f32.mrf.mxu0
        %v1672 = vadd.f32 %v1099, %v1671
        %v1673 = vpop.f32.mrf.mxu0
        %v1674 = vpop.f32.mrf.mxu0
        %v1675 = vadd.f32 %v1102, %v1674
        %v1676 = vpop.f32.mrf.mxu0
        %1677 = vmatprep.mubr.bf16.mxu0 0
        %1678 = vmatmul.mubr.bf16.gmra.mxu0 %v731
        %v1679 = vpop.f32.mrf.mxu0
        %v1680 = vadd.f32 %v1107, %v1679
        %v1681 = vpop.f32.mrf.mxu0
        %v1682 = vpop.f32.mrf.mxu0
        %v1683 = vadd.f32 %v1110, %v1682
        %v1684 = vpop.f32.mrf.mxu0
        %1685 = vmatprep.mubr.bf16.mxu0 0
        %1686 = vmatmul.mubr.bf16.gmra.mxu0 %v734
        %v1687 = vpop.f32.mrf.mxu0
        %v1688 = vadd.f32 %v1115, %v1687
        %v1689 = vpop.f32.mrf.mxu0
        %v1690 = vpop.f32.mrf.mxu0
        %v1691 = vadd.f32 %v1118, %v1690
        %v1692 = vpop.f32.mrf.mxu0
        %1693 = vmatprep.mubr.bf16.mxu0 0
        %1694 = vmatmul.mubr.bf16.gmra.mxu0 %v737
        %v1695 = vpop.f32.mrf.mxu0
        %v1696 = vadd.f32 %v1123, %v1695
        %v1697 = vpop.f32.mrf.mxu0
        %v1698 = vpop.f32.mrf.mxu0
        %v1699 = vadd.f32 %v1126, %v1698
        %v1700 = vpop.f32.mrf.mxu0
        %1701 = vmatprep.mubr.bf16.mxu0 0
        %1702 = vmatmul.mubr.bf16.gmra.mxu0 %v740
        %v1703 = vpop.f32.mrf.mxu0
        %v1704 = vadd.f32 %v1131, %v1703
        %v1705 = vpop.f32.mrf.mxu0
        %v1706 = vpop.f32.mrf.mxu0
        %v1707 = vadd.f32 %v1134, %v1706
        %v1708 = vpop.f32.mrf.mxu0
        %1709 = vmatprep.mubr.bf16.mxu0 0
        %1710 = vmatmul.mubr.bf16.gmra.mxu0 %v743
        %v1711 = vpop.f32.mrf.mxu0
        %v1712 = vadd.f32 %v1139, %v1711
        %v1713 = vpop.f32.mrf.mxu0
        %v1714 = vpop.f32.mrf.mxu0
        %v1715 = vadd.f32 %v1142, %v1714
        %v1716 = vpop.f32.mrf.mxu0
        %1717 = vmatprep.mubr.bf16.mxu0 0
        %1718 = vmatmul.mubr.bf16.gmra.mxu0 %v746
        %v1719 = vpop.f32.mrf.mxu0
        %v1720 = vadd.f32 %v1147, %v1719
        %v1721 = vpop.f32.mrf.mxu0
        %v1722 = vpop.f32.mrf.mxu0
        %v1723 = vadd.f32 %v1150, %v1722
        %v1724 = vpop.f32.mrf.mxu0
        %1725 = vmatprep.mubr.bf16.mxu0 0
        %1726 = vmatmul.mubr.bf16.gmra.mxu0 %v749
        %v1727 = vpop.f32.mrf.mxu0
        %v1728 = vadd.f32 %v1155, %v1727
        %v1729 = vpop.f32.mrf.mxu0
        %v1730 = vpop.f32.mrf.mxu0
        %v1731 = vadd.f32 %v1158, %v1730
        %v1732 = vpop.f32.mrf.mxu0
        %1733 = vmatprep.mubr.bf16.mxu0 0
        %1734 = vmatmul.mubr.bf16.gmra.mxu0 %v752
        %v1735 = vpop.f32.mrf.mxu0
        %v1736 = vadd.f32 %v1163, %v1735
        %v1737 = vpop.f32.mrf.mxu0
        %v1738 = vpop.f32.mrf.mxu0
        %v1739 = vadd.f32 %v1166, %v1738
        %v1740 = vpop.f32.mrf.mxu0
        %1741 = vmatprep.mubr.bf16.mxu0 0
        %1742 = vmatmul.mubr.bf16.gmra.mxu0 %v755
        %v1743 = vpop.f32.mrf.mxu0
        %v1744 = vadd.f32 %v1171, %v1743
        %v1745 = vpop.f32.mrf.mxu0
        %v1746 = vpop.f32.mrf.mxu0
        %v1747 = vadd.f32 %v1174, %v1746
        %v1748 = vpop.f32.mrf.mxu0
        %1749 = vmatprep.mubr.bf16.mxu0 0
        %1750 = vmatmul.mubr.bf16.gmra.mxu0 %v758
        %v1751 = vpop.f32.mrf.mxu0
        %v1752 = vadd.f32 %v1179, %v1751
        %v1753 = vpop.f32.mrf.mxu0
        %v1754 = vpop.f32.mrf.mxu0
        %v1755 = vadd.f32 %v1182, %v1754
        %v1756 = vpop.f32.mrf.mxu0
        %1757 = vmatprep.mubr.bf16.mxu0 0
        %1758 = vmatmul.mubr.bf16.gmra.mxu0 %v761
        %v1759 = vpop.f32.mrf.mxu0
        %v1760 = vadd.f32 %v1187, %v1759
        %v1761 = vpop.f32.mrf.mxu0
        %v1762 = vpop.f32.mrf.mxu0
        %v1763 = vadd.f32 %v1190, %v1762
        %v1764 = vpop.f32.mrf.mxu0
        %1765 = vmatprep.mubr.bf16.mxu0 0
        %1766 = vmatmul.mubr.bf16.gmra.mxu0 %v764
        %v1767 = vpop.f32.mrf.mxu0
        %v1768 = vadd.f32 %v1195, %v1767
        %v1769 = vpop.f32.mrf.mxu0
        %v1770 = vpop.f32.mrf.mxu0
        %v1771 = vadd.f32 %v1198, %v1770
        %v1772 = vpop.f32.mrf.mxu0
        %1773 = vmatprep.mubr.bf16.mxu0 0
        %1774 = vmatmul.mubr.bf16.gmra.mxu0 %v767
        %v1775 = vpop.f32.mrf.mxu0
        %v1776 = vadd.f32 %v1203, %v1775
        %v1777 = vpop.f32.mrf.mxu0
        %v1778 = vpop.f32.mrf.mxu0
        %v1779 = vadd.f32 %v1206, %v1778
        %v1780 = vpop.f32.mrf.mxu0
        %1781 = vmatprep.mubr.bf16.mxu0 0
        %1782 = vmatmul.mubr.bf16.gmra.mxu0 %v770
        %v1783 = vpop.f32.mrf.mxu0
        %v1784 = vadd.f32 %v1211, %v1783
        %v1785 = vpop.f32.mrf.mxu0
        %v1786 = vpop.f32.mrf.mxu0
        %v1787 = vadd.f32 %v1214, %v1786
        %v1788 = vpop.f32.mrf.mxu0
        %1789 = vmatprep.mubr.bf16.mxu0 0
        %1790 = vmatmul.mubr.bf16.gmra.mxu0 %v773
        %v1791 = vpop.f32.mrf.mxu0
        %v1792 = vadd.f32 %v1219, %v1791
        %v1793 = vpop.f32.mrf.mxu0
        %v1794 = vpop.f32.mrf.mxu0
        %v1795 = vadd.f32 %v1222, %v1794
        %v1796 = vpop.f32.mrf.mxu0
        %1797 = vmatprep.mubr.bf16.mxu0 0
        %1798 = vmatmul.mubr.bf16.gmra.mxu0 %v776
        %v1799 = vpop.f32.mrf.mxu0
        %v1800 = vadd.f32 %v1227, %v1799
        %v1801 = vpop.f32.mrf.mxu0
        %v1802 = vpop.f32.mrf.mxu0
        %v1803 = vadd.f32 %v1230, %v1802
        %v1804 = vpop.f32.mrf.mxu0
        %1805 = vmatprep.mubr.bf16.mxu0 0
        %1806 = vmatmul.mubr.bf16.gmra.mxu0 %v779
        %v1807 = vpop.f32.mrf.mxu0
        %v1808 = vadd.f32 %v1235, %v1807
        %v1809 = vpop.f32.mrf.mxu0
        %v1810 = vpop.f32.mrf.mxu0
        %v1811 = vadd.f32 %v1238, %v1810
        %v1812 = vpop.f32.mrf.mxu0
        %1813 = vmatprep.mubr.bf16.mxu0 0
        %1814 = vmatmul.mubr.bf16.gmra.mxu0 %v782
        %v1815 = vpop.f32.mrf.mxu0
        %v1816 = vadd.f32 %v1243, %v1815
        %v1817 = vpop.f32.mrf.mxu0
        %v1818 = vpop.f32.mrf.mxu0
        %v1819 = vadd.f32 %v1246, %v1818
        %v1820 = vpop.f32.mrf.mxu0
        %1821 = vmatprep.mubr.bf16.mxu0 0
        %1822 = vmatmul.mubr.bf16.gmra.mxu0 %v785
        %v1823 = vpop.f32.mrf.mxu0
        %v1824 = vadd.f32 %v1251, %v1823
        %v1825 = vpop.f32.mrf.mxu0
        %v1826 = vpop.f32.mrf.mxu0
        %v1827 = vadd.f32 %v1254, %v1826
        %v1828 = vpop.f32.mrf.mxu0
        %1829 = vmatprep.mubr.bf16.mxu0 0
        %1830 = vmatmul.mubr.bf16.gmra.mxu0 %v788
        %v1831 = vpop.f32.mrf.mxu0
        %v1832 = vadd.f32 %v1259, %v1831
        %v1833 = vpop.f32.mrf.mxu0
        %v1834 = vpop.f32.mrf.mxu0
        %v1835 = vadd.f32 %v1262, %v1834
        %v1836 = vpop.f32.mrf.mxu0
        %1837 = vmatprep.mubr.bf16.mxu0 0
        %1838 = vmatmul.mubr.bf16.gmra.mxu0 %v791
        %v1839 = vpop.f32.mrf.mxu0
        %v1840 = vadd.f32 %v1267, %v1839
        %v1841 = vpop.f32.mrf.mxu0
        %v1842 = vpop.f32.mrf.mxu0
        %v1843 = vadd.f32 %v1270, %v1842
        %v1844 = vpop.f32.mrf.mxu0
        %1845 = vmatprep.mubr.bf16.mxu0 0
        %1846 = vmatmul.mubr.bf16.gmra.mxu0 %v794
        %v1847 = vpop.f32.mrf.mxu0
        %v1848 = vadd.f32 %v1275, %v1847
        %v1849 = vpop.f32.mrf.mxu0
        %v1850 = vpop.f32.mrf.mxu0
        %v1851 = vadd.f32 %v1278, %v1850
        %v1852 = vpop.f32.mrf.mxu0
        %1853 = vmatprep.mubr.bf16.mxu0 0
        %1854 = vmatmul.mubr.bf16.gmra.mxu0 %v797
        %v1855 = vpop.f32.mrf.mxu0
        %v1856 = vadd.f32 %v1283, %v1855
        %v1857 = vpop.f32.mrf.mxu0
        %v1858 = vpop.f32.mrf.mxu0
        %v1859 = vadd.f32 %v1286, %v1858
        %v1860 = vpop.f32.mrf.mxu0
        %1861 = vmatprep.mubr.bf16.mxu0 0
        %1862 = vmatmul.mubr.bf16.gmra.mxu0 %v800
        %v1863 = vpop.f32.mrf.mxu0
        %v1864 = vadd.f32 %v1291, %v1863
        %v1865 = vpop.f32.mrf.mxu0
        %v1866 = vpop.f32.mrf.mxu0
        %v1867 = vadd.f32 %v1294, %v1866
        %v1868 = vpop.f32.mrf.mxu0
        %1869 = vmatprep.mubr.bf16.mxu0 0
        %1870 = vmatmul.mubr.bf16.gmra.mxu0 %v803
        %v1871 = vpop.f32.mrf.mxu0
        %v1872 = vadd.f32 %v1299, %v1871
        %v1873 = vpop.f32.mrf.mxu0
        %v1874 = vpop.f32.mrf.mxu0
        %v1875 = vadd.f32 %v1302, %v1874
        %v1876 = vpop.f32.mrf.mxu0
        %1877 = vmatprep.mubr.bf16.mxu0 0
        %1878 = vmatmul.mubr.bf16.gmra.mxu0 %v806
        %v1879 = vpop.f32.mrf.mxu0
        %v1880 = vadd.f32 %v1307, %v1879
        %v1881 = vpop.f32.mrf.mxu0
        %v1882 = vpop.f32.mrf.mxu0
        %v1883 = vadd.f32 %v1310, %v1882
        %v1884 = vpop.f32.mrf.mxu0
        %1885 = vmatprep.mubr.bf16.mxu0 0
        %1886 = vmatmul.mubr.bf16.gmra.mxu0 %v809
        %v1887 = vpop.f32.mrf.mxu0
        %v1888 = vadd.f32 %v1315, %v1887
        %v1889 = vpop.f32.mrf.mxu0
        %v1890 = vpop.f32.mrf.mxu0
        %v1891 = vadd.f32 %v1318, %v1890
        %v1892 = vpop.f32.mrf.mxu0
        %1893 = vmatprep.mubr.bf16.mxu0 0
        %1894 = vmatmul.mubr.bf16.gmra.mxu0 %v812
        %v1895 = vpop.f32.mrf.mxu0
        %v1896 = vadd.f32 %v1323, %v1895
        %v1897 = vpop.f32.mrf.mxu0
        %v1898 = vpop.f32.mrf.mxu0
        %v1899 = vadd.f32 %v1326, %v1898
        %v1900 = vpop.f32.mrf.mxu0
        %1901 = vmatprep.mubr.bf16.mxu0 0
        %1902 = vmatmul.mubr.bf16.gmra.mxu0 %v815
        %v1903 = vpop.f32.mrf.mxu0
        %v1904 = vadd.f32 %v1331, %v1903
        %v1905 = vpop.f32.mrf.mxu0
        %v1906 = vpop.f32.mrf.mxu0
        %v1907 = vadd.f32 %v1334, %v1906
        %v1908 = vpop.f32.mrf.mxu0
        %1909 = vmatprep.mubr.bf16.mxu0 0
        %1910 = vmatmul.mubr.bf16.gmra.mxu0 %v818
        %v1911 = vpop.f32.mrf.mxu0
        %v1912 = vadd.f32 %v1339, %v1911
        %v1913 = vpop.f32.mrf.mxu0
        %v1914 = vpop.f32.mrf.mxu0
        %v1915 = vadd.f32 %v1342, %v1914
        %v1916 = vpop.f32.mrf.mxu0
        %1917 = vmatprep.mubr.bf16.mxu0 0
        %1918 = vmatmul.mubr.bf16.gmra.mxu0 %v821
        %v1919 = vpop.f32.mrf.mxu0
        %v1920 = vadd.f32 %v1347, %v1919
        %v1921 = vpop.f32.mrf.mxu0
        %v1922 = vpop.f32.mrf.mxu0
        %v1923 = vadd.f32 %v1350, %v1922
        %v1924 = vpop.f32.mrf.mxu0
        %1925 = vmatprep.mubr.bf16.mxu0 0
        %1926 = vmatmul.mubr.bf16.gmra.mxu0 %v824
        %v1927 = vpop.f32.mrf.mxu0
        %v1928 = vadd.f32 %v1355, %v1927
        %v1929 = vpop.f32.mrf.mxu0
        %v1930 = vpop.f32.mrf.mxu0
        %v1931 = vadd.f32 %v1358, %v1930
        %v1932 = vpop.f32.mrf.mxu0
        %1933 = vmatprep.mubr.bf16.mxu0 0
        %1934 = vmatmul.mubr.bf16.gmra.mxu0 %v827
        %v1935 = vpop.f32.mrf.mxu0
        %v1936 = vadd.f32 %v1363, %v1935
        %v1937 = vpop.f32.mrf.mxu0
        %v1938 = vpop.f32.mrf.mxu0
        %v1939 = vadd.f32 %v1366, %v1938
        %v1940 = vpop.f32.mrf.mxu0
        %1941 = vmatprep.mubr.bf16.mxu0 0
        %1942 = vmatmul.mubr.bf16.gmra.mxu0 %v830
        %v1943 = vpop.f32.mrf.mxu0
        %v1944 = vadd.f32 %v1371, %v1943
        %v1945 = vpop.f32.mrf.mxu0
        %v1946 = vpop.f32.mrf.mxu0
        %v1947 = vadd.f32 %v1374, %v1946
        %v1948 = vpop.f32.mrf.mxu0
        %1949 = vmatprep.mubr.bf16.mxu0 0
        %1950 = vmatmul.mubr.bf16.gmra.mxu0 %v833
        %v1951 = vpop.f32.mrf.mxu0
        %v1952 = vadd.f32 %v1379, %v1951
        %v1953 = vpop.f32.mrf.mxu0
        %v1954 = vpop.f32.mrf.mxu0
        %v1955 = vadd.f32 %v1382, %v1954
        %v1956 = vpop.f32.mrf.mxu0
        %1957 = vmatprep.mubr.bf16.mxu0 0
        %1958 = vmatmul.mubr.bf16.gmra.mxu0 %v836
        %v1959 = vpop.f32.mrf.mxu0
        %v1960 = vadd.f32 %v1387, %v1959
        %v1961 = vpop.f32.mrf.mxu0
        %v1962 = vpop.f32.mrf.mxu0
        %v1963 = vadd.f32 %v1390, %v1962
        %v1964 = vpop.f32.mrf.mxu0
        %1965 = vdwg.mxu0
        %1966 = vst [vmem:[%s181] sm:$0xff] %v1456
        %1967 = vst [vmem:[%s181 + $0x8] sm:$0xff] %v1459
        %1968 = vst [vmem:[%s181 + $0x10] sm:$0xff] %v1464
        %1969 = vst [vmem:[%s181 + $0x18] sm:$0xff] %v1467
        %1970 = vst [vmem:[%s181 + $0x20] sm:$0xff] %v1472
        %1971 = vst [vmem:[%s181 + $0x28] sm:$0xff] %v1475
        %1972 = vst [vmem:[%s181 + $0x30] sm:$0xff] %v1480
        %1973 = vst [vmem:[%s181 + $0x38] sm:$0xff] %v1483
        %1974 = vst [vmem:[%s181 + $0x40] sm:$0xff] %v1488
        %1975 = vst [vmem:[%s181 + $0x48] sm:$0xff] %v1491
        %1976 = vst [vmem:[%s181 + $0x50] sm:$0xff] %v1496
        %1977 = vst [vmem:[%s181 + $0x58] sm:$0xff] %v1499
        %1978 = vst [vmem:[%s181 + $0x60] sm:$0xff] %v1504
        %1979 = vst [vmem:[%s181 + $0x68] sm:$0xff] %v1507
        %1980 = vst [vmem:[%s181 + $0x70] sm:$0xff] %v1512
        %1981 = vst [vmem:[%s181 + $0x78] sm:$0xff] %v1515
        %1982 = vst [vmem:[%s181 + $0x80] sm:$0xff] %v1520
        %1983 = vst [vmem:[%s181 + $0x88] sm:$0xff] %v1523
        %1984 = vst [vmem:[%s181 + $0x90] sm:$0xff] %v1528
        %1985 = vst [vmem:[%s181 + $0x98] sm:$0xff] %v1531
        %1986 = vst [vmem:[%s181 + $0xa0] sm:$0xff] %v1536
        %1987 = vst [vmem:[%s181 + $0xa8] sm:$0xff] %v1539
        %1988 = vst [vmem:[%s181 + $0xb0] sm:$0xff] %v1544
        %1989 = vst [vmem:[%s181 + $0xb8] sm:$0xff] %v1547
        %1990 = vst [vmem:[%s181 + $0xc0] sm:$0xff] %v1552
        %1991 = vst [vmem:[%s181 + $0xc8] sm:$0xff] %v1555
        %1992 = vst [vmem:[%s181 + $0xd0] sm:$0xff] %v1560
        %1993 = vst [vmem:[%s181 + $0xd8] sm:$0xff] %v1563
        %1994 = vst [vmem:[%s181 + $0xe0] sm:$0xff] %v1568
        %1995 = vst [vmem:[%s181 + $0xe8] sm:$0xff] %v1571
        %1996 = vst [vmem:[%s181 + $0xf0] sm:$0xff] %v1576
        %1997 = vst [vmem:[%s181 + $0xf8] sm:$0xff] %v1579
        %1998 = vst [vmem:[%s181 + $0x100] sm:$0xff] %v1584
        %1999 = vst [vmem:[%s181 + $0x108] sm:$0xff] %v1587
        %2000 = vst [vmem:[%s181 + $0x110] sm:$0xff] %v1592
        %2001 = vst [vmem:[%s181 + $0x118] sm:$0xff] %v1595
        %2002 = vst [vmem:[%s181 + $0x120] sm:$0xff] %v1600
        %2003 = vst [vmem:[%s181 + $0x128] sm:$0xff] %v1603
        %2004 = vst [vmem:[%s181 + $0x130] sm:$0xff] %v1608
        %2005 = vst [vmem:[%s181 + $0x138] sm:$0xff] %v1611
        %2006 = vst [vmem:[%s181 + $0x140] sm:$0xff] %v1616
        %2007 = vst [vmem:[%s181 + $0x148] sm:$0xff] %v1619
        %2008 = vst [vmem:[%s181 + $0x150] sm:$0xff] %v1624
        %2009 = vst [vmem:[%s181 + $0x158] sm:$0xff] %v1627
        %2010 = vst [vmem:[%s181 + $0x160] sm:$0xff] %v1632
        %2011 = vst [vmem:[%s181 + $0x168] sm:$0xff] %v1635
        %2012 = vst [vmem:[%s181 + $0x170] sm:$0xff] %v1640
        %2013 = vst [vmem:[%s181 + $0x178] sm:$0xff] %v1643
        %2014 = vst [vmem:[%s181 + $0x180] sm:$0xff] %v1648
        %2015 = vst [vmem:[%s181 + $0x188] sm:$0xff] %v1651
        %2016 = vst [vmem:[%s181 + $0x190] sm:$0xff] %v1656
        %2017 = vst [vmem:[%s181 + $0x198] sm:$0xff] %v1659
        %2018 = vst [vmem:[%s181 + $0x1a0] sm:$0xff] %v1664
        %2019 = vst [vmem:[%s181 + $0x1a8] sm:$0xff] %v1667
        %2020 = vst [vmem:[%s181 + $0x1b0] sm:$0xff] %v1672
        %2021 = vst [vmem:[%s181 + $0x1b8] sm:$0xff] %v1675
        %2022 = vst [vmem:[%s181 + $0x1c0] sm:$0xff] %v1680
        %2023 = vst [vmem:[%s181 + $0x1c8] sm:$0xff] %v1683
        %2024 = vst [vmem:[%s181 + $0x1d0] sm:$0xff] %v1688
        %2025 = vst [vmem:[%s181 + $0x1d8] sm:$0xff] %v1691
        %2026 = vst [vmem:[%s181 + $0x1e0] sm:$0xff] %v1696
        %2027 = vst [vmem:[%s181 + $0x1e8] sm:$0xff] %v1699
        %2028 = vst [vmem:[%s181 + $0x1f0] sm:$0xff] %v1704
        %2029 = vst [vmem:[%s181 + $0x1f8] sm:$0xff] %v1707
        %2030 = vst [vmem:[%s181 + $0x200] sm:$0xff] %v1712
        %2031 = vst [vmem:[%s181 + $0x208] sm:$0xff] %v1715
        %2032 = vst [vmem:[%s181 + $0x210] sm:$0xff] %v1720
        %2033 = vst [vmem:[%s181 + $0x218] sm:$0xff] %v1723
        %2034 = vst [vmem:[%s181 + $0x220] sm:$0xff] %v1728
        %2035 = vst [vmem:[%s181 + $0x228] sm:$0xff] %v1731
        %2036 = vst [vmem:[%s181 + $0x230] sm:$0xff] %v1736
        %2037 = vst [vmem:[%s181 + $0x238] sm:$0xff] %v1739
        %2038 = vst [vmem:[%s181 + $0x240] sm:$0xff] %v1744
        %2039 = vst [vmem:[%s181 + $0x248] sm:$0xff] %v1747
        %2040 = vst [vmem:[%s181 + $0x250] sm:$0xff] %v1752
        %2041 = vst [vmem:[%s181 + $0x258] sm:$0xff] %v1755
        %2042 = vst [vmem:[%s181 + $0x260] sm:$0xff] %v1760
        %2043 = vst [vmem:[%s181 + $0x268] sm:$0xff] %v1763
        %2044 = vst [vmem:[%s181 + $0x270] sm:$0xff] %v1768
        %2045 = vst [vmem:[%s181 + $0x278] sm:$0xff] %v1771
        %2046 = vst [vmem:[%s181 + $0x280] sm:$0xff] %v1776
        %2047 = vst [vmem:[%s181 + $0x288] sm:$0xff] %v1779
        %2048 = vst [vmem:[%s181 + $0x290] sm:$0xff] %v1784
        %2049 = vst [vmem:[%s181 + $0x298] sm:$0xff] %v1787
        %2050 = vst [vmem:[%s181 + $0x2a0] sm:$0xff] %v1792
        %2051 = vst [vmem:[%s181 + $0x2a8] sm:$0xff] %v1795
        %2052 = vst [vmem:[%s181 + $0x2b0] sm:$0xff] %v1800
        %2053 = vst [vmem:[%s181 + $0x2b8] sm:$0xff] %v1803
        %2054 = vst [vmem:[%s181 + $0x2c0] sm:$0xff] %v1808
        %2055 = vst [vmem:[%s181 + $0x2c8] sm:$0xff] %v1811
        %2056 = vst [vmem:[%s181 + $0x2d0] sm:$0xff] %v1816
        %2057 = vst [vmem:[%s181 + $0x2d8] sm:$0xff] %v1819
        %2058 = vst [vmem:[%s181 + $0x2e0] sm:$0xff] %v1824
        %2059 = vst [vmem:[%s181 + $0x2e8] sm:$0xff] %v1827
        %2060 = vst [vmem:[%s181 + $0x2f0] sm:$0xff] %v1832
        %2061 = vst [vmem:[%s181 + $0x2f8] sm:$0xff] %v1835
        %2062 = vst [vmem:[%s181 + $0x300] sm:$0xff] %v1840
        %2063 = vst [vmem:[%s181 + $0x308] sm:$0xff] %v1843
        %2064 = vst [vmem:[%s181 + $0x310] sm:$0xff] %v1848
        %2065 = vst [vmem:[%s181 + $0x318] sm:$0xff] %v1851
        %2066 = vst [vmem:[%s181 + $0x320] sm:$0xff] %v1856
        %2067 = vst [vmem:[%s181 + $0x328] sm:$0xff] %v1859
        %2068 = vst [vmem:[%s181 + $0x330] sm:$0xff] %v1864
        %2069 = vst [vmem:[%s181 + $0x338] sm:$0xff] %v1867
        %2070 = vst [vmem:[%s181 + $0x340] sm:$0xff] %v1872
        %2071 = vst [vmem:[%s181 + $0x348] sm:$0xff] %v1875
        %2072 = vst [vmem:[%s181 + $0x350] sm:$0xff] %v1880
        %2073 = vst [vmem:[%s181 + $0x358] sm:$0xff] %v1883
        %2074 = vst [vmem:[%s181 + $0x360] sm:$0xff] %v1888
        %2075 = vst [vmem:[%s181 + $0x368] sm:$0xff] %v1891
        %2076 = vst [vmem:[%s181 + $0x370] sm:$0xff] %v1896
        %2077 = vst [vmem:[%s181 + $0x378] sm:$0xff] %v1899
        %2078 = vst [vmem:[%s181 + $0x380] sm:$0xff] %v1904
        %2079 = vst [vmem:[%s181 + $0x388] sm:$0xff] %v1907
        %2080 = vst [vmem:[%s181 + $0x390] sm:$0xff] %v1912
        %2081 = vst [vmem:[%s181 + $0x398] sm:$0xff] %v1915
        %2082 = vst [vmem:[%s181 + $0x3a0] sm:$0xff] %v1920
        %2083 = vst [vmem:[%s181 + $0x3a8] sm:$0xff] %v1923
        %2084 = vst [vmem:[%s181 + $0x3b0] sm:$0xff] %v1928
        %2085 = vst [vmem:[%s181 + $0x3b8] sm:$0xff] %v1931
        %2086 = vst [vmem:[%s181 + $0x3c0] sm:$0xff] %v1936
        %2087 = vst [vmem:[%s181 + $0x3c8] sm:$0xff] %v1939
        %2088 = vst [vmem:[%s181 + $0x3d0] sm:$0xff] %v1944
        %2089 = vst [vmem:[%s181 + $0x3d8] sm:$0xff] %v1947
        %2090 = vst [vmem:[%s181 + $0x3e0] sm:$0xff] %v1952
        %2091 = vst [vmem:[%s181 + $0x3e8] sm:$0xff] %v1955
        %2092 = vst [vmem:[%s181 + $0x3f0] sm:$0xff] %v1960
        %2093 = vst [vmem:[%s181 + $0x3f8] sm:$0xff] %v1963
        %v2094 = vadd.f32 %v1456, %v1459
        %v2095 = vadd.f32 %v2094, %v1464
        %v2096 = vadd.f32 %v2095, %v1467
        %v2097 = vadd.f32 %v2096, %v1472
        %v2098 = vadd.f32 %v2097, %v1475
        %v2099 = vadd.f32 %v2098, %v1480
        %v2100 = vadd.f32 %v2099, %v1483
        %v2101 = vadd.f32 %v2100, %v1488
        %v2102 = vadd.f32 %v2101, %v1491
        %v2103 = vadd.f32 %v2102, %v1496
        %v2104 = vadd.f32 %v2103, %v1499
        %v2105 = vadd.f32 %v2104, %v1504
        %v2106 = vadd.f32 %v2105, %v1507
        %v2107 = vadd.f32 %v2106, %v1512
        %v2108 = vadd.f32 %v2107, %v1515
        %v2109 = vadd.f32 %v2108, %v1520
        %v2110 = vadd.f32 %v2109, %v1523
        %v2111 = vadd.f32 %v2110, %v1528
        %v2112 = vadd.f32 %v2111, %v1531
        %v2113 = vadd.f32 %v2112, %v1536
        %v2114 = vadd.f32 %v2113, %v1539
        %v2115 = vadd.f32 %v2114, %v1544
        %v2116 = vadd.f32 %v2115, %v1547
        %v2117 = vadd.f32 %v2116, %v1552
        %v2118 = vadd.f32 %v2117, %v1555
        %v2119 = vadd.f32 %v2118, %v1560
        %v2120 = vadd.f32 %v2119, %v1563
        %v2121 = vadd.f32 %v2120, %v1568
        %v2122 = vadd.f32 %v2121, %v1571
        %v2123 = vadd.f32 %v2122, %v1576
        %v2124 = vadd.f32 %v2123, %v1579
        %v2125 = vadd.f32 %v2124, %v1584
        %v2126 = vadd.f32 %v2125, %v1587
        %v2127 = vadd.f32 %v2126, %v1592
        %v2128 = vadd.f32 %v2127, %v1595
        %v2129 = vadd.f32 %v2128, %v1600
        %v2130 = vadd.f32 %v2129, %v1603
        %v2131 = vadd.f32 %v2130, %v1608
        %v2132 = vadd.f32 %v2131, %v1611
        %v2133 = vadd.f32 %v2132, %v1616
        %v2134 = vadd.f32 %v2133, %v1619
        %v2135 = vadd.f32 %v2134, %v1624
        %v2136 = vadd.f32 %v2135, %v1627
        %v2137 = vadd.f32 %v2136, %v1632
        %v2138 = vadd.f32 %v2137, %v1635
        %v2139 = vadd.f32 %v2138, %v1640
        %v2140 = vadd.f32 %v2139, %v1643
        %v2141 = vadd.f32 %v2140, %v1648
        %v2142 = vadd.f32 %v2141, %v1651
        %v2143 = vadd.f32 %v2142, %v1656
        %v2144 = vadd.f32 %v2143, %v1659
        %v2145 = vadd.f32 %v2144, %v1664
        %v2146 = vadd.f32 %v2145, %v1667
        %v2147 = vadd.f32 %v2146, %v1672
        %v2148 = vadd.f32 %v2147, %v1675
        %v2149 = vadd.f32 %v2148, %v1680
        %v2150 = vadd.f32 %v2149, %v1683
        %v2151 = vadd.f32 %v2150, %v1688
        %v2152 = vadd.f32 %v2151, %v1691
        %v2153 = vadd.f32 %v2152, %v1696
        %v2154 = vadd.f32 %v2153, %v1699
        %v2155 = vadd.f32 %v2154, %v1704
        %v2156 = vadd.f32 %v2155, %v1707
        %v2157 = vadd.f32 %v2156, %v1712
        %v2158 = vadd.f32 %v2157, %v1715
        %v2159 = vadd.f32 %v2158, %v1720
        %v2160 = vadd.f32 %v2159, %v1723
        %v2161 = vadd.f32 %v2160, %v1728
        %v2162 = vadd.f32 %v2161, %v1731
        %v2163 = vadd.f32 %v2162, %v1736
        %v2164 = vadd.f32 %v2163, %v1739
        %v2165 = vadd.f32 %v2164, %v1744
        %v2166 = vadd.f32 %v2165, %v1747
        %v2167 = vadd.f32 %v2166, %v1752
        %v2168 = vadd.f32 %v2167, %v1755
        %v2169 = vadd.f32 %v2168, %v1760
        %v2170 = vadd.f32 %v2169, %v1763
        %v2171 = vadd.f32 %v2170, %v1768
        %v2172 = vadd.f32 %v2171, %v1771
        %v2173 = vadd.f32 %v2172, %v1776
        %v2174 = vadd.f32 %v2173, %v1779
        %v2175 = vadd.f32 %v2174, %v1784
        %v2176 = vadd.f32 %v2175, %v1787
        %v2177 = vadd.f32 %v2176, %v1792
        %v2178 = vadd.f32 %v2177, %v1795
        %v2179 = vadd.f32 %v2178, %v1800
        %v2180 = vadd.f32 %v2179, %v1803
        %v2181 = vadd.f32 %v2180, %v1808
        %v2182 = vadd.f32 %v2181, %v1811
        %v2183 = vadd.f32 %v2182, %v1816
        %v2184 = vadd.f32 %v2183, %v1819
        %v2185 = vadd.f32 %v2184, %v1824
        %v2186 = vadd.f32 %v2185, %v1827
        %v2187 = vadd.f32 %v2186, %v1832
        %v2188 = vadd.f32 %v2187, %v1835
        %v2189 = vadd.f32 %v2188, %v1840
        %v2190 = vadd.f32 %v2189, %v1843
        %v2191 = vadd.f32 %v2190, %v1848
        %v2192 = vadd.f32 %v2191, %v1851
        %v2193 = vadd.f32 %v2192, %v1856
        %v2194 = vadd.f32 %v2193, %v1859
        %v2195 = vadd.f32 %v2194, %v1864
        %v2196 = vadd.f32 %v2195, %v1867
        %v2197 = vadd.f32 %v2196, %v1872
        %v2198 = vadd.f32 %v2197, %v1875
        %v2199 = vadd.f32 %v2198, %v1880
        %v2200 = vadd.f32 %v2199, %v1883
        %v2201 = vadd.f32 %v2200, %v1888
        %v2202 = vadd.f32 %v2201, %v1891
        %v2203 = vadd.f32 %v2202, %v1896
        %v2204 = vadd.f32 %v2203, %v1899
        %v2205 = vadd.f32 %v2204, %v1904
        %v2206 = vadd.f32 %v2205, %v1907
        %v2207 = vadd.f32 %v2206, %v1912
        %v2208 = vadd.f32 %v2207, %v1915
        %v2209 = vadd.f32 %v2208, %v1920
        %v2210 = vadd.f32 %v2209, %v1923
        %v2211 = vadd.f32 %v2210, %v1928
        %v2212 = vadd.f32 %v2211, %v1931
        %v2213 = vadd.f32 %v2212, %v1936
        %v2214 = vadd.f32 %v2213, %v1939
        %v2215 = vadd.f32 %v2214, %v1944
        %v2216 = vadd.f32 %v2215, %v1947
        %v2217 = vadd.f32 %v2216, %v1952
        %v2218 = vadd.f32 %v2217, %v1955
        %v2219 = vadd.f32 %v2218, %v1960
        %v2220 = vadd.f32 %v2219, %v1963
        %v2221 = vrot.slane %v2220, 4
        %v2222 = vadd.f32 %v2220, %v2221
        %v2223 = vrot.slane %v2222, 2
        %v2224 = vadd.f32 %v2222, %v2223
        %v2225 = vrot.slane %v2224, 1
        %v2226 = vadd.f32 %v2224, %v2225
        %2227 = vst [vmem:[%s171] sm:$0x1] %v2226
        %v2228 = vmul.f32 %v1456, %v1456
        %v2229 = vmul.f32 %v1459, %v1459
        %v2230 = vmul.f32 %v1464, %v1464
        %v2231 = vmul.f32 %v1467, %v1467
        %v2232 = vmul.f32 %v1472, %v1472
        %v2233 = vmul.f32 %v1475, %v1475
        %v2234 = vmul.f32 %v1480, %v1480
        %v2235 = vmul.f32 %v1483, %v1483
        %v2236 = vmul.f32 %v1488, %v1488
        %v2237 = vmul.f32 %v1491, %v1491
        %v2238 = vmul.f32 %v1496, %v1496
        %v2239 = vmul.f32 %v1499, %v1499
        %v2240 = vmul.f32 %v1504, %v1504
        %v2241 = vmul.f32 %v1507, %v1507
        %v2242 = vmul.f32 %v1512, %v1512
        %v2243 = vmul.f32 %v1515, %v1515
        %v2244 = vmul.f32 %v1520, %v1520
        %v2245 = vmul.f32 %v1523, %v1523
        %v2246 = vmul.f32 %v1528, %v1528
        %v2247 = vmul.f32 %v1531, %v1531
        %v2248 = vmul.f32 %v1536, %v1536
        %v2249 = vmul.f32 %v1539, %v1539
        %v2250 = vmul.f32 %v1544, %v1544
        %v2251 = vmul.f32 %v1547, %v1547
        %v2252 = vmul.f32 %v1552, %v1552
        %v2253 = vmul.f32 %v1555, %v1555
        %v2254 = vmul.f32 %v1560, %v1560
        %v2255 = vmul.f32 %v1563, %v1563
        %v2256 = vmul.f32 %v1568, %v1568
        %v2257 = vmul.f32 %v1571, %v1571
        %v2258 = vmul.f32 %v1576, %v1576
        %v2259 = vmul.f32 %v1579, %v1579
        %v2260 = vmul.f32 %v1584, %v1584
        %v2261 = vmul.f32 %v1587, %v1587
        %v2262 = vmul.f32 %v1592, %v1592
        %v2263 = vmul.f32 %v1595, %v1595
        %v2264 = vmul.f32 %v1600, %v1600
        %v2265 = vmul.f32 %v1603, %v1603
        %v2266 = vmul.f32 %v1608, %v1608
        %v2267 = vmul.f32 %v1611, %v1611
        %v2268 = vmul.f32 %v1616, %v1616
        %v2269 = vmul.f32 %v1619, %v1619
        %v2270 = vmul.f32 %v1624, %v1624
        %v2271 = vmul.f32 %v1627, %v1627
        %v2272 = vmul.f32 %v1632, %v1632
        %v2273 = vmul.f32 %v1635, %v1635
        %v2274 = vmul.f32 %v1640, %v1640
        %v2275 = vmul.f32 %v1643, %v1643
        %v2276 = vmul.f32 %v1648, %v1648
        %v2277 = vmul.f32 %v1651, %v1651
        %v2278 = vmul.f32 %v1656, %v1656
        %v2279 = vmul.f32 %v1659, %v1659
        %v2280 = vmul.f32 %v1664, %v1664
        %v2281 = vmul.f32 %v1667, %v1667
        %v2282 = vmul.f32 %v1672, %v1672
        %v2283 = vmul.f32 %v1675, %v1675
        %v2284 = vmul.f32 %v1680, %v1680
        %v2285 = vmul.f32 %v1683, %v1683
        %v2286 = vmul.f32 %v1688, %v1688
        %v2287 = vmul.f32 %v1691, %v1691
        %v2288 = vmul.f32 %v1696, %v1696
        %v2289 = vmul.f32 %v1699, %v1699
        %v2290 = vmul.f32 %v1704, %v1704
        %v2291 = vmul.f32 %v1707, %v1707
        %v2292 = vmul.f32 %v1712, %v1712
        %v2293 = vmul.f32 %v1715, %v1715
        %v2294 = vmul.f32 %v1720, %v1720
        %v2295 = vmul.f32 %v1723, %v1723
        %v2296 = vmul.f32 %v1728, %v1728
        %v2297 = vmul.f32 %v1731, %v1731
        %v2298 = vmul.f32 %v1736, %v1736
        %v2299 = vmul.f32 %v1739, %v1739
        %v2300 = vmul.f32 %v1744, %v1744
        %v2301 = vmul.f32 %v1747, %v1747
        %v2302 = vmul.f32 %v1752, %v1752
        %v2303 = vmul.f32 %v1755, %v1755
        %v2304 = vmul.f32 %v1760, %v1760
        %v2305 = vmul.f32 %v1763, %v1763
        %v2306 = vmul.f32 %v1768, %v1768
        %v2307 = vmul.f32 %v1771, %v1771
        %v2308 = vmul.f32 %v1776, %v1776
        %v2309 = vmul.f32 %v1779, %v1779
        %v2310 = vmul.f32 %v1784, %v1784
        %v2311 = vmul.f32 %v1787, %v1787
        %v2312 = vmul.f32 %v1792, %v1792
        %v2313 = vmul.f32 %v1795, %v1795
        %v2314 = vmul.f32 %v1800, %v1800
        %v2315 = vmul.f32 %v1803, %v1803
        %v2316 = vmul.f32 %v1808, %v1808
        %v2317 = vmul.f32 %v1811, %v1811
        %v2318 = vmul.f32 %v1816, %v1816
        %v2319 = vmul.f32 %v1819, %v1819
        %v2320 = vmul.f32 %v1824, %v1824
        %v2321 = vmul.f32 %v1827, %v1827
        %v2322 = vmul.f32 %v1832, %v1832
        %v2323 = vmul.f32 %v1835, %v1835
        %v2324 = vmul.f32 %v1840, %v1840
        %v2325 = vmul.f32 %v1843, %v1843
        %v2326 = vmul.f32 %v1848, %v1848
        %v2327 = vmul.f32 %v1851, %v1851
        %v2328 = vmul.f32 %v1856, %v1856
        %v2329 = vmul.f32 %v1859, %v1859
        %v2330 = vmul.f32 %v1864, %v1864
        %v2331 = vmul.f32 %v1867, %v1867
        %v2332 = vmul.f32 %v1872, %v1872
        %v2333 = vmul.f32 %v1875, %v1875
        %v2334 = vmul.f32 %v1880, %v1880
        %v2335 = vmul.f32 %v1883, %v1883
        %v2336 = vmul.f32 %v1888, %v1888
        %v2337 = vmul.f32 %v1891, %v1891
        %v2338 = vmul.f32 %v1896, %v1896
        %v2339 = vmul.f32 %v1899, %v1899
        %v2340 = vmul.f32 %v1904, %v1904
        %v2341 = vmul.f32 %v1907, %v1907
        %v2342 = vmul.f32 %v1912, %v1912
        %v2343 = vmul.f32 %v1915, %v1915
        %v2344 = vmul.f32 %v1920, %v1920
        %v2345 = vmul.f32 %v1923, %v1923
        %v2346 = vmul.f32 %v1928, %v1928
        %v2347 = vmul.f32 %v1931, %v1931
        %v2348 = vmul.f32 %v1936, %v1936
        %v2349 = vmul.f32 %v1939, %v1939
        %v2350 = vmul.f32 %v1944, %v1944
        %v2351 = vmul.f32 %v1947, %v1947
        %v2352 = vmul.f32 %v1952, %v1952
        %v2353 = vmul.f32 %v1955, %v1955
        %v2354 = vmul.f32 %v1960, %v1960
        %v2355 = vmul.f32 %v1963, %v1963
        %v2356 = vadd.f32 %v2228, %v2229
        %v2357 = vadd.f32 %v2356, %v2230
        %v2358 = vadd.f32 %v2357, %v2231
        %v2359 = vadd.f32 %v2358, %v2232
        %v2360 = vadd.f32 %v2359, %v2233
        %v2361 = vadd.f32 %v2360, %v2234
        %v2362 = vadd.f32 %v2361, %v2235
        %v2363 = vadd.f32 %v2362, %v2236
        %v2364 = vadd.f32 %v2363, %v2237
        %v2365 = vadd.f32 %v2364, %v2238
        %v2366 = vadd.f32 %v2365, %v2239
        %v2367 = vadd.f32 %v2366, %v2240
        %v2368 = vadd.f32 %v2367, %v2241
        %v2369 = vadd.f32 %v2368, %v2242
        %v2370 = vadd.f32 %v2369, %v2243
        %v2371 = vadd.f32 %v2370, %v2244
        %v2372 = vadd.f32 %v2371, %v2245
        %v2373 = vadd.f32 %v2372, %v2246
        %v2374 = vadd.f32 %v2373, %v2247
        %v2375 = vadd.f32 %v2374, %v2248
        %v2376 = vadd.f32 %v2375, %v2249
        %v2377 = vadd.f32 %v2376, %v2250
        %v2378 = vadd.f32 %v2377, %v2251
        %v2379 = vadd.f32 %v2378, %v2252
        %v2380 = vadd.f32 %v2379, %v2253
        %v2381 = vadd.f32 %v2380, %v2254
        %v2382 = vadd.f32 %v2381, %v2255
        %v2383 = vadd.f32 %v2382, %v2256
        %v2384 = vadd.f32 %v2383, %v2257
        %v2385 = vadd.f32 %v2384, %v2258
        %v2386 = vadd.f32 %v2385, %v2259
        %v2387 = vadd.f32 %v2386, %v2260
        %v2388 = vadd.f32 %v2387, %v2261
        %v2389 = vadd.f32 %v2388, %v2262
        %v2390 = vadd.f32 %v2389, %v2263
        %v2391 = vadd.f32 %v2390, %v2264
        %v2392 = vadd.f32 %v2391, %v2265
        %v2393 = vadd.f32 %v2392, %v2266
        %v2394 = vadd.f32 %v2393, %v2267
        %v2395 = vadd.f32 %v2394, %v2268
        %v2396 = vadd.f32 %v2395, %v2269
        %v2397 = vadd.f32 %v2396, %v2270
        %v2398 = vadd.f32 %v2397, %v2271
        %v2399 = vadd.f32 %v2398, %v2272
        %v2400 = vadd.f32 %v2399, %v2273
        %v2401 = vadd.f32 %v2400, %v2274
        %v2402 = vadd.f32 %v2401, %v2275
        %v2403 = vadd.f32 %v2402, %v2276
        %v2404 = vadd.f32 %v2403, %v2277
        %v2405 = vadd.f32 %v2404, %v2278
        %v2406 = vadd.f32 %v2405, %v2279
        %v2407 = vadd.f32 %v2406, %v2280
        %v2408 = vadd.f32 %v2407, %v2281
        %v2409 = vadd.f32 %v2408, %v2282
        %v2410 = vadd.f32 %v2409, %v2283
        %v2411 = vadd.f32 %v2410, %v2284
        %v2412 = vadd.f32 %v2411, %v2285
        %v2413 = vadd.f32 %v2412, %v2286
        %v2414 = vadd.f32 %v2413, %v2287
        %v2415 = vadd.f32 %v2414, %v2288
        %v2416 = vadd.f32 %v2415, %v2289
        %v2417 = vadd.f32 %v2416, %v2290
        %v2418 = vadd.f32 %v2417, %v2291
        %v2419 = vadd.f32 %v2418, %v2292
        %v2420 = vadd.f32 %v2419, %v2293
        %v2421 = vadd.f32 %v2420, %v2294
        %v2422 = vadd.f32 %v2421, %v2295
        %v2423 = vadd.f32 %v2422, %v2296
        %v2424 = vadd.f32 %v2423, %v2297
        %v2425 = vadd.f32 %v2424, %v2298
        %v2426 = vadd.f32 %v2425, %v2299
        %v2427 = vadd.f32 %v2426, %v2300
        %v2428 = vadd.f32 %v2427, %v2301
        %v2429 = vadd.f32 %v2428, %v2302
        %v2430 = vadd.f32 %v2429, %v2303
        %v2431 = vadd.f32 %v2430, %v2304
        %v2432 = vadd.f32 %v2431, %v2305
        %v2433 = vadd.f32 %v2432, %v2306
        %v2434 = vadd.f32 %v2433, %v2307
        %v2435 = vadd.f32 %v2434, %v2308
        %v2436 = vadd.f32 %v2435, %v2309
        %v2437 = vadd.f32 %v2436, %v2310
        %v2438 = vadd.f32 %v2437, %v2311
        %v2439 = vadd.f32 %v2438, %v2312
        %v2440 = vadd.f32 %v2439, %v2313
        %v2441 = vadd.f32 %v2440, %v2314
        %v2442 = vadd.f32 %v2441, %v2315
        %v2443 = vadd.f32 %v2442, %v2316
        %v2444 = vadd.f32 %v2443, %v2317
        %v2445 = vadd.f32 %v2444, %v2318
        %v2446 = vadd.f32 %v2445, %v2319
        %v2447 = vadd.f32 %v2446, %v2320
        %v2448 = vadd.f32 %v2447, %v2321
        %v2449 = vadd.f32 %v2448, %v2322
        %v2450 = vadd.f32 %v2449, %v2323
        %v2451 = vadd.f32 %v2450, %v2324
        %v2452 = vadd.f32 %v2451, %v2325
        %v2453 = vadd.f32 %v2452, %v2326
        %v2454 = vadd.f32 %v2453, %v2327
        %v2455 = vadd.f32 %v2454, %v2328
        %v2456 = vadd.f32 %v2455, %v2329
        %v2457 = vadd.f32 %v2456, %v2330
        %v2458 = vadd.f32 %v2457, %v2331
        %v2459 = vadd.f32 %v2458, %v2332
        %v2460 = vadd.f32 %v2459, %v2333
        %v2461 = vadd.f32 %v2460, %v2334
        %v2462 = vadd.f32 %v2461, %v2335
        %v2463 = vadd.f32 %v2462, %v2336
        %v2464 = vadd.f32 %v2463, %v2337
        %v2465 = vadd.f32 %v2464, %v2338
        %v2466 = vadd.f32 %v2465, %v2339
        %v2467 = vadd.f32 %v2466, %v2340
        %v2468 = vadd.f32 %v2467, %v2341
        %v2469 = vadd.f32 %v2468, %v2342
        %v2470 = vadd.f32 %v2469, %v2343
        %v2471 = vadd.f32 %v2470, %v2344
        %v2472 = vadd.f32 %v2471, %v2345
        %v2473 = vadd.f32 %v2472, %v2346
        %v2474 = vadd.f32 %v2473, %v2347
        %v2475 = vadd.f32 %v2474, %v2348
        %v2476 = vadd.f32 %v2475, %v2349
        %v2477 = vadd.f32 %v2476, %v2350
        %v2478 = vadd.f32 %v2477, %v2351
        %v2479 = vadd.f32 %v2478, %v2352
        %v2480 = vadd.f32 %v2479, %v2353
        %v2481 = vadd.f32 %v2480, %v2354
        %v2482 = vadd.f32 %v2481, %v2355
        %v2483 = vrot.slane %v2482, 4
        %v2484 = vadd.f32 %v2482, %v2483
        %v2485 = vrot.slane %v2484, 2
        %v2486 = vadd.f32 %v2484, %v2485
        %v2487 = vrot.slane %v2486, 1
        %v2488 = vadd.f32 %v2486, %v2487
        %2489 = vst [vmem:[%s171 + $0x1] sm:$0x1] %v2488
        %p2490 = scmp.lt.s32.totalorder %s18, 1
        %s2491 = scalar_select %p2490, %s18, 1
        %s2492 = smul.addr %s2491, 128
        %s2493 = smul.addr %s2492, 8
        %s2494 = scalar_lea.vmem %s2, %s2493
        %s2495 = sand.u32 %s99, 1
        %s2496 = scalar_lea.sflag [#allocation3], %s2495
        %s2497 = sand.u32 %s99, 1
        %s2498 = smul.addr %s2497, 2
        %s2499 = scalar_lea.vmem [#allocation2], %s2498
        // Predicated region
        $region29: #{discriminator_pallas.5} parent=27 // pred_check
          %p2500 = pneg %p83
        $region30: #{discriminator_pallas.5} parent=27 // pred_check_branch
          %2502 = sbr.rel (%p2500) target = $region32
        $region31: #{discriminator_pallas.5} parent=27 // pred_region
          _
        $region32: #{discriminator_pallas.5} parent=27 // pred_fallthru
          _
        // Predicated region
        $region33: #{discriminator_pallas.5} parent=27 // pred_check
          %p2503 = pneg %p109
        $region34: #{discriminator_pallas.5} parent=27 // pred_check_branch
          %2505 = sbr.rel (%p2503) target = $region36
        $region35: #{discriminator_pallas.5} parent=27 // pred_region
          %s2507 = ssub.s32 32, 32
          %2508 = vsyncadd %s2496, %s2507
          %s2509 = smul.addr %s18, 32
          %s2510 = scalar_lea.hbm %s3, %s2509
          %s2512 = sshll.u32 %s2499, 4
          %s2513 = int_to_ptr.vmem [resolvable:$true] %s2512
          %2515 = dma.vmem_to_hbm [thread:$0]  %s2513, 32, %s2510, %s2496
        $region36: #{discriminator_pallas.5} parent=27 // pred_fallthru
          _
      $region28: #{discriminator_pallas.5} parent=5 // pred_fallthru
        _
      %p2516 = scmp.le.s32.totalorder 2, %s13
      // Predicated region
      $region37: #{discriminator_pallas.5} parent=5 // pred_check
        %p2517 = pneg %p2516
      $region38: #{discriminator_pallas.5} parent=5 // pred_check_branch
        %2519 = sbr.rel (%p2517) target = $region40
      $region39: #{discriminator_pallas.5} parent=5 // pred_region
        %s2520 = ssub.s32 %s13, 2
        // Predicated region
        $region41: #{discriminator_pallas.5} parent=39 // pred_check
          %p2521 = pneg %p89
        $region42: #{discriminator_pallas.5} parent=39 // pred_check_branch
          %2523 = sbr.rel (%p2521) target = $region44
        $region43: #{discriminator_pallas.5} parent=39 // pred_region
          %p2524 = scmp.lt.s32.totalorder %s19, 1
          %s2525 = scalar_select %p2524, %s19, 1
          %s2526 = smul.addr %s2525, 128
          %s2527 = smul.addr %s2526, 8
          %s2528 = scalar_lea.vmem %s2, %s2527
        $region44: #{discriminator_pallas.5} parent=39 // pred_fallthru
          _
        // Predicated region
        $region45: #{discriminator_pallas.5} parent=39 // pred_check
          %p2529 = pneg %p115
        $region46: #{discriminator_pallas.5} parent=39 // pred_check_branch
          %2531 = sbr.rel (%p2529) target = $region48
        $region47: #{discriminator_pallas.5} parent=39 // pred_region
          %s2532 = sand.u32 %s100, 1
          %s2533 = scalar_lea.sflag [#allocation3], %s2532
          %s2534 = sand.u32 %s100, 1
          %s2535 = smul.addr %s2534, 2
          %s2536 = scalar_lea.vmem [#allocation2], %s2535
          %2537 = dma.done %s2533, 32
        $region48: #{discriminator_pallas.5} parent=39 // pred_fallthru
          _
      $region40: #{discriminator_pallas.5} parent=5 // pred_fallthru
        _
    $region6: #{discriminator_pallas.5} parent=1 // loop_footer
      %s17 = sadd.s32 1, %s13
    $region7: #{discriminator_pallas.5} parent=1 // loop_footer_branch
      %12 = sbr.rel target = $region3
    $region8: #{discriminator_pallas.5} parent=1 // loop_exit
      _
    %2538 = vsyncpa [#allocation3], 1
    %s2539 = scalar_lea.sflag [#allocation3], 1
    %2540 = vsyncpa %s2539, 1

// kernel: discriminator_pallas.6
$region0: #{discriminator_pallas.6}
  #allocation0 [shape = 'u32[]', space=smem, size = 0x4, offset = 0x4, fixed_abs, tag = 'smem constant byte address 0x4 - core index']
  #allocation1 [shape = 'u32[144,128]{1,0:T(1,128)}', space=vmem, size = 0x12000, scoped, tag = 'internal scratch']
  %s0 = inlined_call_operand.vmem [shape: bf16[2,272,1024], index: 0, kind: input, shape index: {}]
  %s1 = inlined_call_operand.vmem [shape: bf16[2,1024,128], index: 1, kind: input, shape index: {}]
  %s2 = inlined_call_operand.vmem [shape: f32[2,256,128], index: 2, kind: output, shape index: {0}]
  %s3 = inlined_call_operand.vmem [shape: f32[2,2,128], index: 3, kind: output, shape index: {1}]
  %4 = xla_tuple %s2, %s3
  %s5 = sld [smem:[#allocation0]]
  $region49: #{discriminator_pallas.6} parent=0
    _
  %s7 = ssub.s32 1, %s5
  %s8 = scalar_select 0, %s7, %s5
  loop: start=0, step=1, limit=4
  $region2: #{discriminator_pallas.6} parent=0 // loop_pre_header
    _
  $region3: #{discriminator_pallas.6} parent=0 // loop_header
    %s10 = sphi 0, %s14
    %p11 = scmp.ge.s32.totalorder %s10, 4
    %s20 = sphi 0, %s22
    %s23 = sphi 0, %s20
    %s24 = sphi 0, %s23
    %s40 = sphi 0, %s24
    %s44 = sphi 0, %s44
    %s46 = sphi 0, %s44
    %s47 = sphi 0, %s46
    %s61 = sphi 0, %s47
    %s67 = sphi 0, %s69
    %s70 = sphi 0, %s67
    %s71 = sphi 0, %s70
    %s87 = sphi 0, %s71
    %s93 = sphi 0, %s95
    %s96 = sphi 0, %s93
    %s97 = sphi 0, %s96
    %s113 = sphi 0, %s97
  $region4: #{discriminator_pallas.6} parent=0 // loop_header_branch
    %13 = sbr.rel (%p11) target = $region8
  $region5: #{discriminator_pallas.6} parent=0 // loop_body
    %s15 = ssub.s32 %s10, 1
    %s16 = ssub.s32 %s10, 2
    %s17 = sadd.s32 %s10, 1
    %s18 = ssub.s32 %s10, %s17
    %p19 = scmp.eq.s32.totalorder %s18, 0
    %s21 = sadd.s32 %s20, 1
    %s22 = scalar_select %p19, %s20, %s21
    %p25 = pneg %p19
    %p26 = scmp.eq.s32.totalorder %s10, 1
    %p27 = por %p25, %p26
    %p28 = scmp.ne.s32.totalorder %s20, %s23
    %p29 = scmp.eq.s32.totalorder %s10, 0
    %p30 = por %p28, %p29
    %p31 = scmp.ne.s32.totalorder %s20, %s23
    %p32 = scmp.eq.s32.totalorder %s15, 1
    %p33 = por %p31, %p32
    %p34 = scmp.ne.s32.totalorder %s23, %s24
    %p35 = scmp.eq.s32.totalorder %s15, 0
    %p36 = por %p34, %p35
    %p37 = scmp.ne.s32.totalorder %s23, %s24
    %p38 = scmp.eq.s32.totalorder %s16, 1
    %p39 = por %p37, %p38
    %p41 = scmp.ne.s32.totalorder %s24, %s40
    %p42 = scmp.eq.s32.totalorder %s16, 0
    %p43 = por %p41, %p42
    %s45 = sadd.s32 %s44, 1
    %p48 = scmp.eq.s32.totalorder %s10, 1
    %p49 = scmp.ne.s32.totalorder %s44, %s46
    %p50 = scmp.eq.s32.totalorder %s10, 0
    %p51 = por %p49, %p50
    %p52 = scmp.ne.s32.totalorder %s44, %s46
    %p53 = scmp.eq.s32.totalorder %s15, 1
    %p54 = por %p52, %p53
    %p55 = scmp.ne.s32.totalorder %s46, %s47
    %p56 = scmp.eq.s32.totalorder %s15, 0
    %p57 = por %p55, %p56
    %p58 = scmp.ne.s32.totalorder %s46, %s47
    %p59 = scmp.eq.s32.totalorder %s16, 1
    %p60 = por %p58, %p59
    %p62 = scmp.ne.s32.totalorder %s47, %s61
    %p63 = scmp.eq.s32.totalorder %s16, 0
    %p64 = por %p62, %p63
    %s65 = ssub.s32 %s10, %s17
    %p66 = scmp.eq.s32.totalorder %s65, 0
    %s68 = sadd.s32 %s67, 1
    %s69 = scalar_select %p66, %s67, %s68
    %p72 = pneg %p66
    %p73 = scmp.eq.s32.totalorder %s10, 1
    %p74 = por %p72, %p73
    %p75 = scmp.ne.s32.totalorder %s67, %s70
    %p76 = scmp.eq.s32.totalorder %s10, 0
    %p77 = por %p75, %p76
    %p78 = scmp.ne.s32.totalorder %s67, %s70
    %p79 = scmp.eq.s32.totalorder %s15, 1
    %p80 = por %p78, %p79
    %p81 = scmp.ne.s32.totalorder %s70, %s71
    %p82 = scmp.eq.s32.totalorder %s15, 0
    %p83 = por %p81, %p82
    %p84 = scmp.ne.s32.totalorder %s70, %s71
    %p85 = scmp.eq.s32.totalorder %s16, 1
    %p86 = por %p84, %p85
    %p88 = scmp.ne.s32.totalorder %s71, %s87
    %p89 = scmp.eq.s32.totalorder %s16, 0
    %p90 = por %p88, %p89
    %s91 = ssub.s32 %s10, %s17
    %p92 = scmp.eq.s32.totalorder %s91, 0
    %s94 = sadd.s32 %s93, 1
    %s95 = scalar_select %p92, %s93, %s94
    %p98 = pneg %p92
    %p99 = scmp.eq.s32.totalorder %s10, 1
    %p100 = por %p98, %p99
    %p101 = scmp.ne.s32.totalorder %s93, %s96
    %p102 = scmp.eq.s32.totalorder %s10, 0
    %p103 = por %p101, %p102
    %p104 = scmp.ne.s32.totalorder %s93, %s96
    %p105 = scmp.eq.s32.totalorder %s15, 1
    %p106 = por %p104, %p105
    %p107 = scmp.ne.s32.totalorder %s96, %s97
    %p108 = scmp.eq.s32.totalorder %s15, 0
    %p109 = por %p107, %p108
    %p110 = scmp.ne.s32.totalorder %s96, %s97
    %p111 = scmp.eq.s32.totalorder %s16, 1
    %p112 = por %p110, %p111
    %p114 = scmp.ne.s32.totalorder %s97, %s113
    %p115 = scmp.eq.s32.totalorder %s16, 0
    %p116 = por %p114, %p115
    %p117 = scmp.le.s32.totalorder 1, %s10
    %p118 = scmp.lt.s32.totalorder %s10, 3
    %p119 = pnand %p117, %p118
    %p120 = pneg %p119
    // Predicated region
    $region9: #{discriminator_pallas.6} parent=5 // pred_check
      _
    $region10: #{discriminator_pallas.6} parent=5 // pred_check_branch
      %122 = sbr.rel (%p119) target = $region12
    $region11: #{discriminator_pallas.6} parent=5 // pred_region
      %s123 = ssub.s32 %s10, 1
      // Predicated region
      $region13: #{discriminator_pallas.6} parent=11 // pred_check
        %p124 = pneg %p57
      $region14: #{discriminator_pallas.6} parent=11 // pred_check_branch
        %126 = sbr.rel (%p124) target = $region16
      $region15: #{discriminator_pallas.6} parent=11 // pred_region
        _
      $region16: #{discriminator_pallas.6} parent=11 // pred_fallthru
        _
    $region12: #{discriminator_pallas.6} parent=5 // pred_fallthru
      _
    %p127 = scmp.lt.s32.totalorder %s10, 2
    // Predicated region
    $region17: #{discriminator_pallas.6} parent=5 // pred_check
      %p128 = pneg %p127
    $region18: #{discriminator_pallas.6} parent=5 // pred_check_branch
      %130 = sbr.rel (%p128) target = $region20
    $region19: #{discriminator_pallas.6} parent=5 // pred_region
      // Predicated region
      $region21: #{discriminator_pallas.6} parent=19 // pred_check
        %p131 = pneg %p30
      $region22: #{discriminator_pallas.6} parent=19 // pred_check_branch
        %133 = sbr.rel (%p131) target = $region24
      $region23: #{discriminator_pallas.6} parent=19 // pred_region
        %p134 = scmp.lt.s32.totalorder %s10, 1
        %s135 = scalar_select %p134, %s10, 1
        %s136 = smul.addr %s135, 272
        %s137 = smul.addr %s136, 4
        %s138 = scalar_lea.vmem %s0, %s137
      $region24: #{discriminator_pallas.6} parent=19 // pred_fallthru
        _
    $region20: #{discriminator_pallas.6} parent=5 // pred_fallthru
      _
    %p139 = scmp.le.s32.totalorder 1, %s10
    %p140 = scmp.lt.s32.totalorder %s10, 3
    %p141 = pnand %p139, %p140
    %p142 = pneg %p141
    // Predicated region
    $region25: #{discriminator_pallas.6} parent=5 // pred_check
      _
    $region26: #{discriminator_pallas.6} parent=5 // pred_check_branch
      %144 = sbr.rel (%p141) target = $region28
    $region27: #{discriminator_pallas.6} parent=5 // pred_region
      %s145 = ssub.s32 %s10, 1
      %p146 = scmp.lt.s32.totalorder %s15, 1
      %s147 = scalar_select %p146, %s15, 1
      %s148 = smul.addr %s147, 272
      %s149 = smul.addr %s148, 4
      %s150 = scalar_lea.vmem %s0, %s149
      %p151 = pneg %p36
      %p152 = pneg %p33
      %p153 = pneg %p57
      %p154 = pneg %p54
      %p155 = pneg %p83
      %p156 = pneg %p80
      %p157 = scmp.lt.s32.totalorder %s15, 1
      %s158 = scalar_select %p157, %s15, 1
      %s159 = smul.addr %s158, 32
      %s160 = smul.addr %s159, 8
      %s161 = scalar_lea.vmem %s2, %s160
      %p162 = pneg %p109
      %p163 = pneg %p106
      %p164 = scmp.lt.s32.totalorder %s15, 1
      %s165 = scalar_select %p164, %s15, 1
      %s166 = smul.addr %s165, 2
      %s167 = scalar_lea.vmem %s3, %s166
      %p168 = scmp.lt.s32.totalorder %s15, 1
      %s169 = scalar_select %p168, %s15, 1
      %s170 = smul.addr %s169, 272
      %s171 = smul.addr %s170, 4
      %s172 = scalar_lea.vmem %s0, %s171
      %p173 = scmp.lt.s32.totalorder %s15, 1
      %s174 = scalar_select %p173, %s15, 1
      %s175 = smul.addr %s174, 32
      %s176 = smul.addr %s175, 8
      %s177 = scalar_lea.vmem %s2, %s176
      %p178 = scmp.lt.s32.totalorder %s15, 1
      %s179 = scalar_select %p178, %s15, 1
      %s180 = smul.addr %s179, 2
      %s181 = scalar_lea.vmem %s3, %s180
      %v183 = vld [vmem:[%s172] sm:$0xff]
      %v184 = vld [vmem:[%s172 + $0x8] sm:$0xff]
      %v185 = vld [vmem:[%s172 + $0x10] sm:$0xff]
      %v186 = vld [vmem:[%s172 + $0x18] sm:$0xff]
      %v187 = vld [vmem:[%s172 + $0x20] sm:$0xff]
      %v188 = vld [vmem:[%s172 + $0x28] sm:$0xff]
      %v189 = vld [vmem:[%s172 + $0x30] sm:$0xff]
      %v190 = vld [vmem:[%s172 + $0x38] sm:$0xff]
      %v191 = vld [vmem:[%s172 + $0x40] sm:$0xff]
      %v192 = vld [vmem:[%s172 + $0x48] sm:$0xff]
      %v193 = vld [vmem:[%s172 + $0x50] sm:$0xff]
      %v194 = vld [vmem:[%s172 + $0x58] sm:$0xff]
      %v195 = vld [vmem:[%s172 + $0x60] sm:$0xff]
      %v196 = vld [vmem:[%s172 + $0x68] sm:$0xff]
      %v197 = vld [vmem:[%s172 + $0x70] sm:$0xff]
      %v198 = vld [vmem:[%s172 + $0x78] sm:$0xff]
      %v199 = vld [vmem:[%s172 + $0x80] sm:$0xff]
      %v200 = vld [vmem:[%s172 + $0x88] sm:$0xff]
      %v201 = vld [vmem:[%s172 + $0x90] sm:$0xff]
      %v202 = vld [vmem:[%s172 + $0x98] sm:$0xff]
      %v203 = vld [vmem:[%s172 + $0xa0] sm:$0xff]
      %v204 = vld [vmem:[%s172 + $0xa8] sm:$0xff]
      %v205 = vld [vmem:[%s172 + $0xb0] sm:$0xff]
      %v206 = vld [vmem:[%s172 + $0xb8] sm:$0xff]
      %v207 = vld [vmem:[%s172 + $0xc0] sm:$0xff]
      %v208 = vld [vmem:[%s172 + $0xc8] sm:$0xff]
      %v209 = vld [vmem:[%s172 + $0xd0] sm:$0xff]
      %v210 = vld [vmem:[%s172 + $0xd8] sm:$0xff]
      %v211 = vld [vmem:[%s172 + $0xe0] sm:$0xff]
      %v212 = vld [vmem:[%s172 + $0xe8] sm:$0xff]
      %v213 = vld [vmem:[%s172 + $0xf0] sm:$0xff]
      %v214 = vld [vmem:[%s172 + $0xf8] sm:$0xff]
      %v215 = vld [vmem:[%s172 + $0x100] sm:$0xff]
      %v216 = vld [vmem:[%s172 + $0x108] sm:$0xff]
      %v217 = vld [vmem:[%s172 + $0x110] sm:$0xff]
      %v218 = vld [vmem:[%s172 + $0x118] sm:$0xff]
      %v219 = vld [vmem:[%s172 + $0x120] sm:$0xff]
      %v220 = vld [vmem:[%s172 + $0x128] sm:$0xff]
      %v221 = vld [vmem:[%s172 + $0x130] sm:$0xff]
      %v222 = vld [vmem:[%s172 + $0x138] sm:$0xff]
      %v223 = vld [vmem:[%s172 + $0x140] sm:$0xff]
      %v224 = vld [vmem:[%s172 + $0x148] sm:$0xff]
      %v225 = vld [vmem:[%s172 + $0x150] sm:$0xff]
      %v226 = vld [vmem:[%s172 + $0x158] sm:$0xff]
      %v227 = vld [vmem:[%s172 + $0x160] sm:$0xff]
      %v228 = vld [vmem:[%s172 + $0x168] sm:$0xff]
      %v229 = vld [vmem:[%s172 + $0x170] sm:$0xff]
      %v230 = vld [vmem:[%s172 + $0x178] sm:$0xff]
      %v231 = vld [vmem:[%s172 + $0x180] sm:$0xff]
      %v232 = vld [vmem:[%s172 + $0x188] sm:$0xff]
      %v233 = vld [vmem:[%s172 + $0x190] sm:$0xff]
      %v234 = vld [vmem:[%s172 + $0x198] sm:$0xff]
      %v235 = vld [vmem:[%s172 + $0x1a0] sm:$0xff]
      %v236 = vld [vmem:[%s172 + $0x1a8] sm:$0xff]
      %v237 = vld [vmem:[%s172 + $0x1b0] sm:$0xff]
      %v238 = vld [vmem:[%s172 + $0x1b8] sm:$0xff]
      %v239 = vld [vmem:[%s172 + $0x1c0] sm:$0xff]
      %v240 = vld [vmem:[%s172 + $0x1c8] sm:$0xff]
      %v241 = vld [vmem:[%s172 + $0x1d0] sm:$0xff]
      %v242 = vld [vmem:[%s172 + $0x1d8] sm:$0xff]
      %v243 = vld [vmem:[%s172 + $0x1e0] sm:$0xff]
      %v244 = vld [vmem:[%s172 + $0x1e8] sm:$0xff]
      %v245 = vld [vmem:[%s172 + $0x1f0] sm:$0xff]
      %v246 = vld [vmem:[%s172 + $0x1f8] sm:$0xff]
      %v247 = vld [vmem:[%s172 + $0x200] sm:$0xff]
      %v248 = vld [vmem:[%s172 + $0x208] sm:$0xff]
      %v249 = vld [vmem:[%s172 + $0x210] sm:$0xff]
      %v250 = vld [vmem:[%s172 + $0x218] sm:$0xff]
      %v251 = vld [vmem:[%s172 + $0x220] sm:$0xff]
      %v252 = vld [vmem:[%s172 + $0x228] sm:$0xff]
      %v253 = vld [vmem:[%s172 + $0x230] sm:$0xff]
      %v254 = vld [vmem:[%s172 + $0x238] sm:$0xff]
      %v255 = vld [vmem:[%s172 + $0x240] sm:$0xff]
      %v256 = vld [vmem:[%s172 + $0x248] sm:$0xff]
      %v257 = vld [vmem:[%s172 + $0x250] sm:$0xff]
      %v258 = vld [vmem:[%s172 + $0x258] sm:$0xff]
      %v259 = vld [vmem:[%s172 + $0x260] sm:$0xff]
      %v260 = vld [vmem:[%s172 + $0x268] sm:$0xff]
      %v261 = vld [vmem:[%s172 + $0x270] sm:$0xff]
      %v262 = vld [vmem:[%s172 + $0x278] sm:$0xff]
      %v263 = vld [vmem:[%s172 + $0x280] sm:$0xff]
      %v264 = vld [vmem:[%s172 + $0x288] sm:$0xff]
      %v265 = vld [vmem:[%s172 + $0x290] sm:$0xff]
      %v266 = vld [vmem:[%s172 + $0x298] sm:$0xff]
      %v267 = vld [vmem:[%s172 + $0x2a0] sm:$0xff]
      %v268 = vld [vmem:[%s172 + $0x2a8] sm:$0xff]
      %v269 = vld [vmem:[%s172 + $0x2b0] sm:$0xff]
      %v270 = vld [vmem:[%s172 + $0x2b8] sm:$0xff]
      %v271 = vld [vmem:[%s172 + $0x2c0] sm:$0xff]
      %v272 = vld [vmem:[%s172 + $0x2c8] sm:$0xff]
      %v273 = vld [vmem:[%s172 + $0x2d0] sm:$0xff]
      %v274 = vld [vmem:[%s172 + $0x2d8] sm:$0xff]
      %v275 = vld [vmem:[%s172 + $0x2e0] sm:$0xff]
      %v276 = vld [vmem:[%s172 + $0x2e8] sm:$0xff]
      %v277 = vld [vmem:[%s172 + $0x2f0] sm:$0xff]
      %v278 = vld [vmem:[%s172 + $0x2f8] sm:$0xff]
      %v279 = vld [vmem:[%s172 + $0x300] sm:$0xff]
      %v280 = vld [vmem:[%s172 + $0x308] sm:$0xff]
      %v281 = vld [vmem:[%s172 + $0x310] sm:$0xff]
      %v282 = vld [vmem:[%s172 + $0x318] sm:$0xff]
      %v283 = vld [vmem:[%s172 + $0x320] sm:$0xff]
      %v284 = vld [vmem:[%s172 + $0x328] sm:$0xff]
      %v285 = vld [vmem:[%s172 + $0x330] sm:$0xff]
      %v286 = vld [vmem:[%s172 + $0x338] sm:$0xff]
      %v287 = vld [vmem:[%s172 + $0x340] sm:$0xff]
      %v288 = vld [vmem:[%s172 + $0x348] sm:$0xff]
      %v289 = vld [vmem:[%s172 + $0x350] sm:$0xff]
      %v290 = vld [vmem:[%s172 + $0x358] sm:$0xff]
      %v291 = vld [vmem:[%s172 + $0x360] sm:$0xff]
      %v292 = vld [vmem:[%s172 + $0x368] sm:$0xff]
      %v293 = vld [vmem:[%s172 + $0x370] sm:$0xff]
      %v294 = vld [vmem:[%s172 + $0x378] sm:$0xff]
      %v295 = vld [vmem:[%s172 + $0x380] sm:$0xff]
      %v296 = vld [vmem:[%s172 + $0x388] sm:$0xff]
      %v297 = vld [vmem:[%s172 + $0x390] sm:$0xff]
      %v298 = vld [vmem:[%s172 + $0x398] sm:$0xff]
      %v299 = vld [vmem:[%s172 + $0x3a0] sm:$0xff]
      %v300 = vld [vmem:[%s172 + $0x3a8] sm:$0xff]
      %v301 = vld [vmem:[%s172 + $0x3b0] sm:$0xff]
      %v302 = vld [vmem:[%s172 + $0x3b8] sm:$0xff]
      %v303 = vld [vmem:[%s172 + $0x3c0] sm:$0xff]
      %v304 = vld [vmem:[%s172 + $0x3c8] sm:$0xff]
      %v305 = vld [vmem:[%s172 + $0x3d0] sm:$0xff]
      %v306 = vld [vmem:[%s172 + $0x3d8] sm:$0xff]
      %v307 = vld [vmem:[%s172 + $0x3e0] sm:$0xff]
      %v308 = vld [vmem:[%s172 + $0x3e8] sm:$0xff]
      %v309 = vld [vmem:[%s172 + $0x3f0] sm:$0xff]
      %v310 = vld [vmem:[%s172 + $0x3f8] sm:$0xff]
      %v311 = vld [vmem:[%s172 + $0x40] sm:$0xff]
      %v312 = vld [vmem:[%s172 + $0x48] sm:$0xff]
      %v313 = vld [vmem:[%s172 + $0x50] sm:$0xff]
      %v314 = vld [vmem:[%s172 + $0x58] sm:$0xff]
      %v315 = vld [vmem:[%s172 + $0x60] sm:$0xff]
      %v316 = vld [vmem:[%s172 + $0x68] sm:$0xff]
      %v317 = vld [vmem:[%s172 + $0x70] sm:$0xff]
      %v318 = vld [vmem:[%s172 + $0x78] sm:$0xff]
      %v319 = vld [vmem:[%s172 + $0x80] sm:$0xff]
      %v320 = vld [vmem:[%s172 + $0x88] sm:$0xff]
      %v321 = vld [vmem:[%s172 + $0x90] sm:$0xff]
      %v322 = vld [vmem:[%s172 + $0x98] sm:$0xff]
      %v323 = vld [vmem:[%s172 + $0xa0] sm:$0xff]
      %v324 = vld [vmem:[%s172 + $0xa8] sm:$0xff]
      %v325 = vld [vmem:[%s172 + $0xb0] sm:$0xff]
      %v326 = vld [vmem:[%s172 + $0xb8] sm:$0xff]
      %v327 = vld [vmem:[%s172 + $0xc0] sm:$0xff]
      %v328 = vld [vmem:[%s172 + $0xc8] sm:$0xff]
      %v329 = vld [vmem:[%s172 + $0xd0] sm:$0xff]
      %v330 = vld [vmem:[%s172 + $0xd8] sm:$0xff]
      %v331 = vld [vmem:[%s172 + $0xe0] sm:$0xff]
      %v332 = vld [vmem:[%s172 + $0xe8] sm:$0xff]
      %v333 = vld [vmem:[%s172 + $0xf0] sm:$0xff]
      %v334 = vld [vmem:[%s172 + $0xf8] sm:$0xff]
      %v335 = vld [vmem:[%s172 + $0x100] sm:$0xff]
      %v336 = vld [vmem:[%s172 + $0x108] sm:$0xff]
      %v337 = vld [vmem:[%s172 + $0x110] sm:$0xff]
      %v338 = vld [vmem:[%s172 + $0x118] sm:$0xff]
      %v339 = vld [vmem:[%s172 + $0x120] sm:$0xff]
      %v340 = vld [vmem:[%s172 + $0x128] sm:$0xff]
      %v341 = vld [vmem:[%s172 + $0x130] sm:$0xff]
      %v342 = vld [vmem:[%s172 + $0x138] sm:$0xff]
      %v343 = vld [vmem:[%s172 + $0x140] sm:$0xff]
      %v344 = vld [vmem:[%s172 + $0x148] sm:$0xff]
      %v345 = vld [vmem:[%s172 + $0x150] sm:$0xff]
      %v346 = vld [vmem:[%s172 + $0x158] sm:$0xff]
      %v347 = vld [vmem:[%s172 + $0x160] sm:$0xff]
      %v348 = vld [vmem:[%s172 + $0x168] sm:$0xff]
      %v349 = vld [vmem:[%s172 + $0x170] sm:$0xff]
      %v350 = vld [vmem:[%s172 + $0x178] sm:$0xff]
      %v351 = vld [vmem:[%s172 + $0x180] sm:$0xff]
      %v352 = vld [vmem:[%s172 + $0x188] sm:$0xff]
      %v353 = vld [vmem:[%s172 + $0x190] sm:$0xff]
      %v354 = vld [vmem:[%s172 + $0x198] sm:$0xff]
      %v355 = vld [vmem:[%s172 + $0x1a0] sm:$0xff]
      %v356 = vld [vmem:[%s172 + $0x1a8] sm:$0xff]
      %v357 = vld [vmem:[%s172 + $0x1b0] sm:$0xff]
      %v358 = vld [vmem:[%s172 + $0x1b8] sm:$0xff]
      %v359 = vld [vmem:[%s172 + $0x1c0] sm:$0xff]
      %v360 = vld [vmem:[%s172 + $0x1c8] sm:$0xff]
      %v361 = vld [vmem:[%s172 + $0x1d0] sm:$0xff]
      %v362 = vld [vmem:[%s172 + $0x1d8] sm:$0xff]
      %v363 = vld [vmem:[%s172 + $0x1e0] sm:$0xff]
      %v364 = vld [vmem:[%s172 + $0x1e8] sm:$0xff]
      %v365 = vld [vmem:[%s172 + $0x1f0] sm:$0xff]
      %v366 = vld [vmem:[%s172 + $0x1f8] sm:$0xff]
      %v367 = vld [vmem:[%s172 + $0x200] sm:$0xff]
      %v368 = vld [vmem:[%s172 + $0x208] sm:$0xff]
      %v369 = vld [vmem:[%s172 + $0x210] sm:$0xff]
      %v370 = vld [vmem:[%s172 + $0x218] sm:$0xff]
      %v371 = vld [vmem:[%s172 + $0x220] sm:$0xff]
      %v372 = vld [vmem:[%s172 + $0x228] sm:$0xff]
      %v373 = vld [vmem:[%s172 + $0x230] sm:$0xff]
      %v374 = vld [vmem:[%s172 + $0x238] sm:$0xff]
      %v375 = vld [vmem:[%s172 + $0x240] sm:$0xff]
      %v376 = vld [vmem:[%s172 + $0x248] sm:$0xff]
      %v377 = vld [vmem:[%s172 + $0x250] sm:$0xff]
      %v378 = vld [vmem:[%s172 + $0x258] sm:$0xff]
      %v379 = vld [vmem:[%s172 + $0x260] sm:$0xff]
      %v380 = vld [vmem:[%s172 + $0x268] sm:$0xff]
      %v381 = vld [vmem:[%s172 + $0x270] sm:$0xff]
      %v382 = vld [vmem:[%s172 + $0x278] sm:$0xff]
      %v383 = vld [vmem:[%s172 + $0x280] sm:$0xff]
      %v384 = vld [vmem:[%s172 + $0x288] sm:$0xff]
      %v385 = vld [vmem:[%s172 + $0x290] sm:$0xff]
      %v386 = vld [vmem:[%s172 + $0x298] sm:$0xff]
      %v387 = vld [vmem:[%s172 + $0x2a0] sm:$0xff]
      %v388 = vld [vmem:[%s172 + $0x2a8] sm:$0xff]
      %v389 = vld [vmem:[%s172 + $0x2b0] sm:$0xff]
      %v390 = vld [vmem:[%s172 + $0x2b8] sm:$0xff]
      %v391 = vld [vmem:[%s172 + $0x2c0] sm:$0xff]
      %v392 = vld [vmem:[%s172 + $0x2c8] sm:$0xff]
      %v393 = vld [vmem:[%s172 + $0x2d0] sm:$0xff]
      %v394 = vld [vmem:[%s172 + $0x2d8] sm:$0xff]
      %v395 = vld [vmem:[%s172 + $0x2e0] sm:$0xff]
      %v396 = vld [vmem:[%s172 + $0x2e8] sm:$0xff]
      %v397 = vld [vmem:[%s172 + $0x2f0] sm:$0xff]
      %v398 = vld [vmem:[%s172 + $0x2f8] sm:$0xff]
      %v399 = vld [vmem:[%s172 + $0x300] sm:$0xff]
      %v400 = vld [vmem:[%s172 + $0x308] sm:$0xff]
      %v401 = vld [vmem:[%s172 + $0x310] sm:$0xff]
      %v402 = vld [vmem:[%s172 + $0x318] sm:$0xff]
      %v403 = vld [vmem:[%s172 + $0x320] sm:$0xff]
      %v404 = vld [vmem:[%s172 + $0x328] sm:$0xff]
      %v405 = vld [vmem:[%s172 + $0x330] sm:$0xff]
      %v406 = vld [vmem:[%s172 + $0x338] sm:$0xff]
      %v407 = vld [vmem:[%s172 + $0x340] sm:$0xff]
      %v408 = vld [vmem:[%s172 + $0x348] sm:$0xff]
      %v409 = vld [vmem:[%s172 + $0x350] sm:$0xff]
      %v410 = vld [vmem:[%s172 + $0x358] sm:$0xff]
      %v411 = vld [vmem:[%s172 + $0x360] sm:$0xff]
      %v412 = vld [vmem:[%s172 + $0x368] sm:$0xff]
      %v413 = vld [vmem:[%s172 + $0x370] sm:$0xff]
      %v414 = vld [vmem:[%s172 + $0x378] sm:$0xff]
      %v415 = vld [vmem:[%s172 + $0x380] sm:$0xff]
      %v416 = vld [vmem:[%s172 + $0x388] sm:$0xff]
      %v417 = vld [vmem:[%s172 + $0x390] sm:$0xff]
      %v418 = vld [vmem:[%s172 + $0x398] sm:$0xff]
      %v419 = vld [vmem:[%s172 + $0x3a0] sm:$0xff]
      %v420 = vld [vmem:[%s172 + $0x3a8] sm:$0xff]
      %v421 = vld [vmem:[%s172 + $0x3b0] sm:$0xff]
      %v422 = vld [vmem:[%s172 + $0x3b8] sm:$0xff]
      %v423 = vld [vmem:[%s172 + $0x3c0] sm:$0xff]
      %v424 = vld [vmem:[%s172 + $0x3c8] sm:$0xff]
      %v425 = vld [vmem:[%s172 + $0x3d0] sm:$0xff]
      %v426 = vld [vmem:[%s172 + $0x3d8] sm:$0xff]
      %v427 = vld [vmem:[%s172 + $0x3e0] sm:$0xff]
      %v428 = vld [vmem:[%s172 + $0x3e8] sm:$0xff]
      %v429 = vld [vmem:[%s172 + $0x3f0] sm:$0xff]
      %v430 = vld [vmem:[%s172 + $0x3f8] sm:$0xff]
      %v431 = vld [vmem:[%s172 + $0x400] sm:$0xff]
      %v432 = vld [vmem:[%s172 + $0x408] sm:$0xff]
      %v433 = vld [vmem:[%s172 + $0x410] sm:$0xff]
      %v434 = vld [vmem:[%s172 + $0x418] sm:$0xff]
      %v435 = vld [vmem:[%s172 + $0x420] sm:$0xff]
      %v436 = vld [vmem:[%s172 + $0x428] sm:$0xff]
      %v437 = vld [vmem:[%s172 + $0x430] sm:$0xff]
      %v438 = vld [vmem:[%s172 + $0x438] sm:$0xff]
      %v439 = vld [vmem:[%s1] sm:$0xf]
      %v440 = vld [vmem:[%s1 + $0x4] sm:$0xf]
      %v441 = vld [vmem:[%s1 + $0x8] sm:$0xf]
      %v442 = vld [vmem:[%s1 + $0xc] sm:$0xf]
      %v443 = vld [vmem:[%s1 + $0x10] sm:$0xf]
      %v444 = vld [vmem:[%s1 + $0x14] sm:$0xf]
      %v445 = vld [vmem:[%s1 + $0x18] sm:$0xf]
      %v446 = vld [vmem:[%s1 + $0x1c] sm:$0xf]
      %v447 = vld [vmem:[%s1 + $0x20] sm:$0xf]
      %v448 = vld [vmem:[%s1 + $0x24] sm:$0xf]
      %v449 = vld [vmem:[%s1 + $0x28] sm:$0xf]
      %v450 = vld [vmem:[%s1 + $0x2c] sm:$0xf]
      %v451 = vld [vmem:[%s1 + $0x30] sm:$0xf]
      %v452 = vld [vmem:[%s1 + $0x34] sm:$0xf]
      %v453 = vld [vmem:[%s1 + $0x38] sm:$0xf]
      %v454 = vld [vmem:[%s1 + $0x3c] sm:$0xf]
      %v455 = vld [vmem:[%s1 + $0x40] sm:$0xf]
      %v456 = vld [vmem:[%s1 + $0x44] sm:$0xf]
      %v457 = vld [vmem:[%s1 + $0x48] sm:$0xf]
      %v458 = vld [vmem:[%s1 + $0x4c] sm:$0xf]
      %v459 = vld [vmem:[%s1 + $0x50] sm:$0xf]
      %v460 = vld [vmem:[%s1 + $0x54] sm:$0xf]
      %v461 = vld [vmem:[%s1 + $0x58] sm:$0xf]
      %v462 = vld [vmem:[%s1 + $0x5c] sm:$0xf]
      %v463 = vld [vmem:[%s1 + $0x60] sm:$0xf]
      %v464 = vld [vmem:[%s1 + $0x64] sm:$0xf]
      %v465 = vld [vmem:[%s1 + $0x68] sm:$0xf]
      %v466 = vld [vmem:[%s1 + $0x6c] sm:$0xf]
      %v467 = vld [vmem:[%s1 + $0x70] sm:$0xf]
      %v468 = vld [vmem:[%s1 + $0x74] sm:$0xf]
      %v469 = vld [vmem:[%s1 + $0x78] sm:$0xf]
      %v470 = vld [vmem:[%s1 + $0x7c] sm:$0xf]
      %v471 = vld [vmem:[%s1 + $0x80] sm:$0xf]
      %v472 = vld [vmem:[%s1 + $0x84] sm:$0xf]
      %v473 = vld [vmem:[%s1 + $0x88] sm:$0xf]
      %v474 = vld [vmem:[%s1 + $0x8c] sm:$0xf]
      %v475 = vld [vmem:[%s1 + $0x90] sm:$0xf]
      %v476 = vld [vmem:[%s1 + $0x94] sm:$0xf]
      %v477 = vld [vmem:[%s1 + $0x98] sm:$0xf]
      %v478 = vld [vmem:[%s1 + $0x9c] sm:$0xf]
      %v479 = vld [vmem:[%s1 + $0xa0] sm:$0xf]
      %v480 = vld [vmem:[%s1 + $0xa4] sm:$0xf]
      %v481 = vld [vmem:[%s1 + $0xa8] sm:$0xf]
      %v482 = vld [vmem:[%s1 + $0xac] sm:$0xf]
      %v483 = vld [vmem:[%s1 + $0xb0] sm:$0xf]
      %v484 = vld [vmem:[%s1 + $0xb4] sm:$0xf]
      %v485 = vld [vmem:[%s1 + $0xb8] sm:$0xf]
      %v486 = vld [vmem:[%s1 + $0xbc] sm:$0xf]
      %v487 = vld [vmem:[%s1 + $0xc0] sm:$0xf]
      %v488 = vld [vmem:[%s1 + $0xc4] sm:$0xf]
      %v489 = vld [vmem:[%s1 + $0xc8] sm:$0xf]
      %v490 = vld [vmem:[%s1 + $0xcc] sm:$0xf]
      %v491 = vld [vmem:[%s1 + $0xd0] sm:$0xf]
      %v492 = vld [vmem:[%s1 + $0xd4] sm:$0xf]
      %v493 = vld [vmem:[%s1 + $0xd8] sm:$0xf]
      %v494 = vld [vmem:[%s1 + $0xdc] sm:$0xf]
      %v495 = vld [vmem:[%s1 + $0xe0] sm:$0xf]
      %v496 = vld [vmem:[%s1 + $0xe4] sm:$0xf]
      %v497 = vld [vmem:[%s1 + $0xe8] sm:$0xf]
      %v498 = vld [vmem:[%s1 + $0xec] sm:$0xf]
      %v499 = vld [vmem:[%s1 + $0xf0] sm:$0xf]
      %v500 = vld [vmem:[%s1 + $0xf4] sm:$0xf]
      %v501 = vld [vmem:[%s1 + $0xf8] sm:$0xf]
      %v502 = vld [vmem:[%s1 + $0xfc] sm:$0xf]
      %v503 = vld [vmem:[%s1 + $0x100] sm:$0xf]
      %v504 = vld [vmem:[%s1 + $0x104] sm:$0xf]
      %v505 = vld [vmem:[%s1 + $0x108] sm:$0xf]
      %v506 = vld [vmem:[%s1 + $0x10c] sm:$0xf]
      %v507 = vld [vmem:[%s1 + $0x110] sm:$0xf]
      %v508 = vld [vmem:[%s1 + $0x114] sm:$0xf]
      %v509 = vld [vmem:[%s1 + $0x118] sm:$0xf]
      %v510 = vld [vmem:[%s1 + $0x11c] sm:$0xf]
      %v511 = vld [vmem:[%s1 + $0x120] sm:$0xf]
      %v512 = vld [vmem:[%s1 + $0x124] sm:$0xf]
      %v513 = vld [vmem:[%s1 + $0x128] sm:$0xf]
      %v514 = vld [vmem:[%s1 + $0x12c] sm:$0xf]
      %v515 = vld [vmem:[%s1 + $0x130] sm:$0xf]
      %v516 = vld [vmem:[%s1 + $0x134] sm:$0xf]
      %v517 = vld [vmem:[%s1 + $0x138] sm:$0xf]
      %v518 = vld [vmem:[%s1 + $0x13c] sm:$0xf]
      %v519 = vld [vmem:[%s1 + $0x140] sm:$0xf]
      %v520 = vld [vmem:[%s1 + $0x144] sm:$0xf]
      %v521 = vld [vmem:[%s1 + $0x148] sm:$0xf]
      %v522 = vld [vmem:[%s1 + $0x14c] sm:$0xf]
      %v523 = vld [vmem:[%s1 + $0x150] sm:$0xf]
      %v524 = vld [vmem:[%s1 + $0x154] sm:$0xf]
      %v525 = vld [vmem:[%s1 + $0x158] sm:$0xf]
      %v526 = vld [vmem:[%s1 + $0x15c] sm:$0xf]
      %v527 = vld [vmem:[%s1 + $0x160] sm:$0xf]
      %v528 = vld [vmem:[%s1 + $0x164] sm:$0xf]
      %v529 = vld [vmem:[%s1 + $0x168] sm:$0xf]
      %v530 = vld [vmem:[%s1 + $0x16c] sm:$0xf]
      %v531 = vld [vmem:[%s1 + $0x170] sm:$0xf]
      %v532 = vld [vmem:[%s1 + $0x174] sm:$0xf]
      %v533 = vld [vmem:[%s1 + $0x178] sm:$0xf]
      %v534 = vld [vmem:[%s1 + $0x17c] sm:$0xf]
      %v535 = vld [vmem:[%s1 + $0x180] sm:$0xf]
      %v536 = vld [vmem:[%s1 + $0x184] sm:$0xf]
      %v537 = vld [vmem:[%s1 + $0x188] sm:$0xf]
      %v538 = vld [vmem:[%s1 + $0x18c] sm:$0xf]
      %v539 = vld [vmem:[%s1 + $0x190] sm:$0xf]
      %v540 = vld [vmem:[%s1 + $0x194] sm:$0xf]
      %v541 = vld [vmem:[%s1 + $0x198] sm:$0xf]
      %v542 = vld [vmem:[%s1 + $0x19c] sm:$0xf]
      %v543 = vld [vmem:[%s1 + $0x1a0] sm:$0xf]
      %v544 = vld [vmem:[%s1 + $0x1a4] sm:$0xf]
      %v545 = vld [vmem:[%s1 + $0x1a8] sm:$0xf]
      %v546 = vld [vmem:[%s1 + $0x1ac] sm:$0xf]
      %v547 = vld [vmem:[%s1 + $0x1b0] sm:$0xf]
      %v548 = vld [vmem:[%s1 + $0x1b4] sm:$0xf]
      %v549 = vld [vmem:[%s1 + $0x1b8] sm:$0xf]
      %v550 = vld [vmem:[%s1 + $0x1bc] sm:$0xf]
      %v551 = vld [vmem:[%s1 + $0x1c0] sm:$0xf]
      %v552 = vld [vmem:[%s1 + $0x1c4] sm:$0xf]
      %v553 = vld [vmem:[%s1 + $0x1c8] sm:$0xf]
      %v554 = vld [vmem:[%s1 + $0x1cc] sm:$0xf]
      %v555 = vld [vmem:[%s1 + $0x1d0] sm:$0xf]
      %v556 = vld [vmem:[%s1 + $0x1d4] sm:$0xf]
      %v557 = vld [vmem:[%s1 + $0x1d8] sm:$0xf]
      %v558 = vld [vmem:[%s1 + $0x1dc] sm:$0xf]
      %v559 = vld [vmem:[%s1 + $0x1e0] sm:$0xf]
      %v560 = vld [vmem:[%s1 + $0x1e4] sm:$0xf]
      %v561 = vld [vmem:[%s1 + $0x1e8] sm:$0xf]
      %v562 = vld [vmem:[%s1 + $0x1ec] sm:$0xf]
      %v563 = vld [vmem:[%s1 + $0x1f0] sm:$0xf]
      %v564 = vld [vmem:[%s1 + $0x1f4] sm:$0xf]
      %v565 = vld [vmem:[%s1 + $0x1f8] sm:$0xf]
      %v566 = vld [vmem:[%s1 + $0x1fc] sm:$0xf]
      %s567 = scalar_lea.vmem %s1, 512
      %v568 = vld [vmem:[%s567] sm:$0xf]
      %v569 = vld [vmem:[%s567 + $0x4] sm:$0xf]
      %v570 = vld [vmem:[%s567 + $0x8] sm:$0xf]
      %v571 = vld [vmem:[%s567 + $0xc] sm:$0xf]
      %v572 = vld [vmem:[%s567 + $0x10] sm:$0xf]
      %v573 = vld [vmem:[%s567 + $0x14] sm:$0xf]
      %v574 = vld [vmem:[%s567 + $0x18] sm:$0xf]
      %v575 = vld [vmem:[%s567 + $0x1c] sm:$0xf]
      %v576 = vld [vmem:[%s567 + $0x20] sm:$0xf]
      %v577 = vld [vmem:[%s567 + $0x24] sm:$0xf]
      %v578 = vld [vmem:[%s567 + $0x28] sm:$0xf]
      %v579 = vld [vmem:[%s567 + $0x2c] sm:$0xf]
      %v580 = vld [vmem:[%s567 + $0x30] sm:$0xf]
      %v581 = vld [vmem:[%s567 + $0x34] sm:$0xf]
      %v582 = vld [vmem:[%s567 + $0x38] sm:$0xf]
      %v583 = vld [vmem:[%s567 + $0x3c] sm:$0xf]
      %v584 = vld [vmem:[%s567 + $0x40] sm:$0xf]
      %v585 = vld [vmem:[%s567 + $0x44] sm:$0xf]
      %v586 = vld [vmem:[%s567 + $0x48] sm:$0xf]
      %v587 = vld [vmem:[%s567 + $0x4c] sm:$0xf]
      %v588 = vld [vmem:[%s567 + $0x50] sm:$0xf]
      %v589 = vld [vmem:[%s567 + $0x54] sm:$0xf]
      %v590 = vld [vmem:[%s567 + $0x58] sm:$0xf]
      %v591 = vld [vmem:[%s567 + $0x5c] sm:$0xf]
      %v592 = vld [vmem:[%s567 + $0x60] sm:$0xf]
      %v593 = vld [vmem:[%s567 + $0x64] sm:$0xf]
      %v594 = vld [vmem:[%s567 + $0x68] sm:$0xf]
      %v595 = vld [vmem:[%s567 + $0x6c] sm:$0xf]
      %v596 = vld [vmem:[%s567 + $0x70] sm:$0xf]
      %v597 = vld [vmem:[%s567 + $0x74] sm:$0xf]
      %v598 = vld [vmem:[%s567 + $0x78] sm:$0xf]
      %v599 = vld [vmem:[%s567 + $0x7c] sm:$0xf]
      %v600 = vld [vmem:[%s567 + $0x80] sm:$0xf]
      %v601 = vld [vmem:[%s567 + $0x84] sm:$0xf]
      %v602 = vld [vmem:[%s567 + $0x88] sm:$0xf]
      %v603 = vld [vmem:[%s567 + $0x8c] sm:$0xf]
      %v604 = vld [vmem:[%s567 + $0x90] sm:$0xf]
      %v605 = vld [vmem:[%s567 + $0x94] sm:$0xf]
      %v606 = vld [vmem:[%s567 + $0x98] sm:$0xf]
      %v607 = vld [vmem:[%s567 + $0x9c] sm:$0xf]
      %v608 = vld [vmem:[%s567 + $0xa0] sm:$0xf]
      %v609 = vld [vmem:[%s567 + $0xa4] sm:$0xf]
      %v610 = vld [vmem:[%s567 + $0xa8] sm:$0xf]
      %v611 = vld [vmem:[%s567 + $0xac] sm:$0xf]
      %v612 = vld [vmem:[%s567 + $0xb0] sm:$0xf]
      %v613 = vld [vmem:[%s567 + $0xb4] sm:$0xf]
      %v614 = vld [vmem:[%s567 + $0xb8] sm:$0xf]
      %v615 = vld [vmem:[%s567 + $0xbc] sm:$0xf]
      %v616 = vld [vmem:[%s567 + $0xc0] sm:$0xf]
      %v617 = vld [vmem:[%s567 + $0xc4] sm:$0xf]
      %v618 = vld [vmem:[%s567 + $0xc8] sm:$0xf]
      %v619 = vld [vmem:[%s567 + $0xcc] sm:$0xf]
      %v620 = vld [vmem:[%s567 + $0xd0] sm:$0xf]
      %v621 = vld [vmem:[%s567 + $0xd4] sm:$0xf]
      %v622 = vld [vmem:[%s567 + $0xd8] sm:$0xf]
      %v623 = vld [vmem:[%s567 + $0xdc] sm:$0xf]
      %v624 = vld [vmem:[%s567 + $0xe0] sm:$0xf]
      %v625 = vld [vmem:[%s567 + $0xe4] sm:$0xf]
      %v626 = vld [vmem:[%s567 + $0xe8] sm:$0xf]
      %v627 = vld [vmem:[%s567 + $0xec] sm:$0xf]
      %v628 = vld [vmem:[%s567 + $0xf0] sm:$0xf]
      %v629 = vld [vmem:[%s567 + $0xf4] sm:$0xf]
      %v630 = vld [vmem:[%s567 + $0xf8] sm:$0xf]
      %v631 = vld [vmem:[%s567 + $0xfc] sm:$0xf]
      %v632 = vld [vmem:[%s567 + $0x100] sm:$0xf]
      %v633 = vld [vmem:[%s567 + $0x104] sm:$0xf]
      %v634 = vld [vmem:[%s567 + $0x108] sm:$0xf]
      %v635 = vld [vmem:[%s567 + $0x10c] sm:$0xf]
      %v636 = vld [vmem:[%s567 + $0x110] sm:$0xf]
      %v637 = vld [vmem:[%s567 + $0x114] sm:$0xf]
      %v638 = vld [vmem:[%s567 + $0x118] sm:$0xf]
      %v639 = vld [vmem:[%s567 + $0x11c] sm:$0xf]
      %v640 = vld [vmem:[%s567 + $0x120] sm:$0xf]
      %v641 = vld [vmem:[%s567 + $0x124] sm:$0xf]
      %v642 = vld [vmem:[%s567 + $0x128] sm:$0xf]
      %v643 = vld [vmem:[%s567 + $0x12c] sm:$0xf]
      %v644 = vld [vmem:[%s567 + $0x130] sm:$0xf]
      %v645 = vld [vmem:[%s567 + $0x134] sm:$0xf]
      %v646 = vld [vmem:[%s567 + $0x138] sm:$0xf]
      %v647 = vld [vmem:[%s567 + $0x13c] sm:$0xf]
      %v648 = vld [vmem:[%s567 + $0x140] sm:$0xf]
      %v649 = vld [vmem:[%s567 + $0x144] sm:$0xf]
      %v650 = vld [vmem:[%s567 + $0x148] sm:$0xf]
      %v651 = vld [vmem:[%s567 + $0x14c] sm:$0xf]
      %v652 = vld [vmem:[%s567 + $0x150] sm:$0xf]
      %v653 = vld [vmem:[%s567 + $0x154] sm:$0xf]
      %v654 = vld [vmem:[%s567 + $0x158] sm:$0xf]
      %v655 = vld [vmem:[%s567 + $0x15c] sm:$0xf]
      %v656 = vld [vmem:[%s567 + $0x160] sm:$0xf]
      %v657 = vld [vmem:[%s567 + $0x164] sm:$0xf]
      %v658 = vld [vmem:[%s567 + $0x168] sm:$0xf]
      %v659 = vld [vmem:[%s567 + $0x16c] sm:$0xf]
      %v660 = vld [vmem:[%s567 + $0x170] sm:$0xf]
      %v661 = vld [vmem:[%s567 + $0x174] sm:$0xf]
      %v662 = vld [vmem:[%s567 + $0x178] sm:$0xf]
      %v663 = vld [vmem:[%s567 + $0x17c] sm:$0xf]
      %v664 = vld [vmem:[%s567 + $0x180] sm:$0xf]
      %v665 = vld [vmem:[%s567 + $0x184] sm:$0xf]
      %v666 = vld [vmem:[%s567 + $0x188] sm:$0xf]
      %v667 = vld [vmem:[%s567 + $0x18c] sm:$0xf]
      %v668 = vld [vmem:[%s567 + $0x190] sm:$0xf]
      %v669 = vld [vmem:[%s567 + $0x194] sm:$0xf]
      %v670 = vld [vmem:[%s567 + $0x198] sm:$0xf]
      %v671 = vld [vmem:[%s567 + $0x19c] sm:$0xf]
      %v672 = vld [vmem:[%s567 + $0x1a0] sm:$0xf]
      %v673 = vld [vmem:[%s567 + $0x1a4] sm:$0xf]
      %v674 = vld [vmem:[%s567 + $0x1a8] sm:$0xf]
      %v675 = vld [vmem:[%s567 + $0x1ac] sm:$0xf]
      %v676 = vld [vmem:[%s567 + $0x1b0] sm:$0xf]
      %v677 = vld [vmem:[%s567 + $0x1b4] sm:$0xf]
      %v678 = vld [vmem:[%s567 + $0x1b8] sm:$0xf]
      %v679 = vld [vmem:[%s567 + $0x1bc] sm:$0xf]
      %v680 = vld [vmem:[%s567 + $0x1c0] sm:$0xf]
      %v681 = vld [vmem:[%s567 + $0x1c4] sm:$0xf]
      %v682 = vld [vmem:[%s567 + $0x1c8] sm:$0xf]
      %v683 = vld [vmem:[%s567 + $0x1cc] sm:$0xf]
      %v684 = vld [vmem:[%s567 + $0x1d0] sm:$0xf]
      %v685 = vld [vmem:[%s567 + $0x1d4] sm:$0xf]
      %v686 = vld [vmem:[%s567 + $0x1d8] sm:$0xf]
      %v687 = vld [vmem:[%s567 + $0x1dc] sm:$0xf]
      %v688 = vld [vmem:[%s567 + $0x1e0] sm:$0xf]
      %v689 = vld [vmem:[%s567 + $0x1e4] sm:$0xf]
      %v690 = vld [vmem:[%s567 + $0x1e8] sm:$0xf]
      %v691 = vld [vmem:[%s567 + $0x1ec] sm:$0xf]
      %v692 = vld [vmem:[%s567 + $0x1f0] sm:$0xf]
      %v693 = vld [vmem:[%s567 + $0x1f4] sm:$0xf]
      %v694 = vld [vmem:[%s567 + $0x1f8] sm:$0xf]
      %v695 = vld [vmem:[%s567 + $0x1fc] sm:$0xf]
      %v824 = vunpack.c.l.b16 %v311
      %v825 = vunpack.c.h.b16 %v311
      %v826 = vunpack.c.l.b16 %v312
      %v827 = vunpack.c.h.b16 %v312
      %v828 = vunpack.c.l.b16 %v313
      %v829 = vunpack.c.h.b16 %v313
      %v830 = vunpack.c.l.b16 %v314
      %v831 = vunpack.c.h.b16 %v314
      %v832 = vunpack.c.l.b16 %v315
      %v833 = vunpack.c.h.b16 %v315
      %v834 = vunpack.c.l.b16 %v316
      %v835 = vunpack.c.h.b16 %v316
      %v836 = vunpack.c.l.b16 %v317
      %v837 = vunpack.c.h.b16 %v317
      %v838 = vunpack.c.l.b16 %v318
      %v839 = vunpack.c.h.b16 %v318
      %v840 = vunpack.c.l.b16 %v319
      %v841 = vunpack.c.h.b16 %v319
      %v842 = vunpack.c.l.b16 %v320
      %v843 = vunpack.c.h.b16 %v320
      %v844 = vunpack.c.l.b16 %v321
      %v845 = vunpack.c.h.b16 %v321
      %v846 = vunpack.c.l.b16 %v322
      %v847 = vunpack.c.h.b16 %v322
      %v848 = vunpack.c.l.b16 %v323
      %v849 = vunpack.c.h.b16 %v323
      %v850 = vunpack.c.l.b16 %v324
      %v851 = vunpack.c.h.b16 %v324
      %v852 = vunpack.c.l.b16 %v325
      %v853 = vunpack.c.h.b16 %v325
      %v854 = vunpack.c.l.b16 %v326
      %v855 = vunpack.c.h.b16 %v326
      %v856 = vunpack.c.l.b16 %v327
      %v857 = vunpack.c.h.b16 %v327
      %v858 = vunpack.c.l.b16 %v328
      %v859 = vunpack.c.h.b16 %v328
      %v860 = vunpack.c.l.b16 %v329
      %v861 = vunpack.c.h.b16 %v329
      %v862 = vunpack.c.l.b16 %v330
      %v863 = vunpack.c.h.b16 %v330
      %v864 = vunpack.c.l.b16 %v331
      %v865 = vunpack.c.h.b16 %v331
      %v866 = vunpack.c.l.b16 %v332
      %v867 = vunpack.c.h.b16 %v332
      %v868 = vunpack.c.l.b16 %v333
      %v869 = vunpack.c.h.b16 %v333
      %v870 = vunpack.c.l.b16 %v334
      %v871 = vunpack.c.h.b16 %v334
      %v872 = vunpack.c.l.b16 %v335
      %v873 = vunpack.c.h.b16 %v335
      %v874 = vunpack.c.l.b16 %v336
      %v875 = vunpack.c.h.b16 %v336
      %v876 = vunpack.c.l.b16 %v337
      %v877 = vunpack.c.h.b16 %v337
      %v878 = vunpack.c.l.b16 %v338
      %v879 = vunpack.c.h.b16 %v338
      %v880 = vunpack.c.l.b16 %v339
      %v881 = vunpack.c.h.b16 %v339
      %v882 = vunpack.c.l.b16 %v340
      %v883 = vunpack.c.h.b16 %v340
      %v884 = vunpack.c.l.b16 %v341
      %v885 = vunpack.c.h.b16 %v341
      %v886 = vunpack.c.l.b16 %v342
      %v887 = vunpack.c.h.b16 %v342
      %v888 = vunpack.c.l.b16 %v343
      %v889 = vunpack.c.h.b16 %v343
      %v890 = vunpack.c.l.b16 %v344
      %v891 = vunpack.c.h.b16 %v344
      %v892 = vunpack.c.l.b16 %v345
      %v893 = vunpack.c.h.b16 %v345
      %v894 = vunpack.c.l.b16 %v346
      %v895 = vunpack.c.h.b16 %v346
      %v896 = vunpack.c.l.b16 %v347
      %v897 = vunpack.c.h.b16 %v347
      %v898 = vunpack.c.l.b16 %v348
      %v899 = vunpack.c.h.b16 %v348
      %v900 = vunpack.c.l.b16 %v349
      %v901 = vunpack.c.h.b16 %v349
      %v902 = vunpack.c.l.b16 %v350
      %v903 = vunpack.c.h.b16 %v350
      %v904 = vunpack.c.l.b16 %v351
      %v905 = vunpack.c.h.b16 %v351
      %v906 = vunpack.c.l.b16 %v352
      %v907 = vunpack.c.h.b16 %v352
      %v908 = vunpack.c.l.b16 %v353
      %v909 = vunpack.c.h.b16 %v353
      %v910 = vunpack.c.l.b16 %v354
      %v911 = vunpack.c.h.b16 %v354
      %v912 = vunpack.c.l.b16 %v355
      %v913 = vunpack.c.h.b16 %v355
      %v914 = vunpack.c.l.b16 %v356
      %v915 = vunpack.c.h.b16 %v356
      %v916 = vunpack.c.l.b16 %v357
      %v917 = vunpack.c.h.b16 %v357
      %v918 = vunpack.c.l.b16 %v358
      %v919 = vunpack.c.h.b16 %v358
      %v920 = vunpack.c.l.b16 %v359
      %v921 = vunpack.c.h.b16 %v359
      %v922 = vunpack.c.l.b16 %v360
      %v923 = vunpack.c.h.b16 %v360
      %v924 = vunpack.c.l.b16 %v361
      %v925 = vunpack.c.h.b16 %v361
      %v926 = vunpack.c.l.b16 %v362
      %v927 = vunpack.c.h.b16 %v362
      %v928 = vunpack.c.l.b16 %v363
      %v929 = vunpack.c.h.b16 %v363
      %v930 = vunpack.c.l.b16 %v364
      %v931 = vunpack.c.h.b16 %v364
      %v932 = vunpack.c.l.b16 %v365
      %v933 = vunpack.c.h.b16 %v365
      %v934 = vunpack.c.l.b16 %v366
      %v935 = vunpack.c.h.b16 %v366
      %v936 = vunpack.c.l.b16 %v367
      %v937 = vunpack.c.h.b16 %v367
      %v938 = vunpack.c.l.b16 %v368
      %v939 = vunpack.c.h.b16 %v368
      %v940 = vunpack.c.l.b16 %v369
      %v941 = vunpack.c.h.b16 %v369
      %v942 = vunpack.c.l.b16 %v370
      %v943 = vunpack.c.h.b16 %v370
      %v944 = vunpack.c.l.b16 %v371
      %v945 = vunpack.c.h.b16 %v371
      %v946 = vunpack.c.l.b16 %v372
      %v947 = vunpack.c.h.b16 %v372
      %v948 = vunpack.c.l.b16 %v373
      %v949 = vunpack.c.h.b16 %v373
      %v950 = vunpack.c.l.b16 %v374
      %v951 = vunpack.c.h.b16 %v374
      %v952 = vunpack.c.l.b16 %v375
      %v953 = vunpack.c.h.b16 %v375
      %v954 = vunpack.c.l.b16 %v376
      %v955 = vunpack.c.h.b16 %v376
      %v956 = vunpack.c.l.b16 %v377
      %v957 = vunpack.c.h.b16 %v377
      %v958 = vunpack.c.l.b16 %v378
      %v959 = vunpack.c.h.b16 %v378
      %v960 = vunpack.c.l.b16 %v379
      %v961 = vunpack.c.h.b16 %v379
      %v962 = vunpack.c.l.b16 %v380
      %v963 = vunpack.c.h.b16 %v380
      %v964 = vunpack.c.l.b16 %v381
      %v965 = vunpack.c.h.b16 %v381
      %v966 = vunpack.c.l.b16 %v382
      %v967 = vunpack.c.h.b16 %v382
      %v968 = vunpack.c.l.b16 %v383
      %v969 = vunpack.c.h.b16 %v383
      %v970 = vunpack.c.l.b16 %v384
      %v971 = vunpack.c.h.b16 %v384
      %v972 = vunpack.c.l.b16 %v385
      %v973 = vunpack.c.h.b16 %v385
      %v974 = vunpack.c.l.b16 %v386
      %v975 = vunpack.c.h.b16 %v386
      %v976 = vunpack.c.l.b16 %v387
      %v977 = vunpack.c.h.b16 %v387
      %v978 = vunpack.c.l.b16 %v388
      %v979 = vunpack.c.h.b16 %v388
      %v980 = vunpack.c.l.b16 %v389
      %v981 = vunpack.c.h.b16 %v389
      %v982 = vunpack.c.l.b16 %v390
      %v983 = vunpack.c.h.b16 %v390
      %v984 = vunpack.c.l.b16 %v391
      %v985 = vunpack.c.h.b16 %v391
      %v986 = vunpack.c.l.b16 %v392
      %v987 = vunpack.c.h.b16 %v392
      %v988 = vunpack.c.l.b16 %v393
      %v989 = vunpack.c.h.b16 %v393
      %v990 = vunpack.c.l.b16 %v394
      %v991 = vunpack.c.h.b16 %v394
      %v992 = vunpack.c.l.b16 %v395
      %v993 = vunpack.c.h.b16 %v395
      %v994 = vunpack.c.l.b16 %v396
      %v995 = vunpack.c.h.b16 %v396
      %v996 = vunpack.c.l.b16 %v397
      %v997 = vunpack.c.h.b16 %v397
      %v998 = vunpack.c.l.b16 %v398
      %v999 = vunpack.c.h.b16 %v398
      %v1000 = vunpack.c.l.b16 %v399
      %v1001 = vunpack.c.h.b16 %v399
      %v1002 = vunpack.c.l.b16 %v400
      %v1003 = vunpack.c.h.b16 %v400
      %v1004 = vunpack.c.l.b16 %v401
      %v1005 = vunpack.c.h.b16 %v401
      %v1006 = vunpack.c.l.b16 %v402
      %v1007 = vunpack.c.h.b16 %v402
      %v1008 = vunpack.c.l.b16 %v403
      %v1009 = vunpack.c.h.b16 %v403
      %v1010 = vunpack.c.l.b16 %v404
      %v1011 = vunpack.c.h.b16 %v404
      %v1012 = vunpack.c.l.b16 %v405
      %v1013 = vunpack.c.h.b16 %v405
      %v1014 = vunpack.c.l.b16 %v406
      %v1015 = vunpack.c.h.b16 %v406
      %v1016 = vunpack.c.l.b16 %v407
      %v1017 = vunpack.c.h.b16 %v407
      %v1018 = vunpack.c.l.b16 %v408
      %v1019 = vunpack.c.h.b16 %v408
      %v1020 = vunpack.c.l.b16 %v409
      %v1021 = vunpack.c.h.b16 %v409
      %v1022 = vunpack.c.l.b16 %v410
      %v1023 = vunpack.c.h.b16 %v410
      %v1024 = vunpack.c.l.b16 %v411
      %v1025 = vunpack.c.h.b16 %v411
      %v1026 = vunpack.c.l.b16 %v412
      %v1027 = vunpack.c.h.b16 %v412
      %v1028 = vunpack.c.l.b16 %v413
      %v1029 = vunpack.c.h.b16 %v413
      %v1030 = vunpack.c.l.b16 %v414
      %v1031 = vunpack.c.h.b16 %v414
      %v1032 = vunpack.c.l.b16 %v415
      %v1033 = vunpack.c.h.b16 %v415
      %v1034 = vunpack.c.l.b16 %v416
      %v1035 = vunpack.c.h.b16 %v416
      %v1036 = vunpack.c.l.b16 %v417
      %v1037 = vunpack.c.h.b16 %v417
      %v1038 = vunpack.c.l.b16 %v418
      %v1039 = vunpack.c.h.b16 %v418
      %v1040 = vunpack.c.l.b16 %v419
      %v1041 = vunpack.c.h.b16 %v419
      %v1042 = vunpack.c.l.b16 %v420
      %v1043 = vunpack.c.h.b16 %v420
      %v1044 = vunpack.c.l.b16 %v421
      %v1045 = vunpack.c.h.b16 %v421
      %v1046 = vunpack.c.l.b16 %v422
      %v1047 = vunpack.c.h.b16 %v422
      %v1048 = vunpack.c.l.b16 %v423
      %v1049 = vunpack.c.h.b16 %v423
      %v1050 = vunpack.c.l.b16 %v424
      %v1051 = vunpack.c.h.b16 %v424
      %v1052 = vunpack.c.l.b16 %v425
      %v1053 = vunpack.c.h.b16 %v425
      %v1054 = vunpack.c.l.b16 %v426
      %v1055 = vunpack.c.h.b16 %v426
      %v1056 = vunpack.c.l.b16 %v427
      %v1057 = vunpack.c.h.b16 %v427
      %v1058 = vunpack.c.l.b16 %v428
      %v1059 = vunpack.c.h.b16 %v428
      %v1060 = vunpack.c.l.b16 %v429
      %v1061 = vunpack.c.h.b16 %v429
      %v1062 = vunpack.c.l.b16 %v430
      %v1063 = vunpack.c.h.b16 %v430
      %v1064 = vunpack.c.l.b16 %v431
      %v1065 = vunpack.c.h.b16 %v431
      %v1066 = vunpack.c.l.b16 %v432
      %v1067 = vunpack.c.h.b16 %v432
      %v1068 = vunpack.c.l.b16 %v433
      %v1069 = vunpack.c.h.b16 %v433
      %v1070 = vunpack.c.l.b16 %v434
      %v1071 = vunpack.c.h.b16 %v434
      %v1072 = vunpack.c.l.b16 %v435
      %v1073 = vunpack.c.h.b16 %v435
      %v1074 = vunpack.c.l.b16 %v436
      %v1075 = vunpack.c.h.b16 %v436
      %v1076 = vunpack.c.l.b16 %v437
      %v1077 = vunpack.c.h.b16 %v437
      %v1078 = vunpack.c.l.b16 %v438
      %v1079 = vunpack.c.h.b16 %v438
      %v1080 = vpack.c.b16 %v832, %v824
      %v1081 = vpack.c.b16 %v833, %v825
      %v1082 = vpack.c.b16 %v834, %v826
      %v1083 = vpack.c.b16 %v835, %v827
      %v1084 = vpack.c.b16 %v836, %v828
      %v1085 = vpack.c.b16 %v837, %v829
      %v1086 = vpack.c.b16 %v838, %v830
      %v1087 = vpack.c.b16 %v839, %v831
      %v1088 = vpack.c.b16 %v848, %v840
      %v1089 = vpack.c.b16 %v849, %v841
      %v1090 = vpack.c.b16 %v850, %v842
      %v1091 = vpack.c.b16 %v851, %v843
      %v1092 = vpack.c.b16 %v852, %v844
      %v1093 = vpack.c.b16 %v853, %v845
      %v1094 = vpack.c.b16 %v854, %v846
      %v1095 = vpack.c.b16 %v855, %v847
      %v1096 = vpack.c.b16 %v864, %v856
      %v1097 = vpack.c.b16 %v865, %v857
      %v1098 = vpack.c.b16 %v866, %v858
      %v1099 = vpack.c.b16 %v867, %v859
      %v1100 = vpack.c.b16 %v868, %v860
      %v1101 = vpack.c.b16 %v869, %v861
      %v1102 = vpack.c.b16 %v870, %v862
      %v1103 = vpack.c.b16 %v871, %v863
      %v1104 = vpack.c.b16 %v880, %v872
      %v1105 = vpack.c.b16 %v881, %v873
      %v1106 = vpack.c.b16 %v882, %v874
      %v1107 = vpack.c.b16 %v883, %v875
      %v1108 = vpack.c.b16 %v884, %v876
      %v1109 = vpack.c.b16 %v885, %v877
      %v1110 = vpack.c.b16 %v886, %v878
      %v1111 = vpack.c.b16 %v887, %v879
      %v1112 = vpack.c.b16 %v896, %v888
      %v1113 = vpack.c.b16 %v897, %v889
      %v1114 = vpack.c.b16 %v898, %v890
      %v1115 = vpack.c.b16 %v899, %v891
      %v1116 = vpack.c.b16 %v900, %v892
      %v1117 = vpack.c.b16 %v901, %v893
      %v1118 = vpack.c.b16 %v902, %v894
      %v1119 = vpack.c.b16 %v903, %v895
      %v1120 = vpack.c.b16 %v912, %v904
      %v1121 = vpack.c.b16 %v913, %v905
      %v1122 = vpack.c.b16 %v914, %v906
      %v1123 = vpack.c.b16 %v915, %v907
      %v1124 = vpack.c.b16 %v916, %v908
      %v1125 = vpack.c.b16 %v917, %v909
      %v1126 = vpack.c.b16 %v918, %v910
      %v1127 = vpack.c.b16 %v919, %v911
      %v1128 = vpack.c.b16 %v928, %v920
      %v1129 = vpack.c.b16 %v929, %v921
      %v1130 = vpack.c.b16 %v930, %v922
      %v1131 = vpack.c.b16 %v931, %v923
      %v1132 = vpack.c.b16 %v932, %v924
      %v1133 = vpack.c.b16 %v933, %v925
      %v1134 = vpack.c.b16 %v934, %v926
      %v1135 = vpack.c.b16 %v935, %v927
      %v1136 = vpack.c.b16 %v944, %v936
      %v1137 = vpack.c.b16 %v945, %v937
      %v1138 = vpack.c.b16 %v946, %v938
      %v1139 = vpack.c.b16 %v947, %v939
      %v1140 = vpack.c.b16 %v948, %v940
      %v1141 = vpack.c.b16 %v949, %v941
      %v1142 = vpack.c.b16 %v950, %v942
      %v1143 = vpack.c.b16 %v951, %v943
      %v1144 = vpack.c.b16 %v960, %v952
      %v1145 = vpack.c.b16 %v961, %v953
      %v1146 = vpack.c.b16 %v962, %v954
      %v1147 = vpack.c.b16 %v963, %v955
      %v1148 = vpack.c.b16 %v964, %v956
      %v1149 = vpack.c.b16 %v965, %v957
      %v1150 = vpack.c.b16 %v966, %v958
      %v1151 = vpack.c.b16 %v967, %v959
      %v1152 = vpack.c.b16 %v976, %v968
      %v1153 = vpack.c.b16 %v977, %v969
      %v1154 = vpack.c.b16 %v978, %v970
      %v1155 = vpack.c.b16 %v979, %v971
      %v1156 = vpack.c.b16 %v980, %v972
      %v1157 = vpack.c.b16 %v981, %v973
      %v1158 = vpack.c.b16 %v982, %v974
      %v1159 = vpack.c.b16 %v983, %v975
      %v1160 = vpack.c.b16 %v992, %v984
      %v1161 = vpack.c.b16 %v993, %v985
      %v1162 = vpack.c.b16 %v994, %v986
      %v1163 = vpack.c.b16 %v995, %v987
      %v1164 = vpack.c.b16 %v996, %v988
      %v1165 = vpack.c.b16 %v997, %v989
      %v1166 = vpack.c.b16 %v998, %v990
      %v1167 = vpack.c.b16 %v999, %v991
      %v1168 = vpack.c.b16 %v1008, %v1000
      %v1169 = vpack.c.b16 %v1009, %v1001
      %v1170 = vpack.c.b16 %v1010, %v1002
      %v1171 = vpack.c.b16 %v1011, %v1003
      %v1172 = vpack.c.b16 %v1012, %v1004
      %v1173 = vpack.c.b16 %v1013, %v1005
      %v1174 = vpack.c.b16 %v1014, %v1006
      %v1175 = vpack.c.b16 %v1015, %v1007
      %v1176 = vpack.c.b16 %v1024, %v1016
      %v1177 = vpack.c.b16 %v1025, %v1017
      %v1178 = vpack.c.b16 %v1026, %v1018
      %v1179 = vpack.c.b16 %v1027, %v1019
      %v1180 = vpack.c.b16 %v1028, %v1020
      %v1181 = vpack.c.b16 %v1029, %v1021
      %v1182 = vpack.c.b16 %v1030, %v1022
      %v1183 = vpack.c.b16 %v1031, %v1023
      %v1184 = vpack.c.b16 %v1040, %v1032
      %v1185 = vpack.c.b16 %v1041, %v1033
      %v1186 = vpack.c.b16 %v1042, %v1034
      %v1187 = vpack.c.b16 %v1043, %v1035
      %v1188 = vpack.c.b16 %v1044, %v1036
      %v1189 = vpack.c.b16 %v1045, %v1037
      %v1190 = vpack.c.b16 %v1046, %v1038
      %v1191 = vpack.c.b16 %v1047, %v1039
      %v1192 = vpack.c.b16 %v1056, %v1048
      %v1193 = vpack.c.b16 %v1057, %v1049
      %v1194 = vpack.c.b16 %v1058, %v1050
      %v1195 = vpack.c.b16 %v1059, %v1051
      %v1196 = vpack.c.b16 %v1060, %v1052
      %v1197 = vpack.c.b16 %v1061, %v1053
      %v1198 = vpack.c.b16 %v1062, %v1054
      %v1199 = vpack.c.b16 %v1063, %v1055
      %v1200 = vpack.c.b16 %v1072, %v1064
      %v1201 = vpack.c.b16 %v1073, %v1065
      %v1202 = vpack.c.b16 %v1074, %v1066
      %v1203 = vpack.c.b16 %v1075, %v1067
      %v1204 = vpack.c.b16 %v1076, %v1068
      %v1205 = vpack.c.b16 %v1077, %v1069
      %v1206 = vpack.c.b16 %v1078, %v1070
      %v1207 = vpack.c.b16 %v1079, %v1071
      %v1464 = vunpack.c.l.b16 %v568
      %v1465 = vunpack.c.l.b16 %v569
      %v1466 = vunpack.c.l.b16 %v570
      %v1467 = vunpack.c.l.b16 %v571
      %v1468 = vunpack.c.l.b16 %v572
      %v1469 = vunpack.c.l.b16 %v573
      %v1470 = vunpack.c.l.b16 %v574
      %v1471 = vunpack.c.l.b16 %v575
      %v1472 = vunpack.c.l.b16 %v576
      %v1473 = vunpack.c.l.b16 %v577
      %v1474 = vunpack.c.l.b16 %v578
      %v1475 = vunpack.c.l.b16 %v579
      %v1476 = vunpack.c.l.b16 %v580
      %v1477 = vunpack.c.l.b16 %v581
      %v1478 = vunpack.c.l.b16 %v582
      %v1479 = vunpack.c.l.b16 %v583
      %v1480 = vunpack.c.l.b16 %v584
      %v1481 = vunpack.c.l.b16 %v585
      %v1482 = vunpack.c.l.b16 %v586
      %v1483 = vunpack.c.l.b16 %v587
      %v1484 = vunpack.c.l.b16 %v588
      %v1485 = vunpack.c.l.b16 %v589
      %v1486 = vunpack.c.l.b16 %v590
      %v1487 = vunpack.c.l.b16 %v591
      %v1488 = vunpack.c.l.b16 %v592
      %v1489 = vunpack.c.l.b16 %v593
      %v1490 = vunpack.c.l.b16 %v594
      %v1491 = vunpack.c.l.b16 %v595
      %v1492 = vunpack.c.l.b16 %v596
      %v1493 = vunpack.c.l.b16 %v597
      %v1494 = vunpack.c.l.b16 %v598
      %v1495 = vunpack.c.l.b16 %v599
      %v1496 = vunpack.c.l.b16 %v600
      %v1497 = vunpack.c.l.b16 %v601
      %v1498 = vunpack.c.l.b16 %v602
      %v1499 = vunpack.c.l.b16 %v603
      %v1500 = vunpack.c.l.b16 %v604
      %v1501 = vunpack.c.l.b16 %v605
      %v1502 = vunpack.c.l.b16 %v606
      %v1503 = vunpack.c.l.b16 %v607
      %v1504 = vunpack.c.l.b16 %v608
      %v1505 = vunpack.c.l.b16 %v609
      %v1506 = vunpack.c.l.b16 %v610
      %v1507 = vunpack.c.l.b16 %v611
      %v1508 = vunpack.c.l.b16 %v612
      %v1509 = vunpack.c.l.b16 %v613
      %v1510 = vunpack.c.l.b16 %v614
      %v1511 = vunpack.c.l.b16 %v615
      %v1512 = vunpack.c.l.b16 %v616
      %v1513 = vunpack.c.l.b16 %v617
      %v1514 = vunpack.c.l.b16 %v618
      %v1515 = vunpack.c.l.b16 %v619
      %v1516 = vunpack.c.l.b16 %v620
      %v1517 = vunpack.c.l.b16 %v621
      %v1518 = vunpack.c.l.b16 %v622
      %v1519 = vunpack.c.l.b16 %v623
      %v1520 = vunpack.c.l.b16 %v624
      %v1521 = vunpack.c.l.b16 %v625
      %v1522 = vunpack.c.l.b16 %v626
      %v1523 = vunpack.c.l.b16 %v627
      %v1524 = vunpack.c.l.b16 %v628
      %v1525 = vunpack.c.l.b16 %v629
      %v1526 = vunpack.c.l.b16 %v630
      %v1527 = vunpack.c.l.b16 %v631
      %v1528 = vunpack.c.l.b16 %v632
      %v1529 = vunpack.c.l.b16 %v633
      %v1530 = vunpack.c.l.b16 %v634
      %v1531 = vunpack.c.l.b16 %v635
      %v1532 = vunpack.c.l.b16 %v636
      %v1533 = vunpack.c.l.b16 %v637
      %v1534 = vunpack.c.l.b16 %v638
      %v1535 = vunpack.c.l.b16 %v639
      %v1536 = vunpack.c.l.b16 %v640
      %v1537 = vunpack.c.l.b16 %v641
      %v1538 = vunpack.c.l.b16 %v642
      %v1539 = vunpack.c.l.b16 %v643
      %v1540 = vunpack.c.l.b16 %v644
      %v1541 = vunpack.c.l.b16 %v645
      %v1542 = vunpack.c.l.b16 %v646
      %v1543 = vunpack.c.l.b16 %v647
      %v1544 = vunpack.c.l.b16 %v648
      %v1545 = vunpack.c.l.b16 %v649
      %v1546 = vunpack.c.l.b16 %v650
      %v1547 = vunpack.c.l.b16 %v651
      %v1548 = vunpack.c.l.b16 %v652
      %v1549 = vunpack.c.l.b16 %v653
      %v1550 = vunpack.c.l.b16 %v654
      %v1551 = vunpack.c.l.b16 %v655
      %v1552 = vunpack.c.l.b16 %v656
      %v1553 = vunpack.c.l.b16 %v657
      %v1554 = vunpack.c.l.b16 %v658
      %v1555 = vunpack.c.l.b16 %v659
      %v1556 = vunpack.c.l.b16 %v660
      %v1557 = vunpack.c.l.b16 %v661
      %v1558 = vunpack.c.l.b16 %v662
      %v1559 = vunpack.c.l.b16 %v663
      %v1560 = vunpack.c.l.b16 %v664
      %v1561 = vunpack.c.l.b16 %v665
      %v1562 = vunpack.c.l.b16 %v666
      %v1563 = vunpack.c.l.b16 %v667
      %v1564 = vunpack.c.l.b16 %v668
      %v1565 = vunpack.c.l.b16 %v669
      %v1566 = vunpack.c.l.b16 %v670
      %v1567 = vunpack.c.l.b16 %v671
      %v1568 = vunpack.c.l.b16 %v672
      %v1569 = vunpack.c.l.b16 %v673
      %v1570 = vunpack.c.l.b16 %v674
      %v1571 = vunpack.c.l.b16 %v675
      %v1572 = vunpack.c.l.b16 %v676
      %v1573 = vunpack.c.l.b16 %v677
      %v1574 = vunpack.c.l.b16 %v678
      %v1575 = vunpack.c.l.b16 %v679
      %v1576 = vunpack.c.l.b16 %v680
      %v1577 = vunpack.c.l.b16 %v681
      %v1578 = vunpack.c.l.b16 %v682
      %v1579 = vunpack.c.l.b16 %v683
      %v1580 = vunpack.c.l.b16 %v684
      %v1581 = vunpack.c.l.b16 %v685
      %v1582 = vunpack.c.l.b16 %v686
      %v1583 = vunpack.c.l.b16 %v687
      %v1584 = vunpack.c.l.b16 %v688
      %v1585 = vunpack.c.l.b16 %v689
      %v1586 = vunpack.c.l.b16 %v690
      %v1587 = vunpack.c.l.b16 %v691
      %v1588 = vunpack.c.l.b16 %v692
      %v1589 = vunpack.c.l.b16 %v693
      %v1590 = vunpack.c.l.b16 %v694
      %v1591 = vunpack.c.l.b16 %v695
      %v1592 = vpack.c.b16 %v1465, %v1464
      %v1593 = vpack.c.b16 %v1467, %v1466
      %v1594 = vpack.c.b16 %v1469, %v1468
      %v1595 = vpack.c.b16 %v1471, %v1470
      %v1596 = vpack.c.b16 %v1473, %v1472
      %v1597 = vpack.c.b16 %v1475, %v1474
      %v1598 = vpack.c.b16 %v1477, %v1476
      %v1599 = vpack.c.b16 %v1479, %v1478
      %v1600 = vpack.c.b16 %v1481, %v1480
      %v1601 = vpack.c.b16 %v1483, %v1482
      %v1602 = vpack.c.b16 %v1485, %v1484
      %v1603 = vpack.c.b16 %v1487, %v1486
      %v1604 = vpack.c.b16 %v1489, %v1488
      %v1605 = vpack.c.b16 %v1491, %v1490
      %v1606 = vpack.c.b16 %v1493, %v1492
      %v1607 = vpack.c.b16 %v1495, %v1494
      %v1608 = vpack.c.b16 %v1497, %v1496
      %v1609 = vpack.c.b16 %v1499, %v1498
      %v1610 = vpack.c.b16 %v1501, %v1500
      %v1611 = vpack.c.b16 %v1503, %v1502
      %v1612 = vpack.c.b16 %v1505, %v1504
      %v1613 = vpack.c.b16 %v1507, %v1506
      %v1614 = vpack.c.b16 %v1509, %v1508
      %v1615 = vpack.c.b16 %v1511, %v1510
      %v1616 = vpack.c.b16 %v1513, %v1512
      %v1617 = vpack.c.b16 %v1515, %v1514
      %v1618 = vpack.c.b16 %v1517, %v1516
      %v1619 = vpack.c.b16 %v1519, %v1518
      %v1620 = vpack.c.b16 %v1521, %v1520
      %v1621 = vpack.c.b16 %v1523, %v1522
      %v1622 = vpack.c.b16 %v1525, %v1524
      %v1623 = vpack.c.b16 %v1527, %v1526
      %v1624 = vpack.c.b16 %v1529, %v1528
      %v1625 = vpack.c.b16 %v1531, %v1530
      %v1626 = vpack.c.b16 %v1533, %v1532
      %v1627 = vpack.c.b16 %v1535, %v1534
      %v1628 = vpack.c.b16 %v1537, %v1536
      %v1629 = vpack.c.b16 %v1539, %v1538
      %v1630 = vpack.c.b16 %v1541, %v1540
      %v1631 = vpack.c.b16 %v1543, %v1542
      %v1632 = vpack.c.b16 %v1545, %v1544
      %v1633 = vpack.c.b16 %v1547, %v1546
      %v1634 = vpack.c.b16 %v1549, %v1548
      %v1635 = vpack.c.b16 %v1551, %v1550
      %v1636 = vpack.c.b16 %v1553, %v1552
      %v1637 = vpack.c.b16 %v1555, %v1554
      %v1638 = vpack.c.b16 %v1557, %v1556
      %v1639 = vpack.c.b16 %v1559, %v1558
      %v1640 = vpack.c.b16 %v1561, %v1560
      %v1641 = vpack.c.b16 %v1563, %v1562
      %v1642 = vpack.c.b16 %v1565, %v1564
      %v1643 = vpack.c.b16 %v1567, %v1566
      %v1644 = vpack.c.b16 %v1569, %v1568
      %v1645 = vpack.c.b16 %v1571, %v1570
      %v1646 = vpack.c.b16 %v1573, %v1572
      %v1647 = vpack.c.b16 %v1575, %v1574
      %v1648 = vpack.c.b16 %v1577, %v1576
      %v1649 = vpack.c.b16 %v1579, %v1578
      %v1650 = vpack.c.b16 %v1581, %v1580
      %v1651 = vpack.c.b16 %v1583, %v1582
      %v1652 = vpack.c.b16 %v1585, %v1584
      %v1653 = vpack.c.b16 %v1587, %v1586
      %v1654 = vpack.c.b16 %v1589, %v1588
      %v1655 = vpack.c.b16 %v1591, %v1590
      %1720 = vmatprep.subr.bf16.mxu0 0
      %1721 = vmatpush1.bf16.msra.mxu0 %v1599
      %1722 = vmatprep.subr.bf16.mxu0 0
      %1723 = vmatpush1.bf16.msra.mxu0 %v1598
      %1724 = vmatprep.subr.bf16.mxu0 0
      %1725 = vmatpush1.bf16.msra.mxu0 %v1597
      %1726 = vmatprep.subr.bf16.mxu0 0
      %1727 = vmatpush1.bf16.msra.mxu0 %v1596
      %1728 = vmatprep.subr.bf16.mxu0 0
      %1729 = vmatpush1.bf16.msra.mxu0 %v1595
      %1730 = vmatprep.subr.bf16.mxu0 0
      %1731 = vmatpush1.bf16.msra.mxu0 %v1594
      %1732 = vmatprep.subr.bf16.mxu0 0
      %1733 = vmatpush1.bf16.msra.mxu0 %v1593
      %1734 = vmatprep.subr.bf16.mxu0 0
      %1735 = vmatpush1.bf16.msra.mxu0 %v1592
      %1736 = vmatprep.subr.bf16.mxu0 0
      %1737 = vmatpush2.bf16.msra.mxu0 %v1607
      %1738 = vmatprep.subr.bf16.mxu0 0
      %1739 = vmatpush2.bf16.msra.mxu0 %v1606
      %1740 = vmatprep.subr.bf16.mxu0 0
      %1741 = vmatpush2.bf16.msra.mxu0 %v1605
      %1742 = vmatprep.subr.bf16.mxu0 0
      %1743 = vmatpush2.bf16.msra.mxu0 %v1604
      %1744 = vmatprep.subr.bf16.mxu0 0
      %1745 = vmatpush2.bf16.msra.mxu0 %v1603
      %1746 = vmatprep.subr.bf16.mxu0 0
      %1747 = vmatpush2.bf16.msra.mxu0 %v1602
      %1748 = vmatprep.subr.bf16.mxu0 0
      %1749 = vmatpush2.bf16.msra.mxu0 %v1601
      %1750 = vmatprep.subr.bf16.mxu0 0
      %1751 = vmatpush2.bf16.msra.mxu0 %v1600
      %1752 = vmatprep.mubr.bf16.mxu0 %v1081
      %1753 = vmatmul.mubr.bf16.gmra.mxu0 %v1080
      %v1754 = vpop.f32.mrf.mxu0
      %v1755 = vadd.f32 0.0, %v1754
      %v1756 = vpop.f32.mrf.mxu0
      %v1757 = vpop.f32.mrf.mxu0
      %v1758 = vadd.f32 0.0, %v1757
      %v1759 = vpop.f32.mrf.mxu0
      %1760 = vmatprep.mubr.bf16.mxu0 %v1089
      %1761 = vmatmul.mubr.bf16.gmra.mxu0 %v1088
      %v1762 = vpop.f32.mrf.mxu0
      %v1763 = vadd.f32 0.0, %v1762
      %v1764 = vpop.f32.mrf.mxu0
      %v1765 = vpop.f32.mrf.mxu0
      %v1766 = vadd.f32 0.0, %v1765
      %v1767 = vpop.f32.mrf.mxu0
      %1768 = vmatprep.mubr.bf16.mxu0 %v1097
      %1769 = vmatmul.mubr.bf16.gmra.mxu0 %v1096
      %v1770 = vpop.f32.mrf.mxu0
      %v1771 = vadd.f32 0.0, %v1770
      %v1772 = vpop.f32.mrf.mxu0
      %v1773 = vpop.f32.mrf.mxu0
      %v1774 = vadd.f32 0.0, %v1773
      %v1775 = vpop.f32.mrf.mxu0
      %1776 = vmatprep.mubr.bf16.mxu0 %v1105
      %1777 = vmatmul.mubr.bf16.gmra.mxu0 %v1104
      %v1778 = vpop.f32.mrf.mxu0
      %v1779 = vadd.f32 0.0, %v1778
      %v1780 = vpop.f32.mrf.mxu0
      %v1781 = vpop.f32.mrf.mxu0
      %v1782 = vadd.f32 0.0, %v1781
      %v1783 = vpop.f32.mrf.mxu0
      %1784 = vmatprep.mubr.bf16.mxu0 %v1113
      %1785 = vmatmul.mubr.bf16.gmra.mxu0 %v1112
      %v1786 = vpop.f32.mrf.mxu0
      %v1787 = vadd.f32 0.0, %v1786
      %v1788 = vpop.f32.mrf.mxu0
      %v1789 = vpop.f32.mrf.mxu0
      %v1790 = vadd.f32 0.0, %v1789
      %v1791 = vpop.f32.mrf.mxu0
      %1792 = vmatprep.mubr.bf16.mxu0 %v1121
      %1793 = vmatmul.mubr.bf16.gmra.mxu0 %v1120
      %v1794 = vpop.f32.mrf.mxu0
      %v1795 = vadd.f32 0.0, %v1794
      %v1796 = vpop.f32.mrf.mxu0
      %v1797 = vpop.f32.mrf.mxu0
      %v1798 = vadd.f32 0.0, %v1797
      %v1799 = vpop.f32.mrf.mxu0
      %1800 = vmatprep.mubr.bf16.mxu0 %v1129
      %1801 = vmatmul.mubr.bf16.gmra.mxu0 %v1128
      %v1802 = vpop.f32.mrf.mxu0
      %v1803 = vadd.f32 0.0, %v1802
      %v1804 = vpop.f32.mrf.mxu0
      %v1805 = vpop.f32.mrf.mxu0
      %v1806 = vadd.f32 0.0, %v1805
      %v1807 = vpop.f32.mrf.mxu0
      %1808 = vmatprep.mubr.bf16.mxu0 %v1137
      %1809 = vmatmul.mubr.bf16.gmra.mxu0 %v1136
      %v1810 = vpop.f32.mrf.mxu0
      %v1811 = vadd.f32 0.0, %v1810
      %v1812 = vpop.f32.mrf.mxu0
      %v1813 = vpop.f32.mrf.mxu0
      %v1814 = vadd.f32 0.0, %v1813
      %v1815 = vpop.f32.mrf.mxu0
      %1816 = vmatprep.mubr.bf16.mxu0 %v1145
      %1817 = vmatmul.mubr.bf16.gmra.mxu0 %v1144
      %v1818 = vpop.f32.mrf.mxu0
      %v1819 = vadd.f32 0.0, %v1818
      %v1820 = vpop.f32.mrf.mxu0
      %v1821 = vpop.f32.mrf.mxu0
      %v1822 = vadd.f32 0.0, %v1821
      %v1823 = vpop.f32.mrf.mxu0
      %1824 = vmatprep.mubr.bf16.mxu0 %v1153
      %1825 = vmatmul.mubr.bf16.gmra.mxu0 %v1152
      %v1826 = vpop.f32.mrf.mxu0
      %v1827 = vadd.f32 0.0, %v1826
      %v1828 = vpop.f32.mrf.mxu0
      %v1829 = vpop.f32.mrf.mxu0
      %v1830 = vadd.f32 0.0, %v1829
      %v1831 = vpop.f32.mrf.mxu0
      %1832 = vmatprep.mubr.bf16.mxu0 %v1161
      %1833 = vmatmul.mubr.bf16.gmra.mxu0 %v1160
      %v1834 = vpop.f32.mrf.mxu0
      %v1835 = vadd.f32 0.0, %v1834
      %v1836 = vpop.f32.mrf.mxu0
      %v1837 = vpop.f32.mrf.mxu0
      %v1838 = vadd.f32 0.0, %v1837
      %v1839 = vpop.f32.mrf.mxu0
      %1840 = vmatprep.mubr.bf16.mxu0 %v1169
      %1841 = vmatmul.mubr.bf16.gmra.mxu0 %v1168
      %v1842 = vpop.f32.mrf.mxu0
      %v1843 = vadd.f32 0.0, %v1842
      %v1844 = vpop.f32.mrf.mxu0
      %v1845 = vpop.f32.mrf.mxu0
      %v1846 = vadd.f32 0.0, %v1845
      %v1847 = vpop.f32.mrf.mxu0
      %1848 = vmatprep.mubr.bf16.mxu0 %v1177
      %1849 = vmatmul.mubr.bf16.gmra.mxu0 %v1176
      %v1850 = vpop.f32.mrf.mxu0
      %v1851 = vadd.f32 0.0, %v1850
      %v1852 = vpop.f32.mrf.mxu0
      %v1853 = vpop.f32.mrf.mxu0
      %v1854 = vadd.f32 0.0, %v1853
      %v1855 = vpop.f32.mrf.mxu0
      %1856 = vmatprep.mubr.bf16.mxu0 %v1185
      %1857 = vmatmul.mubr.bf16.gmra.mxu0 %v1184
      %v1858 = vpop.f32.mrf.mxu0
      %v1859 = vadd.f32 0.0, %v1858
      %v1860 = vpop.f32.mrf.mxu0
      %v1861 = vpop.f32.mrf.mxu0
      %v1862 = vadd.f32 0.0, %v1861
      %v1863 = vpop.f32.mrf.mxu0
      %1864 = vmatprep.mubr.bf16.mxu0 %v1193
      %1865 = vmatmul.mubr.bf16.gmra.mxu0 %v1192
      %v1866 = vpop.f32.mrf.mxu0
      %v1867 = vadd.f32 0.0, %v1866
      %v1868 = vpop.f32.mrf.mxu0
      %v1869 = vpop.f32.mrf.mxu0
      %v1870 = vadd.f32 0.0, %v1869
      %v1871 = vpop.f32.mrf.mxu0
      %1872 = vmatprep.mubr.bf16.mxu0 %v1201
      %1873 = vmatmul.mubr.bf16.gmra.mxu0 %v1200
      %v1874 = vpop.f32.mrf.mxu0
      %v1875 = vadd.f32 0.0, %v1874
      %v1876 = vpop.f32.mrf.mxu0
      %v1877 = vpop.f32.mrf.mxu0
      %v1878 = vadd.f32 0.0, %v1877
      %v1879 = vpop.f32.mrf.mxu0
      %1880 = vdwg.mxu0
      %1881 = vmatprep.subr.bf16.mxu0 0
      %1882 = vmatpush1.bf16.msra.mxu0 %v1615
      %1883 = vmatprep.subr.bf16.mxu0 0
      %1884 = vmatpush1.bf16.msra.mxu0 %v1614
      %1885 = vmatprep.subr.bf16.mxu0 0
      %1886 = vmatpush1.bf16.msra.mxu0 %v1613
      %1887 = vmatprep.subr.bf16.mxu0 0
      %1888 = vmatpush1.bf16.msra.mxu0 %v1612
      %1889 = vmatprep.subr.bf16.mxu0 0
      %1890 = vmatpush1.bf16.msra.mxu0 %v1611
      %1891 = vmatprep.subr.bf16.mxu0 0
      %1892 = vmatpush1.bf16.msra.mxu0 %v1610
      %1893 = vmatprep.subr.bf16.mxu0 0
      %1894 = vmatpush1.bf16.msra.mxu0 %v1609
      %1895 = vmatprep.subr.bf16.mxu0 0
      %1896 = vmatpush1.bf16.msra.mxu0 %v1608
      %1897 = vmatprep.subr.bf16.mxu0 0
      %1898 = vmatpush2.bf16.msra.mxu0 %v1623
      %1899 = vmatprep.subr.bf16.mxu0 0
      %1900 = vmatpush2.bf16.msra.mxu0 %v1622
      %1901 = vmatprep.subr.bf16.mxu0 0
      %1902 = vmatpush2.bf16.msra.mxu0 %v1621
      %1903 = vmatprep.subr.bf16.mxu0 0
      %1904 = vmatpush2.bf16.msra.mxu0 %v1620
      %1905 = vmatprep.subr.bf16.mxu0 0
      %1906 = vmatpush2.bf16.msra.mxu0 %v1619
      %1907 = vmatprep.subr.bf16.mxu0 0
      %1908 = vmatpush2.bf16.msra.mxu0 %v1618
      %1909 = vmatprep.subr.bf16.mxu0 0
      %1910 = vmatpush2.bf16.msra.mxu0 %v1617
      %1911 = vmatprep.subr.bf16.mxu0 0
      %1912 = vmatpush2.bf16.msra.mxu0 %v1616
      %1913 = vmatprep.mubr.bf16.mxu0 %v1083
      %1914 = vmatmul.mubr.bf16.gmra.mxu0 %v1082
      %v1915 = vpop.f32.mrf.mxu0
      %v1916 = vadd.f32 %v1755, %v1915
      %v1917 = vpop.f32.mrf.mxu0
      %v1918 = vpop.f32.mrf.mxu0
      %v1919 = vadd.f32 %v1758, %v1918
      %v1920 = vpop.f32.mrf.mxu0
      %1921 = vmatprep.mubr.bf16.mxu0 %v1091
      %1922 = vmatmul.mubr.bf16.gmra.mxu0 %v1090
      %v1923 = vpop.f32.mrf.mxu0
      %v1924 = vadd.f32 %v1763, %v1923
      %v1925 = vpop.f32.mrf.mxu0
      %v1926 = vpop.f32.mrf.mxu0
      %v1927 = vadd.f32 %v1766, %v1926
      %v1928 = vpop.f32.mrf.mxu0
      %1929 = vmatprep.mubr.bf16.mxu0 %v1099
      %1930 = vmatmul.mubr.bf16.gmra.mxu0 %v1098
      %v1931 = vpop.f32.mrf.mxu0
      %v1932 = vadd.f32 %v1771, %v1931
      %v1933 = vpop.f32.mrf.mxu0
      %v1934 = vpop.f32.mrf.mxu0
      %v1935 = vadd.f32 %v1774, %v1934
      %v1936 = vpop.f32.mrf.mxu0
      %1937 = vmatprep.mubr.bf16.mxu0 %v1107
      %1938 = vmatmul.mubr.bf16.gmra.mxu0 %v1106
      %v1939 = vpop.f32.mrf.mxu0
      %v1940 = vadd.f32 %v1779, %v1939
      %v1941 = vpop.f32.mrf.mxu0
      %v1942 = vpop.f32.mrf.mxu0
      %v1943 = vadd.f32 %v1782, %v1942
      %v1944 = vpop.f32.mrf.mxu0
      %1945 = vmatprep.mubr.bf16.mxu0 %v1115
      %1946 = vmatmul.mubr.bf16.gmra.mxu0 %v1114
      %v1947 = vpop.f32.mrf.mxu0
      %v1948 = vadd.f32 %v1787, %v1947
      %v1949 = vpop.f32.mrf.mxu0
      %v1950 = vpop.f32.mrf.mxu0
      %v1951 = vadd.f32 %v1790, %v1950
      %v1952 = vpop.f32.mrf.mxu0
      %1953 = vmatprep.mubr.bf16.mxu0 %v1123
      %1954 = vmatmul.mubr.bf16.gmra.mxu0 %v1122
      %v1955 = vpop.f32.mrf.mxu0
      %v1956 = vadd.f32 %v1795, %v1955
      %v1957 = vpop.f32.mrf.mxu0
      %v1958 = vpop.f32.mrf.mxu0
      %v1959 = vadd.f32 %v1798, %v1958
      %v1960 = vpop.f32.mrf.mxu0
      %1961 = vmatprep.mubr.bf16.mxu0 %v1131
      %1962 = vmatmul.mubr.bf16.gmra.mxu0 %v1130
      %v1963 = vpop.f32.mrf.mxu0
      %v1964 = vadd.f32 %v1803, %v1963
      %v1965 = vpop.f32.mrf.mxu0
      %v1966 = vpop.f32.mrf.mxu0
      %v1967 = vadd.f32 %v1806, %v1966
      %v1968 = vpop.f32.mrf.mxu0
      %1969 = vmatprep.mubr.bf16.mxu0 %v1139
      %1970 = vmatmul.mubr.bf16.gmra.mxu0 %v1138
      %v1971 = vpop.f32.mrf.mxu0
      %v1972 = vadd.f32 %v1811, %v1971
      %v1973 = vpop.f32.mrf.mxu0
      %v1974 = vpop.f32.mrf.mxu0
      %v1975 = vadd.f32 %v1814, %v1974
      %v1976 = vpop.f32.mrf.mxu0
      %1977 = vmatprep.mubr.bf16.mxu0 %v1147
      %1978 = vmatmul.mubr.bf16.gmra.mxu0 %v1146
      %v1979 = vpop.f32.mrf.mxu0
      %v1980 = vadd.f32 %v1819, %v1979
      %v1981 = vpop.f32.mrf.mxu0
      %v1982 = vpop.f32.mrf.mxu0
      %v1983 = vadd.f32 %v1822, %v1982
      %v1984 = vpop.f32.mrf.mxu0
      %1985 = vmatprep.mubr.bf16.mxu0 %v1155
      %1986 = vmatmul.mubr.bf16.gmra.mxu0 %v1154
      %v1987 = vpop.f32.mrf.mxu0
      %v1988 = vadd.f32 %v1827, %v1987
      %v1989 = vpop.f32.mrf.mxu0
      %v1990 = vpop.f32.mrf.mxu0
      %v1991 = vadd.f32 %v1830, %v1990
      %v1992 = vpop.f32.mrf.mxu0
      %1993 = vmatprep.mubr.bf16.mxu0 %v1163
      %1994 = vmatmul.mubr.bf16.gmra.mxu0 %v1162
      %v1995 = vpop.f32.mrf.mxu0
      %v1996 = vadd.f32 %v1835, %v1995
      %v1997 = vpop.f32.mrf.mxu0
      %v1998 = vpop.f32.mrf.mxu0
      %v1999 = vadd.f32 %v1838, %v1998
      %v2000 = vpop.f32.mrf.mxu0
      %2001 = vmatprep.mubr.bf16.mxu0 %v1171
      %2002 = vmatmul.mubr.bf16.gmra.mxu0 %v1170
      %v2003 = vpop.f32.mrf.mxu0
      %v2004 = vadd.f32 %v1843, %v2003
      %v2005 = vpop.f32.mrf.mxu0
      %v2006 = vpop.f32.mrf.mxu0
      %v2007 = vadd.f32 %v1846, %v2006
      %v2008 = vpop.f32.mrf.mxu0
      %2009 = vmatprep.mubr.bf16.mxu0 %v1179
      %2010 = vmatmul.mubr.bf16.gmra.mxu0 %v1178
      %v2011 = vpop.f32.mrf.mxu0
      %v2012 = vadd.f32 %v1851, %v2011
      %v2013 = vpop.f32.mrf.mxu0
      %v2014 = vpop.f32.mrf.mxu0
      %v2015 = vadd.f32 %v1854, %v2014
      %v2016 = vpop.f32.mrf.mxu0
      %2017 = vmatprep.mubr.bf16.mxu0 %v1187
      %2018 = vmatmul.mubr.bf16.gmra.mxu0 %v1186
      %v2019 = vpop.f32.mrf.mxu0
      %v2020 = vadd.f32 %v1859, %v2019
      %v2021 = vpop.f32.mrf.mxu0
      %v2022 = vpop.f32.mrf.mxu0
      %v2023 = vadd.f32 %v1862, %v2022
      %v2024 = vpop.f32.mrf.mxu0
      %2025 = vmatprep.mubr.bf16.mxu0 %v1195
      %2026 = vmatmul.mubr.bf16.gmra.mxu0 %v1194
      %v2027 = vpop.f32.mrf.mxu0
      %v2028 = vadd.f32 %v1867, %v2027
      %v2029 = vpop.f32.mrf.mxu0
      %v2030 = vpop.f32.mrf.mxu0
      %v2031 = vadd.f32 %v1870, %v2030
      %v2032 = vpop.f32.mrf.mxu0
      %2033 = vmatprep.mubr.bf16.mxu0 %v1203
      %2034 = vmatmul.mubr.bf16.gmra.mxu0 %v1202
      %v2035 = vpop.f32.mrf.mxu0
      %v2036 = vadd.f32 %v1875, %v2035
      %v2037 = vpop.f32.mrf.mxu0
      %v2038 = vpop.f32.mrf.mxu0
      %v2039 = vadd.f32 %v1878, %v2038
      %v2040 = vpop.f32.mrf.mxu0
      %2041 = vdwg.mxu0
      %2042 = vmatprep.subr.bf16.mxu0 0
      %2043 = vmatpush1.bf16.msra.mxu0 %v1631
      %2044 = vmatprep.subr.bf16.mxu0 0
      %2045 = vmatpush1.bf16.msra.mxu0 %v1630
      %2046 = vmatprep.subr.bf16.mxu0 0
      %2047 = vmatpush1.bf16.msra.mxu0 %v1629
      %2048 = vmatprep.subr.bf16.mxu0 0
      %2049 = vmatpush1.bf16.msra.mxu0 %v1628
      %2050 = vmatprep.subr.bf16.mxu0 0
      %2051 = vmatpush1.bf16.msra.mxu0 %v1627
      %2052 = vmatprep.subr.bf16.mxu0 0
      %2053 = vmatpush1.bf16.msra.mxu0 %v1626
      %2054 = vmatprep.subr.bf16.mxu0 0
      %2055 = vmatpush1.bf16.msra.mxu0 %v1625
      %2056 = vmatprep.subr.bf16.mxu0 0
      %2057 = vmatpush1.bf16.msra.mxu0 %v1624
      %2058 = vmatprep.subr.bf16.mxu0 0
      %2059 = vmatpush2.bf16.msra.mxu0 %v1639
      %2060 = vmatprep.subr.bf16.mxu0 0
      %2061 = vmatpush2.bf16.msra.mxu0 %v1638
      %2062 = vmatprep.subr.bf16.mxu0 0
      %2063 = vmatpush2.bf16.msra.mxu0 %v1637
      %2064 = vmatprep.subr.bf16.mxu0 0
      %2065 = vmatpush2.bf16.msra.mxu0 %v1636
      %2066 = vmatprep.subr.bf16.mxu0 0
      %2067 = vmatpush2.bf16.msra.mxu0 %v1635
      %2068 = vmatprep.subr.bf16.mxu0 0
      %2069 = vmatpush2.bf16.msra.mxu0 %v1634
      %2070 = vmatprep.subr.bf16.mxu0 0
      %2071 = vmatpush2.bf16.msra.mxu0 %v1633
      %2072 = vmatprep.subr.bf16.mxu0 0
      %2073 = vmatpush2.bf16.msra.mxu0 %v1632
      %2074 = vmatprep.mubr.bf16.mxu0 %v1085
      %2075 = vmatmul.mubr.bf16.gmra.mxu0 %v1084
      %v2076 = vpop.f32.mrf.mxu0
      %v2077 = vadd.f32 %v1916, %v2076
      %v2078 = vpop.f32.mrf.mxu0
      %v2079 = vpop.f32.mrf.mxu0
      %v2080 = vadd.f32 %v1919, %v2079
      %v2081 = vpop.f32.mrf.mxu0
      %2082 = vmatprep.mubr.bf16.mxu0 %v1093
      %2083 = vmatmul.mubr.bf16.gmra.mxu0 %v1092
      %v2084 = vpop.f32.mrf.mxu0
      %v2085 = vadd.f32 %v1924, %v2084
      %v2086 = vpop.f32.mrf.mxu0
      %v2087 = vpop.f32.mrf.mxu0
      %v2088 = vadd.f32 %v1927, %v2087
      %v2089 = vpop.f32.mrf.mxu0
      %2090 = vmatprep.mubr.bf16.mxu0 %v1101
      %2091 = vmatmul.mubr.bf16.gmra.mxu0 %v1100
      %v2092 = vpop.f32.mrf.mxu0
      %v2093 = vadd.f32 %v1932, %v2092
      %v2094 = vpop.f32.mrf.mxu0
      %v2095 = vpop.f32.mrf.mxu0
      %v2096 = vadd.f32 %v1935, %v2095
      %v2097 = vpop.f32.mrf.mxu0
      %2098 = vmatprep.mubr.bf16.mxu0 %v1109
      %2099 = vmatmul.mubr.bf16.gmra.mxu0 %v1108
      %v2100 = vpop.f32.mrf.mxu0
      %v2101 = vadd.f32 %v1940, %v2100
      %v2102 = vpop.f32.mrf.mxu0
      %v2103 = vpop.f32.mrf.mxu0
      %v2104 = vadd.f32 %v1943, %v2103
      %v2105 = vpop.f32.mrf.mxu0
      %2106 = vmatprep.mubr.bf16.mxu0 %v1117
      %2107 = vmatmul.mubr.bf16.gmra.mxu0 %v1116
      %v2108 = vpop.f32.mrf.mxu0
      %v2109 = vadd.f32 %v1948, %v2108
      %v2110 = vpop.f32.mrf.mxu0
      %v2111 = vpop.f32.mrf.mxu0
      %v2112 = vadd.f32 %v1951, %v2111
      %v2113 = vpop.f32.mrf.mxu0
      %2114 = vmatprep.mubr.bf16.mxu0 %v1125
      %2115 = vmatmul.mubr.bf16.gmra.mxu0 %v1124
      %v2116 = vpop.f32.mrf.mxu0
      %v2117 = vadd.f32 %v1956, %v2116
      %v2118 = vpop.f32.mrf.mxu0
      %v2119 = vpop.f32.mrf.mxu0
      %v2120 = vadd.f32 %v1959, %v2119
      %v2121 = vpop.f32.mrf.mxu0
      %2122 = vmatprep.mubr.bf16.mxu0 %v1133
      %2123 = vmatmul.mubr.bf16.gmra.mxu0 %v1132
      %v2124 = vpop.f32.mrf.mxu0
      %v2125 = vadd.f32 %v1964, %v2124
      %v2126 = vpop.f32.mrf.mxu0
      %v2127 = vpop.f32.mrf.mxu0
      %v2128 = vadd.f32 %v1967, %v2127
      %v2129 = vpop.f32.mrf.mxu0
      %2130 = vmatprep.mubr.bf16.mxu0 %v1141
      %2131 = vmatmul.mubr.bf16.gmra.mxu0 %v1140
      %v2132 = vpop.f32.mrf.mxu0
      %v2133 = vadd.f32 %v1972, %v2132
      %v2134 = vpop.f32.mrf.mxu0
      %v2135 = vpop.f32.mrf.mxu0
      %v2136 = vadd.f32 %v1975, %v2135
      %v2137 = vpop.f32.mrf.mxu0
      %2138 = vmatprep.mubr.bf16.mxu0 %v1149
      %2139 = vmatmul.mubr.bf16.gmra.mxu0 %v1148
      %v2140 = vpop.f32.mrf.mxu0
      %v2141 = vadd.f32 %v1980, %v2140
      %v2142 = vpop.f32.mrf.mxu0
      %v2143 = vpop.f32.mrf.mxu0
      %v2144 = vadd.f32 %v1983, %v2143
      %v2145 = vpop.f32.mrf.mxu0
      %2146 = vmatprep.mubr.bf16.mxu0 %v1157
      %2147 = vmatmul.mubr.bf16.gmra.mxu0 %v1156
      %v2148 = vpop.f32.mrf.mxu0
      %v2149 = vadd.f32 %v1988, %v2148
      %v2150 = vpop.f32.mrf.mxu0
      %v2151 = vpop.f32.mrf.mxu0
      %v2152 = vadd.f32 %v1991, %v2151
      %v2153 = vpop.f32.mrf.mxu0
      %2154 = vmatprep.mubr.bf16.mxu0 %v1165
      %2155 = vmatmul.mubr.bf16.gmra.mxu0 %v1164
      %v2156 = vpop.f32.mrf.mxu0
      %v2157 = vadd.f32 %v1996, %v2156
      %v2158 = vpop.f32.mrf.mxu0
      %v2159 = vpop.f32.mrf.mxu0
      %v2160 = vadd.f32 %v1999, %v2159
      %v2161 = vpop.f32.mrf.mxu0
      %2162 = vmatprep.mubr.bf16.mxu0 %v1173
      %2163 = vmatmul.mubr.bf16.gmra.mxu0 %v1172
      %v2164 = vpop.f32.mrf.mxu0
      %v2165 = vadd.f32 %v2004, %v2164
      %v2166 = vpop.f32.mrf.mxu0
      %v2167 = vpop.f32.mrf.mxu0
      %v2168 = vadd.f32 %v2007, %v2167
      %v2169 = vpop.f32.mrf.mxu0
      %2170 = vmatprep.mubr.bf16.mxu0 %v1181
      %2171 = vmatmul.mubr.bf16.gmra.mxu0 %v1180
      %v2172 = vpop.f32.mrf.mxu0
      %v2173 = vadd.f32 %v2012, %v2172
      %v2174 = vpop.f32.mrf.mxu0
      %v2175 = vpop.f32.mrf.mxu0
      %v2176 = vadd.f32 %v2015, %v2175
      %v2177 = vpop.f32.mrf.mxu0
      %2178 = vmatprep.mubr.bf16.mxu0 %v1189
      %2179 = vmatmul.mubr.bf16.gmra.mxu0 %v1188
      %v2180 = vpop.f32.mrf.mxu0
      %v2181 = vadd.f32 %v2020, %v2180
      %v2182 = vpop.f32.mrf.mxu0
      %v2183 = vpop.f32.mrf.mxu0
      %v2184 = vadd.f32 %v2023, %v2183
      %v2185 = vpop.f32.mrf.mxu0
      %2186 = vmatprep.mubr.bf16.mxu0 %v1197
      %2187 = vmatmul.mubr.bf16.gmra.mxu0 %v1196
      %v2188 = vpop.f32.mrf.mxu0
      %v2189 = vadd.f32 %v2028, %v2188
      %v2190 = vpop.f32.mrf.mxu0
      %v2191 = vpop.f32.mrf.mxu0
      %v2192 = vadd.f32 %v2031, %v2191
      %v2193 = vpop.f32.mrf.mxu0
      %2194 = vmatprep.mubr.bf16.mxu0 %v1205
      %2195 = vmatmul.mubr.bf16.gmra.mxu0 %v1204
      %v2196 = vpop.f32.mrf.mxu0
      %v2197 = vadd.f32 %v2036, %v2196
      %v2198 = vpop.f32.mrf.mxu0
      %v2199 = vpop.f32.mrf.mxu0
      %v2200 = vadd.f32 %v2039, %v2199
      %v2201 = vpop.f32.mrf.mxu0
      %2202 = vdwg.mxu0
      %2203 = vmatprep.subr.bf16.mxu0 0
      %2204 = vmatpush1.bf16.msra.mxu0 %v1647
      %2205 = vmatprep.subr.bf16.mxu0 0
      %2206 = vmatpush1.bf16.msra.mxu0 %v1646
      %2207 = vmatprep.subr.bf16.mxu0 0
      %2208 = vmatpush1.bf16.msra.mxu0 %v1645
      %2209 = vmatprep.subr.bf16.mxu0 0
      %2210 = vmatpush1.bf16.msra.mxu0 %v1644
      %2211 = vmatprep.subr.bf16.mxu0 0
      %2212 = vmatpush1.bf16.msra.mxu0 %v1643
      %2213 = vmatprep.subr.bf16.mxu0 0
      %2214 = vmatpush1.bf16.msra.mxu0 %v1642
      %2215 = vmatprep.subr.bf16.mxu0 0
      %2216 = vmatpush1.bf16.msra.mxu0 %v1641
      %2217 = vmatprep.subr.bf16.mxu0 0
      %2218 = vmatpush1.bf16.msra.mxu0 %v1640
      %2219 = vmatprep.subr.bf16.mxu0 0
      %2220 = vmatpush2.bf16.msra.mxu0 %v1655
      %2221 = vmatprep.subr.bf16.mxu0 0
      %2222 = vmatpush2.bf16.msra.mxu0 %v1654
      %2223 = vmatprep.subr.bf16.mxu0 0
      %2224 = vmatpush2.bf16.msra.mxu0 %v1653
      %2225 = vmatprep.subr.bf16.mxu0 0
      %2226 = vmatpush2.bf16.msra.mxu0 %v1652
      %2227 = vmatprep.subr.bf16.mxu0 0
      %2228 = vmatpush2.bf16.msra.mxu0 %v1651
      %2229 = vmatprep.subr.bf16.mxu0 0
      %2230 = vmatpush2.bf16.msra.mxu0 %v1650
      %2231 = vmatprep.subr.bf16.mxu0 0
      %2232 = vmatpush2.bf16.msra.mxu0 %v1649
      %2233 = vmatprep.subr.bf16.mxu0 0
      %2234 = vmatpush2.bf16.msra.mxu0 %v1648
      %2235 = vmatprep.mubr.bf16.mxu0 %v1087
      %2236 = vmatmul.mubr.bf16.gmra.mxu0 %v1086
      %v2237 = vpop.f32.mrf.mxu0
      %v2238 = vadd.f32 %v2077, %v2237
      %v2239 = vpop.f32.mrf.mxu0
      %v2240 = vpop.f32.mrf.mxu0
      %v2241 = vadd.f32 %v2080, %v2240
      %v2242 = vpop.f32.mrf.mxu0
      %2243 = vmatprep.mubr.bf16.mxu0 %v1095
      %2244 = vmatmul.mubr.bf16.gmra.mxu0 %v1094
      %v2245 = vpop.f32.mrf.mxu0
      %v2246 = vadd.f32 %v2085, %v2245
      %v2247 = vpop.f32.mrf.mxu0
      %v2248 = vpop.f32.mrf.mxu0
      %v2249 = vadd.f32 %v2088, %v2248
      %v2250 = vpop.f32.mrf.mxu0
      %2251 = vmatprep.mubr.bf16.mxu0 %v1103
      %2252 = vmatmul.mubr.bf16.gmra.mxu0 %v1102
      %v2253 = vpop.f32.mrf.mxu0
      %v2254 = vadd.f32 %v2093, %v2253
      %v2255 = vpop.f32.mrf.mxu0
      %v2256 = vpop.f32.mrf.mxu0
      %v2257 = vadd.f32 %v2096, %v2256
      %v2258 = vpop.f32.mrf.mxu0
      %2259 = vmatprep.mubr.bf16.mxu0 %v1111
      %2260 = vmatmul.mubr.bf16.gmra.mxu0 %v1110
      %v2261 = vpop.f32.mrf.mxu0
      %v2262 = vadd.f32 %v2101, %v2261
      %v2263 = vpop.f32.mrf.mxu0
      %v2264 = vpop.f32.mrf.mxu0
      %v2265 = vadd.f32 %v2104, %v2264
      %v2266 = vpop.f32.mrf.mxu0
      %2267 = vmatprep.mubr.bf16.mxu0 %v1119
      %2268 = vmatmul.mubr.bf16.gmra.mxu0 %v1118
      %v2269 = vpop.f32.mrf.mxu0
      %v2270 = vadd.f32 %v2109, %v2269
      %v2271 = vpop.f32.mrf.mxu0
      %v2272 = vpop.f32.mrf.mxu0
      %v2273 = vadd.f32 %v2112, %v2272
      %v2274 = vpop.f32.mrf.mxu0
      %2275 = vmatprep.mubr.bf16.mxu0 %v1127
      %2276 = vmatmul.mubr.bf16.gmra.mxu0 %v1126
      %v2277 = vpop.f32.mrf.mxu0
      %v2278 = vadd.f32 %v2117, %v2277
      %v2279 = vpop.f32.mrf.mxu0
      %v2280 = vpop.f32.mrf.mxu0
      %v2281 = vadd.f32 %v2120, %v2280
      %v2282 = vpop.f32.mrf.mxu0
      %2283 = vmatprep.mubr.bf16.mxu0 %v1135
      %2284 = vmatmul.mubr.bf16.gmra.mxu0 %v1134
      %v2285 = vpop.f32.mrf.mxu0
      %v2286 = vadd.f32 %v2125, %v2285
      %v2287 = vpop.f32.mrf.mxu0
      %v2288 = vpop.f32.mrf.mxu0
      %v2289 = vadd.f32 %v2128, %v2288
      %v2290 = vpop.f32.mrf.mxu0
      %2291 = vmatprep.mubr.bf16.mxu0 %v1143
      %2292 = vmatmul.mubr.bf16.gmra.mxu0 %v1142
      %v2293 = vpop.f32.mrf.mxu0
      %v2294 = vadd.f32 %v2133, %v2293
      %v2295 = vpop.f32.mrf.mxu0
      %v2296 = vpop.f32.mrf.mxu0
      %v2297 = vadd.f32 %v2136, %v2296
      %v2298 = vpop.f32.mrf.mxu0
      %2299 = vmatprep.mubr.bf16.mxu0 %v1151
      %2300 = vmatmul.mubr.bf16.gmra.mxu0 %v1150
      %v2301 = vpop.f32.mrf.mxu0
      %v2302 = vadd.f32 %v2141, %v2301
      %v2303 = vpop.f32.mrf.mxu0
      %v2304 = vpop.f32.mrf.mxu0
      %v2305 = vadd.f32 %v2144, %v2304
      %v2306 = vpop.f32.mrf.mxu0
      %2307 = vmatprep.mubr.bf16.mxu0 %v1159
      %2308 = vmatmul.mubr.bf16.gmra.mxu0 %v1158
      %v2309 = vpop.f32.mrf.mxu0
      %v2310 = vadd.f32 %v2149, %v2309
      %v2311 = vpop.f32.mrf.mxu0
      %v2312 = vpop.f32.mrf.mxu0
      %v2313 = vadd.f32 %v2152, %v2312
      %v2314 = vpop.f32.mrf.mxu0
      %2315 = vmatprep.mubr.bf16.mxu0 %v1167
      %2316 = vmatmul.mubr.bf16.gmra.mxu0 %v1166
      %v2317 = vpop.f32.mrf.mxu0
      %v2318 = vadd.f32 %v2157, %v2317
      %v2319 = vpop.f32.mrf.mxu0
      %v2320 = vpop.f32.mrf.mxu0
      %v2321 = vadd.f32 %v2160, %v2320
      %v2322 = vpop.f32.mrf.mxu0
      %2323 = vmatprep.mubr.bf16.mxu0 %v1175
      %2324 = vmatmul.mubr.bf16.gmra.mxu0 %v1174
      %v2325 = vpop.f32.mrf.mxu0
      %v2326 = vadd.f32 %v2165, %v2325
      %v2327 = vpop.f32.mrf.mxu0
      %v2328 = vpop.f32.mrf.mxu0
      %v2329 = vadd.f32 %v2168, %v2328
      %v2330 = vpop.f32.mrf.mxu0
      %2331 = vmatprep.mubr.bf16.mxu0 %v1183
      %2332 = vmatmul.mubr.bf16.gmra.mxu0 %v1182
      %v2333 = vpop.f32.mrf.mxu0
      %v2334 = vadd.f32 %v2173, %v2333
      %v2335 = vpop.f32.mrf.mxu0
      %v2336 = vpop.f32.mrf.mxu0
      %v2337 = vadd.f32 %v2176, %v2336
      %v2338 = vpop.f32.mrf.mxu0
      %2339 = vmatprep.mubr.bf16.mxu0 %v1191
      %2340 = vmatmul.mubr.bf16.gmra.mxu0 %v1190
      %v2341 = vpop.f32.mrf.mxu0
      %v2342 = vadd.f32 %v2181, %v2341
      %v2343 = vpop.f32.mrf.mxu0
      %v2344 = vpop.f32.mrf.mxu0
      %v2345 = vadd.f32 %v2184, %v2344
      %v2346 = vpop.f32.mrf.mxu0
      %2347 = vmatprep.mubr.bf16.mxu0 %v1199
      %2348 = vmatmul.mubr.bf16.gmra.mxu0 %v1198
      %v2349 = vpop.f32.mrf.mxu0
      %v2350 = vadd.f32 %v2189, %v2349
      %v2351 = vpop.f32.mrf.mxu0
      %v2352 = vpop.f32.mrf.mxu0
      %v2353 = vadd.f32 %v2192, %v2352
      %v2354 = vpop.f32.mrf.mxu0
      %2355 = vmatprep.mubr.bf16.mxu0 %v1207
      %2356 = vmatmul.mubr.bf16.gmra.mxu0 %v1206
      %v2357 = vpop.f32.mrf.mxu0
      %v2358 = vadd.f32 %v2197, %v2357
      %v2359 = vpop.f32.mrf.mxu0
      %v2360 = vpop.f32.mrf.mxu0
      %v2361 = vadd.f32 %v2200, %v2360
      %v2362 = vpop.f32.mrf.mxu0
      %2363 = vdwg.mxu0
      %v2492 = vunpack.c.l.b16 %v183
      %v2493 = vunpack.c.h.b16 %v183
      %v2494 = vunpack.c.l.b16 %v184
      %v2495 = vunpack.c.h.b16 %v184
      %v2496 = vunpack.c.l.b16 %v185
      %v2497 = vunpack.c.h.b16 %v185
      %v2498 = vunpack.c.l.b16 %v186
      %v2499 = vunpack.c.h.b16 %v186
      %v2500 = vunpack.c.l.b16 %v187
      %v2501 = vunpack.c.h.b16 %v187
      %v2502 = vunpack.c.l.b16 %v188
      %v2503 = vunpack.c.h.b16 %v188
      %v2504 = vunpack.c.l.b16 %v189
      %v2505 = vunpack.c.h.b16 %v189
      %v2506 = vunpack.c.l.b16 %v190
      %v2507 = vunpack.c.h.b16 %v190
      %v2508 = vunpack.c.l.b16 %v191
      %v2509 = vunpack.c.h.b16 %v191
      %v2510 = vunpack.c.l.b16 %v192
      %v2511 = vunpack.c.h.b16 %v192
      %v2512 = vunpack.c.l.b16 %v193
      %v2513 = vunpack.c.h.b16 %v193
      %v2514 = vunpack.c.l.b16 %v194
      %v2515 = vunpack.c.h.b16 %v194
      %v2516 = vunpack.c.l.b16 %v195
      %v2517 = vunpack.c.h.b16 %v195
      %v2518 = vunpack.c.l.b16 %v196
      %v2519 = vunpack.c.h.b16 %v196
      %v2520 = vunpack.c.l.b16 %v197
      %v2521 = vunpack.c.h.b16 %v197
      %v2522 = vunpack.c.l.b16 %v198
      %v2523 = vunpack.c.h.b16 %v198
      %v2524 = vunpack.c.l.b16 %v199
      %v2525 = vunpack.c.h.b16 %v199
      %v2526 = vunpack.c.l.b16 %v200
      %v2527 = vunpack.c.h.b16 %v200
      %v2528 = vunpack.c.l.b16 %v201
      %v2529 = vunpack.c.h.b16 %v201
      %v2530 = vunpack.c.l.b16 %v202
      %v2531 = vunpack.c.h.b16 %v202
      %v2532 = vunpack.c.l.b16 %v203
      %v2533 = vunpack.c.h.b16 %v203
      %v2534 = vunpack.c.l.b16 %v204
      %v2535 = vunpack.c.h.b16 %v204
      %v2536 = vunpack.c.l.b16 %v205
      %v2537 = vunpack.c.h.b16 %v205
      %v2538 = vunpack.c.l.b16 %v206
      %v2539 = vunpack.c.h.b16 %v206
      %v2540 = vunpack.c.l.b16 %v207
      %v2541 = vunpack.c.h.b16 %v207
      %v2542 = vunpack.c.l.b16 %v208
      %v2543 = vunpack.c.h.b16 %v208
      %v2544 = vunpack.c.l.b16 %v209
      %v2545 = vunpack.c.h.b16 %v209
      %v2546 = vunpack.c.l.b16 %v210
      %v2547 = vunpack.c.h.b16 %v210
      %v2548 = vunpack.c.l.b16 %v211
      %v2549 = vunpack.c.h.b16 %v211
      %v2550 = vunpack.c.l.b16 %v212
      %v2551 = vunpack.c.h.b16 %v212
      %v2552 = vunpack.c.l.b16 %v213
      %v2553 = vunpack.c.h.b16 %v213
      %v2554 = vunpack.c.l.b16 %v214
      %v2555 = vunpack.c.h.b16 %v214
      %v2556 = vunpack.c.l.b16 %v215
      %v2557 = vunpack.c.h.b16 %v215
      %v2558 = vunpack.c.l.b16 %v216
      %v2559 = vunpack.c.h.b16 %v216
      %v2560 = vunpack.c.l.b16 %v217
      %v2561 = vunpack.c.h.b16 %v217
      %v2562 = vunpack.c.l.b16 %v218
      %v2563 = vunpack.c.h.b16 %v218
      %v2564 = vunpack.c.l.b16 %v219
      %v2565 = vunpack.c.h.b16 %v219
      %v2566 = vunpack.c.l.b16 %v220
      %v2567 = vunpack.c.h.b16 %v220
      %v2568 = vunpack.c.l.b16 %v221
      %v2569 = vunpack.c.h.b16 %v221
      %v2570 = vunpack.c.l.b16 %v222
      %v2571 = vunpack.c.h.b16 %v222
      %v2572 = vunpack.c.l.b16 %v223
      %v2573 = vunpack.c.h.b16 %v223
      %v2574 = vunpack.c.l.b16 %v224
      %v2575 = vunpack.c.h.b16 %v224
      %v2576 = vunpack.c.l.b16 %v225
      %v2577 = vunpack.c.h.b16 %v225
      %v2578 = vunpack.c.l.b16 %v226
      %v2579 = vunpack.c.h.b16 %v226
      %v2580 = vunpack.c.l.b16 %v227
      %v2581 = vunpack.c.h.b16 %v227
      %v2582 = vunpack.c.l.b16 %v228
      %v2583 = vunpack.c.h.b16 %v228
      %v2584 = vunpack.c.l.b16 %v229
      %v2585 = vunpack.c.h.b16 %v229
      %v2586 = vunpack.c.l.b16 %v230
      %v2587 = vunpack.c.h.b16 %v230
      %v2588 = vunpack.c.l.b16 %v231
      %v2589 = vunpack.c.h.b16 %v231
      %v2590 = vunpack.c.l.b16 %v232
      %v2591 = vunpack.c.h.b16 %v232
      %v2592 = vunpack.c.l.b16 %v233
      %v2593 = vunpack.c.h.b16 %v233
      %v2594 = vunpack.c.l.b16 %v234
      %v2595 = vunpack.c.h.b16 %v234
      %v2596 = vunpack.c.l.b16 %v235
      %v2597 = vunpack.c.h.b16 %v235
      %v2598 = vunpack.c.l.b16 %v236
      %v2599 = vunpack.c.h.b16 %v236
      %v2600 = vunpack.c.l.b16 %v237
      %v2601 = vunpack.c.h.b16 %v237
      %v2602 = vunpack.c.l.b16 %v238
      %v2603 = vunpack.c.h.b16 %v238
      %v2604 = vunpack.c.l.b16 %v239
      %v2605 = vunpack.c.h.b16 %v239
      %v2606 = vunpack.c.l.b16 %v240
      %v2607 = vunpack.c.h.b16 %v240
      %v2608 = vunpack.c.l.b16 %v241
      %v2609 = vunpack.c.h.b16 %v241
      %v2610 = vunpack.c.l.b16 %v242
      %v2611 = vunpack.c.h.b16 %v242
      %v2612 = vunpack.c.l.b16 %v243
      %v2613 = vunpack.c.h.b16 %v243
      %v2614 = vunpack.c.l.b16 %v244
      %v2615 = vunpack.c.h.b16 %v244
      %v2616 = vunpack.c.l.b16 %v245
      %v2617 = vunpack.c.h.b16 %v245
      %v2618 = vunpack.c.l.b16 %v246
      %v2619 = vunpack.c.h.b16 %v246
      %v2620 = vunpack.c.l.b16 %v247
      %v2621 = vunpack.c.h.b16 %v247
      %v2622 = vunpack.c.l.b16 %v248
      %v2623 = vunpack.c.h.b16 %v248
      %v2624 = vunpack.c.l.b16 %v249
      %v2625 = vunpack.c.h.b16 %v249
      %v2626 = vunpack.c.l.b16 %v250
      %v2627 = vunpack.c.h.b16 %v250
      %v2628 = vunpack.c.l.b16 %v251
      %v2629 = vunpack.c.h.b16 %v251
      %v2630 = vunpack.c.l.b16 %v252
      %v2631 = vunpack.c.h.b16 %v252
      %v2632 = vunpack.c.l.b16 %v253
      %v2633 = vunpack.c.h.b16 %v253
      %v2634 = vunpack.c.l.b16 %v254
      %v2635 = vunpack.c.h.b16 %v254
      %v2636 = vunpack.c.l.b16 %v255
      %v2637 = vunpack.c.h.b16 %v255
      %v2638 = vunpack.c.l.b16 %v256
      %v2639 = vunpack.c.h.b16 %v256
      %v2640 = vunpack.c.l.b16 %v257
      %v2641 = vunpack.c.h.b16 %v257
      %v2642 = vunpack.c.l.b16 %v258
      %v2643 = vunpack.c.h.b16 %v258
      %v2644 = vunpack.c.l.b16 %v259
      %v2645 = vunpack.c.h.b16 %v259
      %v2646 = vunpack.c.l.b16 %v260
      %v2647 = vunpack.c.h.b16 %v260
      %v2648 = vunpack.c.l.b16 %v261
      %v2649 = vunpack.c.h.b16 %v261
      %v2650 = vunpack.c.l.b16 %v262
      %v2651 = vunpack.c.h.b16 %v262
      %v2652 = vunpack.c.l.b16 %v263
      %v2653 = vunpack.c.h.b16 %v263
      %v2654 = vunpack.c.l.b16 %v264
      %v2655 = vunpack.c.h.b16 %v264
      %v2656 = vunpack.c.l.b16 %v265
      %v2657 = vunpack.c.h.b16 %v265
      %v2658 = vunpack.c.l.b16 %v266
      %v2659 = vunpack.c.h.b16 %v266
      %v2660 = vunpack.c.l.b16 %v267
      %v2661 = vunpack.c.h.b16 %v267
      %v2662 = vunpack.c.l.b16 %v268
      %v2663 = vunpack.c.h.b16 %v268
      %v2664 = vunpack.c.l.b16 %v269
      %v2665 = vunpack.c.h.b16 %v269
      %v2666 = vunpack.c.l.b16 %v270
      %v2667 = vunpack.c.h.b16 %v270
      %v2668 = vunpack.c.l.b16 %v271
      %v2669 = vunpack.c.h.b16 %v271
      %v2670 = vunpack.c.l.b16 %v272
      %v2671 = vunpack.c.h.b16 %v272
      %v2672 = vunpack.c.l.b16 %v273
      %v2673 = vunpack.c.h.b16 %v273
      %v2674 = vunpack.c.l.b16 %v274
      %v2675 = vunpack.c.h.b16 %v274
      %v2676 = vunpack.c.l.b16 %v275
      %v2677 = vunpack.c.h.b16 %v275
      %v2678 = vunpack.c.l.b16 %v276
      %v2679 = vunpack.c.h.b16 %v276
      %v2680 = vunpack.c.l.b16 %v277
      %v2681 = vunpack.c.h.b16 %v277
      %v2682 = vunpack.c.l.b16 %v278
      %v2683 = vunpack.c.h.b16 %v278
      %v2684 = vunpack.c.l.b16 %v279
      %v2685 = vunpack.c.h.b16 %v279
      %v2686 = vunpack.c.l.b16 %v280
      %v2687 = vunpack.c.h.b16 %v280
      %v2688 = vunpack.c.l.b16 %v281
      %v2689 = vunpack.c.h.b16 %v281
      %v2690 = vunpack.c.l.b16 %v282
      %v2691 = vunpack.c.h.b16 %v282
      %v2692 = vunpack.c.l.b16 %v283
      %v2693 = vunpack.c.h.b16 %v283
      %v2694 = vunpack.c.l.b16 %v284
      %v2695 = vunpack.c.h.b16 %v284
      %v2696 = vunpack.c.l.b16 %v285
      %v2697 = vunpack.c.h.b16 %v285
      %v2698 = vunpack.c.l.b16 %v286
      %v2699 = vunpack.c.h.b16 %v286
      %v2700 = vunpack.c.l.b16 %v287
      %v2701 = vunpack.c.h.b16 %v287
      %v2702 = vunpack.c.l.b16 %v288
      %v2703 = vunpack.c.h.b16 %v288
      %v2704 = vunpack.c.l.b16 %v289
      %v2705 = vunpack.c.h.b16 %v289
      %v2706 = vunpack.c.l.b16 %v290
      %v2707 = vunpack.c.h.b16 %v290
      %v2708 = vunpack.c.l.b16 %v291
      %v2709 = vunpack.c.h.b16 %v291
      %v2710 = vunpack.c.l.b16 %v292
      %v2711 = vunpack.c.h.b16 %v292
      %v2712 = vunpack.c.l.b16 %v293
      %v2713 = vunpack.c.h.b16 %v293
      %v2714 = vunpack.c.l.b16 %v294
      %v2715 = vunpack.c.h.b16 %v294
      %v2716 = vunpack.c.l.b16 %v295
      %v2717 = vunpack.c.h.b16 %v295
      %v2718 = vunpack.c.l.b16 %v296
      %v2719 = vunpack.c.h.b16 %v296
      %v2720 = vunpack.c.l.b16 %v297
      %v2721 = vunpack.c.h.b16 %v297
      %v2722 = vunpack.c.l.b16 %v298
      %v2723 = vunpack.c.h.b16 %v298
      %v2724 = vunpack.c.l.b16 %v299
      %v2725 = vunpack.c.h.b16 %v299
      %v2726 = vunpack.c.l.b16 %v300
      %v2727 = vunpack.c.h.b16 %v300
      %v2728 = vunpack.c.l.b16 %v301
      %v2729 = vunpack.c.h.b16 %v301
      %v2730 = vunpack.c.l.b16 %v302
      %v2731 = vunpack.c.h.b16 %v302
      %v2732 = vunpack.c.l.b16 %v303
      %v2733 = vunpack.c.h.b16 %v303
      %v2734 = vunpack.c.l.b16 %v304
      %v2735 = vunpack.c.h.b16 %v304
      %v2736 = vunpack.c.l.b16 %v305
      %v2737 = vunpack.c.h.b16 %v305
      %v2738 = vunpack.c.l.b16 %v306
      %v2739 = vunpack.c.h.b16 %v306
      %v2740 = vunpack.c.l.b16 %v307
      %v2741 = vunpack.c.h.b16 %v307
      %v2742 = vunpack.c.l.b16 %v308
      %v2743 = vunpack.c.h.b16 %v308
      %v2744 = vunpack.c.l.b16 %v309
      %v2745 = vunpack.c.h.b16 %v309
      %v2746 = vunpack.c.l.b16 %v310
      %v2747 = vunpack.c.h.b16 %v310
      %v2748 = vpack.c.b16 %v2500, %v2492
      %v2749 = vpack.c.b16 %v2501, %v2493
      %v2750 = vpack.c.b16 %v2502, %v2494
      %v2751 = vpack.c.b16 %v2503, %v2495
      %v2752 = vpack.c.b16 %v2504, %v2496
      %v2753 = vpack.c.b16 %v2505, %v2497
      %v2754 = vpack.c.b16 %v2506, %v2498
      %v2755 = vpack.c.b16 %v2507, %v2499
      %v2756 = vpack.c.b16 %v2516, %v2508
      %v2757 = vpack.c.b16 %v2517, %v2509
      %v2758 = vpack.c.b16 %v2518, %v2510
      %v2759 = vpack.c.b16 %v2519, %v2511
      %v2760 = vpack.c.b16 %v2520, %v2512
      %v2761 = vpack.c.b16 %v2521, %v2513
      %v2762 = vpack.c.b16 %v2522, %v2514
      %v2763 = vpack.c.b16 %v2523, %v2515
      %v2764 = vpack.c.b16 %v2532, %v2524
      %v2765 = vpack.c.b16 %v2533, %v2525
      %v2766 = vpack.c.b16 %v2534, %v2526
      %v2767 = vpack.c.b16 %v2535, %v2527
      %v2768 = vpack.c.b16 %v2536, %v2528
      %v2769 = vpack.c.b16 %v2537, %v2529
      %v2770 = vpack.c.b16 %v2538, %v2530
      %v2771 = vpack.c.b16 %v2539, %v2531
      %v2772 = vpack.c.b16 %v2548, %v2540
      %v2773 = vpack.c.b16 %v2549, %v2541
      %v2774 = vpack.c.b16 %v2550, %v2542
      %v2775 = vpack.c.b16 %v2551, %v2543
      %v2776 = vpack.c.b16 %v2552, %v2544
      %v2777 = vpack.c.b16 %v2553, %v2545
      %v2778 = vpack.c.b16 %v2554, %v2546
      %v2779 = vpack.c.b16 %v2555, %v2547
      %v2780 = vpack.c.b16 %v2564, %v2556
      %v2781 = vpack.c.b16 %v2565, %v2557
      %v2782 = vpack.c.b16 %v2566, %v2558
      %v2783 = vpack.c.b16 %v2567, %v2559
      %v2784 = vpack.c.b16 %v2568, %v2560
      %v2785 = vpack.c.b16 %v2569, %v2561
      %v2786 = vpack.c.b16 %v2570, %v2562
      %v2787 = vpack.c.b16 %v2571, %v2563
      %v2788 = vpack.c.b16 %v2580, %v2572
      %v2789 = vpack.c.b16 %v2581, %v2573
      %v2790 = vpack.c.b16 %v2582, %v2574
      %v2791 = vpack.c.b16 %v2583, %v2575
      %v2792 = vpack.c.b16 %v2584, %v2576
      %v2793 = vpack.c.b16 %v2585, %v2577
      %v2794 = vpack.c.b16 %v2586, %v2578
      %v2795 = vpack.c.b16 %v2587, %v2579
      %v2796 = vpack.c.b16 %v2596, %v2588
      %v2797 = vpack.c.b16 %v2597, %v2589
      %v2798 = vpack.c.b16 %v2598, %v2590
      %v2799 = vpack.c.b16 %v2599, %v2591
      %v2800 = vpack.c.b16 %v2600, %v2592
      %v2801 = vpack.c.b16 %v2601, %v2593
      %v2802 = vpack.c.b16 %v2602, %v2594
      %v2803 = vpack.c.b16 %v2603, %v2595
      %v2804 = vpack.c.b16 %v2612, %v2604
      %v2805 = vpack.c.b16 %v2613, %v2605
      %v2806 = vpack.c.b16 %v2614, %v2606
      %v2807 = vpack.c.b16 %v2615, %v2607
      %v2808 = vpack.c.b16 %v2616, %v2608
      %v2809 = vpack.c.b16 %v2617, %v2609
      %v2810 = vpack.c.b16 %v2618, %v2610
      %v2811 = vpack.c.b16 %v2619, %v2611
      %v2812 = vpack.c.b16 %v2628, %v2620
      %v2813 = vpack.c.b16 %v2629, %v2621
      %v2814 = vpack.c.b16 %v2630, %v2622
      %v2815 = vpack.c.b16 %v2631, %v2623
      %v2816 = vpack.c.b16 %v2632, %v2624
      %v2817 = vpack.c.b16 %v2633, %v2625
      %v2818 = vpack.c.b16 %v2634, %v2626
      %v2819 = vpack.c.b16 %v2635, %v2627
      %v2820 = vpack.c.b16 %v2644, %v2636
      %v2821 = vpack.c.b16 %v2645, %v2637
      %v2822 = vpack.c.b16 %v2646, %v2638
      %v2823 = vpack.c.b16 %v2647, %v2639
      %v2824 = vpack.c.b16 %v2648, %v2640
      %v2825 = vpack.c.b16 %v2649, %v2641
      %v2826 = vpack.c.b16 %v2650, %v2642
      %v2827 = vpack.c.b16 %v2651, %v2643
      %v2828 = vpack.c.b16 %v2660, %v2652
      %v2829 = vpack.c.b16 %v2661, %v2653
      %v2830 = vpack.c.b16 %v2662, %v2654
      %v2831 = vpack.c.b16 %v2663, %v2655
      %v2832 = vpack.c.b16 %v2664, %v2656
      %v2833 = vpack.c.b16 %v2665, %v2657
      %v2834 = vpack.c.b16 %v2666, %v2658
      %v2835 = vpack.c.b16 %v2667, %v2659
      %v2836 = vpack.c.b16 %v2676, %v2668
      %v2837 = vpack.c.b16 %v2677, %v2669
      %v2838 = vpack.c.b16 %v2678, %v2670
      %v2839 = vpack.c.b16 %v2679, %v2671
      %v2840 = vpack.c.b16 %v2680, %v2672
      %v2841 = vpack.c.b16 %v2681, %v2673
      %v2842 = vpack.c.b16 %v2682, %v2674
      %v2843 = vpack.c.b16 %v2683, %v2675
      %v2844 = vpack.c.b16 %v2692, %v2684
      %v2845 = vpack.c.b16 %v2693, %v2685
      %v2846 = vpack.c.b16 %v2694, %v2686
      %v2847 = vpack.c.b16 %v2695, %v2687
      %v2848 = vpack.c.b16 %v2696, %v2688
      %v2849 = vpack.c.b16 %v2697, %v2689
      %v2850 = vpack.c.b16 %v2698, %v2690
      %v2851 = vpack.c.b16 %v2699, %v2691
      %v2852 = vpack.c.b16 %v2708, %v2700
      %v2853 = vpack.c.b16 %v2709, %v2701
      %v2854 = vpack.c.b16 %v2710, %v2702
      %v2855 = vpack.c.b16 %v2711, %v2703
      %v2856 = vpack.c.b16 %v2712, %v2704
      %v2857 = vpack.c.b16 %v2713, %v2705
      %v2858 = vpack.c.b16 %v2714, %v2706
      %v2859 = vpack.c.b16 %v2715, %v2707
      %v2860 = vpack.c.b16 %v2724, %v2716
      %v2861 = vpack.c.b16 %v2725, %v2717
      %v2862 = vpack.c.b16 %v2726, %v2718
      %v2863 = vpack.c.b16 %v2727, %v2719
      %v2864 = vpack.c.b16 %v2728, %v2720
      %v2865 = vpack.c.b16 %v2729, %v2721
      %v2866 = vpack.c.b16 %v2730, %v2722
      %v2867 = vpack.c.b16 %v2731, %v2723
      %v2868 = vpack.c.b16 %v2740, %v2732
      %v2869 = vpack.c.b16 %v2741, %v2733
      %v2870 = vpack.c.b16 %v2742, %v2734
      %v2871 = vpack.c.b16 %v2743, %v2735
      %v2872 = vpack.c.b16 %v2744, %v2736
      %v2873 = vpack.c.b16 %v2745, %v2737
      %v2874 = vpack.c.b16 %v2746, %v2738
      %v2875 = vpack.c.b16 %v2747, %v2739
      %v3132 = vunpack.c.l.b16 %v439
      %v3133 = vunpack.c.l.b16 %v440
      %v3134 = vunpack.c.l.b16 %v441
      %v3135 = vunpack.c.l.b16 %v442
      %v3136 = vunpack.c.l.b16 %v443
      %v3137 = vunpack.c.l.b16 %v444
      %v3138 = vunpack.c.l.b16 %v445
      %v3139 = vunpack.c.l.b16 %v446
      %v3140 = vunpack.c.l.b16 %v447
      %v3141 = vunpack.c.l.b16 %v448
      %v3142 = vunpack.c.l.b16 %v449
      %v3143 = vunpack.c.l.b16 %v450
      %v3144 = vunpack.c.l.b16 %v451
      %v3145 = vunpack.c.l.b16 %v452
      %v3146 = vunpack.c.l.b16 %v453
      %v3147 = vunpack.c.l.b16 %v454
      %v3148 = vunpack.c.l.b16 %v455
      %v3149 = vunpack.c.l.b16 %v456
      %v3150 = vunpack.c.l.b16 %v457
      %v3151 = vunpack.c.l.b16 %v458
      %v3152 = vunpack.c.l.b16 %v459
      %v3153 = vunpack.c.l.b16 %v460
      %v3154 = vunpack.c.l.b16 %v461
      %v3155 = vunpack.c.l.b16 %v462
      %v3156 = vunpack.c.l.b16 %v463
      %v3157 = vunpack.c.l.b16 %v464
      %v3158 = vunpack.c.l.b16 %v465
      %v3159 = vunpack.c.l.b16 %v466
      %v3160 = vunpack.c.l.b16 %v467
      %v3161 = vunpack.c.l.b16 %v468
      %v3162 = vunpack.c.l.b16 %v469
      %v3163 = vunpack.c.l.b16 %v470
      %v3164 = vunpack.c.l.b16 %v471
      %v3165 = vunpack.c.l.b16 %v472
      %v3166 = vunpack.c.l.b16 %v473
      %v3167 = vunpack.c.l.b16 %v474
      %v3168 = vunpack.c.l.b16 %v475
      %v3169 = vunpack.c.l.b16 %v476
      %v3170 = vunpack.c.l.b16 %v477
      %v3171 = vunpack.c.l.b16 %v478
      %v3172 = vunpack.c.l.b16 %v479
      %v3173 = vunpack.c.l.b16 %v480
      %v3174 = vunpack.c.l.b16 %v481
      %v3175 = vunpack.c.l.b16 %v482
      %v3176 = vunpack.c.l.b16 %v483
      %v3177 = vunpack.c.l.b16 %v484
      %v3178 = vunpack.c.l.b16 %v485
      %v3179 = vunpack.c.l.b16 %v486
      %v3180 = vunpack.c.l.b16 %v487
      %v3181 = vunpack.c.l.b16 %v488
      %v3182 = vunpack.c.l.b16 %v489
      %v3183 = vunpack.c.l.b16 %v490
      %v3184 = vunpack.c.l.b16 %v491
      %v3185 = vunpack.c.l.b16 %v492
      %v3186 = vunpack.c.l.b16 %v493
      %v3187 = vunpack.c.l.b16 %v494
      %v3188 = vunpack.c.l.b16 %v495
      %v3189 = vunpack.c.l.b16 %v496
      %v3190 = vunpack.c.l.b16 %v497
      %v3191 = vunpack.c.l.b16 %v498
      %v3192 = vunpack.c.l.b16 %v499
      %v3193 = vunpack.c.l.b16 %v500
      %v3194 = vunpack.c.l.b16 %v501
      %v3195 = vunpack.c.l.b16 %v502
      %v3196 = vunpack.c.l.b16 %v503
      %v3197 = vunpack.c.l.b16 %v504
      %v3198 = vunpack.c.l.b16 %v505
      %v3199 = vunpack.c.l.b16 %v506
      %v3200 = vunpack.c.l.b16 %v507
      %v3201 = vunpack.c.l.b16 %v508
      %v3202 = vunpack.c.l.b16 %v509
      %v3203 = vunpack.c.l.b16 %v510
      %v3204 = vunpack.c.l.b16 %v511
      %v3205 = vunpack.c.l.b16 %v512
      %v3206 = vunpack.c.l.b16 %v513
      %v3207 = vunpack.c.l.b16 %v514
      %v3208 = vunpack.c.l.b16 %v515
      %v3209 = vunpack.c.l.b16 %v516
      %v3210 = vunpack.c.l.b16 %v517
      %v3211 = vunpack.c.l.b16 %v518
      %v3212 = vunpack.c.l.b16 %v519
      %v3213 = vunpack.c.l.b16 %v520
      %v3214 = vunpack.c.l.b16 %v521
      %v3215 = vunpack.c.l.b16 %v522
      %v3216 = vunpack.c.l.b16 %v523
      %v3217 = vunpack.c.l.b16 %v524
      %v3218 = vunpack.c.l.b16 %v525
      %v3219 = vunpack.c.l.b16 %v526
      %v3220 = vunpack.c.l.b16 %v527
      %v3221 = vunpack.c.l.b16 %v528
      %v3222 = vunpack.c.l.b16 %v529
      %v3223 = vunpack.c.l.b16 %v530
      %v3224 = vunpack.c.l.b16 %v531
      %v3225 = vunpack.c.l.b16 %v532
      %v3226 = vunpack.c.l.b16 %v533
      %v3227 = vunpack.c.l.b16 %v534
      %v3228 = vunpack.c.l.b16 %v535
      %v3229 = vunpack.c.l.b16 %v536
      %v3230 = vunpack.c.l.b16 %v537
      %v3231 = vunpack.c.l.b16 %v538
      %v3232 = vunpack.c.l.b16 %v539
      %v3233 = vunpack.c.l.b16 %v540
      %v3234 = vunpack.c.l.b16 %v541
      %v3235 = vunpack.c.l.b16 %v542
      %v3236 = vunpack.c.l.b16 %v543
      %v3237 = vunpack.c.l.b16 %v544
      %v3238 = vunpack.c.l.b16 %v545
      %v3239 = vunpack.c.l.b16 %v546
      %v3240 = vunpack.c.l.b16 %v547
      %v3241 = vunpack.c.l.b16 %v548
      %v3242 = vunpack.c.l.b16 %v549
      %v3243 = vunpack.c.l.b16 %v550
      %v3244 = vunpack.c.l.b16 %v551
      %v3245 = vunpack.c.l.b16 %v552
      %v3246 = vunpack.c.l.b16 %v553
      %v3247 = vunpack.c.l.b16 %v554
      %v3248 = vunpack.c.l.b16 %v555
      %v3249 = vunpack.c.l.b16 %v556
      %v3250 = vunpack.c.l.b16 %v557
      %v3251 = vunpack.c.l.b16 %v558
      %v3252 = vunpack.c.l.b16 %v559
      %v3253 = vunpack.c.l.b16 %v560
      %v3254 = vunpack.c.l.b16 %v561
      %v3255 = vunpack.c.l.b16 %v562
      %v3256 = vunpack.c.l.b16 %v563
      %v3257 = vunpack.c.l.b16 %v564
      %v3258 = vunpack.c.l.b16 %v565
      %v3259 = vunpack.c.l.b16 %v566
      %v3260 = vpack.c.b16 %v3133, %v3132
      %v3261 = vpack.c.b16 %v3135, %v3134
      %v3262 = vpack.c.b16 %v3137, %v3136
      %v3263 = vpack.c.b16 %v3139, %v3138
      %v3264 = vpack.c.b16 %v3141, %v3140
      %v3265 = vpack.c.b16 %v3143, %v3142
      %v3266 = vpack.c.b16 %v3145, %v3144
      %v3267 = vpack.c.b16 %v3147, %v3146
      %v3268 = vpack.c.b16 %v3149, %v3148
      %v3269 = vpack.c.b16 %v3151, %v3150
      %v3270 = vpack.c.b16 %v3153, %v3152
      %v3271 = vpack.c.b16 %v3155, %v3154
      %v3272 = vpack.c.b16 %v3157, %v3156
      %v3273 = vpack.c.b16 %v3159, %v3158
      %v3274 = vpack.c.b16 %v3161, %v3160
      %v3275 = vpack.c.b16 %v3163, %v3162
      %v3276 = vpack.c.b16 %v3165, %v3164
      %v3277 = vpack.c.b16 %v3167, %v3166
      %v3278 = vpack.c.b16 %v3169, %v3168
      %v3279 = vpack.c.b16 %v3171, %v3170
      %v3280 = vpack.c.b16 %v3173, %v3172
      %v3281 = vpack.c.b16 %v3175, %v3174
      %v3282 = vpack.c.b16 %v3177, %v3176
      %v3283 = vpack.c.b16 %v3179, %v3178
      %v3284 = vpack.c.b16 %v3181, %v3180
      %v3285 = vpack.c.b16 %v3183, %v3182
      %v3286 = vpack.c.b16 %v3185, %v3184
      %v3287 = vpack.c.b16 %v3187, %v3186
      %v3288 = vpack.c.b16 %v3189, %v3188
      %v3289 = vpack.c.b16 %v3191, %v3190
      %v3290 = vpack.c.b16 %v3193, %v3192
      %v3291 = vpack.c.b16 %v3195, %v3194
      %v3292 = vpack.c.b16 %v3197, %v3196
      %v3293 = vpack.c.b16 %v3199, %v3198
      %v3294 = vpack.c.b16 %v3201, %v3200
      %v3295 = vpack.c.b16 %v3203, %v3202
      %v3296 = vpack.c.b16 %v3205, %v3204
      %v3297 = vpack.c.b16 %v3207, %v3206
      %v3298 = vpack.c.b16 %v3209, %v3208
      %v3299 = vpack.c.b16 %v3211, %v3210
      %v3300 = vpack.c.b16 %v3213, %v3212
      %v3301 = vpack.c.b16 %v3215, %v3214
      %v3302 = vpack.c.b16 %v3217, %v3216
      %v3303 = vpack.c.b16 %v3219, %v3218
      %v3304 = vpack.c.b16 %v3221, %v3220
      %v3305 = vpack.c.b16 %v3223, %v3222
      %v3306 = vpack.c.b16 %v3225, %v3224
      %v3307 = vpack.c.b16 %v3227, %v3226
      %v3308 = vpack.c.b16 %v3229, %v3228
      %v3309 = vpack.c.b16 %v3231, %v3230
      %v3310 = vpack.c.b16 %v3233, %v3232
      %v3311 = vpack.c.b16 %v3235, %v3234
      %v3312 = vpack.c.b16 %v3237, %v3236
      %v3313 = vpack.c.b16 %v3239, %v3238
      %v3314 = vpack.c.b16 %v3241, %v3240
      %v3315 = vpack.c.b16 %v3243, %v3242
      %v3316 = vpack.c.b16 %v3245, %v3244
      %v3317 = vpack.c.b16 %v3247, %v3246
      %v3318 = vpack.c.b16 %v3249, %v3248
      %v3319 = vpack.c.b16 %v3251, %v3250
      %v3320 = vpack.c.b16 %v3253, %v3252
      %v3321 = vpack.c.b16 %v3255, %v3254
      %v3322 = vpack.c.b16 %v3257, %v3256
      %v3323 = vpack.c.b16 %v3259, %v3258
      %3388 = vmatprep.subr.bf16.mxu0 0
      %3389 = vmatpush1.bf16.msra.mxu0 %v3267
      %3390 = vmatprep.subr.bf16.mxu0 0
      %3391 = vmatpush1.bf16.msra.mxu0 %v3266
      %3392 = vmatprep.subr.bf16.mxu0 0
      %3393 = vmatpush1.bf16.msra.mxu0 %v3265
      %3394 = vmatprep.subr.bf16.mxu0 0
      %3395 = vmatpush1.bf16.msra.mxu0 %v3264
      %3396 = vmatprep.subr.bf16.mxu0 0
      %3397 = vmatpush1.bf16.msra.mxu0 %v3263
      %3398 = vmatprep.subr.bf16.mxu0 0
      %3399 = vmatpush1.bf16.msra.mxu0 %v3262
      %3400 = vmatprep.subr.bf16.mxu0 0
      %3401 = vmatpush1.bf16.msra.mxu0 %v3261
      %3402 = vmatprep.subr.bf16.mxu0 0
      %3403 = vmatpush1.bf16.msra.mxu0 %v3260
      %3404 = vmatprep.subr.bf16.mxu0 0
      %3405 = vmatpush2.bf16.msra.mxu0 %v3275
      %3406 = vmatprep.subr.bf16.mxu0 0
      %3407 = vmatpush2.bf16.msra.mxu0 %v3274
      %3408 = vmatprep.subr.bf16.mxu0 0
      %3409 = vmatpush2.bf16.msra.mxu0 %v3273
      %3410 = vmatprep.subr.bf16.mxu0 0
      %3411 = vmatpush2.bf16.msra.mxu0 %v3272
      %3412 = vmatprep.subr.bf16.mxu0 0
      %3413 = vmatpush2.bf16.msra.mxu0 %v3271
      %3414 = vmatprep.subr.bf16.mxu0 0
      %3415 = vmatpush2.bf16.msra.mxu0 %v3270
      %3416 = vmatprep.subr.bf16.mxu0 0
      %3417 = vmatpush2.bf16.msra.mxu0 %v3269
      %3418 = vmatprep.subr.bf16.mxu0 0
      %3419 = vmatpush2.bf16.msra.mxu0 %v3268
      %3420 = vmatprep.mubr.bf16.mxu0 %v2749
      %3421 = vmatmul.mubr.bf16.gmra.mxu0 %v2748
      %v3422 = vpop.f32.mrf.mxu0
      %v3423 = vadd.f32 %v2238, %v3422
      %v3424 = vpop.f32.mrf.mxu0
      %v3425 = vpop.f32.mrf.mxu0
      %v3426 = vadd.f32 %v2241, %v3425
      %v3427 = vpop.f32.mrf.mxu0
      %3428 = vmatprep.mubr.bf16.mxu0 %v2757
      %3429 = vmatmul.mubr.bf16.gmra.mxu0 %v2756
      %v3430 = vpop.f32.mrf.mxu0
      %v3431 = vadd.f32 %v2246, %v3430
      %v3432 = vpop.f32.mrf.mxu0
      %v3433 = vpop.f32.mrf.mxu0
      %v3434 = vadd.f32 %v2249, %v3433
      %v3435 = vpop.f32.mrf.mxu0
      %3436 = vmatprep.mubr.bf16.mxu0 %v2765
      %3437 = vmatmul.mubr.bf16.gmra.mxu0 %v2764
      %v3438 = vpop.f32.mrf.mxu0
      %v3439 = vadd.f32 %v2254, %v3438
      %v3440 = vpop.f32.mrf.mxu0
      %v3441 = vpop.f32.mrf.mxu0
      %v3442 = vadd.f32 %v2257, %v3441
      %v3443 = vpop.f32.mrf.mxu0
      %3444 = vmatprep.mubr.bf16.mxu0 %v2773
      %3445 = vmatmul.mubr.bf16.gmra.mxu0 %v2772
      %v3446 = vpop.f32.mrf.mxu0
      %v3447 = vadd.f32 %v2262, %v3446
      %v3448 = vpop.f32.mrf.mxu0
      %v3449 = vpop.f32.mrf.mxu0
      %v3450 = vadd.f32 %v2265, %v3449
      %v3451 = vpop.f32.mrf.mxu0
      %3452 = vmatprep.mubr.bf16.mxu0 %v2781
      %3453 = vmatmul.mubr.bf16.gmra.mxu0 %v2780
      %v3454 = vpop.f32.mrf.mxu0
      %v3455 = vadd.f32 %v2270, %v3454
      %v3456 = vpop.f32.mrf.mxu0
      %v3457 = vpop.f32.mrf.mxu0
      %v3458 = vadd.f32 %v2273, %v3457
      %v3459 = vpop.f32.mrf.mxu0
      %3460 = vmatprep.mubr.bf16.mxu0 %v2789
      %3461 = vmatmul.mubr.bf16.gmra.mxu0 %v2788
      %v3462 = vpop.f32.mrf.mxu0
      %v3463 = vadd.f32 %v2278, %v3462
      %v3464 = vpop.f32.mrf.mxu0
      %v3465 = vpop.f32.mrf.mxu0
      %v3466 = vadd.f32 %v2281, %v3465
      %v3467 = vpop.f32.mrf.mxu0
      %3468 = vmatprep.mubr.bf16.mxu0 %v2797
      %3469 = vmatmul.mubr.bf16.gmra.mxu0 %v2796
      %v3470 = vpop.f32.mrf.mxu0
      %v3471 = vadd.f32 %v2286, %v3470
      %v3472 = vpop.f32.mrf.mxu0
      %v3473 = vpop.f32.mrf.mxu0
      %v3474 = vadd.f32 %v2289, %v3473
      %v3475 = vpop.f32.mrf.mxu0
      %3476 = vmatprep.mubr.bf16.mxu0 %v2805
      %3477 = vmatmul.mubr.bf16.gmra.mxu0 %v2804
      %v3478 = vpop.f32.mrf.mxu0
      %v3479 = vadd.f32 %v2294, %v3478
      %v3480 = vpop.f32.mrf.mxu0
      %v3481 = vpop.f32.mrf.mxu0
      %v3482 = vadd.f32 %v2297, %v3481
      %v3483 = vpop.f32.mrf.mxu0
      %3484 = vmatprep.mubr.bf16.mxu0 %v2813
      %3485 = vmatmul.mubr.bf16.gmra.mxu0 %v2812
      %v3486 = vpop.f32.mrf.mxu0
      %v3487 = vadd.f32 %v2302, %v3486
      %v3488 = vpop.f32.mrf.mxu0
      %v3489 = vpop.f32.mrf.mxu0
      %v3490 = vadd.f32 %v2305, %v3489
      %v3491 = vpop.f32.mrf.mxu0
      %3492 = vmatprep.mubr.bf16.mxu0 %v2821
      %3493 = vmatmul.mubr.bf16.gmra.mxu0 %v2820
      %v3494 = vpop.f32.mrf.mxu0
      %v3495 = vadd.f32 %v2310, %v3494
      %v3496 = vpop.f32.mrf.mxu0
      %v3497 = vpop.f32.mrf.mxu0
      %v3498 = vadd.f32 %v2313, %v3497
      %v3499 = vpop.f32.mrf.mxu0
      %3500 = vmatprep.mubr.bf16.mxu0 %v2829
      %3501 = vmatmul.mubr.bf16.gmra.mxu0 %v2828
      %v3502 = vpop.f32.mrf.mxu0
      %v3503 = vadd.f32 %v2318, %v3502
      %v3504 = vpop.f32.mrf.mxu0
      %v3505 = vpop.f32.mrf.mxu0
      %v3506 = vadd.f32 %v2321, %v3505
      %v3507 = vpop.f32.mrf.mxu0
      %3508 = vmatprep.mubr.bf16.mxu0 %v2837
      %3509 = vmatmul.mubr.bf16.gmra.mxu0 %v2836
      %v3510 = vpop.f32.mrf.mxu0
      %v3511 = vadd.f32 %v2326, %v3510
      %v3512 = vpop.f32.mrf.mxu0
      %v3513 = vpop.f32.mrf.mxu0
      %v3514 = vadd.f32 %v2329, %v3513
      %v3515 = vpop.f32.mrf.mxu0
      %3516 = vmatprep.mubr.bf16.mxu0 %v2845
      %3517 = vmatmul.mubr.bf16.gmra.mxu0 %v2844
      %v3518 = vpop.f32.mrf.mxu0
      %v3519 = vadd.f32 %v2334, %v3518
      %v3520 = vpop.f32.mrf.mxu0
      %v3521 = vpop.f32.mrf.mxu0
      %v3522 = vadd.f32 %v2337, %v3521
      %v3523 = vpop.f32.mrf.mxu0
      %3524 = vmatprep.mubr.bf16.mxu0 %v2853
      %3525 = vmatmul.mubr.bf16.gmra.mxu0 %v2852
      %v3526 = vpop.f32.mrf.mxu0
      %v3527 = vadd.f32 %v2342, %v3526
      %v3528 = vpop.f32.mrf.mxu0
      %v3529 = vpop.f32.mrf.mxu0
      %v3530 = vadd.f32 %v2345, %v3529
      %v3531 = vpop.f32.mrf.mxu0
      %3532 = vmatprep.mubr.bf16.mxu0 %v2861
      %3533 = vmatmul.mubr.bf16.gmra.mxu0 %v2860
      %v3534 = vpop.f32.mrf.mxu0
      %v3535 = vadd.f32 %v2350, %v3534
      %v3536 = vpop.f32.mrf.mxu0
      %v3537 = vpop.f32.mrf.mxu0
      %v3538 = vadd.f32 %v2353, %v3537
      %v3539 = vpop.f32.mrf.mxu0
      %3540 = vmatprep.mubr.bf16.mxu0 %v2869
      %3541 = vmatmul.mubr.bf16.gmra.mxu0 %v2868
      %v3542 = vpop.f32.mrf.mxu0
      %v3543 = vadd.f32 %v2358, %v3542
      %v3544 = vpop.f32.mrf.mxu0
      %v3545 = vpop.f32.mrf.mxu0
      %v3546 = vadd.f32 %v2361, %v3545
      %v3547 = vpop.f32.mrf.mxu0
      %3548 = vdwg.mxu0
      %3549 = vmatprep.subr.bf16.mxu0 0
      %3550 = vmatpush1.bf16.msra.mxu0 %v3283
      %3551 = vmatprep.subr.bf16.mxu0 0
      %3552 = vmatpush1.bf16.msra.mxu0 %v3282
      %3553 = vmatprep.subr.bf16.mxu0 0
      %3554 = vmatpush1.bf16.msra.mxu0 %v3281
      %3555 = vmatprep.subr.bf16.mxu0 0
      %3556 = vmatpush1.bf16.msra.mxu0 %v3280
      %3557 = vmatprep.subr.bf16.mxu0 0
      %3558 = vmatpush1.bf16.msra.mxu0 %v3279
      %3559 = vmatprep.subr.bf16.mxu0 0
      %3560 = vmatpush1.bf16.msra.mxu0 %v3278
      %3561 = vmatprep.subr.bf16.mxu0 0
      %3562 = vmatpush1.bf16.msra.mxu0 %v3277
      %3563 = vmatprep.subr.bf16.mxu0 0
      %3564 = vmatpush1.bf16.msra.mxu0 %v3276
      %3565 = vmatprep.subr.bf16.mxu0 0
      %3566 = vmatpush2.bf16.msra.mxu0 %v3291
      %3567 = vmatprep.subr.bf16.mxu0 0
      %3568 = vmatpush2.bf16.msra.mxu0 %v3290
      %3569 = vmatprep.subr.bf16.mxu0 0
      %3570 = vmatpush2.bf16.msra.mxu0 %v3289
      %3571 = vmatprep.subr.bf16.mxu0 0
      %3572 = vmatpush2.bf16.msra.mxu0 %v3288
      %3573 = vmatprep.subr.bf16.mxu0 0
      %3574 = vmatpush2.bf16.msra.mxu0 %v3287
      %3575 = vmatprep.subr.bf16.mxu0 0
      %3576 = vmatpush2.bf16.msra.mxu0 %v3286
      %3577 = vmatprep.subr.bf16.mxu0 0
      %3578 = vmatpush2.bf16.msra.mxu0 %v3285
      %3579 = vmatprep.subr.bf16.mxu0 0
      %3580 = vmatpush2.bf16.msra.mxu0 %v3284
      %3581 = vmatprep.mubr.bf16.mxu0 %v2751
      %3582 = vmatmul.mubr.bf16.gmra.mxu0 %v2750
      %v3583 = vpop.f32.mrf.mxu0
      %v3584 = vadd.f32 %v3423, %v3583
      %v3585 = vpop.f32.mrf.mxu0
      %v3586 = vpop.f32.mrf.mxu0
      %v3587 = vadd.f32 %v3426, %v3586
      %v3588 = vpop.f32.mrf.mxu0
      %3589 = vmatprep.mubr.bf16.mxu0 %v2759
      %3590 = vmatmul.mubr.bf16.gmra.mxu0 %v2758
      %v3591 = vpop.f32.mrf.mxu0
      %v3592 = vadd.f32 %v3431, %v3591
      %v3593 = vpop.f32.mrf.mxu0
      %v3594 = vpop.f32.mrf.mxu0
      %v3595 = vadd.f32 %v3434, %v3594
      %v3596 = vpop.f32.mrf.mxu0
      %3597 = vmatprep.mubr.bf16.mxu0 %v2767
      %3598 = vmatmul.mubr.bf16.gmra.mxu0 %v2766
      %v3599 = vpop.f32.mrf.mxu0
      %v3600 = vadd.f32 %v3439, %v3599
      %v3601 = vpop.f32.mrf.mxu0
      %v3602 = vpop.f32.mrf.mxu0
      %v3603 = vadd.f32 %v3442, %v3602
      %v3604 = vpop.f32.mrf.mxu0
      %3605 = vmatprep.mubr.bf16.mxu0 %v2775
      %3606 = vmatmul.mubr.bf16.gmra.mxu0 %v2774
      %v3607 = vpop.f32.mrf.mxu0
      %v3608 = vadd.f32 %v3447, %v3607
      %v3609 = vpop.f32.mrf.mxu0
      %v3610 = vpop.f32.mrf.mxu0
      %v3611 = vadd.f32 %v3450, %v3610
      %v3612 = vpop.f32.mrf.mxu0
      %3613 = vmatprep.mubr.bf16.mxu0 %v2783
      %3614 = vmatmul.mubr.bf16.gmra.mxu0 %v2782
      %v3615 = vpop.f32.mrf.mxu0
      %v3616 = vadd.f32 %v3455, %v3615
      %v3617 = vpop.f32.mrf.mxu0
      %v3618 = vpop.f32.mrf.mxu0
      %v3619 = vadd.f32 %v3458, %v3618
      %v3620 = vpop.f32.mrf.mxu0
      %3621 = vmatprep.mubr.bf16.mxu0 %v2791
      %3622 = vmatmul.mubr.bf16.gmra.mxu0 %v2790
      %v3623 = vpop.f32.mrf.mxu0
      %v3624 = vadd.f32 %v3463, %v3623
      %v3625 = vpop.f32.mrf.mxu0
      %v3626 = vpop.f32.mrf.mxu0
      %v3627 = vadd.f32 %v3466, %v3626
      %v3628 = vpop.f32.mrf.mxu0
      %3629 = vmatprep.mubr.bf16.mxu0 %v2799
      %3630 = vmatmul.mubr.bf16.gmra.mxu0 %v2798
      %v3631 = vpop.f32.mrf.mxu0
      %v3632 = vadd.f32 %v3471, %v3631
      %v3633 = vpop.f32.mrf.mxu0
      %v3634 = vpop.f32.mrf.mxu0
      %v3635 = vadd.f32 %v3474, %v3634
      %v3636 = vpop.f32.mrf.mxu0
      %3637 = vmatprep.mubr.bf16.mxu0 %v2807
      %3638 = vmatmul.mubr.bf16.gmra.mxu0 %v2806
      %v3639 = vpop.f32.mrf.mxu0
      %v3640 = vadd.f32 %v3479, %v3639
      %v3641 = vpop.f32.mrf.mxu0
      %v3642 = vpop.f32.mrf.mxu0
      %v3643 = vadd.f32 %v3482, %v3642
      %v3644 = vpop.f32.mrf.mxu0
      %3645 = vmatprep.mubr.bf16.mxu0 %v2815
      %3646 = vmatmul.mubr.bf16.gmra.mxu0 %v2814
      %v3647 = vpop.f32.mrf.mxu0
      %v3648 = vadd.f32 %v3487, %v3647
      %v3649 = vpop.f32.mrf.mxu0
      %v3650 = vpop.f32.mrf.mxu0
      %v3651 = vadd.f32 %v3490, %v3650
      %v3652 = vpop.f32.mrf.mxu0
      %3653 = vmatprep.mubr.bf16.mxu0 %v2823
      %3654 = vmatmul.mubr.bf16.gmra.mxu0 %v2822
      %v3655 = vpop.f32.mrf.mxu0
      %v3656 = vadd.f32 %v3495, %v3655
      %v3657 = vpop.f32.mrf.mxu0
      %v3658 = vpop.f32.mrf.mxu0
      %v3659 = vadd.f32 %v3498, %v3658
      %v3660 = vpop.f32.mrf.mxu0
      %3661 = vmatprep.mubr.bf16.mxu0 %v2831
      %3662 = vmatmul.mubr.bf16.gmra.mxu0 %v2830
      %v3663 = vpop.f32.mrf.mxu0
      %v3664 = vadd.f32 %v3503, %v3663
      %v3665 = vpop.f32.mrf.mxu0
      %v3666 = vpop.f32.mrf.mxu0
      %v3667 = vadd.f32 %v3506, %v3666
      %v3668 = vpop.f32.mrf.mxu0
      %3669 = vmatprep.mubr.bf16.mxu0 %v2839
      %3670 = vmatmul.mubr.bf16.gmra.mxu0 %v2838
      %v3671 = vpop.f32.mrf.mxu0
      %v3672 = vadd.f32 %v3511, %v3671
      %v3673 = vpop.f32.mrf.mxu0
      %v3674 = vpop.f32.mrf.mxu0
      %v3675 = vadd.f32 %v3514, %v3674
      %v3676 = vpop.f32.mrf.mxu0
      %3677 = vmatprep.mubr.bf16.mxu0 %v2847
      %3678 = vmatmul.mubr.bf16.gmra.mxu0 %v2846
      %v3679 = vpop.f32.mrf.mxu0
      %v3680 = vadd.f32 %v3519, %v3679
      %v3681 = vpop.f32.mrf.mxu0
      %v3682 = vpop.f32.mrf.mxu0
      %v3683 = vadd.f32 %v3522, %v3682
      %v3684 = vpop.f32.mrf.mxu0
      %3685 = vmatprep.mubr.bf16.mxu0 %v2855
      %3686 = vmatmul.mubr.bf16.gmra.mxu0 %v2854
      %v3687 = vpop.f32.mrf.mxu0
      %v3688 = vadd.f32 %v3527, %v3687
      %v3689 = vpop.f32.mrf.mxu0
      %v3690 = vpop.f32.mrf.mxu0
      %v3691 = vadd.f32 %v3530, %v3690
      %v3692 = vpop.f32.mrf.mxu0
      %3693 = vmatprep.mubr.bf16.mxu0 %v2863
      %3694 = vmatmul.mubr.bf16.gmra.mxu0 %v2862
      %v3695 = vpop.f32.mrf.mxu0
      %v3696 = vadd.f32 %v3535, %v3695
      %v3697 = vpop.f32.mrf.mxu0
      %v3698 = vpop.f32.mrf.mxu0
      %v3699 = vadd.f32 %v3538, %v3698
      %v3700 = vpop.f32.mrf.mxu0
      %3701 = vmatprep.mubr.bf16.mxu0 %v2871
      %3702 = vmatmul.mubr.bf16.gmra.mxu0 %v2870
      %v3703 = vpop.f32.mrf.mxu0
      %v3704 = vadd.f32 %v3543, %v3703
      %v3705 = vpop.f32.mrf.mxu0
      %v3706 = vpop.f32.mrf.mxu0
      %v3707 = vadd.f32 %v3546, %v3706
      %v3708 = vpop.f32.mrf.mxu0
      %3709 = vdwg.mxu0
      %3710 = vmatprep.subr.bf16.mxu0 0
      %3711 = vmatpush1.bf16.msra.mxu0 %v3299
      %3712 = vmatprep.subr.bf16.mxu0 0
      %3713 = vmatpush1.bf16.msra.mxu0 %v3298
      %3714 = vmatprep.subr.bf16.mxu0 0
      %3715 = vmatpush1.bf16.msra.mxu0 %v3297
      %3716 = vmatprep.subr.bf16.mxu0 0
      %3717 = vmatpush1.bf16.msra.mxu0 %v3296
      %3718 = vmatprep.subr.bf16.mxu0 0
      %3719 = vmatpush1.bf16.msra.mxu0 %v3295
      %3720 = vmatprep.subr.bf16.mxu0 0
      %3721 = vmatpush1.bf16.msra.mxu0 %v3294
      %3722 = vmatprep.subr.bf16.mxu0 0
      %3723 = vmatpush1.bf16.msra.mxu0 %v3293
      %3724 = vmatprep.subr.bf16.mxu0 0
      %3725 = vmatpush1.bf16.msra.mxu0 %v3292
      %3726 = vmatprep.subr.bf16.mxu0 0
      %3727 = vmatpush2.bf16.msra.mxu0 %v3307
      %3728 = vmatprep.subr.bf16.mxu0 0
      %3729 = vmatpush2.bf16.msra.mxu0 %v3306
      %3730 = vmatprep.subr.bf16.mxu0 0
      %3731 = vmatpush2.bf16.msra.mxu0 %v3305
      %3732 = vmatprep.subr.bf16.mxu0 0
      %3733 = vmatpush2.bf16.msra.mxu0 %v3304
      %3734 = vmatprep.subr.bf16.mxu0 0
      %3735 = vmatpush2.bf16.msra.mxu0 %v3303
      %3736 = vmatprep.subr.bf16.mxu0 0
      %3737 = vmatpush2.bf16.msra.mxu0 %v3302
      %3738 = vmatprep.subr.bf16.mxu0 0
      %3739 = vmatpush2.bf16.msra.mxu0 %v3301
      %3740 = vmatprep.subr.bf16.mxu0 0
      %3741 = vmatpush2.bf16.msra.mxu0 %v3300
      %3742 = vmatprep.mubr.bf16.mxu0 %v2753
      %3743 = vmatmul.mubr.bf16.gmra.mxu0 %v2752
      %v3744 = vpop.f32.mrf.mxu0
      %v3745 = vadd.f32 %v3584, %v3744
      %v3746 = vpop.f32.mrf.mxu0
      %v3747 = vpop.f32.mrf.mxu0
      %v3748 = vadd.f32 %v3587, %v3747
      %v3749 = vpop.f32.mrf.mxu0
      %3750 = vmatprep.mubr.bf16.mxu0 %v2761
      %3751 = vmatmul.mubr.bf16.gmra.mxu0 %v2760
      %v3752 = vpop.f32.mrf.mxu0
      %v3753 = vadd.f32 %v3592, %v3752
      %v3754 = vpop.f32.mrf.mxu0
      %v3755 = vpop.f32.mrf.mxu0
      %v3756 = vadd.f32 %v3595, %v3755
      %v3757 = vpop.f32.mrf.mxu0
      %3758 = vmatprep.mubr.bf16.mxu0 %v2769
      %3759 = vmatmul.mubr.bf16.gmra.mxu0 %v2768
      %v3760 = vpop.f32.mrf.mxu0
      %v3761 = vadd.f32 %v3600, %v3760
      %v3762 = vpop.f32.mrf.mxu0
      %v3763 = vpop.f32.mrf.mxu0
      %v3764 = vadd.f32 %v3603, %v3763
      %v3765 = vpop.f32.mrf.mxu0
      %3766 = vmatprep.mubr.bf16.mxu0 %v2777
      %3767 = vmatmul.mubr.bf16.gmra.mxu0 %v2776
      %v3768 = vpop.f32.mrf.mxu0
      %v3769 = vadd.f32 %v3608, %v3768
      %v3770 = vpop.f32.mrf.mxu0
      %v3771 = vpop.f32.mrf.mxu0
      %v3772 = vadd.f32 %v3611, %v3771
      %v3773 = vpop.f32.mrf.mxu0
      %3774 = vmatprep.mubr.bf16.mxu0 %v2785
      %3775 = vmatmul.mubr.bf16.gmra.mxu0 %v2784
      %v3776 = vpop.f32.mrf.mxu0
      %v3777 = vadd.f32 %v3616, %v3776
      %v3778 = vpop.f32.mrf.mxu0
      %v3779 = vpop.f32.mrf.mxu0
      %v3780 = vadd.f32 %v3619, %v3779
      %v3781 = vpop.f32.mrf.mxu0
      %3782 = vmatprep.mubr.bf16.mxu0 %v2793
      %3783 = vmatmul.mubr.bf16.gmra.mxu0 %v2792
      %v3784 = vpop.f32.mrf.mxu0
      %v3785 = vadd.f32 %v3624, %v3784
      %v3786 = vpop.f32.mrf.mxu0
      %v3787 = vpop.f32.mrf.mxu0
      %v3788 = vadd.f32 %v3627, %v3787
      %v3789 = vpop.f32.mrf.mxu0
      %3790 = vmatprep.mubr.bf16.mxu0 %v2801
      %3791 = vmatmul.mubr.bf16.gmra.mxu0 %v2800
      %v3792 = vpop.f32.mrf.mxu0
      %v3793 = vadd.f32 %v3632, %v3792
      %v3794 = vpop.f32.mrf.mxu0
      %v3795 = vpop.f32.mrf.mxu0
      %v3796 = vadd.f32 %v3635, %v3795
      %v3797 = vpop.f32.mrf.mxu0
      %3798 = vmatprep.mubr.bf16.mxu0 %v2809
      %3799 = vmatmul.mubr.bf16.gmra.mxu0 %v2808
      %v3800 = vpop.f32.mrf.mxu0
      %v3801 = vadd.f32 %v3640, %v3800
      %v3802 = vpop.f32.mrf.mxu0
      %v3803 = vpop.f32.mrf.mxu0
      %v3804 = vadd.f32 %v3643, %v3803
      %v3805 = vpop.f32.mrf.mxu0
      %3806 = vmatprep.mubr.bf16.mxu0 %v2817
      %3807 = vmatmul.mubr.bf16.gmra.mxu0 %v2816
      %v3808 = vpop.f32.mrf.mxu0
      %v3809 = vadd.f32 %v3648, %v3808
      %v3810 = vpop.f32.mrf.mxu0
      %v3811 = vpop.f32.mrf.mxu0
      %v3812 = vadd.f32 %v3651, %v3811
      %v3813 = vpop.f32.mrf.mxu0
      %3814 = vmatprep.mubr.bf16.mxu0 %v2825
      %3815 = vmatmul.mubr.bf16.gmra.mxu0 %v2824
      %v3816 = vpop.f32.mrf.mxu0
      %v3817 = vadd.f32 %v3656, %v3816
      %v3818 = vpop.f32.mrf.mxu0
      %v3819 = vpop.f32.mrf.mxu0
      %v3820 = vadd.f32 %v3659, %v3819
      %v3821 = vpop.f32.mrf.mxu0
      %3822 = vmatprep.mubr.bf16.mxu0 %v2833
      %3823 = vmatmul.mubr.bf16.gmra.mxu0 %v2832
      %v3824 = vpop.f32.mrf.mxu0
      %v3825 = vadd.f32 %v3664, %v3824
      %v3826 = vpop.f32.mrf.mxu0
      %v3827 = vpop.f32.mrf.mxu0
      %v3828 = vadd.f32 %v3667, %v3827
      %v3829 = vpop.f32.mrf.mxu0
      %3830 = vmatprep.mubr.bf16.mxu0 %v2841
      %3831 = vmatmul.mubr.bf16.gmra.mxu0 %v2840
      %v3832 = vpop.f32.mrf.mxu0
      %v3833 = vadd.f32 %v3672, %v3832
      %v3834 = vpop.f32.mrf.mxu0
      %v3835 = vpop.f32.mrf.mxu0
      %v3836 = vadd.f32 %v3675, %v3835
      %v3837 = vpop.f32.mrf.mxu0
      %3838 = vmatprep.mubr.bf16.mxu0 %v2849
      %3839 = vmatmul.mubr.bf16.gmra.mxu0 %v2848
      %v3840 = vpop.f32.mrf.mxu0
      %v3841 = vadd.f32 %v3680, %v3840
      %v3842 = vpop.f32.mrf.mxu0
      %v3843 = vpop.f32.mrf.mxu0
      %v3844 = vadd.f32 %v3683, %v3843
      %v3845 = vpop.f32.mrf.mxu0
      %3846 = vmatprep.mubr.bf16.mxu0 %v2857
      %3847 = vmatmul.mubr.bf16.gmra.mxu0 %v2856
      %v3848 = vpop.f32.mrf.mxu0
      %v3849 = vadd.f32 %v3688, %v3848
      %v3850 = vpop.f32.mrf.mxu0
      %v3851 = vpop.f32.mrf.mxu0
      %v3852 = vadd.f32 %v3691, %v3851
      %v3853 = vpop.f32.mrf.mxu0
      %3854 = vmatprep.mubr.bf16.mxu0 %v2865
      %3855 = vmatmul.mubr.bf16.gmra.mxu0 %v2864
      %v3856 = vpop.f32.mrf.mxu0
      %v3857 = vadd.f32 %v3696, %v3856
      %v3858 = vpop.f32.mrf.mxu0
      %v3859 = vpop.f32.mrf.mxu0
      %v3860 = vadd.f32 %v3699, %v3859
      %v3861 = vpop.f32.mrf.mxu0
      %3862 = vmatprep.mubr.bf16.mxu0 %v2873
      %3863 = vmatmul.mubr.bf16.gmra.mxu0 %v2872
      %v3864 = vpop.f32.mrf.mxu0
      %v3865 = vadd.f32 %v3704, %v3864
      %v3866 = vpop.f32.mrf.mxu0
      %v3867 = vpop.f32.mrf.mxu0
      %v3868 = vadd.f32 %v3707, %v3867
      %v3869 = vpop.f32.mrf.mxu0
      %3870 = vdwg.mxu0
      %3871 = vmatprep.subr.bf16.mxu0 0
      %3872 = vmatpush1.bf16.msra.mxu0 %v3315
      %3873 = vmatprep.subr.bf16.mxu0 0
      %3874 = vmatpush1.bf16.msra.mxu0 %v3314
      %3875 = vmatprep.subr.bf16.mxu0 0
      %3876 = vmatpush1.bf16.msra.mxu0 %v3313
      %3877 = vmatprep.subr.bf16.mxu0 0
      %3878 = vmatpush1.bf16.msra.mxu0 %v3312
      %3879 = vmatprep.subr.bf16.mxu0 0
      %3880 = vmatpush1.bf16.msra.mxu0 %v3311
      %3881 = vmatprep.subr.bf16.mxu0 0
      %3882 = vmatpush1.bf16.msra.mxu0 %v3310
      %3883 = vmatprep.subr.bf16.mxu0 0
      %3884 = vmatpush1.bf16.msra.mxu0 %v3309
      %3885 = vmatprep.subr.bf16.mxu0 0
      %3886 = vmatpush1.bf16.msra.mxu0 %v3308
      %3887 = vmatprep.subr.bf16.mxu0 0
      %3888 = vmatpush2.bf16.msra.mxu0 %v3323
      %3889 = vmatprep.subr.bf16.mxu0 0
      %3890 = vmatpush2.bf16.msra.mxu0 %v3322
      %3891 = vmatprep.subr.bf16.mxu0 0
      %3892 = vmatpush2.bf16.msra.mxu0 %v3321
      %3893 = vmatprep.subr.bf16.mxu0 0
      %3894 = vmatpush2.bf16.msra.mxu0 %v3320
      %3895 = vmatprep.subr.bf16.mxu0 0
      %3896 = vmatpush2.bf16.msra.mxu0 %v3319
      %3897 = vmatprep.subr.bf16.mxu0 0
      %3898 = vmatpush2.bf16.msra.mxu0 %v3318
      %3899 = vmatprep.subr.bf16.mxu0 0
      %3900 = vmatpush2.bf16.msra.mxu0 %v3317
      %3901 = vmatprep.subr.bf16.mxu0 0
      %3902 = vmatpush2.bf16.msra.mxu0 %v3316
      %3903 = vmatprep.mubr.bf16.mxu0 %v2755
      %3904 = vmatmul.mubr.bf16.gmra.mxu0 %v2754
      %v3905 = vpop.f32.mrf.mxu0
      %v3906 = vadd.f32 %v3745, %v3905
      %v3907 = vpop.f32.mrf.mxu0
      %v3908 = vpop.f32.mrf.mxu0
      %v3909 = vadd.f32 %v3748, %v3908
      %v3910 = vpop.f32.mrf.mxu0
      %3911 = vmatprep.mubr.bf16.mxu0 %v2763
      %3912 = vmatmul.mubr.bf16.gmra.mxu0 %v2762
      %v3913 = vpop.f32.mrf.mxu0
      %v3914 = vadd.f32 %v3753, %v3913
      %v3915 = vpop.f32.mrf.mxu0
      %v3916 = vpop.f32.mrf.mxu0
      %v3917 = vadd.f32 %v3756, %v3916
      %v3918 = vpop.f32.mrf.mxu0
      %3919 = vmatprep.mubr.bf16.mxu0 %v2771
      %3920 = vmatmul.mubr.bf16.gmra.mxu0 %v2770
      %v3921 = vpop.f32.mrf.mxu0
      %v3922 = vadd.f32 %v3761, %v3921
      %v3923 = vpop.f32.mrf.mxu0
      %v3924 = vpop.f32.mrf.mxu0
      %v3925 = vadd.f32 %v3764, %v3924
      %v3926 = vpop.f32.mrf.mxu0
      %3927 = vmatprep.mubr.bf16.mxu0 %v2779
      %3928 = vmatmul.mubr.bf16.gmra.mxu0 %v2778
      %v3929 = vpop.f32.mrf.mxu0
      %v3930 = vadd.f32 %v3769, %v3929
      %v3931 = vpop.f32.mrf.mxu0
      %v3932 = vpop.f32.mrf.mxu0
      %v3933 = vadd.f32 %v3772, %v3932
      %v3934 = vpop.f32.mrf.mxu0
      %3935 = vmatprep.mubr.bf16.mxu0 %v2787
      %3936 = vmatmul.mubr.bf16.gmra.mxu0 %v2786
      %v3937 = vpop.f32.mrf.mxu0
      %v3938 = vadd.f32 %v3777, %v3937
      %v3939 = vpop.f32.mrf.mxu0
      %v3940 = vpop.f32.mrf.mxu0
      %v3941 = vadd.f32 %v3780, %v3940
      %v3942 = vpop.f32.mrf.mxu0
      %3943 = vmatprep.mubr.bf16.mxu0 %v2795
      %3944 = vmatmul.mubr.bf16.gmra.mxu0 %v2794
      %v3945 = vpop.f32.mrf.mxu0
      %v3946 = vadd.f32 %v3785, %v3945
      %v3947 = vpop.f32.mrf.mxu0
      %v3948 = vpop.f32.mrf.mxu0
      %v3949 = vadd.f32 %v3788, %v3948
      %v3950 = vpop.f32.mrf.mxu0
      %3951 = vmatprep.mubr.bf16.mxu0 %v2803
      %3952 = vmatmul.mubr.bf16.gmra.mxu0 %v2802
      %v3953 = vpop.f32.mrf.mxu0
      %v3954 = vadd.f32 %v3793, %v3953
      %v3955 = vpop.f32.mrf.mxu0
      %v3956 = vpop.f32.mrf.mxu0
      %v3957 = vadd.f32 %v3796, %v3956
      %v3958 = vpop.f32.mrf.mxu0
      %3959 = vmatprep.mubr.bf16.mxu0 %v2811
      %3960 = vmatmul.mubr.bf16.gmra.mxu0 %v2810
      %v3961 = vpop.f32.mrf.mxu0
      %v3962 = vadd.f32 %v3801, %v3961
      %v3963 = vpop.f32.mrf.mxu0
      %v3964 = vpop.f32.mrf.mxu0
      %v3965 = vadd.f32 %v3804, %v3964
      %v3966 = vpop.f32.mrf.mxu0
      %3967 = vmatprep.mubr.bf16.mxu0 %v2819
      %3968 = vmatmul.mubr.bf16.gmra.mxu0 %v2818
      %v3969 = vpop.f32.mrf.mxu0
      %v3970 = vadd.f32 %v3809, %v3969
      %v3971 = vpop.f32.mrf.mxu0
      %v3972 = vpop.f32.mrf.mxu0
      %v3973 = vadd.f32 %v3812, %v3972
      %v3974 = vpop.f32.mrf.mxu0
      %3975 = vmatprep.mubr.bf16.mxu0 %v2827
      %3976 = vmatmul.mubr.bf16.gmra.mxu0 %v2826
      %v3977 = vpop.f32.mrf.mxu0
      %v3978 = vadd.f32 %v3817, %v3977
      %v3979 = vpop.f32.mrf.mxu0
      %v3980 = vpop.f32.mrf.mxu0
      %v3981 = vadd.f32 %v3820, %v3980
      %v3982 = vpop.f32.mrf.mxu0
      %3983 = vmatprep.mubr.bf16.mxu0 %v2835
      %3984 = vmatmul.mubr.bf16.gmra.mxu0 %v2834
      %v3985 = vpop.f32.mrf.mxu0
      %v3986 = vadd.f32 %v3825, %v3985
      %v3987 = vpop.f32.mrf.mxu0
      %v3988 = vpop.f32.mrf.mxu0
      %v3989 = vadd.f32 %v3828, %v3988
      %v3990 = vpop.f32.mrf.mxu0
      %3991 = vmatprep.mubr.bf16.mxu0 %v2843
      %3992 = vmatmul.mubr.bf16.gmra.mxu0 %v2842
      %v3993 = vpop.f32.mrf.mxu0
      %v3994 = vadd.f32 %v3833, %v3993
      %v3995 = vpop.f32.mrf.mxu0
      %v3996 = vpop.f32.mrf.mxu0
      %v3997 = vadd.f32 %v3836, %v3996
      %v3998 = vpop.f32.mrf.mxu0
      %3999 = vmatprep.mubr.bf16.mxu0 %v2851
      %4000 = vmatmul.mubr.bf16.gmra.mxu0 %v2850
      %v4001 = vpop.f32.mrf.mxu0
      %v4002 = vadd.f32 %v3841, %v4001
      %v4003 = vpop.f32.mrf.mxu0
      %v4004 = vpop.f32.mrf.mxu0
      %v4005 = vadd.f32 %v3844, %v4004
      %v4006 = vpop.f32.mrf.mxu0
      %4007 = vmatprep.mubr.bf16.mxu0 %v2859
      %4008 = vmatmul.mubr.bf16.gmra.mxu0 %v2858
      %v4009 = vpop.f32.mrf.mxu0
      %v4010 = vadd.f32 %v3849, %v4009
      %v4011 = vpop.f32.mrf.mxu0
      %v4012 = vpop.f32.mrf.mxu0
      %v4013 = vadd.f32 %v3852, %v4012
      %v4014 = vpop.f32.mrf.mxu0
      %4015 = vmatprep.mubr.bf16.mxu0 %v2867
      %4016 = vmatmul.mubr.bf16.gmra.mxu0 %v2866
      %v4017 = vpop.f32.mrf.mxu0
      %v4018 = vadd.f32 %v3857, %v4017
      %v4019 = vpop.f32.mrf.mxu0
      %v4020 = vpop.f32.mrf.mxu0
      %v4021 = vadd.f32 %v3860, %v4020
      %v4022 = vpop.f32.mrf.mxu0
      %4023 = vmatprep.mubr.bf16.mxu0 %v2875
      %4024 = vmatmul.mubr.bf16.gmra.mxu0 %v2874
      %v4025 = vpop.f32.mrf.mxu0
      %v4026 = vadd.f32 %v3865, %v4025
      %v4027 = vpop.f32.mrf.mxu0
      %v4028 = vpop.f32.mrf.mxu0
      %v4029 = vadd.f32 %v3868, %v4028
      %v4030 = vpop.f32.mrf.mxu0
      %4031 = vdwg.mxu0
      %4032 = vst [vmem:[%s177] sm:$0xff] %v3906
      %4033 = vst [vmem:[%s177 + $0x8] sm:$0xff] %v3909
      %4034 = vst [vmem:[%s177 + $0x10] sm:$0xff] %v3914
      %4035 = vst [vmem:[%s177 + $0x18] sm:$0xff] %v3917
      %4036 = vst [vmem:[%s177 + $0x20] sm:$0xff] %v3922
      %4037 = vst [vmem:[%s177 + $0x28] sm:$0xff] %v3925
      %4038 = vst [vmem:[%s177 + $0x30] sm:$0xff] %v3930
      %4039 = vst [vmem:[%s177 + $0x38] sm:$0xff] %v3933
      %4040 = vst [vmem:[%s177 + $0x40] sm:$0xff] %v3938
      %4041 = vst [vmem:[%s177 + $0x48] sm:$0xff] %v3941
      %4042 = vst [vmem:[%s177 + $0x50] sm:$0xff] %v3946
      %4043 = vst [vmem:[%s177 + $0x58] sm:$0xff] %v3949
      %4044 = vst [vmem:[%s177 + $0x60] sm:$0xff] %v3954
      %4045 = vst [vmem:[%s177 + $0x68] sm:$0xff] %v3957
      %4046 = vst [vmem:[%s177 + $0x70] sm:$0xff] %v3962
      %4047 = vst [vmem:[%s177 + $0x78] sm:$0xff] %v3965
      %4048 = vst [vmem:[%s177 + $0x80] sm:$0xff] %v3970
      %4049 = vst [vmem:[%s177 + $0x88] sm:$0xff] %v3973
      %4050 = vst [vmem:[%s177 + $0x90] sm:$0xff] %v3978
      %4051 = vst [vmem:[%s177 + $0x98] sm:$0xff] %v3981
      %4052 = vst [vmem:[%s177 + $0xa0] sm:$0xff] %v3986
      %4053 = vst [vmem:[%s177 + $0xa8] sm:$0xff] %v3989
      %4054 = vst [vmem:[%s177 + $0xb0] sm:$0xff] %v3994
      %4055 = vst [vmem:[%s177 + $0xb8] sm:$0xff] %v3997
      %4056 = vst [vmem:[%s177 + $0xc0] sm:$0xff] %v4002
      %4057 = vst [vmem:[%s177 + $0xc8] sm:$0xff] %v4005
      %4058 = vst [vmem:[%s177 + $0xd0] sm:$0xff] %v4010
      %4059 = vst [vmem:[%s177 + $0xd8] sm:$0xff] %v4013
      %4060 = vst [vmem:[%s177 + $0xe0] sm:$0xff] %v4018
      %4061 = vst [vmem:[%s177 + $0xe8] sm:$0xff] %v4021
      %4062 = vst [vmem:[%s177 + $0xf0] sm:$0xff] %v4026
      %4063 = vst [vmem:[%s177 + $0xf8] sm:$0xff] %v4029
      %v4064 = vadd.f32 %v3906, %v3909
      %v4065 = vadd.f32 %v4064, %v3914
      %v4066 = vadd.f32 %v4065, %v3917
      %v4067 = vadd.f32 %v4066, %v3922
      %v4068 = vadd.f32 %v4067, %v3925
      %v4069 = vadd.f32 %v4068, %v3930
      %v4070 = vadd.f32 %v4069, %v3933
      %v4071 = vadd.f32 %v4070, %v3938
      %v4072 = vadd.f32 %v4071, %v3941
      %v4073 = vadd.f32 %v4072, %v3946
      %v4074 = vadd.f32 %v4073, %v3949
      %v4075 = vadd.f32 %v4074, %v3954
      %v4076 = vadd.f32 %v4075, %v3957
      %v4077 = vadd.f32 %v4076, %v3962
      %v4078 = vadd.f32 %v4077, %v3965
      %v4079 = vadd.f32 %v4078, %v3970
      %v4080 = vadd.f32 %v4079, %v3973
      %v4081 = vadd.f32 %v4080, %v3978
      %v4082 = vadd.f32 %v4081, %v3981
      %v4083 = vadd.f32 %v4082, %v3986
      %v4084 = vadd.f32 %v4083, %v3989
      %v4085 = vadd.f32 %v4084, %v3994
      %v4086 = vadd.f32 %v4085, %v3997
      %v4087 = vadd.f32 %v4086, %v4002
      %v4088 = vadd.f32 %v4087, %v4005
      %v4089 = vadd.f32 %v4088, %v4010
      %v4090 = vadd.f32 %v4089, %v4013
      %v4091 = vadd.f32 %v4090, %v4018
      %v4092 = vadd.f32 %v4091, %v4021
      %v4093 = vadd.f32 %v4092, %v4026
      %v4094 = vadd.f32 %v4093, %v4029
      %v4095 = vrot.slane %v4094, 4
      %v4096 = vadd.f32 %v4094, %v4095
      %v4097 = vrot.slane %v4096, 2
      %v4098 = vadd.f32 %v4096, %v4097
      %v4099 = vrot.slane %v4098, 1
      %v4100 = vadd.f32 %v4098, %v4099
      %4101 = vst [vmem:[%s181] sm:$0x1] %v4100
      %v4102 = vmul.f32 %v3906, %v3906
      %v4103 = vmul.f32 %v3909, %v3909
      %v4104 = vmul.f32 %v3914, %v3914
      %v4105 = vmul.f32 %v3917, %v3917
      %v4106 = vmul.f32 %v3922, %v3922
      %v4107 = vmul.f32 %v3925, %v3925
      %v4108 = vmul.f32 %v3930, %v3930
      %v4109 = vmul.f32 %v3933, %v3933
      %v4110 = vmul.f32 %v3938, %v3938
      %v4111 = vmul.f32 %v3941, %v3941
      %v4112 = vmul.f32 %v3946, %v3946
      %v4113 = vmul.f32 %v3949, %v3949
      %v4114 = vmul.f32 %v3954, %v3954
      %v4115 = vmul.f32 %v3957, %v3957
      %v4116 = vmul.f32 %v3962, %v3962
      %v4117 = vmul.f32 %v3965, %v3965
      %v4118 = vmul.f32 %v3970, %v3970
      %v4119 = vmul.f32 %v3973, %v3973
      %v4120 = vmul.f32 %v3978, %v3978
      %v4121 = vmul.f32 %v3981, %v3981
      %v4122 = vmul.f32 %v3986, %v3986
      %v4123 = vmul.f32 %v3989, %v3989
      %v4124 = vmul.f32 %v3994, %v3994
      %v4125 = vmul.f32 %v3997, %v3997
      %v4126 = vmul.f32 %v4002, %v4002
      %v4127 = vmul.f32 %v4005, %v4005
      %v4128 = vmul.f32 %v4010, %v4010
      %v4129 = vmul.f32 %v4013, %v4013
      %v4130 = vmul.f32 %v4018, %v4018
      %v4131 = vmul.f32 %v4021, %v4021
      %v4132 = vmul.f32 %v4026, %v4026
      %v4133 = vmul.f32 %v4029, %v4029
      %v4134 = vadd.f32 %v4102, %v4103
      %v4135 = vadd.f32 %v4134, %v4104
      %v4136 = vadd.f32 %v4135, %v4105
      %v4137 = vadd.f32 %v4136, %v4106
      %v4138 = vadd.f32 %v4137, %v4107
      %v4139 = vadd.f32 %v4138, %v4108
      %v4140 = vadd.f32 %v4139, %v4109
      %v4141 = vadd.f32 %v4140, %v4110
      %v4142 = vadd.f32 %v4141, %v4111
      %v4143 = vadd.f32 %v4142, %v4112
      %v4144 = vadd.f32 %v4143, %v4113
      %v4145 = vadd.f32 %v4144, %v4114
      %v4146 = vadd.f32 %v4145, %v4115
      %v4147 = vadd.f32 %v4146, %v4116
      %v4148 = vadd.f32 %v4147, %v4117
      %v4149 = vadd.f32 %v4148, %v4118
      %v4150 = vadd.f32 %v4149, %v4119
      %v4151 = vadd.f32 %v4150, %v4120
      %v4152 = vadd.f32 %v4151, %v4121
      %v4153 = vadd.f32 %v4152, %v4122
      %v4154 = vadd.f32 %v4153, %v4123
      %v4155 = vadd.f32 %v4154, %v4124
      %v4156 = vadd.f32 %v4155, %v4125
      %v4157 = vadd.f32 %v4156, %v4126
      %v4158 = vadd.f32 %v4157, %v4127
      %v4159 = vadd.f32 %v4158, %v4128
      %v4160 = vadd.f32 %v4159, %v4129
      %v4161 = vadd.f32 %v4160, %v4130
      %v4162 = vadd.f32 %v4161, %v4131
      %v4163 = vadd.f32 %v4162, %v4132
      %v4164 = vadd.f32 %v4163, %v4133
      %v4165 = vrot.slane %v4164, 4
      %v4166 = vadd.f32 %v4164, %v4165
      %v4167 = vrot.slane %v4166, 2
      %v4168 = vadd.f32 %v4166, %v4167
      %v4169 = vrot.slane %v4168, 1
      %v4170 = vadd.f32 %v4168, %v4169
      %4171 = vst [vmem:[%s181 + $0x1] sm:$0x1] %v4170
      %p4172 = scmp.lt.s32.totalorder %s15, 1
      %s4173 = scalar_select %p4172, %s15, 1
      %s4174 = smul.addr %s4173, 32
      %s4175 = smul.addr %s4174, 8
      %s4176 = scalar_lea.vmem %s2, %s4175
      %p4177 = scmp.lt.s32.totalorder %s15, 1
      %s4178 = scalar_select %p4177, %s15, 1
      %s4179 = smul.addr %s4178, 2
      %s4180 = scalar_lea.vmem %s3, %s4179
      // Predicated region
      $region29: #{discriminator_pallas.6} parent=27 // pred_check
        %p4181 = pneg %p80
      $region30: #{discriminator_pallas.6} parent=27 // pred_check_branch
        %4183 = sbr.rel (%p4181) target = $region32
      $region31: #{discriminator_pallas.6} parent=27 // pred_region
        _
      $region32: #{discriminator_pallas.6} parent=27 // pred_fallthru
        _
      // Predicated region
      $region33: #{discriminator_pallas.6} parent=27 // pred_check
        %p4184 = pneg %p106
      $region34: #{discriminator_pallas.6} parent=27 // pred_check_branch
        %4186 = sbr.rel (%p4184) target = $region36
      $region35: #{discriminator_pallas.6} parent=27 // pred_region
        _
      $region36: #{discriminator_pallas.6} parent=27 // pred_fallthru
        _
    $region28: #{discriminator_pallas.6} parent=5 // pred_fallthru
      _
    %p4187 = scmp.le.s32.totalorder 2, %s10
    // Predicated region
    $region37: #{discriminator_pallas.6} parent=5 // pred_check
      %p4188 = pneg %p4187
    $region38: #{discriminator_pallas.6} parent=5 // pred_check_branch
      %4190 = sbr.rel (%p4188) target = $region40
    $region39: #{discriminator_pallas.6} parent=5 // pred_region
      %s4191 = ssub.s32 %s10, 2
      // Predicated region
      $region41: #{discriminator_pallas.6} parent=39 // pred_check
        %p4192 = pneg %p86
      $region42: #{discriminator_pallas.6} parent=39 // pred_check_branch
        %4194 = sbr.rel (%p4192) target = $region44
      $region43: #{discriminator_pallas.6} parent=39 // pred_region
        %p4195 = scmp.lt.s32.totalorder %s16, 1
        %s4196 = scalar_select %p4195, %s16, 1
        %s4197 = smul.addr %s4196, 32
        %s4198 = smul.addr %s4197, 8
        %s4199 = scalar_lea.vmem %s2, %s4198
      $region44: #{discriminator_pallas.6} parent=39 // pred_fallthru
        _
      // Predicated region
      $region45: #{discriminator_pallas.6} parent=39 // pred_check
        %p4200 = pneg %p112
      $region46: #{discriminator_pallas.6} parent=39 // pred_check_branch
        %4202 = sbr.rel (%p4200) target = $region48
      $region47: #{discriminator_pallas.6} parent=39 // pred_region
        %p4203 = scmp.lt.s32.totalorder %s16, 1
        %s4204 = scalar_select %p4203, %s16, 1
        %s4205 = smul.addr %s4204, 2
        %s4206 = scalar_lea.vmem %s3, %s4205
      $region48: #{discriminator_pallas.6} parent=39 // pred_fallthru
        _
    $region40: #{discriminator_pallas.6} parent=5 // pred_fallthru
      _
  $region6: #{discriminator_pallas.6} parent=0 // loop_footer
    %s14 = sadd.s32 1, %s10
  $region7: #{discriminator_pallas.6} parent=0 // loop_footer_branch
    %9 = sbr.rel target = $region3
  $region8: #{discriminator_pallas.6} parent=0 // loop_exit
    _

// kernel: discriminator_pallas.7
$region0: #{discriminator_pallas.7}
  #allocation0 [shape = 'u32[]', space=smem, size = 0x4, offset = 0x4, fixed_abs, tag = 'smem constant byte address 0x4 - core index']
  #allocation1 [shape = 'u32[144,128]{1,0:T(1,128)}', space=vmem, size = 0x12000, scoped, tag = 'internal scratch']
  %s0 = inlined_call_operand.vmem [shape: bf16[2,144,1024], index: 0, kind: input, shape index: {}]
  %s1 = inlined_call_operand.vmem [shape: bf16[2,1024,128], index: 1, kind: input, shape index: {}]
  %s2 = inlined_call_operand.vmem [shape: f32[2,128,128], index: 2, kind: output, shape index: {0}]
  %s3 = inlined_call_operand.vmem [shape: f32[2,2,128], index: 3, kind: output, shape index: {1}]
  %4 = xla_tuple %s2, %s3
  %s5 = sld [smem:[#allocation0]]
  $region49: #{discriminator_pallas.7} parent=0
    _
  %s7 = ssub.s32 1, %s5
  %s8 = scalar_select 0, %s7, %s5
  loop: start=0, step=1, limit=4
  $region2: #{discriminator_pallas.7} parent=0 // loop_pre_header
    _
  $region3: #{discriminator_pallas.7} parent=0 // loop_header
    %s10 = sphi 0, %s14
    %p11 = scmp.ge.s32.totalorder %s10, 4
    %s20 = sphi 0, %s22
    %s23 = sphi 0, %s20
    %s24 = sphi 0, %s23
    %s40 = sphi 0, %s24
    %s44 = sphi 0, %s44
    %s46 = sphi 0, %s44
    %s47 = sphi 0, %s46
    %s61 = sphi 0, %s47
    %s67 = sphi 0, %s69
    %s70 = sphi 0, %s67
    %s71 = sphi 0, %s70
    %s87 = sphi 0, %s71
    %s93 = sphi 0, %s95
    %s96 = sphi 0, %s93
    %s97 = sphi 0, %s96
    %s113 = sphi 0, %s97
  $region4: #{discriminator_pallas.7} parent=0 // loop_header_branch
    %13 = sbr.rel (%p11) target = $region8
  $region5: #{discriminator_pallas.7} parent=0 // loop_body
    %s15 = ssub.s32 %s10, 1
    %s16 = ssub.s32 %s10, 2
    %s17 = sadd.s32 %s10, 1
    %s18 = ssub.s32 %s10, %s17
    %p19 = scmp.eq.s32.totalorder %s18, 0
    %s21 = sadd.s32 %s20, 1
    %s22 = scalar_select %p19, %s20, %s21
    %p25 = pneg %p19
    %p26 = scmp.eq.s32.totalorder %s10, 1
    %p27 = por %p25, %p26
    %p28 = scmp.ne.s32.totalorder %s20, %s23
    %p29 = scmp.eq.s32.totalorder %s10, 0
    %p30 = por %p28, %p29
    %p31 = scmp.ne.s32.totalorder %s20, %s23
    %p32 = scmp.eq.s32.totalorder %s15, 1
    %p33 = por %p31, %p32
    %p34 = scmp.ne.s32.totalorder %s23, %s24
    %p35 = scmp.eq.s32.totalorder %s15, 0
    %p36 = por %p34, %p35
    %p37 = scmp.ne.s32.totalorder %s23, %s24
    %p38 = scmp.eq.s32.totalorder %s16, 1
    %p39 = por %p37, %p38
    %p41 = scmp.ne.s32.totalorder %s24, %s40
    %p42 = scmp.eq.s32.totalorder %s16, 0
    %p43 = por %p41, %p42
    %s45 = sadd.s32 %s44, 1
    %p48 = scmp.eq.s32.totalorder %s10, 1
    %p49 = scmp.ne.s32.totalorder %s44, %s46
    %p50 = scmp.eq.s32.totalorder %s10, 0
    %p51 = por %p49, %p50
    %p52 = scmp.ne.s32.totalorder %s44, %s46
    %p53 = scmp.eq.s32.totalorder %s15, 1
    %p54 = por %p52, %p53
    %p55 = scmp.ne.s32.totalorder %s46, %s47
    %p56 = scmp.eq.s32.totalorder %s15, 0
    %p57 = por %p55, %p56
    %p58 = scmp.ne.s32.totalorder %s46, %s47
    %p59 = scmp.eq.s32.totalorder %s16, 1
    %p60 = por %p58, %p59
    %p62 = scmp.ne.s32.totalorder %s47, %s61
    %p63 = scmp.eq.s32.totalorder %s16, 0
    %p64 = por %p62, %p63
    %s65 = ssub.s32 %s10, %s17
    %p66 = scmp.eq.s32.totalorder %s65, 0
    %s68 = sadd.s32 %s67, 1
    %s69 = scalar_select %p66, %s67, %s68
    %p72 = pneg %p66
    %p73 = scmp.eq.s32.totalorder %s10, 1
    %p74 = por %p72, %p73
    %p75 = scmp.ne.s32.totalorder %s67, %s70
    %p76 = scmp.eq.s32.totalorder %s10, 0
    %p77 = por %p75, %p76
    %p78 = scmp.ne.s32.totalorder %s67, %s70
    %p79 = scmp.eq.s32.totalorder %s15, 1
    %p80 = por %p78, %p79
    %p81 = scmp.ne.s32.totalorder %s70, %s71
    %p82 = scmp.eq.s32.totalorder %s15, 0
    %p83 = por %p81, %p82
    %p84 = scmp.ne.s32.totalorder %s70, %s71
    %p85 = scmp.eq.s32.totalorder %s16, 1
    %p86 = por %p84, %p85
    %p88 = scmp.ne.s32.totalorder %s71, %s87
    %p89 = scmp.eq.s32.totalorder %s16, 0
    %p90 = por %p88, %p89
    %s91 = ssub.s32 %s10, %s17
    %p92 = scmp.eq.s32.totalorder %s91, 0
    %s94 = sadd.s32 %s93, 1
    %s95 = scalar_select %p92, %s93, %s94
    %p98 = pneg %p92
    %p99 = scmp.eq.s32.totalorder %s10, 1
    %p100 = por %p98, %p99
    %p101 = scmp.ne.s32.totalorder %s93, %s96
    %p102 = scmp.eq.s32.totalorder %s10, 0
    %p103 = por %p101, %p102
    %p104 = scmp.ne.s32.totalorder %s93, %s96
    %p105 = scmp.eq.s32.totalorder %s15, 1
    %p106 = por %p104, %p105
    %p107 = scmp.ne.s32.totalorder %s96, %s97
    %p108 = scmp.eq.s32.totalorder %s15, 0
    %p109 = por %p107, %p108
    %p110 = scmp.ne.s32.totalorder %s96, %s97
    %p111 = scmp.eq.s32.totalorder %s16, 1
    %p112 = por %p110, %p111
    %p114 = scmp.ne.s32.totalorder %s97, %s113
    %p115 = scmp.eq.s32.totalorder %s16, 0
    %p116 = por %p114, %p115
    %p117 = scmp.le.s32.totalorder 1, %s10
    %p118 = scmp.lt.s32.totalorder %s10, 3
    %p119 = pnand %p117, %p118
    %p120 = pneg %p119
    // Predicated region
    $region9: #{discriminator_pallas.7} parent=5 // pred_check
      _
    $region10: #{discriminator_pallas.7} parent=5 // pred_check_branch
      %122 = sbr.rel (%p119) target = $region12
    $region11: #{discriminator_pallas.7} parent=5 // pred_region
      %s123 = ssub.s32 %s10, 1
      // Predicated region
      $region13: #{discriminator_pallas.7} parent=11 // pred_check
        %p124 = pneg %p57
      $region14: #{discriminator_pallas.7} parent=11 // pred_check_branch
        %126 = sbr.rel (%p124) target = $region16
      $region15: #{discriminator_pallas.7} parent=11 // pred_region
        _
      $region16: #{discriminator_pallas.7} parent=11 // pred_fallthru
        _
    $region12: #{discriminator_pallas.7} parent=5 // pred_fallthru
      _
    %p127 = scmp.lt.s32.totalorder %s10, 2
    // Predicated region
    $region17: #{discriminator_pallas.7} parent=5 // pred_check
      %p128 = pneg %p127
    $region18: #{discriminator_pallas.7} parent=5 // pred_check_branch
      %130 = sbr.rel (%p128) target = $region20
    $region19: #{discriminator_pallas.7} parent=5 // pred_region
      // Predicated region
      $region21: #{discriminator_pallas.7} parent=19 // pred_check
        %p131 = pneg %p30
      $region22: #{discriminator_pallas.7} parent=19 // pred_check_branch
        %133 = sbr.rel (%p131) target = $region24
      $region23: #{discriminator_pallas.7} parent=19 // pred_region
        %p134 = scmp.lt.s32.totalorder %s10, 1
        %s135 = scalar_select %p134, %s10, 1
        %s136 = smul.addr %s135, 144
        %s137 = smul.addr %s136, 4
        %s138 = scalar_lea.vmem %s0, %s137
      $region24: #{discriminator_pallas.7} parent=19 // pred_fallthru
        _
    $region20: #{discriminator_pallas.7} parent=5 // pred_fallthru
      _
    %p139 = scmp.le.s32.totalorder 1, %s10
    %p140 = scmp.lt.s32.totalorder %s10, 3
    %p141 = pnand %p139, %p140
    %p142 = pneg %p141
    // Predicated region
    $region25: #{discriminator_pallas.7} parent=5 // pred_check
      _
    $region26: #{discriminator_pallas.7} parent=5 // pred_check_branch
      %144 = sbr.rel (%p141) target = $region28
    $region27: #{discriminator_pallas.7} parent=5 // pred_region
      %s145 = ssub.s32 %s10, 1
      %p146 = scmp.lt.s32.totalorder %s15, 1
      %s147 = scalar_select %p146, %s15, 1
      %s148 = smul.addr %s147, 144
      %s149 = smul.addr %s148, 4
      %s150 = scalar_lea.vmem %s0, %s149
      %p151 = pneg %p36
      %p152 = pneg %p33
      %p153 = pneg %p57
      %p154 = pneg %p54
      %p155 = pneg %p83
      %p156 = pneg %p80
      %p157 = scmp.lt.s32.totalorder %s15, 1
      %s158 = scalar_select %p157, %s15, 1
      %s159 = smul.addr %s158, 16
      %s160 = smul.addr %s159, 8
      %s161 = scalar_lea.vmem %s2, %s160
      %p162 = pneg %p109
      %p163 = pneg %p106
      %p164 = scmp.lt.s32.totalorder %s15, 1
      %s165 = scalar_select %p164, %s15, 1
      %s166 = smul.addr %s165, 2
      %s167 = scalar_lea.vmem %s3, %s166
      %p168 = scmp.lt.s32.totalorder %s15, 1
      %s169 = scalar_select %p168, %s15, 1
      %s170 = smul.addr %s169, 144
      %s171 = smul.addr %s170, 4
      %s172 = scalar_lea.vmem %s0, %s171
      %p173 = scmp.lt.s32.totalorder %s15, 1
      %s174 = scalar_select %p173, %s15, 1
      %s175 = smul.addr %s174, 16
      %s176 = smul.addr %s175, 8
      %s177 = scalar_lea.vmem %s2, %s176
      %p178 = scmp.lt.s32.totalorder %s15, 1
      %s179 = scalar_select %p178, %s15, 1
      %s180 = smul.addr %s179, 2
      %s181 = scalar_lea.vmem %s3, %s180
      %v183 = vld [vmem:[%s172] sm:$0xff]
      %v184 = vld [vmem:[%s172 + $0x8] sm:$0xff]
      %v185 = vld [vmem:[%s172 + $0x10] sm:$0xff]
      %v186 = vld [vmem:[%s172 + $0x18] sm:$0xff]
      %v187 = vld [vmem:[%s172 + $0x20] sm:$0xff]
      %v188 = vld [vmem:[%s172 + $0x28] sm:$0xff]
      %v189 = vld [vmem:[%s172 + $0x30] sm:$0xff]
      %v190 = vld [vmem:[%s172 + $0x38] sm:$0xff]
      %v191 = vld [vmem:[%s172 + $0x40] sm:$0xff]
      %v192 = vld [vmem:[%s172 + $0x48] sm:$0xff]
      %v193 = vld [vmem:[%s172 + $0x50] sm:$0xff]
      %v194 = vld [vmem:[%s172 + $0x58] sm:$0xff]
      %v195 = vld [vmem:[%s172 + $0x60] sm:$0xff]
      %v196 = vld [vmem:[%s172 + $0x68] sm:$0xff]
      %v197 = vld [vmem:[%s172 + $0x70] sm:$0xff]
      %v198 = vld [vmem:[%s172 + $0x78] sm:$0xff]
      %v199 = vld [vmem:[%s172 + $0x80] sm:$0xff]
      %v200 = vld [vmem:[%s172 + $0x88] sm:$0xff]
      %v201 = vld [vmem:[%s172 + $0x90] sm:$0xff]
      %v202 = vld [vmem:[%s172 + $0x98] sm:$0xff]
      %v203 = vld [vmem:[%s172 + $0xa0] sm:$0xff]
      %v204 = vld [vmem:[%s172 + $0xa8] sm:$0xff]
      %v205 = vld [vmem:[%s172 + $0xb0] sm:$0xff]
      %v206 = vld [vmem:[%s172 + $0xb8] sm:$0xff]
      %v207 = vld [vmem:[%s172 + $0xc0] sm:$0xff]
      %v208 = vld [vmem:[%s172 + $0xc8] sm:$0xff]
      %v209 = vld [vmem:[%s172 + $0xd0] sm:$0xff]
      %v210 = vld [vmem:[%s172 + $0xd8] sm:$0xff]
      %v211 = vld [vmem:[%s172 + $0xe0] sm:$0xff]
      %v212 = vld [vmem:[%s172 + $0xe8] sm:$0xff]
      %v213 = vld [vmem:[%s172 + $0xf0] sm:$0xff]
      %v214 = vld [vmem:[%s172 + $0xf8] sm:$0xff]
      %v215 = vld [vmem:[%s172 + $0x100] sm:$0xff]
      %v216 = vld [vmem:[%s172 + $0x108] sm:$0xff]
      %v217 = vld [vmem:[%s172 + $0x110] sm:$0xff]
      %v218 = vld [vmem:[%s172 + $0x118] sm:$0xff]
      %v219 = vld [vmem:[%s172 + $0x120] sm:$0xff]
      %v220 = vld [vmem:[%s172 + $0x128] sm:$0xff]
      %v221 = vld [vmem:[%s172 + $0x130] sm:$0xff]
      %v222 = vld [vmem:[%s172 + $0x138] sm:$0xff]
      %v223 = vld [vmem:[%s172 + $0x140] sm:$0xff]
      %v224 = vld [vmem:[%s172 + $0x148] sm:$0xff]
      %v225 = vld [vmem:[%s172 + $0x150] sm:$0xff]
      %v226 = vld [vmem:[%s172 + $0x158] sm:$0xff]
      %v227 = vld [vmem:[%s172 + $0x160] sm:$0xff]
      %v228 = vld [vmem:[%s172 + $0x168] sm:$0xff]
      %v229 = vld [vmem:[%s172 + $0x170] sm:$0xff]
      %v230 = vld [vmem:[%s172 + $0x178] sm:$0xff]
      %v231 = vld [vmem:[%s172 + $0x180] sm:$0xff]
      %v232 = vld [vmem:[%s172 + $0x188] sm:$0xff]
      %v233 = vld [vmem:[%s172 + $0x190] sm:$0xff]
      %v234 = vld [vmem:[%s172 + $0x198] sm:$0xff]
      %v235 = vld [vmem:[%s172 + $0x1a0] sm:$0xff]
      %v236 = vld [vmem:[%s172 + $0x1a8] sm:$0xff]
      %v237 = vld [vmem:[%s172 + $0x1b0] sm:$0xff]
      %v238 = vld [vmem:[%s172 + $0x1b8] sm:$0xff]
      %v239 = vld [vmem:[%s172 + $0x1c0] sm:$0xff]
      %v240 = vld [vmem:[%s172 + $0x1c8] sm:$0xff]
      %v241 = vld [vmem:[%s172 + $0x1d0] sm:$0xff]
      %v242 = vld [vmem:[%s172 + $0x1d8] sm:$0xff]
      %v243 = vld [vmem:[%s172 + $0x1e0] sm:$0xff]
      %v244 = vld [vmem:[%s172 + $0x1e8] sm:$0xff]
      %v245 = vld [vmem:[%s172 + $0x1f0] sm:$0xff]
      %v246 = vld [vmem:[%s172 + $0x1f8] sm:$0xff]
      %v247 = vld [vmem:[%s172 + $0x40] sm:$0xff]
      %v248 = vld [vmem:[%s172 + $0x48] sm:$0xff]
      %v249 = vld [vmem:[%s172 + $0x50] sm:$0xff]
      %v250 = vld [vmem:[%s172 + $0x58] sm:$0xff]
      %v251 = vld [vmem:[%s172 + $0x60] sm:$0xff]
      %v252 = vld [vmem:[%s172 + $0x68] sm:$0xff]
      %v253 = vld [vmem:[%s172 + $0x70] sm:$0xff]
      %v254 = vld [vmem:[%s172 + $0x78] sm:$0xff]
      %v255 = vld [vmem:[%s172 + $0x80] sm:$0xff]
      %v256 = vld [vmem:[%s172 + $0x88] sm:$0xff]
      %v257 = vld [vmem:[%s172 + $0x90] sm:$0xff]
      %v258 = vld [vmem:[%s172 + $0x98] sm:$0xff]
      %v259 = vld [vmem:[%s172 + $0xa0] sm:$0xff]
      %v260 = vld [vmem:[%s172 + $0xa8] sm:$0xff]
      %v261 = vld [vmem:[%s172 + $0xb0] sm:$0xff]
      %v262 = vld [vmem:[%s172 + $0xb8] sm:$0xff]
      %v263 = vld [vmem:[%s172 + $0xc0] sm:$0xff]
      %v264 = vld [vmem:[%s172 + $0xc8] sm:$0xff]
      %v265 = vld [vmem:[%s172 + $0xd0] sm:$0xff]
      %v266 = vld [vmem:[%s172 + $0xd8] sm:$0xff]
      %v267 = vld [vmem:[%s172 + $0xe0] sm:$0xff]
      %v268 = vld [vmem:[%s172 + $0xe8] sm:$0xff]
      %v269 = vld [vmem:[%s172 + $0xf0] sm:$0xff]
      %v270 = vld [vmem:[%s172 + $0xf8] sm:$0xff]
      %v271 = vld [vmem:[%s172 + $0x100] sm:$0xff]
      %v272 = vld [vmem:[%s172 + $0x108] sm:$0xff]
      %v273 = vld [vmem:[%s172 + $0x110] sm:$0xff]
      %v274 = vld [vmem:[%s172 + $0x118] sm:$0xff]
      %v275 = vld [vmem:[%s172 + $0x120] sm:$0xff]
      %v276 = vld [vmem:[%s172 + $0x128] sm:$0xff]
      %v277 = vld [vmem:[%s172 + $0x130] sm:$0xff]
      %v278 = vld [vmem:[%s172 + $0x138] sm:$0xff]
      %v279 = vld [vmem:[%s172 + $0x140] sm:$0xff]
      %v280 = vld [vmem:[%s172 + $0x148] sm:$0xff]
      %v281 = vld [vmem:[%s172 + $0x150] sm:$0xff]
      %v282 = vld [vmem:[%s172 + $0x158] sm:$0xff]
      %v283 = vld [vmem:[%s172 + $0x160] sm:$0xff]
      %v284 = vld [vmem:[%s172 + $0x168] sm:$0xff]
      %v285 = vld [vmem:[%s172 + $0x170] sm:$0xff]
      %v286 = vld [vmem:[%s172 + $0x178] sm:$0xff]
      %v287 = vld [vmem:[%s172 + $0x180] sm:$0xff]
      %v288 = vld [vmem:[%s172 + $0x188] sm:$0xff]
      %v289 = vld [vmem:[%s172 + $0x190] sm:$0xff]
      %v290 = vld [vmem:[%s172 + $0x198] sm:$0xff]
      %v291 = vld [vmem:[%s172 + $0x1a0] sm:$0xff]
      %v292 = vld [vmem:[%s172 + $0x1a8] sm:$0xff]
      %v293 = vld [vmem:[%s172 + $0x1b0] sm:$0xff]
      %v294 = vld [vmem:[%s172 + $0x1b8] sm:$0xff]
      %v295 = vld [vmem:[%s172 + $0x1c0] sm:$0xff]
      %v296 = vld [vmem:[%s172 + $0x1c8] sm:$0xff]
      %v297 = vld [vmem:[%s172 + $0x1d0] sm:$0xff]
      %v298 = vld [vmem:[%s172 + $0x1d8] sm:$0xff]
      %v299 = vld [vmem:[%s172 + $0x1e0] sm:$0xff]
      %v300 = vld [vmem:[%s172 + $0x1e8] sm:$0xff]
      %v301 = vld [vmem:[%s172 + $0x1f0] sm:$0xff]
      %v302 = vld [vmem:[%s172 + $0x1f8] sm:$0xff]
      %v303 = vld [vmem:[%s172 + $0x200] sm:$0xff]
      %v304 = vld [vmem:[%s172 + $0x208] sm:$0xff]
      %v305 = vld [vmem:[%s172 + $0x210] sm:$0xff]
      %v306 = vld [vmem:[%s172 + $0x218] sm:$0xff]
      %v307 = vld [vmem:[%s172 + $0x220] sm:$0xff]
      %v308 = vld [vmem:[%s172 + $0x228] sm:$0xff]
      %v309 = vld [vmem:[%s172 + $0x230] sm:$0xff]
      %v310 = vld [vmem:[%s172 + $0x238] sm:$0xff]
      %v311 = vld [vmem:[%s1] sm:$0xf]
      %v312 = vld [vmem:[%s1 + $0x4] sm:$0xf]
      %v313 = vld [vmem:[%s1 + $0x8] sm:$0xf]
      %v314 = vld [vmem:[%s1 + $0xc] sm:$0xf]
      %v315 = vld [vmem:[%s1 + $0x10] sm:$0xf]
      %v316 = vld [vmem:[%s1 + $0x14] sm:$0xf]
      %v317 = vld [vmem:[%s1 + $0x18] sm:$0xf]
      %v318 = vld [vmem:[%s1 + $0x1c] sm:$0xf]
      %v319 = vld [vmem:[%s1 + $0x20] sm:$0xf]
      %v320 = vld [vmem:[%s1 + $0x24] sm:$0xf]
      %v321 = vld [vmem:[%s1 + $0x28] sm:$0xf]
      %v322 = vld [vmem:[%s1 + $0x2c] sm:$0xf]
      %v323 = vld [vmem:[%s1 + $0x30] sm:$0xf]
      %v324 = vld [vmem:[%s1 + $0x34] sm:$0xf]
      %v325 = vld [vmem:[%s1 + $0x38] sm:$0xf]
      %v326 = vld [vmem:[%s1 + $0x3c] sm:$0xf]
      %v327 = vld [vmem:[%s1 + $0x40] sm:$0xf]
      %v328 = vld [vmem:[%s1 + $0x44] sm:$0xf]
      %v329 = vld [vmem:[%s1 + $0x48] sm:$0xf]
      %v330 = vld [vmem:[%s1 + $0x4c] sm:$0xf]
      %v331 = vld [vmem:[%s1 + $0x50] sm:$0xf]
      %v332 = vld [vmem:[%s1 + $0x54] sm:$0xf]
      %v333 = vld [vmem:[%s1 + $0x58] sm:$0xf]
      %v334 = vld [vmem:[%s1 + $0x5c] sm:$0xf]
      %v335 = vld [vmem:[%s1 + $0x60] sm:$0xf]
      %v336 = vld [vmem:[%s1 + $0x64] sm:$0xf]
      %v337 = vld [vmem:[%s1 + $0x68] sm:$0xf]
      %v338 = vld [vmem:[%s1 + $0x6c] sm:$0xf]
      %v339 = vld [vmem:[%s1 + $0x70] sm:$0xf]
      %v340 = vld [vmem:[%s1 + $0x74] sm:$0xf]
      %v341 = vld [vmem:[%s1 + $0x78] sm:$0xf]
      %v342 = vld [vmem:[%s1 + $0x7c] sm:$0xf]
      %v343 = vld [vmem:[%s1 + $0x80] sm:$0xf]
      %v344 = vld [vmem:[%s1 + $0x84] sm:$0xf]
      %v345 = vld [vmem:[%s1 + $0x88] sm:$0xf]
      %v346 = vld [vmem:[%s1 + $0x8c] sm:$0xf]
      %v347 = vld [vmem:[%s1 + $0x90] sm:$0xf]
      %v348 = vld [vmem:[%s1 + $0x94] sm:$0xf]
      %v349 = vld [vmem:[%s1 + $0x98] sm:$0xf]
      %v350 = vld [vmem:[%s1 + $0x9c] sm:$0xf]
      %v351 = vld [vmem:[%s1 + $0xa0] sm:$0xf]
      %v352 = vld [vmem:[%s1 + $0xa4] sm:$0xf]
      %v353 = vld [vmem:[%s1 + $0xa8] sm:$0xf]
      %v354 = vld [vmem:[%s1 + $0xac] sm:$0xf]
      %v355 = vld [vmem:[%s1 + $0xb0] sm:$0xf]
      %v356 = vld [vmem:[%s1 + $0xb4] sm:$0xf]
      %v357 = vld [vmem:[%s1 + $0xb8] sm:$0xf]
      %v358 = vld [vmem:[%s1 + $0xbc] sm:$0xf]
      %v359 = vld [vmem:[%s1 + $0xc0] sm:$0xf]
      %v360 = vld [vmem:[%s1 + $0xc4] sm:$0xf]
      %v361 = vld [vmem:[%s1 + $0xc8] sm:$0xf]
      %v362 = vld [vmem:[%s1 + $0xcc] sm:$0xf]
      %v363 = vld [vmem:[%s1 + $0xd0] sm:$0xf]
      %v364 = vld [vmem:[%s1 + $0xd4] sm:$0xf]
      %v365 = vld [vmem:[%s1 + $0xd8] sm:$0xf]
      %v366 = vld [vmem:[%s1 + $0xdc] sm:$0xf]
      %v367 = vld [vmem:[%s1 + $0xe0] sm:$0xf]
      %v368 = vld [vmem:[%s1 + $0xe4] sm:$0xf]
      %v369 = vld [vmem:[%s1 + $0xe8] sm:$0xf]
      %v370 = vld [vmem:[%s1 + $0xec] sm:$0xf]
      %v371 = vld [vmem:[%s1 + $0xf0] sm:$0xf]
      %v372 = vld [vmem:[%s1 + $0xf4] sm:$0xf]
      %v373 = vld [vmem:[%s1 + $0xf8] sm:$0xf]
      %v374 = vld [vmem:[%s1 + $0xfc] sm:$0xf]
      %v375 = vld [vmem:[%s1 + $0x100] sm:$0xf]
      %v376 = vld [vmem:[%s1 + $0x104] sm:$0xf]
      %v377 = vld [vmem:[%s1 + $0x108] sm:$0xf]
      %v378 = vld [vmem:[%s1 + $0x10c] sm:$0xf]
      %v379 = vld [vmem:[%s1 + $0x110] sm:$0xf]
      %v380 = vld [vmem:[%s1 + $0x114] sm:$0xf]
      %v381 = vld [vmem:[%s1 + $0x118] sm:$0xf]
      %v382 = vld [vmem:[%s1 + $0x11c] sm:$0xf]
      %v383 = vld [vmem:[%s1 + $0x120] sm:$0xf]
      %v384 = vld [vmem:[%s1 + $0x124] sm:$0xf]
      %v385 = vld [vmem:[%s1 + $0x128] sm:$0xf]
      %v386 = vld [vmem:[%s1 + $0x12c] sm:$0xf]
      %v387 = vld [vmem:[%s1 + $0x130] sm:$0xf]
      %v388 = vld [vmem:[%s1 + $0x134] sm:$0xf]
      %v389 = vld [vmem:[%s1 + $0x138] sm:$0xf]
      %v390 = vld [vmem:[%s1 + $0x13c] sm:$0xf]
      %v391 = vld [vmem:[%s1 + $0x140] sm:$0xf]
      %v392 = vld [vmem:[%s1 + $0x144] sm:$0xf]
      %v393 = vld [vmem:[%s1 + $0x148] sm:$0xf]
      %v394 = vld [vmem:[%s1 + $0x14c] sm:$0xf]
      %v395 = vld [vmem:[%s1 + $0x150] sm:$0xf]
      %v396 = vld [vmem:[%s1 + $0x154] sm:$0xf]
      %v397 = vld [vmem:[%s1 + $0x158] sm:$0xf]
      %v398 = vld [vmem:[%s1 + $0x15c] sm:$0xf]
      %v399 = vld [vmem:[%s1 + $0x160] sm:$0xf]
      %v400 = vld [vmem:[%s1 + $0x164] sm:$0xf]
      %v401 = vld [vmem:[%s1 + $0x168] sm:$0xf]
      %v402 = vld [vmem:[%s1 + $0x16c] sm:$0xf]
      %v403 = vld [vmem:[%s1 + $0x170] sm:$0xf]
      %v404 = vld [vmem:[%s1 + $0x174] sm:$0xf]
      %v405 = vld [vmem:[%s1 + $0x178] sm:$0xf]
      %v406 = vld [vmem:[%s1 + $0x17c] sm:$0xf]
      %v407 = vld [vmem:[%s1 + $0x180] sm:$0xf]
      %v408 = vld [vmem:[%s1 + $0x184] sm:$0xf]
      %v409 = vld [vmem:[%s1 + $0x188] sm:$0xf]
      %v410 = vld [vmem:[%s1 + $0x18c] sm:$0xf]
      %v411 = vld [vmem:[%s1 + $0x190] sm:$0xf]
      %v412 = vld [vmem:[%s1 + $0x194] sm:$0xf]
      %v413 = vld [vmem:[%s1 + $0x198] sm:$0xf]
      %v414 = vld [vmem:[%s1 + $0x19c] sm:$0xf]
      %v415 = vld [vmem:[%s1 + $0x1a0] sm:$0xf]
      %v416 = vld [vmem:[%s1 + $0x1a4] sm:$0xf]
      %v417 = vld [vmem:[%s1 + $0x1a8] sm:$0xf]
      %v418 = vld [vmem:[%s1 + $0x1ac] sm:$0xf]
      %v419 = vld [vmem:[%s1 + $0x1b0] sm:$0xf]
      %v420 = vld [vmem:[%s1 + $0x1b4] sm:$0xf]
      %v421 = vld [vmem:[%s1 + $0x1b8] sm:$0xf]
      %v422 = vld [vmem:[%s1 + $0x1bc] sm:$0xf]
      %v423 = vld [vmem:[%s1 + $0x1c0] sm:$0xf]
      %v424 = vld [vmem:[%s1 + $0x1c4] sm:$0xf]
      %v425 = vld [vmem:[%s1 + $0x1c8] sm:$0xf]
      %v426 = vld [vmem:[%s1 + $0x1cc] sm:$0xf]
      %v427 = vld [vmem:[%s1 + $0x1d0] sm:$0xf]
      %v428 = vld [vmem:[%s1 + $0x1d4] sm:$0xf]
      %v429 = vld [vmem:[%s1 + $0x1d8] sm:$0xf]
      %v430 = vld [vmem:[%s1 + $0x1dc] sm:$0xf]
      %v431 = vld [vmem:[%s1 + $0x1e0] sm:$0xf]
      %v432 = vld [vmem:[%s1 + $0x1e4] sm:$0xf]
      %v433 = vld [vmem:[%s1 + $0x1e8] sm:$0xf]
      %v434 = vld [vmem:[%s1 + $0x1ec] sm:$0xf]
      %v435 = vld [vmem:[%s1 + $0x1f0] sm:$0xf]
      %v436 = vld [vmem:[%s1 + $0x1f4] sm:$0xf]
      %v437 = vld [vmem:[%s1 + $0x1f8] sm:$0xf]
      %v438 = vld [vmem:[%s1 + $0x1fc] sm:$0xf]
      %s439 = scalar_lea.vmem %s1, 512
      %v440 = vld [vmem:[%s439] sm:$0xf]
      %v441 = vld [vmem:[%s439 + $0x4] sm:$0xf]
      %v442 = vld [vmem:[%s439 + $0x8] sm:$0xf]
      %v443 = vld [vmem:[%s439 + $0xc] sm:$0xf]
      %v444 = vld [vmem:[%s439 + $0x10] sm:$0xf]
      %v445 = vld [vmem:[%s439 + $0x14] sm:$0xf]
      %v446 = vld [vmem:[%s439 + $0x18] sm:$0xf]
      %v447 = vld [vmem:[%s439 + $0x1c] sm:$0xf]
      %v448 = vld [vmem:[%s439 + $0x20] sm:$0xf]
      %v449 = vld [vmem:[%s439 + $0x24] sm:$0xf]
      %v450 = vld [vmem:[%s439 + $0x28] sm:$0xf]
      %v451 = vld [vmem:[%s439 + $0x2c] sm:$0xf]
      %v452 = vld [vmem:[%s439 + $0x30] sm:$0xf]
      %v453 = vld [vmem:[%s439 + $0x34] sm:$0xf]
      %v454 = vld [vmem:[%s439 + $0x38] sm:$0xf]
      %v455 = vld [vmem:[%s439 + $0x3c] sm:$0xf]
      %v456 = vld [vmem:[%s439 + $0x40] sm:$0xf]
      %v457 = vld [vmem:[%s439 + $0x44] sm:$0xf]
      %v458 = vld [vmem:[%s439 + $0x48] sm:$0xf]
      %v459 = vld [vmem:[%s439 + $0x4c] sm:$0xf]
      %v460 = vld [vmem:[%s439 + $0x50] sm:$0xf]
      %v461 = vld [vmem:[%s439 + $0x54] sm:$0xf]
      %v462 = vld [vmem:[%s439 + $0x58] sm:$0xf]
      %v463 = vld [vmem:[%s439 + $0x5c] sm:$0xf]
      %v464 = vld [vmem:[%s439 + $0x60] sm:$0xf]
      %v465 = vld [vmem:[%s439 + $0x64] sm:$0xf]
      %v466 = vld [vmem:[%s439 + $0x68] sm:$0xf]
      %v467 = vld [vmem:[%s439 + $0x6c] sm:$0xf]
      %v468 = vld [vmem:[%s439 + $0x70] sm:$0xf]
      %v469 = vld [vmem:[%s439 + $0x74] sm:$0xf]
      %v470 = vld [vmem:[%s439 + $0x78] sm:$0xf]
      %v471 = vld [vmem:[%s439 + $0x7c] sm:$0xf]
      %v472 = vld [vmem:[%s439 + $0x80] sm:$0xf]
      %v473 = vld [vmem:[%s439 + $0x84] sm:$0xf]
      %v474 = vld [vmem:[%s439 + $0x88] sm:$0xf]
      %v475 = vld [vmem:[%s439 + $0x8c] sm:$0xf]
      %v476 = vld [vmem:[%s439 + $0x90] sm:$0xf]
      %v477 = vld [vmem:[%s439 + $0x94] sm:$0xf]
      %v478 = vld [vmem:[%s439 + $0x98] sm:$0xf]
      %v479 = vld [vmem:[%s439 + $0x9c] sm:$0xf]
      %v480 = vld [vmem:[%s439 + $0xa0] sm:$0xf]
      %v481 = vld [vmem:[%s439 + $0xa4] sm:$0xf]
      %v482 = vld [vmem:[%s439 + $0xa8] sm:$0xf]
      %v483 = vld [vmem:[%s439 + $0xac] sm:$0xf]
      %v484 = vld [vmem:[%s439 + $0xb0] sm:$0xf]
      %v485 = vld [vmem:[%s439 + $0xb4] sm:$0xf]
      %v486 = vld [vmem:[%s439 + $0xb8] sm:$0xf]
      %v487 = vld [vmem:[%s439 + $0xbc] sm:$0xf]
      %v488 = vld [vmem:[%s439 + $0xc0] sm:$0xf]
      %v489 = vld [vmem:[%s439 + $0xc4] sm:$0xf]
      %v490 = vld [vmem:[%s439 + $0xc8] sm:$0xf]
      %v491 = vld [vmem:[%s439 + $0xcc] sm:$0xf]
      %v492 = vld [vmem:[%s439 + $0xd0] sm:$0xf]
      %v493 = vld [vmem:[%s439 + $0xd4] sm:$0xf]
      %v494 = vld [vmem:[%s439 + $0xd8] sm:$0xf]
      %v495 = vld [vmem:[%s439 + $0xdc] sm:$0xf]
      %v496 = vld [vmem:[%s439 + $0xe0] sm:$0xf]
      %v497 = vld [vmem:[%s439 + $0xe4] sm:$0xf]
      %v498 = vld [vmem:[%s439 + $0xe8] sm:$0xf]
      %v499 = vld [vmem:[%s439 + $0xec] sm:$0xf]
      %v500 = vld [vmem:[%s439 + $0xf0] sm:$0xf]
      %v501 = vld [vmem:[%s439 + $0xf4] sm:$0xf]
      %v502 = vld [vmem:[%s439 + $0xf8] sm:$0xf]
      %v503 = vld [vmem:[%s439 + $0xfc] sm:$0xf]
      %v504 = vld [vmem:[%s439 + $0x100] sm:$0xf]
      %v505 = vld [vmem:[%s439 + $0x104] sm:$0xf]
      %v506 = vld [vmem:[%s439 + $0x108] sm:$0xf]
      %v507 = vld [vmem:[%s439 + $0x10c] sm:$0xf]
      %v508 = vld [vmem:[%s439 + $0x110] sm:$0xf]
      %v509 = vld [vmem:[%s439 + $0x114] sm:$0xf]
      %v510 = vld [vmem:[%s439 + $0x118] sm:$0xf]
      %v511 = vld [vmem:[%s439 + $0x11c] sm:$0xf]
      %v512 = vld [vmem:[%s439 + $0x120] sm:$0xf]
      %v513 = vld [vmem:[%s439 + $0x124] sm:$0xf]
      %v514 = vld [vmem:[%s439 + $0x128] sm:$0xf]
      %v515 = vld [vmem:[%s439 + $0x12c] sm:$0xf]
      %v516 = vld [vmem:[%s439 + $0x130] sm:$0xf]
      %v517 = vld [vmem:[%s439 + $0x134] sm:$0xf]
      %v518 = vld [vmem:[%s439 + $0x138] sm:$0xf]
      %v519 = vld [vmem:[%s439 + $0x13c] sm:$0xf]
      %v520 = vld [vmem:[%s439 + $0x140] sm:$0xf]
      %v521 = vld [vmem:[%s439 + $0x144] sm:$0xf]
      %v522 = vld [vmem:[%s439 + $0x148] sm:$0xf]
      %v523 = vld [vmem:[%s439 + $0x14c] sm:$0xf]
      %v524 = vld [vmem:[%s439 + $0x150] sm:$0xf]
      %v525 = vld [vmem:[%s439 + $0x154] sm:$0xf]
      %v526 = vld [vmem:[%s439 + $0x158] sm:$0xf]
      %v527 = vld [vmem:[%s439 + $0x15c] sm:$0xf]
      %v528 = vld [vmem:[%s439 + $0x160] sm:$0xf]
      %v529 = vld [vmem:[%s439 + $0x164] sm:$0xf]
      %v530 = vld [vmem:[%s439 + $0x168] sm:$0xf]
      %v531 = vld [vmem:[%s439 + $0x16c] sm:$0xf]
      %v532 = vld [vmem:[%s439 + $0x170] sm:$0xf]
      %v533 = vld [vmem:[%s439 + $0x174] sm:$0xf]
      %v534 = vld [vmem:[%s439 + $0x178] sm:$0xf]
      %v535 = vld [vmem:[%s439 + $0x17c] sm:$0xf]
      %v536 = vld [vmem:[%s439 + $0x180] sm:$0xf]
      %v537 = vld [vmem:[%s439 + $0x184] sm:$0xf]
      %v538 = vld [vmem:[%s439 + $0x188] sm:$0xf]
      %v539 = vld [vmem:[%s439 + $0x18c] sm:$0xf]
      %v540 = vld [vmem:[%s439 + $0x190] sm:$0xf]
      %v541 = vld [vmem:[%s439 + $0x194] sm:$0xf]
      %v542 = vld [vmem:[%s439 + $0x198] sm:$0xf]
      %v543 = vld [vmem:[%s439 + $0x19c] sm:$0xf]
      %v544 = vld [vmem:[%s439 + $0x1a0] sm:$0xf]
      %v545 = vld [vmem:[%s439 + $0x1a4] sm:$0xf]
      %v546 = vld [vmem:[%s439 + $0x1a8] sm:$0xf]
      %v547 = vld [vmem:[%s439 + $0x1ac] sm:$0xf]
      %v548 = vld [vmem:[%s439 + $0x1b0] sm:$0xf]
      %v549 = vld [vmem:[%s439 + $0x1b4] sm:$0xf]
      %v550 = vld [vmem:[%s439 + $0x1b8] sm:$0xf]
      %v551 = vld [vmem:[%s439 + $0x1bc] sm:$0xf]
      %v552 = vld [vmem:[%s439 + $0x1c0] sm:$0xf]
      %v553 = vld [vmem:[%s439 + $0x1c4] sm:$0xf]
      %v554 = vld [vmem:[%s439 + $0x1c8] sm:$0xf]
      %v555 = vld [vmem:[%s439 + $0x1cc] sm:$0xf]
      %v556 = vld [vmem:[%s439 + $0x1d0] sm:$0xf]
      %v557 = vld [vmem:[%s439 + $0x1d4] sm:$0xf]
      %v558 = vld [vmem:[%s439 + $0x1d8] sm:$0xf]
      %v559 = vld [vmem:[%s439 + $0x1dc] sm:$0xf]
      %v560 = vld [vmem:[%s439 + $0x1e0] sm:$0xf]
      %v561 = vld [vmem:[%s439 + $0x1e4] sm:$0xf]
      %v562 = vld [vmem:[%s439 + $0x1e8] sm:$0xf]
      %v563 = vld [vmem:[%s439 + $0x1ec] sm:$0xf]
      %v564 = vld [vmem:[%s439 + $0x1f0] sm:$0xf]
      %v565 = vld [vmem:[%s439 + $0x1f4] sm:$0xf]
      %v566 = vld [vmem:[%s439 + $0x1f8] sm:$0xf]
      %v567 = vld [vmem:[%s439 + $0x1fc] sm:$0xf]
      %v632 = vunpack.c.l.b16 %v247
      %v633 = vunpack.c.h.b16 %v247
      %v634 = vunpack.c.l.b16 %v248
      %v635 = vunpack.c.h.b16 %v248
      %v636 = vunpack.c.l.b16 %v249
      %v637 = vunpack.c.h.b16 %v249
      %v638 = vunpack.c.l.b16 %v250
      %v639 = vunpack.c.h.b16 %v250
      %v640 = vunpack.c.l.b16 %v251
      %v641 = vunpack.c.h.b16 %v251
      %v642 = vunpack.c.l.b16 %v252
      %v643 = vunpack.c.h.b16 %v252
      %v644 = vunpack.c.l.b16 %v253
      %v645 = vunpack.c.h.b16 %v253
      %v646 = vunpack.c.l.b16 %v254
      %v647 = vunpack.c.h.b16 %v254
      %v648 = vunpack.c.l.b16 %v255
      %v649 = vunpack.c.h.b16 %v255
      %v650 = vunpack.c.l.b16 %v256
      %v651 = vunpack.c.h.b16 %v256
      %v652 = vunpack.c.l.b16 %v257
      %v653 = vunpack.c.h.b16 %v257
      %v654 = vunpack.c.l.b16 %v258
      %v655 = vunpack.c.h.b16 %v258
      %v656 = vunpack.c.l.b16 %v259
      %v657 = vunpack.c.h.b16 %v259
      %v658 = vunpack.c.l.b16 %v260
      %v659 = vunpack.c.h.b16 %v260
      %v660 = vunpack.c.l.b16 %v261
      %v661 = vunpack.c.h.b16 %v261
      %v662 = vunpack.c.l.b16 %v262
      %v663 = vunpack.c.h.b16 %v262
      %v664 = vunpack.c.l.b16 %v263
      %v665 = vunpack.c.h.b16 %v263
      %v666 = vunpack.c.l.b16 %v264
      %v667 = vunpack.c.h.b16 %v264
      %v668 = vunpack.c.l.b16 %v265
      %v669 = vunpack.c.h.b16 %v265
      %v670 = vunpack.c.l.b16 %v266
      %v671 = vunpack.c.h.b16 %v266
      %v672 = vunpack.c.l.b16 %v267
      %v673 = vunpack.c.h.b16 %v267
      %v674 = vunpack.c.l.b16 %v268
      %v675 = vunpack.c.h.b16 %v268
      %v676 = vunpack.c.l.b16 %v269
      %v677 = vunpack.c.h.b16 %v269
      %v678 = vunpack.c.l.b16 %v270
      %v679 = vunpack.c.h.b16 %v270
      %v680 = vunpack.c.l.b16 %v271
      %v681 = vunpack.c.h.b16 %v271
      %v682 = vunpack.c.l.b16 %v272
      %v683 = vunpack.c.h.b16 %v272
      %v684 = vunpack.c.l.b16 %v273
      %v685 = vunpack.c.h.b16 %v273
      %v686 = vunpack.c.l.b16 %v274
      %v687 = vunpack.c.h.b16 %v274
      %v688 = vunpack.c.l.b16 %v275
      %v689 = vunpack.c.h.b16 %v275
      %v690 = vunpack.c.l.b16 %v276
      %v691 = vunpack.c.h.b16 %v276
      %v692 = vunpack.c.l.b16 %v277
      %v693 = vunpack.c.h.b16 %v277
      %v694 = vunpack.c.l.b16 %v278
      %v695 = vunpack.c.h.b16 %v278
      %v696 = vunpack.c.l.b16 %v279
      %v697 = vunpack.c.h.b16 %v279
      %v698 = vunpack.c.l.b16 %v280
      %v699 = vunpack.c.h.b16 %v280
      %v700 = vunpack.c.l.b16 %v281
      %v701 = vunpack.c.h.b16 %v281
      %v702 = vunpack.c.l.b16 %v282
      %v703 = vunpack.c.h.b16 %v282
      %v704 = vunpack.c.l.b16 %v283
      %v705 = vunpack.c.h.b16 %v283
      %v706 = vunpack.c.l.b16 %v284
      %v707 = vunpack.c.h.b16 %v284
      %v708 = vunpack.c.l.b16 %v285
      %v709 = vunpack.c.h.b16 %v285
      %v710 = vunpack.c.l.b16 %v286
      %v711 = vunpack.c.h.b16 %v286
      %v712 = vunpack.c.l.b16 %v287
      %v713 = vunpack.c.h.b16 %v287
      %v714 = vunpack.c.l.b16 %v288
      %v715 = vunpack.c.h.b16 %v288
      %v716 = vunpack.c.l.b16 %v289
      %v717 = vunpack.c.h.b16 %v289
      %v718 = vunpack.c.l.b16 %v290
      %v719 = vunpack.c.h.b16 %v290
      %v720 = vunpack.c.l.b16 %v291
      %v721 = vunpack.c.h.b16 %v291
      %v722 = vunpack.c.l.b16 %v292
      %v723 = vunpack.c.h.b16 %v292
      %v724 = vunpack.c.l.b16 %v293
      %v725 = vunpack.c.h.b16 %v293
      %v726 = vunpack.c.l.b16 %v294
      %v727 = vunpack.c.h.b16 %v294
      %v728 = vunpack.c.l.b16 %v295
      %v729 = vunpack.c.h.b16 %v295
      %v730 = vunpack.c.l.b16 %v296
      %v731 = vunpack.c.h.b16 %v296
      %v732 = vunpack.c.l.b16 %v297
      %v733 = vunpack.c.h.b16 %v297
      %v734 = vunpack.c.l.b16 %v298
      %v735 = vunpack.c.h.b16 %v298
      %v736 = vunpack.c.l.b16 %v299
      %v737 = vunpack.c.h.b16 %v299
      %v738 = vunpack.c.l.b16 %v300
      %v739 = vunpack.c.h.b16 %v300
      %v740 = vunpack.c.l.b16 %v301
      %v741 = vunpack.c.h.b16 %v301
      %v742 = vunpack.c.l.b16 %v302
      %v743 = vunpack.c.h.b16 %v302
      %v744 = vunpack.c.l.b16 %v303
      %v745 = vunpack.c.h.b16 %v303
      %v746 = vunpack.c.l.b16 %v304
      %v747 = vunpack.c.h.b16 %v304
      %v748 = vunpack.c.l.b16 %v305
      %v749 = vunpack.c.h.b16 %v305
      %v750 = vunpack.c.l.b16 %v306
      %v751 = vunpack.c.h.b16 %v306
      %v752 = vunpack.c.l.b16 %v307
      %v753 = vunpack.c.h.b16 %v307
      %v754 = vunpack.c.l.b16 %v308
      %v755 = vunpack.c.h.b16 %v308
      %v756 = vunpack.c.l.b16 %v309
      %v757 = vunpack.c.h.b16 %v309
      %v758 = vunpack.c.l.b16 %v310
      %v759 = vunpack.c.h.b16 %v310
      %v760 = vpack.c.b16 %v640, %v632
      %v761 = vpack.c.b16 %v641, %v633
      %v762 = vpack.c.b16 %v642, %v634
      %v763 = vpack.c.b16 %v643, %v635
      %v764 = vpack.c.b16 %v644, %v636
      %v765 = vpack.c.b16 %v645, %v637
      %v766 = vpack.c.b16 %v646, %v638
      %v767 = vpack.c.b16 %v647, %v639
      %v768 = vpack.c.b16 %v656, %v648
      %v769 = vpack.c.b16 %v657, %v649
      %v770 = vpack.c.b16 %v658, %v650
      %v771 = vpack.c.b16 %v659, %v651
      %v772 = vpack.c.b16 %v660, %v652
      %v773 = vpack.c.b16 %v661, %v653
      %v774 = vpack.c.b16 %v662, %v654
      %v775 = vpack.c.b16 %v663, %v655
      %v776 = vpack.c.b16 %v672, %v664
      %v777 = vpack.c.b16 %v673, %v665
      %v778 = vpack.c.b16 %v674, %v666
      %v779 = vpack.c.b16 %v675, %v667
      %v780 = vpack.c.b16 %v676, %v668
      %v781 = vpack.c.b16 %v677, %v669
      %v782 = vpack.c.b16 %v678, %v670
      %v783 = vpack.c.b16 %v679, %v671
      %v784 = vpack.c.b16 %v688, %v680
      %v785 = vpack.c.b16 %v689, %v681
      %v786 = vpack.c.b16 %v690, %v682
      %v787 = vpack.c.b16 %v691, %v683
      %v788 = vpack.c.b16 %v692, %v684
      %v789 = vpack.c.b16 %v693, %v685
      %v790 = vpack.c.b16 %v694, %v686
      %v791 = vpack.c.b16 %v695, %v687
      %v792 = vpack.c.b16 %v704, %v696
      %v793 = vpack.c.b16 %v705, %v697
      %v794 = vpack.c.b16 %v706, %v698
      %v795 = vpack.c.b16 %v707, %v699
      %v796 = vpack.c.b16 %v708, %v700
      %v797 = vpack.c.b16 %v709, %v701
      %v798 = vpack.c.b16 %v710, %v702
      %v799 = vpack.c.b16 %v711, %v703
      %v800 = vpack.c.b16 %v720, %v712
      %v801 = vpack.c.b16 %v721, %v713
      %v802 = vpack.c.b16 %v722, %v714
      %v803 = vpack.c.b16 %v723, %v715
      %v804 = vpack.c.b16 %v724, %v716
      %v805 = vpack.c.b16 %v725, %v717
      %v806 = vpack.c.b16 %v726, %v718
      %v807 = vpack.c.b16 %v727, %v719
      %v808 = vpack.c.b16 %v736, %v728
      %v809 = vpack.c.b16 %v737, %v729
      %v810 = vpack.c.b16 %v738, %v730
      %v811 = vpack.c.b16 %v739, %v731
      %v812 = vpack.c.b16 %v740, %v732
      %v813 = vpack.c.b16 %v741, %v733
      %v814 = vpack.c.b16 %v742, %v734
      %v815 = vpack.c.b16 %v743, %v735
      %v816 = vpack.c.b16 %v752, %v744
      %v817 = vpack.c.b16 %v753, %v745
      %v818 = vpack.c.b16 %v754, %v746
      %v819 = vpack.c.b16 %v755, %v747
      %v820 = vpack.c.b16 %v756, %v748
      %v821 = vpack.c.b16 %v757, %v749
      %v822 = vpack.c.b16 %v758, %v750
      %v823 = vpack.c.b16 %v759, %v751
      %v1016 = vunpack.c.l.b16 %v440
      %v1017 = vunpack.c.l.b16 %v441
      %v1018 = vunpack.c.l.b16 %v442
      %v1019 = vunpack.c.l.b16 %v443
      %v1020 = vunpack.c.l.b16 %v444
      %v1021 = vunpack.c.l.b16 %v445
      %v1022 = vunpack.c.l.b16 %v446
      %v1023 = vunpack.c.l.b16 %v447
      %v1024 = vunpack.c.l.b16 %v448
      %v1025 = vunpack.c.l.b16 %v449
      %v1026 = vunpack.c.l.b16 %v450
      %v1027 = vunpack.c.l.b16 %v451
      %v1028 = vunpack.c.l.b16 %v452
      %v1029 = vunpack.c.l.b16 %v453
      %v1030 = vunpack.c.l.b16 %v454
      %v1031 = vunpack.c.l.b16 %v455
      %v1032 = vunpack.c.l.b16 %v456
      %v1033 = vunpack.c.l.b16 %v457
      %v1034 = vunpack.c.l.b16 %v458
      %v1035 = vunpack.c.l.b16 %v459
      %v1036 = vunpack.c.l.b16 %v460
      %v1037 = vunpack.c.l.b16 %v461
      %v1038 = vunpack.c.l.b16 %v462
      %v1039 = vunpack.c.l.b16 %v463
      %v1040 = vunpack.c.l.b16 %v464
      %v1041 = vunpack.c.l.b16 %v465
      %v1042 = vunpack.c.l.b16 %v466
      %v1043 = vunpack.c.l.b16 %v467
      %v1044 = vunpack.c.l.b16 %v468
      %v1045 = vunpack.c.l.b16 %v469
      %v1046 = vunpack.c.l.b16 %v470
      %v1047 = vunpack.c.l.b16 %v471
      %v1048 = vunpack.c.l.b16 %v472
      %v1049 = vunpack.c.l.b16 %v473
      %v1050 = vunpack.c.l.b16 %v474
      %v1051 = vunpack.c.l.b16 %v475
      %v1052 = vunpack.c.l.b16 %v476
      %v1053 = vunpack.c.l.b16 %v477
      %v1054 = vunpack.c.l.b16 %v478
      %v1055 = vunpack.c.l.b16 %v479
      %v1056 = vunpack.c.l.b16 %v480
      %v1057 = vunpack.c.l.b16 %v481
      %v1058 = vunpack.c.l.b16 %v482
      %v1059 = vunpack.c.l.b16 %v483
      %v1060 = vunpack.c.l.b16 %v484
      %v1061 = vunpack.c.l.b16 %v485
      %v1062 = vunpack.c.l.b16 %v486
      %v1063 = vunpack.c.l.b16 %v487
      %v1064 = vunpack.c.l.b16 %v488
      %v1065 = vunpack.c.l.b16 %v489
      %v1066 = vunpack.c.l.b16 %v490
      %v1067 = vunpack.c.l.b16 %v491
      %v1068 = vunpack.c.l.b16 %v492
      %v1069 = vunpack.c.l.b16 %v493
      %v1070 = vunpack.c.l.b16 %v494
      %v1071 = vunpack.c.l.b16 %v495
      %v1072 = vunpack.c.l.b16 %v496
      %v1073 = vunpack.c.l.b16 %v497
      %v1074 = vunpack.c.l.b16 %v498
      %v1075 = vunpack.c.l.b16 %v499
      %v1076 = vunpack.c.l.b16 %v500
      %v1077 = vunpack.c.l.b16 %v501
      %v1078 = vunpack.c.l.b16 %v502
      %v1079 = vunpack.c.l.b16 %v503
      %v1080 = vunpack.c.l.b16 %v504
      %v1081 = vunpack.c.l.b16 %v505
      %v1082 = vunpack.c.l.b16 %v506
      %v1083 = vunpack.c.l.b16 %v507
      %v1084 = vunpack.c.l.b16 %v508
      %v1085 = vunpack.c.l.b16 %v509
      %v1086 = vunpack.c.l.b16 %v510
      %v1087 = vunpack.c.l.b16 %v511
      %v1088 = vunpack.c.l.b16 %v512
      %v1089 = vunpack.c.l.b16 %v513
      %v1090 = vunpack.c.l.b16 %v514
      %v1091 = vunpack.c.l.b16 %v515
      %v1092 = vunpack.c.l.b16 %v516
      %v1093 = vunpack.c.l.b16 %v517
      %v1094 = vunpack.c.l.b16 %v518
      %v1095 = vunpack.c.l.b16 %v519
      %v1096 = vunpack.c.l.b16 %v520
      %v1097 = vunpack.c.l.b16 %v521
      %v1098 = vunpack.c.l.b16 %v522
      %v1099 = vunpack.c.l.b16 %v523
      %v1100 = vunpack.c.l.b16 %v524
      %v1101 = vunpack.c.l.b16 %v525
      %v1102 = vunpack.c.l.b16 %v526
      %v1103 = vunpack.c.l.b16 %v527
      %v1104 = vunpack.c.l.b16 %v528
      %v1105 = vunpack.c.l.b16 %v529
      %v1106 = vunpack.c.l.b16 %v530
      %v1107 = vunpack.c.l.b16 %v531
      %v1108 = vunpack.c.l.b16 %v532
      %v1109 = vunpack.c.l.b16 %v533
      %v1110 = vunpack.c.l.b16 %v534
      %v1111 = vunpack.c.l.b16 %v535
      %v1112 = vunpack.c.l.b16 %v536
      %v1113 = vunpack.c.l.b16 %v537
      %v1114 = vunpack.c.l.b16 %v538
      %v1115 = vunpack.c.l.b16 %v539
      %v1116 = vunpack.c.l.b16 %v540
      %v1117 = vunpack.c.l.b16 %v541
      %v1118 = vunpack.c.l.b16 %v542
      %v1119 = vunpack.c.l.b16 %v543
      %v1120 = vunpack.c.l.b16 %v544
      %v1121 = vunpack.c.l.b16 %v545
      %v1122 = vunpack.c.l.b16 %v546
      %v1123 = vunpack.c.l.b16 %v547
      %v1124 = vunpack.c.l.b16 %v548
      %v1125 = vunpack.c.l.b16 %v549
      %v1126 = vunpack.c.l.b16 %v550
      %v1127 = vunpack.c.l.b16 %v551
      %v1128 = vunpack.c.l.b16 %v552
      %v1129 = vunpack.c.l.b16 %v553
      %v1130 = vunpack.c.l.b16 %v554
      %v1131 = vunpack.c.l.b16 %v555
      %v1132 = vunpack.c.l.b16 %v556
      %v1133 = vunpack.c.l.b16 %v557
      %v1134 = vunpack.c.l.b16 %v558
      %v1135 = vunpack.c.l.b16 %v559
      %v1136 = vunpack.c.l.b16 %v560
      %v1137 = vunpack.c.l.b16 %v561
      %v1138 = vunpack.c.l.b16 %v562
      %v1139 = vunpack.c.l.b16 %v563
      %v1140 = vunpack.c.l.b16 %v564
      %v1141 = vunpack.c.l.b16 %v565
      %v1142 = vunpack.c.l.b16 %v566
      %v1143 = vunpack.c.l.b16 %v567
      %v1144 = vpack.c.b16 %v1017, %v1016
      %v1145 = vpack.c.b16 %v1019, %v1018
      %v1146 = vpack.c.b16 %v1021, %v1020
      %v1147 = vpack.c.b16 %v1023, %v1022
      %v1148 = vpack.c.b16 %v1025, %v1024
      %v1149 = vpack.c.b16 %v1027, %v1026
      %v1150 = vpack.c.b16 %v1029, %v1028
      %v1151 = vpack.c.b16 %v1031, %v1030
      %v1152 = vpack.c.b16 %v1033, %v1032
      %v1153 = vpack.c.b16 %v1035, %v1034
      %v1154 = vpack.c.b16 %v1037, %v1036
      %v1155 = vpack.c.b16 %v1039, %v1038
      %v1156 = vpack.c.b16 %v1041, %v1040
      %v1157 = vpack.c.b16 %v1043, %v1042
      %v1158 = vpack.c.b16 %v1045, %v1044
      %v1159 = vpack.c.b16 %v1047, %v1046
      %v1160 = vpack.c.b16 %v1049, %v1048
      %v1161 = vpack.c.b16 %v1051, %v1050
      %v1162 = vpack.c.b16 %v1053, %v1052
      %v1163 = vpack.c.b16 %v1055, %v1054
      %v1164 = vpack.c.b16 %v1057, %v1056
      %v1165 = vpack.c.b16 %v1059, %v1058
      %v1166 = vpack.c.b16 %v1061, %v1060
      %v1167 = vpack.c.b16 %v1063, %v1062
      %v1168 = vpack.c.b16 %v1065, %v1064
      %v1169 = vpack.c.b16 %v1067, %v1066
      %v1170 = vpack.c.b16 %v1069, %v1068
      %v1171 = vpack.c.b16 %v1071, %v1070
      %v1172 = vpack.c.b16 %v1073, %v1072
      %v1173 = vpack.c.b16 %v1075, %v1074
      %v1174 = vpack.c.b16 %v1077, %v1076
      %v1175 = vpack.c.b16 %v1079, %v1078
      %v1176 = vpack.c.b16 %v1081, %v1080
      %v1177 = vpack.c.b16 %v1083, %v1082
      %v1178 = vpack.c.b16 %v1085, %v1084
      %v1179 = vpack.c.b16 %v1087, %v1086
      %v1180 = vpack.c.b16 %v1089, %v1088
      %v1181 = vpack.c.b16 %v1091, %v1090
      %v1182 = vpack.c.b16 %v1093, %v1092
      %v1183 = vpack.c.b16 %v1095, %v1094
      %v1184 = vpack.c.b16 %v1097, %v1096
      %v1185 = vpack.c.b16 %v1099, %v1098
      %v1186 = vpack.c.b16 %v1101, %v1100
      %v1187 = vpack.c.b16 %v1103, %v1102
      %v1188 = vpack.c.b16 %v1105, %v1104
      %v1189 = vpack.c.b16 %v1107, %v1106
      %v1190 = vpack.c.b16 %v1109, %v1108
      %v1191 = vpack.c.b16 %v1111, %v1110
      %v1192 = vpack.c.b16 %v1113, %v1112
      %v1193 = vpack.c.b16 %v1115, %v1114
      %v1194 = vpack.c.b16 %v1117, %v1116
      %v1195 = vpack.c.b16 %v1119, %v1118
      %v1196 = vpack.c.b16 %v1121, %v1120
      %v1197 = vpack.c.b16 %v1123, %v1122
      %v1198 = vpack.c.b16 %v1125, %v1124
      %v1199 = vpack.c.b16 %v1127, %v1126
      %v1200 = vpack.c.b16 %v1129, %v1128
      %v1201 = vpack.c.b16 %v1131, %v1130
      %v1202 = vpack.c.b16 %v1133, %v1132
      %v1203 = vpack.c.b16 %v1135, %v1134
      %v1204 = vpack.c.b16 %v1137, %v1136
      %v1205 = vpack.c.b16 %v1139, %v1138
      %v1206 = vpack.c.b16 %v1141, %v1140
      %v1207 = vpack.c.b16 %v1143, %v1142
      %1272 = vmatprep.subr.bf16.mxu0 0
      %1273 = vmatpush1.bf16.msra.mxu0 %v1151
      %1274 = vmatprep.subr.bf16.mxu0 0
      %1275 = vmatpush1.bf16.msra.mxu0 %v1150
      %1276 = vmatprep.subr.bf16.mxu0 0
      %1277 = vmatpush1.bf16.msra.mxu0 %v1149
      %1278 = vmatprep.subr.bf16.mxu0 0
      %1279 = vmatpush1.bf16.msra.mxu0 %v1148
      %1280 = vmatprep.subr.bf16.mxu0 0
      %1281 = vmatpush1.bf16.msra.mxu0 %v1147
      %1282 = vmatprep.subr.bf16.mxu0 0
      %1283 = vmatpush1.bf16.msra.mxu0 %v1146
      %1284 = vmatprep.subr.bf16.mxu0 0
      %1285 = vmatpush1.bf16.msra.mxu0 %v1145
      %1286 = vmatprep.subr.bf16.mxu0 0
      %1287 = vmatpush1.bf16.msra.mxu0 %v1144
      %1288 = vmatprep.subr.bf16.mxu0 0
      %1289 = vmatpush2.bf16.msra.mxu0 %v1159
      %1290 = vmatprep.subr.bf16.mxu0 0
      %1291 = vmatpush2.bf16.msra.mxu0 %v1158
      %1292 = vmatprep.subr.bf16.mxu0 0
      %1293 = vmatpush2.bf16.msra.mxu0 %v1157
      %1294 = vmatprep.subr.bf16.mxu0 0
      %1295 = vmatpush2.bf16.msra.mxu0 %v1156
      %1296 = vmatprep.subr.bf16.mxu0 0
      %1297 = vmatpush2.bf16.msra.mxu0 %v1155
      %1298 = vmatprep.subr.bf16.mxu0 0
      %1299 = vmatpush2.bf16.msra.mxu0 %v1154
      %1300 = vmatprep.subr.bf16.mxu0 0
      %1301 = vmatpush2.bf16.msra.mxu0 %v1153
      %1302 = vmatprep.subr.bf16.mxu0 0
      %1303 = vmatpush2.bf16.msra.mxu0 %v1152
      %1304 = vmatprep.mubr.bf16.mxu0 %v761
      %1305 = vmatmul.mubr.bf16.gmra.mxu0 %v760
      %v1306 = vpop.f32.mrf.mxu0
      %v1307 = vadd.f32 0.0, %v1306
      %v1308 = vpop.f32.mrf.mxu0
      %v1309 = vpop.f32.mrf.mxu0
      %v1310 = vadd.f32 0.0, %v1309
      %v1311 = vpop.f32.mrf.mxu0
      %1312 = vmatprep.mubr.bf16.mxu0 %v769
      %1313 = vmatmul.mubr.bf16.gmra.mxu0 %v768
      %v1314 = vpop.f32.mrf.mxu0
      %v1315 = vadd.f32 0.0, %v1314
      %v1316 = vpop.f32.mrf.mxu0
      %v1317 = vpop.f32.mrf.mxu0
      %v1318 = vadd.f32 0.0, %v1317
      %v1319 = vpop.f32.mrf.mxu0
      %1320 = vmatprep.mubr.bf16.mxu0 %v777
      %1321 = vmatmul.mubr.bf16.gmra.mxu0 %v776
      %v1322 = vpop.f32.mrf.mxu0
      %v1323 = vadd.f32 0.0, %v1322
      %v1324 = vpop.f32.mrf.mxu0
      %v1325 = vpop.f32.mrf.mxu0
      %v1326 = vadd.f32 0.0, %v1325
      %v1327 = vpop.f32.mrf.mxu0
      %1328 = vmatprep.mubr.bf16.mxu0 %v785
      %1329 = vmatmul.mubr.bf16.gmra.mxu0 %v784
      %v1330 = vpop.f32.mrf.mxu0
      %v1331 = vadd.f32 0.0, %v1330
      %v1332 = vpop.f32.mrf.mxu0
      %v1333 = vpop.f32.mrf.mxu0
      %v1334 = vadd.f32 0.0, %v1333
      %v1335 = vpop.f32.mrf.mxu0
      %1336 = vmatprep.mubr.bf16.mxu0 %v793
      %1337 = vmatmul.mubr.bf16.gmra.mxu0 %v792
      %v1338 = vpop.f32.mrf.mxu0
      %v1339 = vadd.f32 0.0, %v1338
      %v1340 = vpop.f32.mrf.mxu0
      %v1341 = vpop.f32.mrf.mxu0
      %v1342 = vadd.f32 0.0, %v1341
      %v1343 = vpop.f32.mrf.mxu0
      %1344 = vmatprep.mubr.bf16.mxu0 %v801
      %1345 = vmatmul.mubr.bf16.gmra.mxu0 %v800
      %v1346 = vpop.f32.mrf.mxu0
      %v1347 = vadd.f32 0.0, %v1346
      %v1348 = vpop.f32.mrf.mxu0
      %v1349 = vpop.f32.mrf.mxu0
      %v1350 = vadd.f32 0.0, %v1349
      %v1351 = vpop.f32.mrf.mxu0
      %1352 = vmatprep.mubr.bf16.mxu0 %v809
      %1353 = vmatmul.mubr.bf16.gmra.mxu0 %v808
      %v1354 = vpop.f32.mrf.mxu0
      %v1355 = vadd.f32 0.0, %v1354
      %v1356 = vpop.f32.mrf.mxu0
      %v1357 = vpop.f32.mrf.mxu0
      %v1358 = vadd.f32 0.0, %v1357
      %v1359 = vpop.f32.mrf.mxu0
      %1360 = vmatprep.mubr.bf16.mxu0 %v817
      %1361 = vmatmul.mubr.bf16.gmra.mxu0 %v816
      %v1362 = vpop.f32.mrf.mxu0
      %v1363 = vadd.f32 0.0, %v1362
      %v1364 = vpop.f32.mrf.mxu0
      %v1365 = vpop.f32.mrf.mxu0
      %v1366 = vadd.f32 0.0, %v1365
      %v1367 = vpop.f32.mrf.mxu0
      %1368 = vdwg.mxu0
      %1369 = vmatprep.subr.bf16.mxu0 0
      %1370 = vmatpush1.bf16.msra.mxu0 %v1167
      %1371 = vmatprep.subr.bf16.mxu0 0
      %1372 = vmatpush1.bf16.msra.mxu0 %v1166
      %1373 = vmatprep.subr.bf16.mxu0 0
      %1374 = vmatpush1.bf16.msra.mxu0 %v1165
      %1375 = vmatprep.subr.bf16.mxu0 0
      %1376 = vmatpush1.bf16.msra.mxu0 %v1164
      %1377 = vmatprep.subr.bf16.mxu0 0
      %1378 = vmatpush1.bf16.msra.mxu0 %v1163
      %1379 = vmatprep.subr.bf16.mxu0 0
      %1380 = vmatpush1.bf16.msra.mxu0 %v1162
      %1381 = vmatprep.subr.bf16.mxu0 0
      %1382 = vmatpush1.bf16.msra.mxu0 %v1161
      %1383 = vmatprep.subr.bf16.mxu0 0
      %1384 = vmatpush1.bf16.msra.mxu0 %v1160
      %1385 = vmatprep.subr.bf16.mxu0 0
      %1386 = vmatpush2.bf16.msra.mxu0 %v1175
      %1387 = vmatprep.subr.bf16.mxu0 0
      %1388 = vmatpush2.bf16.msra.mxu0 %v1174
      %1389 = vmatprep.subr.bf16.mxu0 0
      %1390 = vmatpush2.bf16.msra.mxu0 %v1173
      %1391 = vmatprep.subr.bf16.mxu0 0
      %1392 = vmatpush2.bf16.msra.mxu0 %v1172
      %1393 = vmatprep.subr.bf16.mxu0 0
      %1394 = vmatpush2.bf16.msra.mxu0 %v1171
      %1395 = vmatprep.subr.bf16.mxu0 0
      %1396 = vmatpush2.bf16.msra.mxu0 %v1170
      %1397 = vmatprep.subr.bf16.mxu0 0
      %1398 = vmatpush2.bf16.msra.mxu0 %v1169
      %1399 = vmatprep.subr.bf16.mxu0 0
      %1400 = vmatpush2.bf16.msra.mxu0 %v1168
      %1401 = vmatprep.mubr.bf16.mxu0 %v763
      %1402 = vmatmul.mubr.bf16.gmra.mxu0 %v762
      %v1403 = vpop.f32.mrf.mxu0
      %v1404 = vadd.f32 %v1307, %v1403
      %v1405 = vpop.f32.mrf.mxu0
      %v1406 = vpop.f32.mrf.mxu0
      %v1407 = vadd.f32 %v1310, %v1406
      %v1408 = vpop.f32.mrf.mxu0
      %1409 = vmatprep.mubr.bf16.mxu0 %v771
      %1410 = vmatmul.mubr.bf16.gmra.mxu0 %v770
      %v1411 = vpop.f32.mrf.mxu0
      %v1412 = vadd.f32 %v1315, %v1411
      %v1413 = vpop.f32.mrf.mxu0
      %v1414 = vpop.f32.mrf.mxu0
      %v1415 = vadd.f32 %v1318, %v1414
      %v1416 = vpop.f32.mrf.mxu0
      %1417 = vmatprep.mubr.bf16.mxu0 %v779
      %1418 = vmatmul.mubr.bf16.gmra.mxu0 %v778
      %v1419 = vpop.f32.mrf.mxu0
      %v1420 = vadd.f32 %v1323, %v1419
      %v1421 = vpop.f32.mrf.mxu0
      %v1422 = vpop.f32.mrf.mxu0
      %v1423 = vadd.f32 %v1326, %v1422
      %v1424 = vpop.f32.mrf.mxu0
      %1425 = vmatprep.mubr.bf16.mxu0 %v787
      %1426 = vmatmul.mubr.bf16.gmra.mxu0 %v786
      %v1427 = vpop.f32.mrf.mxu0
      %v1428 = vadd.f32 %v1331, %v1427
      %v1429 = vpop.f32.mrf.mxu0
      %v1430 = vpop.f32.mrf.mxu0
      %v1431 = vadd.f32 %v1334, %v1430
      %v1432 = vpop.f32.mrf.mxu0
      %1433 = vmatprep.mubr.bf16.mxu0 %v795
      %1434 = vmatmul.mubr.bf16.gmra.mxu0 %v794
      %v1435 = vpop.f32.mrf.mxu0
      %v1436 = vadd.f32 %v1339, %v1435
      %v1437 = vpop.f32.mrf.mxu0
      %v1438 = vpop.f32.mrf.mxu0
      %v1439 = vadd.f32 %v1342, %v1438
      %v1440 = vpop.f32.mrf.mxu0
      %1441 = vmatprep.mubr.bf16.mxu0 %v803
      %1442 = vmatmul.mubr.bf16.gmra.mxu0 %v802
      %v1443 = vpop.f32.mrf.mxu0
      %v1444 = vadd.f32 %v1347, %v1443
      %v1445 = vpop.f32.mrf.mxu0
      %v1446 = vpop.f32.mrf.mxu0
      %v1447 = vadd.f32 %v1350, %v1446
      %v1448 = vpop.f32.mrf.mxu0
      %1449 = vmatprep.mubr.bf16.mxu0 %v811
      %1450 = vmatmul.mubr.bf16.gmra.mxu0 %v810
      %v1451 = vpop.f32.mrf.mxu0
      %v1452 = vadd.f32 %v1355, %v1451
      %v1453 = vpop.f32.mrf.mxu0
      %v1454 = vpop.f32.mrf.mxu0
      %v1455 = vadd.f32 %v1358, %v1454
      %v1456 = vpop.f32.mrf.mxu0
      %1457 = vmatprep.mubr.bf16.mxu0 %v819
      %1458 = vmatmul.mubr.bf16.gmra.mxu0 %v818
      %v1459 = vpop.f32.mrf.mxu0
      %v1460 = vadd.f32 %v1363, %v1459
      %v1461 = vpop.f32.mrf.mxu0
      %v1462 = vpop.f32.mrf.mxu0
      %v1463 = vadd.f32 %v1366, %v1462
      %v1464 = vpop.f32.mrf.mxu0
      %1465 = vdwg.mxu0
      %1466 = vmatprep.subr.bf16.mxu0 0
      %1467 = vmatpush1.bf16.msra.mxu0 %v1183
      %1468 = vmatprep.subr.bf16.mxu0 0
      %1469 = vmatpush1.bf16.msra.mxu0 %v1182
      %1470 = vmatprep.subr.bf16.mxu0 0
      %1471 = vmatpush1.bf16.msra.mxu0 %v1181
      %1472 = vmatprep.subr.bf16.mxu0 0
      %1473 = vmatpush1.bf16.msra.mxu0 %v1180
      %1474 = vmatprep.subr.bf16.mxu0 0
      %1475 = vmatpush1.bf16.msra.mxu0 %v1179
      %1476 = vmatprep.subr.bf16.mxu0 0
      %1477 = vmatpush1.bf16.msra.mxu0 %v1178
      %1478 = vmatprep.subr.bf16.mxu0 0
      %1479 = vmatpush1.bf16.msra.mxu0 %v1177
      %1480 = vmatprep.subr.bf16.mxu0 0
      %1481 = vmatpush1.bf16.msra.mxu0 %v1176
      %1482 = vmatprep.subr.bf16.mxu0 0
      %1483 = vmatpush2.bf16.msra.mxu0 %v1191
      %1484 = vmatprep.subr.bf16.mxu0 0
      %1485 = vmatpush2.bf16.msra.mxu0 %v1190
      %1486 = vmatprep.subr.bf16.mxu0 0
      %1487 = vmatpush2.bf16.msra.mxu0 %v1189
      %1488 = vmatprep.subr.bf16.mxu0 0
      %1489 = vmatpush2.bf16.msra.mxu0 %v1188
      %1490 = vmatprep.subr.bf16.mxu0 0
      %1491 = vmatpush2.bf16.msra.mxu0 %v1187
      %1492 = vmatprep.subr.bf16.mxu0 0
      %1493 = vmatpush2.bf16.msra.mxu0 %v1186
      %1494 = vmatprep.subr.bf16.mxu0 0
      %1495 = vmatpush2.bf16.msra.mxu0 %v1185
      %1496 = vmatprep.subr.bf16.mxu0 0
      %1497 = vmatpush2.bf16.msra.mxu0 %v1184
      %1498 = vmatprep.mubr.bf16.mxu0 %v765
      %1499 = vmatmul.mubr.bf16.gmra.mxu0 %v764
      %v1500 = vpop.f32.mrf.mxu0
      %v1501 = vadd.f32 %v1404, %v1500
      %v1502 = vpop.f32.mrf.mxu0
      %v1503 = vpop.f32.mrf.mxu0
      %v1504 = vadd.f32 %v1407, %v1503
      %v1505 = vpop.f32.mrf.mxu0
      %1506 = vmatprep.mubr.bf16.mxu0 %v773
      %1507 = vmatmul.mubr.bf16.gmra.mxu0 %v772
      %v1508 = vpop.f32.mrf.mxu0
      %v1509 = vadd.f32 %v1412, %v1508
      %v1510 = vpop.f32.mrf.mxu0
      %v1511 = vpop.f32.mrf.mxu0
      %v1512 = vadd.f32 %v1415, %v1511
      %v1513 = vpop.f32.mrf.mxu0
      %1514 = vmatprep.mubr.bf16.mxu0 %v781
      %1515 = vmatmul.mubr.bf16.gmra.mxu0 %v780
      %v1516 = vpop.f32.mrf.mxu0
      %v1517 = vadd.f32 %v1420, %v1516
      %v1518 = vpop.f32.mrf.mxu0
      %v1519 = vpop.f32.mrf.mxu0
      %v1520 = vadd.f32 %v1423, %v1519
      %v1521 = vpop.f32.mrf.mxu0
      %1522 = vmatprep.mubr.bf16.mxu0 %v789
      %1523 = vmatmul.mubr.bf16.gmra.mxu0 %v788
      %v1524 = vpop.f32.mrf.mxu0
      %v1525 = vadd.f32 %v1428, %v1524
      %v1526 = vpop.f32.mrf.mxu0
      %v1527 = vpop.f32.mrf.mxu0
      %v1528 = vadd.f32 %v1431, %v1527
      %v1529 = vpop.f32.mrf.mxu0
      %1530 = vmatprep.mubr.bf16.mxu0 %v797
      %1531 = vmatmul.mubr.bf16.gmra.mxu0 %v796
      %v1532 = vpop.f32.mrf.mxu0
      %v1533 = vadd.f32 %v1436, %v1532
      %v1534 = vpop.f32.mrf.mxu0
      %v1535 = vpop.f32.mrf.mxu0
      %v1536 = vadd.f32 %v1439, %v1535
      %v1537 = vpop.f32.mrf.mxu0
      %1538 = vmatprep.mubr.bf16.mxu0 %v805
      %1539 = vmatmul.mubr.bf16.gmra.mxu0 %v804
      %v1540 = vpop.f32.mrf.mxu0
      %v1541 = vadd.f32 %v1444, %v1540
      %v1542 = vpop.f32.mrf.mxu0
      %v1543 = vpop.f32.mrf.mxu0
      %v1544 = vadd.f32 %v1447, %v1543
      %v1545 = vpop.f32.mrf.mxu0
      %1546 = vmatprep.mubr.bf16.mxu0 %v813
      %1547 = vmatmul.mubr.bf16.gmra.mxu0 %v812
      %v1548 = vpop.f32.mrf.mxu0
      %v1549 = vadd.f32 %v1452, %v1548
      %v1550 = vpop.f32.mrf.mxu0
      %v1551 = vpop.f32.mrf.mxu0
      %v1552 = vadd.f32 %v1455, %v1551
      %v1553 = vpop.f32.mrf.mxu0
      %1554 = vmatprep.mubr.bf16.mxu0 %v821
      %1555 = vmatmul.mubr.bf16.gmra.mxu0 %v820
      %v1556 = vpop.f32.mrf.mxu0
      %v1557 = vadd.f32 %v1460, %v1556
      %v1558 = vpop.f32.mrf.mxu0
      %v1559 = vpop.f32.mrf.mxu0
      %v1560 = vadd.f32 %v1463, %v1559
      %v1561 = vpop.f32.mrf.mxu0
      %1562 = vdwg.mxu0
      %1563 = vmatprep.subr.bf16.mxu0 0
      %1564 = vmatpush1.bf16.msra.mxu0 %v1199
      %1565 = vmatprep.subr.bf16.mxu0 0
      %1566 = vmatpush1.bf16.msra.mxu0 %v1198
      %1567 = vmatprep.subr.bf16.mxu0 0
      %1568 = vmatpush1.bf16.msra.mxu0 %v1197
      %1569 = vmatprep.subr.bf16.mxu0 0
      %1570 = vmatpush1.bf16.msra.mxu0 %v1196
      %1571 = vmatprep.subr.bf16.mxu0 0
      %1572 = vmatpush1.bf16.msra.mxu0 %v1195
      %1573 = vmatprep.subr.bf16.mxu0 0
      %1574 = vmatpush1.bf16.msra.mxu0 %v1194
      %1575 = vmatprep.subr.bf16.mxu0 0
      %1576 = vmatpush1.bf16.msra.mxu0 %v1193
      %1577 = vmatprep.subr.bf16.mxu0 0
      %1578 = vmatpush1.bf16.msra.mxu0 %v1192
      %1579 = vmatprep.subr.bf16.mxu0 0
      %1580 = vmatpush2.bf16.msra.mxu0 %v1207
      %1581 = vmatprep.subr.bf16.mxu0 0
      %1582 = vmatpush2.bf16.msra.mxu0 %v1206
      %1583 = vmatprep.subr.bf16.mxu0 0
      %1584 = vmatpush2.bf16.msra.mxu0 %v1205
      %1585 = vmatprep.subr.bf16.mxu0 0
      %1586 = vmatpush2.bf16.msra.mxu0 %v1204
      %1587 = vmatprep.subr.bf16.mxu0 0
      %1588 = vmatpush2.bf16.msra.mxu0 %v1203
      %1589 = vmatprep.subr.bf16.mxu0 0
      %1590 = vmatpush2.bf16.msra.mxu0 %v1202
      %1591 = vmatprep.subr.bf16.mxu0 0
      %1592 = vmatpush2.bf16.msra.mxu0 %v1201
      %1593 = vmatprep.subr.bf16.mxu0 0
      %1594 = vmatpush2.bf16.msra.mxu0 %v1200
      %1595 = vmatprep.mubr.bf16.mxu0 %v767
      %1596 = vmatmul.mubr.bf16.gmra.mxu0 %v766
      %v1597 = vpop.f32.mrf.mxu0
      %v1598 = vadd.f32 %v1501, %v1597
      %v1599 = vpop.f32.mrf.mxu0
      %v1600 = vpop.f32.mrf.mxu0
      %v1601 = vadd.f32 %v1504, %v1600
      %v1602 = vpop.f32.mrf.mxu0
      %1603 = vmatprep.mubr.bf16.mxu0 %v775
      %1604 = vmatmul.mubr.bf16.gmra.mxu0 %v774
      %v1605 = vpop.f32.mrf.mxu0
      %v1606 = vadd.f32 %v1509, %v1605
      %v1607 = vpop.f32.mrf.mxu0
      %v1608 = vpop.f32.mrf.mxu0
      %v1609 = vadd.f32 %v1512, %v1608
      %v1610 = vpop.f32.mrf.mxu0
      %1611 = vmatprep.mubr.bf16.mxu0 %v783
      %1612 = vmatmul.mubr.bf16.gmra.mxu0 %v782
      %v1613 = vpop.f32.mrf.mxu0
      %v1614 = vadd.f32 %v1517, %v1613
      %v1615 = vpop.f32.mrf.mxu0
      %v1616 = vpop.f32.mrf.mxu0
      %v1617 = vadd.f32 %v1520, %v1616
      %v1618 = vpop.f32.mrf.mxu0
      %1619 = vmatprep.mubr.bf16.mxu0 %v791
      %1620 = vmatmul.mubr.bf16.gmra.mxu0 %v790
      %v1621 = vpop.f32.mrf.mxu0
      %v1622 = vadd.f32 %v1525, %v1621
      %v1623 = vpop.f32.mrf.mxu0
      %v1624 = vpop.f32.mrf.mxu0
      %v1625 = vadd.f32 %v1528, %v1624
      %v1626 = vpop.f32.mrf.mxu0
      %1627 = vmatprep.mubr.bf16.mxu0 %v799
      %1628 = vmatmul.mubr.bf16.gmra.mxu0 %v798
      %v1629 = vpop.f32.mrf.mxu0
      %v1630 = vadd.f32 %v1533, %v1629
      %v1631 = vpop.f32.mrf.mxu0
      %v1632 = vpop.f32.mrf.mxu0
      %v1633 = vadd.f32 %v1536, %v1632
      %v1634 = vpop.f32.mrf.mxu0
      %1635 = vmatprep.mubr.bf16.mxu0 %v807
      %1636 = vmatmul.mubr.bf16.gmra.mxu0 %v806
      %v1637 = vpop.f32.mrf.mxu0
      %v1638 = vadd.f32 %v1541, %v1637
      %v1639 = vpop.f32.mrf.mxu0
      %v1640 = vpop.f32.mrf.mxu0
      %v1641 = vadd.f32 %v1544, %v1640
      %v1642 = vpop.f32.mrf.mxu0
      %1643 = vmatprep.mubr.bf16.mxu0 %v815
      %1644 = vmatmul.mubr.bf16.gmra.mxu0 %v814
      %v1645 = vpop.f32.mrf.mxu0
      %v1646 = vadd.f32 %v1549, %v1645
      %v1647 = vpop.f32.mrf.mxu0
      %v1648 = vpop.f32.mrf.mxu0
      %v1649 = vadd.f32 %v1552, %v1648
      %v1650 = vpop.f32.mrf.mxu0
      %1651 = vmatprep.mubr.bf16.mxu0 %v823
      %1652 = vmatmul.mubr.bf16.gmra.mxu0 %v822
      %v1653 = vpop.f32.mrf.mxu0
      %v1654 = vadd.f32 %v1557, %v1653
      %v1655 = vpop.f32.mrf.mxu0
      %v1656 = vpop.f32.mrf.mxu0
      %v1657 = vadd.f32 %v1560, %v1656
      %v1658 = vpop.f32.mrf.mxu0
      %1659 = vdwg.mxu0
      %v1724 = vunpack.c.l.b16 %v183
      %v1725 = vunpack.c.h.b16 %v183
      %v1726 = vunpack.c.l.b16 %v184
      %v1727 = vunpack.c.h.b16 %v184
      %v1728 = vunpack.c.l.b16 %v185
      %v1729 = vunpack.c.h.b16 %v185
      %v1730 = vunpack.c.l.b16 %v186
      %v1731 = vunpack.c.h.b16 %v186
      %v1732 = vunpack.c.l.b16 %v187
      %v1733 = vunpack.c.h.b16 %v187
      %v1734 = vunpack.c.l.b16 %v188
      %v1735 = vunpack.c.h.b16 %v188
      %v1736 = vunpack.c.l.b16 %v189
      %v1737 = vunpack.c.h.b16 %v189
      %v1738 = vunpack.c.l.b16 %v190
      %v1739 = vunpack.c.h.b16 %v190
      %v1740 = vunpack.c.l.b16 %v191
      %v1741 = vunpack.c.h.b16 %v191
      %v1742 = vunpack.c.l.b16 %v192
      %v1743 = vunpack.c.h.b16 %v192
      %v1744 = vunpack.c.l.b16 %v193
      %v1745 = vunpack.c.h.b16 %v193
      %v1746 = vunpack.c.l.b16 %v194
      %v1747 = vunpack.c.h.b16 %v194
      %v1748 = vunpack.c.l.b16 %v195
      %v1749 = vunpack.c.h.b16 %v195
      %v1750 = vunpack.c.l.b16 %v196
      %v1751 = vunpack.c.h.b16 %v196
      %v1752 = vunpack.c.l.b16 %v197
      %v1753 = vunpack.c.h.b16 %v197
      %v1754 = vunpack.c.l.b16 %v198
      %v1755 = vunpack.c.h.b16 %v198
      %v1756 = vunpack.c.l.b16 %v199
      %v1757 = vunpack.c.h.b16 %v199
      %v1758 = vunpack.c.l.b16 %v200
      %v1759 = vunpack.c.h.b16 %v200
      %v1760 = vunpack.c.l.b16 %v201
      %v1761 = vunpack.c.h.b16 %v201
      %v1762 = vunpack.c.l.b16 %v202
      %v1763 = vunpack.c.h.b16 %v202
      %v1764 = vunpack.c.l.b16 %v203
      %v1765 = vunpack.c.h.b16 %v203
      %v1766 = vunpack.c.l.b16 %v204
      %v1767 = vunpack.c.h.b16 %v204
      %v1768 = vunpack.c.l.b16 %v205
      %v1769 = vunpack.c.h.b16 %v205
      %v1770 = vunpack.c.l.b16 %v206
      %v1771 = vunpack.c.h.b16 %v206
      %v1772 = vunpack.c.l.b16 %v207
      %v1773 = vunpack.c.h.b16 %v207
      %v1774 = vunpack.c.l.b16 %v208
      %v1775 = vunpack.c.h.b16 %v208
      %v1776 = vunpack.c.l.b16 %v209
      %v1777 = vunpack.c.h.b16 %v209
      %v1778 = vunpack.c.l.b16 %v210
      %v1779 = vunpack.c.h.b16 %v210
      %v1780 = vunpack.c.l.b16 %v211
      %v1781 = vunpack.c.h.b16 %v211
      %v1782 = vunpack.c.l.b16 %v212
      %v1783 = vunpack.c.h.b16 %v212
      %v1784 = vunpack.c.l.b16 %v213
      %v1785 = vunpack.c.h.b16 %v213
      %v1786 = vunpack.c.l.b16 %v214
      %v1787 = vunpack.c.h.b16 %v214
      %v1788 = vunpack.c.l.b16 %v215
      %v1789 = vunpack.c.h.b16 %v215
      %v1790 = vunpack.c.l.b16 %v216
      %v1791 = vunpack.c.h.b16 %v216
      %v1792 = vunpack.c.l.b16 %v217
      %v1793 = vunpack.c.h.b16 %v217
      %v1794 = vunpack.c.l.b16 %v218
      %v1795 = vunpack.c.h.b16 %v218
      %v1796 = vunpack.c.l.b16 %v219
      %v1797 = vunpack.c.h.b16 %v219
      %v1798 = vunpack.c.l.b16 %v220
      %v1799 = vunpack.c.h.b16 %v220
      %v1800 = vunpack.c.l.b16 %v221
      %v1801 = vunpack.c.h.b16 %v221
      %v1802 = vunpack.c.l.b16 %v222
      %v1803 = vunpack.c.h.b16 %v222
      %v1804 = vunpack.c.l.b16 %v223
      %v1805 = vunpack.c.h.b16 %v223
      %v1806 = vunpack.c.l.b16 %v224
      %v1807 = vunpack.c.h.b16 %v224
      %v1808 = vunpack.c.l.b16 %v225
      %v1809 = vunpack.c.h.b16 %v225
      %v1810 = vunpack.c.l.b16 %v226
      %v1811 = vunpack.c.h.b16 %v226
      %v1812 = vunpack.c.l.b16 %v227
      %v1813 = vunpack.c.h.b16 %v227
      %v1814 = vunpack.c.l.b16 %v228
      %v1815 = vunpack.c.h.b16 %v228
      %v1816 = vunpack.c.l.b16 %v229
      %v1817 = vunpack.c.h.b16 %v229
      %v1818 = vunpack.c.l.b16 %v230
      %v1819 = vunpack.c.h.b16 %v230
      %v1820 = vunpack.c.l.b16 %v231
      %v1821 = vunpack.c.h.b16 %v231
      %v1822 = vunpack.c.l.b16 %v232
      %v1823 = vunpack.c.h.b16 %v232
      %v1824 = vunpack.c.l.b16 %v233
      %v1825 = vunpack.c.h.b16 %v233
      %v1826 = vunpack.c.l.b16 %v234
      %v1827 = vunpack.c.h.b16 %v234
      %v1828 = vunpack.c.l.b16 %v235
      %v1829 = vunpack.c.h.b16 %v235
      %v1830 = vunpack.c.l.b16 %v236
      %v1831 = vunpack.c.h.b16 %v236
      %v1832 = vunpack.c.l.b16 %v237
      %v1833 = vunpack.c.h.b16 %v237
      %v1834 = vunpack.c.l.b16 %v238
      %v1835 = vunpack.c.h.b16 %v238
      %v1836 = vunpack.c.l.b16 %v239
      %v1837 = vunpack.c.h.b16 %v239
      %v1838 = vunpack.c.l.b16 %v240
      %v1839 = vunpack.c.h.b16 %v240
      %v1840 = vunpack.c.l.b16 %v241
      %v1841 = vunpack.c.h.b16 %v241
      %v1842 = vunpack.c.l.b16 %v242
      %v1843 = vunpack.c.h.b16 %v242
      %v1844 = vunpack.c.l.b16 %v243
      %v1845 = vunpack.c.h.b16 %v243
      %v1846 = vunpack.c.l.b16 %v244
      %v1847 = vunpack.c.h.b16 %v244
      %v1848 = vunpack.c.l.b16 %v245
      %v1849 = vunpack.c.h.b16 %v245
      %v1850 = vunpack.c.l.b16 %v246
      %v1851 = vunpack.c.h.b16 %v246
      %v1852 = vpack.c.b16 %v1732, %v1724
      %v1853 = vpack.c.b16 %v1733, %v1725
      %v1854 = vpack.c.b16 %v1734, %v1726
      %v1855 = vpack.c.b16 %v1735, %v1727
      %v1856 = vpack.c.b16 %v1736, %v1728
      %v1857 = vpack.c.b16 %v1737, %v1729
      %v1858 = vpack.c.b16 %v1738, %v1730
      %v1859 = vpack.c.b16 %v1739, %v1731
      %v1860 = vpack.c.b16 %v1748, %v1740
      %v1861 = vpack.c.b16 %v1749, %v1741
      %v1862 = vpack.c.b16 %v1750, %v1742
      %v1863 = vpack.c.b16 %v1751, %v1743
      %v1864 = vpack.c.b16 %v1752, %v1744
      %v1865 = vpack.c.b16 %v1753, %v1745
      %v1866 = vpack.c.b16 %v1754, %v1746
      %v1867 = vpack.c.b16 %v1755, %v1747
      %v1868 = vpack.c.b16 %v1764, %v1756
      %v1869 = vpack.c.b16 %v1765, %v1757
      %v1870 = vpack.c.b16 %v1766, %v1758
      %v1871 = vpack.c.b16 %v1767, %v1759
      %v1872 = vpack.c.b16 %v1768, %v1760
      %v1873 = vpack.c.b16 %v1769, %v1761
      %v1874 = vpack.c.b16 %v1770, %v1762
      %v1875 = vpack.c.b16 %v1771, %v1763
      %v1876 = vpack.c.b16 %v1780, %v1772
      %v1877 = vpack.c.b16 %v1781, %v1773
      %v1878 = vpack.c.b16 %v1782, %v1774
      %v1879 = vpack.c.b16 %v1783, %v1775
      %v1880 = vpack.c.b16 %v1784, %v1776
      %v1881 = vpack.c.b16 %v1785, %v1777
      %v1882 = vpack.c.b16 %v1786, %v1778
      %v1883 = vpack.c.b16 %v1787, %v1779
      %v1884 = vpack.c.b16 %v1796, %v1788
      %v1885 = vpack.c.b16 %v1797, %v1789
      %v1886 = vpack.c.b16 %v1798, %v1790
      %v1887 = vpack.c.b16 %v1799, %v1791
      %v1888 = vpack.c.b16 %v1800, %v1792
      %v1889 = vpack.c.b16 %v1801, %v1793
      %v1890 = vpack.c.b16 %v1802, %v1794
      %v1891 = vpack.c.b16 %v1803, %v1795
      %v1892 = vpack.c.b16 %v1812, %v1804
      %v1893 = vpack.c.b16 %v1813, %v1805
      %v1894 = vpack.c.b16 %v1814, %v1806
      %v1895 = vpack.c.b16 %v1815, %v1807
      %v1896 = vpack.c.b16 %v1816, %v1808
      %v1897 = vpack.c.b16 %v1817, %v1809
      %v1898 = vpack.c.b16 %v1818, %v1810
      %v1899 = vpack.c.b16 %v1819, %v1811
      %v1900 = vpack.c.b16 %v1828, %v1820
      %v1901 = vpack.c.b16 %v1829, %v1821
      %v1902 = vpack.c.b16 %v1830, %v1822
      %v1903 = vpack.c.b16 %v1831, %v1823
      %v1904 = vpack.c.b16 %v1832, %v1824
      %v1905 = vpack.c.b16 %v1833, %v1825
      %v1906 = vpack.c.b16 %v1834, %v1826
      %v1907 = vpack.c.b16 %v1835, %v1827
      %v1908 = vpack.c.b16 %v1844, %v1836
      %v1909 = vpack.c.b16 %v1845, %v1837
      %v1910 = vpack.c.b16 %v1846, %v1838
      %v1911 = vpack.c.b16 %v1847, %v1839
      %v1912 = vpack.c.b16 %v1848, %v1840
      %v1913 = vpack.c.b16 %v1849, %v1841
      %v1914 = vpack.c.b16 %v1850, %v1842
      %v1915 = vpack.c.b16 %v1851, %v1843
      %v2108 = vunpack.c.l.b16 %v311
      %v2109 = vunpack.c.l.b16 %v312
      %v2110 = vunpack.c.l.b16 %v313
      %v2111 = vunpack.c.l.b16 %v314
      %v2112 = vunpack.c.l.b16 %v315
      %v2113 = vunpack.c.l.b16 %v316
      %v2114 = vunpack.c.l.b16 %v317
      %v2115 = vunpack.c.l.b16 %v318
      %v2116 = vunpack.c.l.b16 %v319
      %v2117 = vunpack.c.l.b16 %v320
      %v2118 = vunpack.c.l.b16 %v321
      %v2119 = vunpack.c.l.b16 %v322
      %v2120 = vunpack.c.l.b16 %v323
      %v2121 = vunpack.c.l.b16 %v324
      %v2122 = vunpack.c.l.b16 %v325
      %v2123 = vunpack.c.l.b16 %v326
      %v2124 = vunpack.c.l.b16 %v327
      %v2125 = vunpack.c.l.b16 %v328
      %v2126 = vunpack.c.l.b16 %v329
      %v2127 = vunpack.c.l.b16 %v330
      %v2128 = vunpack.c.l.b16 %v331
      %v2129 = vunpack.c.l.b16 %v332
      %v2130 = vunpack.c.l.b16 %v333
      %v2131 = vunpack.c.l.b16 %v334
      %v2132 = vunpack.c.l.b16 %v335
      %v2133 = vunpack.c.l.b16 %v336
      %v2134 = vunpack.c.l.b16 %v337
      %v2135 = vunpack.c.l.b16 %v338
      %v2136 = vunpack.c.l.b16 %v339
      %v2137 = vunpack.c.l.b16 %v340
      %v2138 = vunpack.c.l.b16 %v341
      %v2139 = vunpack.c.l.b16 %v342
      %v2140 = vunpack.c.l.b16 %v343
      %v2141 = vunpack.c.l.b16 %v344
      %v2142 = vunpack.c.l.b16 %v345
      %v2143 = vunpack.c.l.b16 %v346
      %v2144 = vunpack.c.l.b16 %v347
      %v2145 = vunpack.c.l.b16 %v348
      %v2146 = vunpack.c.l.b16 %v349
      %v2147 = vunpack.c.l.b16 %v350
      %v2148 = vunpack.c.l.b16 %v351
      %v2149 = vunpack.c.l.b16 %v352
      %v2150 = vunpack.c.l.b16 %v353
      %v2151 = vunpack.c.l.b16 %v354
      %v2152 = vunpack.c.l.b16 %v355
      %v2153 = vunpack.c.l.b16 %v356
      %v2154 = vunpack.c.l.b16 %v357
      %v2155 = vunpack.c.l.b16 %v358
      %v2156 = vunpack.c.l.b16 %v359
      %v2157 = vunpack.c.l.b16 %v360
      %v2158 = vunpack.c.l.b16 %v361
      %v2159 = vunpack.c.l.b16 %v362
      %v2160 = vunpack.c.l.b16 %v363
      %v2161 = vunpack.c.l.b16 %v364
      %v2162 = vunpack.c.l.b16 %v365
      %v2163 = vunpack.c.l.b16 %v366
      %v2164 = vunpack.c.l.b16 %v367
      %v2165 = vunpack.c.l.b16 %v368
      %v2166 = vunpack.c.l.b16 %v369
      %v2167 = vunpack.c.l.b16 %v370
      %v2168 = vunpack.c.l.b16 %v371
      %v2169 = vunpack.c.l.b16 %v372
      %v2170 = vunpack.c.l.b16 %v373
      %v2171 = vunpack.c.l.b16 %v374
      %v2172 = vunpack.c.l.b16 %v375
      %v2173 = vunpack.c.l.b16 %v376
      %v2174 = vunpack.c.l.b16 %v377
      %v2175 = vunpack.c.l.b16 %v378
      %v2176 = vunpack.c.l.b16 %v379
      %v2177 = vunpack.c.l.b16 %v380
      %v2178 = vunpack.c.l.b16 %v381
      %v2179 = vunpack.c.l.b16 %v382
      %v2180 = vunpack.c.l.b16 %v383
      %v2181 = vunpack.c.l.b16 %v384
      %v2182 = vunpack.c.l.b16 %v385
      %v2183 = vunpack.c.l.b16 %v386
      %v2184 = vunpack.c.l.b16 %v387
      %v2185 = vunpack.c.l.b16 %v388
      %v2186 = vunpack.c.l.b16 %v389
      %v2187 = vunpack.c.l.b16 %v390
      %v2188 = vunpack.c.l.b16 %v391
      %v2189 = vunpack.c.l.b16 %v392
      %v2190 = vunpack.c.l.b16 %v393
      %v2191 = vunpack.c.l.b16 %v394
      %v2192 = vunpack.c.l.b16 %v395
      %v2193 = vunpack.c.l.b16 %v396
      %v2194 = vunpack.c.l.b16 %v397
      %v2195 = vunpack.c.l.b16 %v398
      %v2196 = vunpack.c.l.b16 %v399
      %v2197 = vunpack.c.l.b16 %v400
      %v2198 = vunpack.c.l.b16 %v401
      %v2199 = vunpack.c.l.b16 %v402
      %v2200 = vunpack.c.l.b16 %v403
      %v2201 = vunpack.c.l.b16 %v404
      %v2202 = vunpack.c.l.b16 %v405
      %v2203 = vunpack.c.l.b16 %v406
      %v2204 = vunpack.c.l.b16 %v407
      %v2205 = vunpack.c.l.b16 %v408
      %v2206 = vunpack.c.l.b16 %v409
      %v2207 = vunpack.c.l.b16 %v410
      %v2208 = vunpack.c.l.b16 %v411
      %v2209 = vunpack.c.l.b16 %v412
      %v2210 = vunpack.c.l.b16 %v413
      %v2211 = vunpack.c.l.b16 %v414
      %v2212 = vunpack.c.l.b16 %v415
      %v2213 = vunpack.c.l.b16 %v416
      %v2214 = vunpack.c.l.b16 %v417
      %v2215 = vunpack.c.l.b16 %v418
      %v2216 = vunpack.c.l.b16 %v419
      %v2217 = vunpack.c.l.b16 %v420
      %v2218 = vunpack.c.l.b16 %v421
      %v2219 = vunpack.c.l.b16 %v422
      %v2220 = vunpack.c.l.b16 %v423
      %v2221 = vunpack.c.l.b16 %v424
      %v2222 = vunpack.c.l.b16 %v425
      %v2223 = vunpack.c.l.b16 %v426
      %v2224 = vunpack.c.l.b16 %v427
      %v2225 = vunpack.c.l.b16 %v428
      %v2226 = vunpack.c.l.b16 %v429
      %v2227 = vunpack.c.l.b16 %v430
      %v2228 = vunpack.c.l.b16 %v431
      %v2229 = vunpack.c.l.b16 %v432
      %v2230 = vunpack.c.l.b16 %v433
      %v2231 = vunpack.c.l.b16 %v434
      %v2232 = vunpack.c.l.b16 %v435
      %v2233 = vunpack.c.l.b16 %v436
      %v2234 = vunpack.c.l.b16 %v437
      %v2235 = vunpack.c.l.b16 %v438
      %v2236 = vpack.c.b16 %v2109, %v2108
      %v2237 = vpack.c.b16 %v2111, %v2110
      %v2238 = vpack.c.b16 %v2113, %v2112
      %v2239 = vpack.c.b16 %v2115, %v2114
      %v2240 = vpack.c.b16 %v2117, %v2116
      %v2241 = vpack.c.b16 %v2119, %v2118
      %v2242 = vpack.c.b16 %v2121, %v2120
      %v2243 = vpack.c.b16 %v2123, %v2122
      %v2244 = vpack.c.b16 %v2125, %v2124
      %v2245 = vpack.c.b16 %v2127, %v2126
      %v2246 = vpack.c.b16 %v2129, %v2128
      %v2247 = vpack.c.b16 %v2131, %v2130
      %v2248 = vpack.c.b16 %v2133, %v2132
      %v2249 = vpack.c.b16 %v2135, %v2134
      %v2250 = vpack.c.b16 %v2137, %v2136
      %v2251 = vpack.c.b16 %v2139, %v2138
      %v2252 = vpack.c.b16 %v2141, %v2140
      %v2253 = vpack.c.b16 %v2143, %v2142
      %v2254 = vpack.c.b16 %v2145, %v2144
      %v2255 = vpack.c.b16 %v2147, %v2146
      %v2256 = vpack.c.b16 %v2149, %v2148
      %v2257 = vpack.c.b16 %v2151, %v2150
      %v2258 = vpack.c.b16 %v2153, %v2152
      %v2259 = vpack.c.b16 %v2155, %v2154
      %v2260 = vpack.c.b16 %v2157, %v2156
      %v2261 = vpack.c.b16 %v2159, %v2158
      %v2262 = vpack.c.b16 %v2161, %v2160
      %v2263 = vpack.c.b16 %v2163, %v2162
      %v2264 = vpack.c.b16 %v2165, %v2164
      %v2265 = vpack.c.b16 %v2167, %v2166
      %v2266 = vpack.c.b16 %v2169, %v2168
      %v2267 = vpack.c.b16 %v2171, %v2170
      %v2268 = vpack.c.b16 %v2173, %v2172
      %v2269 = vpack.c.b16 %v2175, %v2174
      %v2270 = vpack.c.b16 %v2177, %v2176
      %v2271 = vpack.c.b16 %v2179, %v2178
      %v2272 = vpack.c.b16 %v2181, %v2180
      %v2273 = vpack.c.b16 %v2183, %v2182
      %v2274 = vpack.c.b16 %v2185, %v2184
      %v2275 = vpack.c.b16 %v2187, %v2186
      %v2276 = vpack.c.b16 %v2189, %v2188
      %v2277 = vpack.c.b16 %v2191, %v2190
      %v2278 = vpack.c.b16 %v2193, %v2192
      %v2279 = vpack.c.b16 %v2195, %v2194
      %v2280 = vpack.c.b16 %v2197, %v2196
      %v2281 = vpack.c.b16 %v2199, %v2198
      %v2282 = vpack.c.b16 %v2201, %v2200
      %v2283 = vpack.c.b16 %v2203, %v2202
      %v2284 = vpack.c.b16 %v2205, %v2204
      %v2285 = vpack.c.b16 %v2207, %v2206
      %v2286 = vpack.c.b16 %v2209, %v2208
      %v2287 = vpack.c.b16 %v2211, %v2210
      %v2288 = vpack.c.b16 %v2213, %v2212
      %v2289 = vpack.c.b16 %v2215, %v2214
      %v2290 = vpack.c.b16 %v2217, %v2216
      %v2291 = vpack.c.b16 %v2219, %v2218
      %v2292 = vpack.c.b16 %v2221, %v2220
      %v2293 = vpack.c.b16 %v2223, %v2222
      %v2294 = vpack.c.b16 %v2225, %v2224
      %v2295 = vpack.c.b16 %v2227, %v2226
      %v2296 = vpack.c.b16 %v2229, %v2228
      %v2297 = vpack.c.b16 %v2231, %v2230
      %v2298 = vpack.c.b16 %v2233, %v2232
      %v2299 = vpack.c.b16 %v2235, %v2234
      %2364 = vmatprep.subr.bf16.mxu0 0
      %2365 = vmatpush1.bf16.msra.mxu0 %v2243
      %2366 = vmatprep.subr.bf16.mxu0 0
      %2367 = vmatpush1.bf16.msra.mxu0 %v2242
      %2368 = vmatprep.subr.bf16.mxu0 0
      %2369 = vmatpush1.bf16.msra.mxu0 %v2241
      %2370 = vmatprep.subr.bf16.mxu0 0
      %2371 = vmatpush1.bf16.msra.mxu0 %v2240
      %2372 = vmatprep.subr.bf16.mxu0 0
      %2373 = vmatpush1.bf16.msra.mxu0 %v2239
      %2374 = vmatprep.subr.bf16.mxu0 0
      %2375 = vmatpush1.bf16.msra.mxu0 %v2238
      %2376 = vmatprep.subr.bf16.mxu0 0
      %2377 = vmatpush1.bf16.msra.mxu0 %v2237
      %2378 = vmatprep.subr.bf16.mxu0 0
      %2379 = vmatpush1.bf16.msra.mxu0 %v2236
      %2380 = vmatprep.subr.bf16.mxu0 0
      %2381 = vmatpush2.bf16.msra.mxu0 %v2251
      %2382 = vmatprep.subr.bf16.mxu0 0
      %2383 = vmatpush2.bf16.msra.mxu0 %v2250
      %2384 = vmatprep.subr.bf16.mxu0 0
      %2385 = vmatpush2.bf16.msra.mxu0 %v2249
      %2386 = vmatprep.subr.bf16.mxu0 0
      %2387 = vmatpush2.bf16.msra.mxu0 %v2248
      %2388 = vmatprep.subr.bf16.mxu0 0
      %2389 = vmatpush2.bf16.msra.mxu0 %v2247
      %2390 = vmatprep.subr.bf16.mxu0 0
      %2391 = vmatpush2.bf16.msra.mxu0 %v2246
      %2392 = vmatprep.subr.bf16.mxu0 0
      %2393 = vmatpush2.bf16.msra.mxu0 %v2245
      %2394 = vmatprep.subr.bf16.mxu0 0
      %2395 = vmatpush2.bf16.msra.mxu0 %v2244
      %2396 = vmatprep.mubr.bf16.mxu0 %v1853
      %2397 = vmatmul.mubr.bf16.gmra.mxu0 %v1852
      %v2398 = vpop.f32.mrf.mxu0
      %v2399 = vadd.f32 %v1598, %v2398
      %v2400 = vpop.f32.mrf.mxu0
      %v2401 = vpop.f32.mrf.mxu0
      %v2402 = vadd.f32 %v1601, %v2401
      %v2403 = vpop.f32.mrf.mxu0
      %2404 = vmatprep.mubr.bf16.mxu0 %v1861
      %2405 = vmatmul.mubr.bf16.gmra.mxu0 %v1860
      %v2406 = vpop.f32.mrf.mxu0
      %v2407 = vadd.f32 %v1606, %v2406
      %v2408 = vpop.f32.mrf.mxu0
      %v2409 = vpop.f32.mrf.mxu0
      %v2410 = vadd.f32 %v1609, %v2409
      %v2411 = vpop.f32.mrf.mxu0
      %2412 = vmatprep.mubr.bf16.mxu0 %v1869
      %2413 = vmatmul.mubr.bf16.gmra.mxu0 %v1868
      %v2414 = vpop.f32.mrf.mxu0
      %v2415 = vadd.f32 %v1614, %v2414
      %v2416 = vpop.f32.mrf.mxu0
      %v2417 = vpop.f32.mrf.mxu0
      %v2418 = vadd.f32 %v1617, %v2417
      %v2419 = vpop.f32.mrf.mxu0
      %2420 = vmatprep.mubr.bf16.mxu0 %v1877
      %2421 = vmatmul.mubr.bf16.gmra.mxu0 %v1876
      %v2422 = vpop.f32.mrf.mxu0
      %v2423 = vadd.f32 %v1622, %v2422
      %v2424 = vpop.f32.mrf.mxu0
      %v2425 = vpop.f32.mrf.mxu0
      %v2426 = vadd.f32 %v1625, %v2425
      %v2427 = vpop.f32.mrf.mxu0
      %2428 = vmatprep.mubr.bf16.mxu0 %v1885
      %2429 = vmatmul.mubr.bf16.gmra.mxu0 %v1884
      %v2430 = vpop.f32.mrf.mxu0
      %v2431 = vadd.f32 %v1630, %v2430
      %v2432 = vpop.f32.mrf.mxu0
      %v2433 = vpop.f32.mrf.mxu0
      %v2434 = vadd.f32 %v1633, %v2433
      %v2435 = vpop.f32.mrf.mxu0
      %2436 = vmatprep.mubr.bf16.mxu0 %v1893
      %2437 = vmatmul.mubr.bf16.gmra.mxu0 %v1892
      %v2438 = vpop.f32.mrf.mxu0
      %v2439 = vadd.f32 %v1638, %v2438
      %v2440 = vpop.f32.mrf.mxu0
      %v2441 = vpop.f32.mrf.mxu0
      %v2442 = vadd.f32 %v1641, %v2441
      %v2443 = vpop.f32.mrf.mxu0
      %2444 = vmatprep.mubr.bf16.mxu0 %v1901
      %2445 = vmatmul.mubr.bf16.gmra.mxu0 %v1900
      %v2446 = vpop.f32.mrf.mxu0
      %v2447 = vadd.f32 %v1646, %v2446
      %v2448 = vpop.f32.mrf.mxu0
      %v2449 = vpop.f32.mrf.mxu0
      %v2450 = vadd.f32 %v1649, %v2449
      %v2451 = vpop.f32.mrf.mxu0
      %2452 = vmatprep.mubr.bf16.mxu0 %v1909
      %2453 = vmatmul.mubr.bf16.gmra.mxu0 %v1908
      %v2454 = vpop.f32.mrf.mxu0
      %v2455 = vadd.f32 %v1654, %v2454
      %v2456 = vpop.f32.mrf.mxu0
      %v2457 = vpop.f32.mrf.mxu0
      %v2458 = vadd.f32 %v1657, %v2457
      %v2459 = vpop.f32.mrf.mxu0
      %2460 = vdwg.mxu0
      %2461 = vmatprep.subr.bf16.mxu0 0
      %2462 = vmatpush1.bf16.msra.mxu0 %v2259
      %2463 = vmatprep.subr.bf16.mxu0 0
      %2464 = vmatpush1.bf16.msra.mxu0 %v2258
      %2465 = vmatprep.subr.bf16.mxu0 0
      %2466 = vmatpush1.bf16.msra.mxu0 %v2257
      %2467 = vmatprep.subr.bf16.mxu0 0
      %2468 = vmatpush1.bf16.msra.mxu0 %v2256
      %2469 = vmatprep.subr.bf16.mxu0 0
      %2470 = vmatpush1.bf16.msra.mxu0 %v2255
      %2471 = vmatprep.subr.bf16.mxu0 0
      %2472 = vmatpush1.bf16.msra.mxu0 %v2254
      %2473 = vmatprep.subr.bf16.mxu0 0
      %2474 = vmatpush1.bf16.msra.mxu0 %v2253
      %2475 = vmatprep.subr.bf16.mxu0 0
      %2476 = vmatpush1.bf16.msra.mxu0 %v2252
      %2477 = vmatprep.subr.bf16.mxu0 0
      %2478 = vmatpush2.bf16.msra.mxu0 %v2267
      %2479 = vmatprep.subr.bf16.mxu0 0
      %2480 = vmatpush2.bf16.msra.mxu0 %v2266
      %2481 = vmatprep.subr.bf16.mxu0 0
      %2482 = vmatpush2.bf16.msra.mxu0 %v2265
      %2483 = vmatprep.subr.bf16.mxu0 0
      %2484 = vmatpush2.bf16.msra.mxu0 %v2264
      %2485 = vmatprep.subr.bf16.mxu0 0
      %2486 = vmatpush2.bf16.msra.mxu0 %v2263
      %2487 = vmatprep.subr.bf16.mxu0 0
      %2488 = vmatpush2.bf16.msra.mxu0 %v2262
      %2489 = vmatprep.subr.bf16.mxu0 0
      %2490 = vmatpush2.bf16.msra.mxu0 %v2261
      %2491 = vmatprep.subr.bf16.mxu0 0
      %2492 = vmatpush2.bf16.msra.mxu0 %v2260
      %2493 = vmatprep.mubr.bf16.mxu0 %v1855
      %2494 = vmatmul.mubr.bf16.gmra.mxu0 %v1854
      %v2495 = vpop.f32.mrf.mxu0
      %v2496 = vadd.f32 %v2399, %v2495
      %v2497 = vpop.f32.mrf.mxu0
      %v2498 = vpop.f32.mrf.mxu0
      %v2499 = vadd.f32 %v2402, %v2498
      %v2500 = vpop.f32.mrf.mxu0
      %2501 = vmatprep.mubr.bf16.mxu0 %v1863
      %2502 = vmatmul.mubr.bf16.gmra.mxu0 %v1862
      %v2503 = vpop.f32.mrf.mxu0
      %v2504 = vadd.f32 %v2407, %v2503
      %v2505 = vpop.f32.mrf.mxu0
      %v2506 = vpop.f32.mrf.mxu0
      %v2507 = vadd.f32 %v2410, %v2506
      %v2508 = vpop.f32.mrf.mxu0
      %2509 = vmatprep.mubr.bf16.mxu0 %v1871
      %2510 = vmatmul.mubr.bf16.gmra.mxu0 %v1870
      %v2511 = vpop.f32.mrf.mxu0
      %v2512 = vadd.f32 %v2415, %v2511
      %v2513 = vpop.f32.mrf.mxu0
      %v2514 = vpop.f32.mrf.mxu0
      %v2515 = vadd.f32 %v2418, %v2514
      %v2516 = vpop.f32.mrf.mxu0
      %2517 = vmatprep.mubr.bf16.mxu0 %v1879
      %2518 = vmatmul.mubr.bf16.gmra.mxu0 %v1878
      %v2519 = vpop.f32.mrf.mxu0
      %v2520 = vadd.f32 %v2423, %v2519
      %v2521 = vpop.f32.mrf.mxu0
      %v2522 = vpop.f32.mrf.mxu0
      %v2523 = vadd.f32 %v2426, %v2522
      %v2524 = vpop.f32.mrf.mxu0
      %2525 = vmatprep.mubr.bf16.mxu0 %v1887
      %2526 = vmatmul.mubr.bf16.gmra.mxu0 %v1886
      %v2527 = vpop.f32.mrf.mxu0
      %v2528 = vadd.f32 %v2431, %v2527
      %v2529 = vpop.f32.mrf.mxu0
      %v2530 = vpop.f32.mrf.mxu0
      %v2531 = vadd.f32 %v2434, %v2530
      %v2532 = vpop.f32.mrf.mxu0
      %2533 = vmatprep.mubr.bf16.mxu0 %v1895
      %2534 = vmatmul.mubr.bf16.gmra.mxu0 %v1894
      %v2535 = vpop.f32.mrf.mxu0
      %v2536 = vadd.f32 %v2439, %v2535
      %v2537 = vpop.f32.mrf.mxu0
      %v2538 = vpop.f32.mrf.mxu0
      %v2539 = vadd.f32 %v2442, %v2538
      %v2540 = vpop.f32.mrf.mxu0
      %2541 = vmatprep.mubr.bf16.mxu0 %v1903
      %2542 = vmatmul.mubr.bf16.gmra.mxu0 %v1902
      %v2543 = vpop.f32.mrf.mxu0
      %v2544 = vadd.f32 %v2447, %v2543
      %v2545 = vpop.f32.mrf.mxu0
      %v2546 = vpop.f32.mrf.mxu0
      %v2547 = vadd.f32 %v2450, %v2546
      %v2548 = vpop.f32.mrf.mxu0
      %2549 = vmatprep.mubr.bf16.mxu0 %v1911
      %2550 = vmatmul.mubr.bf16.gmra.mxu0 %v1910
      %v2551 = vpop.f32.mrf.mxu0
      %v2552 = vadd.f32 %v2455, %v2551
      %v2553 = vpop.f32.mrf.mxu0
      %v2554 = vpop.f32.mrf.mxu0
      %v2555 = vadd.f32 %v2458, %v2554
      %v2556 = vpop.f32.mrf.mxu0
      %2557 = vdwg.mxu0
      %2558 = vmatprep.subr.bf16.mxu0 0
      %2559 = vmatpush1.bf16.msra.mxu0 %v2275
      %2560 = vmatprep.subr.bf16.mxu0 0
      %2561 = vmatpush1.bf16.msra.mxu0 %v2274
      %2562 = vmatprep.subr.bf16.mxu0 0
      %2563 = vmatpush1.bf16.msra.mxu0 %v2273
      %2564 = vmatprep.subr.bf16.mxu0 0
      %2565 = vmatpush1.bf16.msra.mxu0 %v2272
      %2566 = vmatprep.subr.bf16.mxu0 0
      %2567 = vmatpush1.bf16.msra.mxu0 %v2271
      %2568 = vmatprep.subr.bf16.mxu0 0
      %2569 = vmatpush1.bf16.msra.mxu0 %v2270
      %2570 = vmatprep.subr.bf16.mxu0 0
      %2571 = vmatpush1.bf16.msra.mxu0 %v2269
      %2572 = vmatprep.subr.bf16.mxu0 0
      %2573 = vmatpush1.bf16.msra.mxu0 %v2268
      %2574 = vmatprep.subr.bf16.mxu0 0
      %2575 = vmatpush2.bf16.msra.mxu0 %v2283
      %2576 = vmatprep.subr.bf16.mxu0 0
      %2577 = vmatpush2.bf16.msra.mxu0 %v2282
      %2578 = vmatprep.subr.bf16.mxu0 0
      %2579 = vmatpush2.bf16.msra.mxu0 %v2281
      %2580 = vmatprep.subr.bf16.mxu0 0
      %2581 = vmatpush2.bf16.msra.mxu0 %v2280
      %2582 = vmatprep.subr.bf16.mxu0 0
      %2583 = vmatpush2.bf16.msra.mxu0 %v2279
      %2584 = vmatprep.subr.bf16.mxu0 0
      %2585 = vmatpush2.bf16.msra.mxu0 %v2278
      %2586 = vmatprep.subr.bf16.mxu0 0
      %2587 = vmatpush2.bf16.msra.mxu0 %v2277
      %2588 = vmatprep.subr.bf16.mxu0 0
      %2589 = vmatpush2.bf16.msra.mxu0 %v2276
      %2590 = vmatprep.mubr.bf16.mxu0 %v1857
      %2591 = vmatmul.mubr.bf16.gmra.mxu0 %v1856
      %v2592 = vpop.f32.mrf.mxu0
      %v2593 = vadd.f32 %v2496, %v2592
      %v2594 = vpop.f32.mrf.mxu0
      %v2595 = vpop.f32.mrf.mxu0
      %v2596 = vadd.f32 %v2499, %v2595
      %v2597 = vpop.f32.mrf.mxu0
      %2598 = vmatprep.mubr.bf16.mxu0 %v1865
      %2599 = vmatmul.mubr.bf16.gmra.mxu0 %v1864
      %v2600 = vpop.f32.mrf.mxu0
      %v2601 = vadd.f32 %v2504, %v2600
      %v2602 = vpop.f32.mrf.mxu0
      %v2603 = vpop.f32.mrf.mxu0
      %v2604 = vadd.f32 %v2507, %v2603
      %v2605 = vpop.f32.mrf.mxu0
      %2606 = vmatprep.mubr.bf16.mxu0 %v1873
      %2607 = vmatmul.mubr.bf16.gmra.mxu0 %v1872
      %v2608 = vpop.f32.mrf.mxu0
      %v2609 = vadd.f32 %v2512, %v2608
      %v2610 = vpop.f32.mrf.mxu0
      %v2611 = vpop.f32.mrf.mxu0
      %v2612 = vadd.f32 %v2515, %v2611
      %v2613 = vpop.f32.mrf.mxu0
      %2614 = vmatprep.mubr.bf16.mxu0 %v1881
      %2615 = vmatmul.mubr.bf16.gmra.mxu0 %v1880
      %v2616 = vpop.f32.mrf.mxu0
      %v2617 = vadd.f32 %v2520, %v2616
      %v2618 = vpop.f32.mrf.mxu0
      %v2619 = vpop.f32.mrf.mxu0
      %v2620 = vadd.f32 %v2523, %v2619
      %v2621 = vpop.f32.mrf.mxu0
      %2622 = vmatprep.mubr.bf16.mxu0 %v1889
      %2623 = vmatmul.mubr.bf16.gmra.mxu0 %v1888
      %v2624 = vpop.f32.mrf.mxu0
      %v2625 = vadd.f32 %v2528, %v2624
      %v2626 = vpop.f32.mrf.mxu0
      %v2627 = vpop.f32.mrf.mxu0
      %v2628 = vadd.f32 %v2531, %v2627
      %v2629 = vpop.f32.mrf.mxu0
      %2630 = vmatprep.mubr.bf16.mxu0 %v1897
      %2631 = vmatmul.mubr.bf16.gmra.mxu0 %v1896
      %v2632 = vpop.f32.mrf.mxu0
      %v2633 = vadd.f32 %v2536, %v2632
      %v2634 = vpop.f32.mrf.mxu0
      %v2635 = vpop.f32.mrf.mxu0
      %v2636 = vadd.f32 %v2539, %v2635
      %v2637 = vpop.f32.mrf.mxu0
      %2638 = vmatprep.mubr.bf16.mxu0 %v1905
      %2639 = vmatmul.mubr.bf16.gmra.mxu0 %v1904
      %v2640 = vpop.f32.mrf.mxu0
      %v2641 = vadd.f32 %v2544, %v2640
      %v2642 = vpop.f32.mrf.mxu0
      %v2643 = vpop.f32.mrf.mxu0
      %v2644 = vadd.f32 %v2547, %v2643
      %v2645 = vpop.f32.mrf.mxu0
      %2646 = vmatprep.mubr.bf16.mxu0 %v1913
      %2647 = vmatmul.mubr.bf16.gmra.mxu0 %v1912
      %v2648 = vpop.f32.mrf.mxu0
      %v2649 = vadd.f32 %v2552, %v2648
      %v2650 = vpop.f32.mrf.mxu0
      %v2651 = vpop.f32.mrf.mxu0
      %v2652 = vadd.f32 %v2555, %v2651
      %v2653 = vpop.f32.mrf.mxu0
      %2654 = vdwg.mxu0
      %2655 = vmatprep.subr.bf16.mxu0 0
      %2656 = vmatpush1.bf16.msra.mxu0 %v2291
      %2657 = vmatprep.subr.bf16.mxu0 0
      %2658 = vmatpush1.bf16.msra.mxu0 %v2290
      %2659 = vmatprep.subr.bf16.mxu0 0
      %2660 = vmatpush1.bf16.msra.mxu0 %v2289
      %2661 = vmatprep.subr.bf16.mxu0 0
      %2662 = vmatpush1.bf16.msra.mxu0 %v2288
      %2663 = vmatprep.subr.bf16.mxu0 0
      %2664 = vmatpush1.bf16.msra.mxu0 %v2287
      %2665 = vmatprep.subr.bf16.mxu0 0
      %2666 = vmatpush1.bf16.msra.mxu0 %v2286
      %2667 = vmatprep.subr.bf16.mxu0 0
      %2668 = vmatpush1.bf16.msra.mxu0 %v2285
      %2669 = vmatprep.subr.bf16.mxu0 0
      %2670 = vmatpush1.bf16.msra.mxu0 %v2284
      %2671 = vmatprep.subr.bf16.mxu0 0
      %2672 = vmatpush2.bf16.msra.mxu0 %v2299
      %2673 = vmatprep.subr.bf16.mxu0 0
      %2674 = vmatpush2.bf16.msra.mxu0 %v2298
      %2675 = vmatprep.subr.bf16.mxu0 0
      %2676 = vmatpush2.bf16.msra.mxu0 %v2297
      %2677 = vmatprep.subr.bf16.mxu0 0
      %2678 = vmatpush2.bf16.msra.mxu0 %v2296
      %2679 = vmatprep.subr.bf16.mxu0 0
      %2680 = vmatpush2.bf16.msra.mxu0 %v2295
      %2681 = vmatprep.subr.bf16.mxu0 0
      %2682 = vmatpush2.bf16.msra.mxu0 %v2294
      %2683 = vmatprep.subr.bf16.mxu0 0
      %2684 = vmatpush2.bf16.msra.mxu0 %v2293
      %2685 = vmatprep.subr.bf16.mxu0 0
      %2686 = vmatpush2.bf16.msra.mxu0 %v2292
      %2687 = vmatprep.mubr.bf16.mxu0 %v1859
      %2688 = vmatmul.mubr.bf16.gmra.mxu0 %v1858
      %v2689 = vpop.f32.mrf.mxu0
      %v2690 = vadd.f32 %v2593, %v2689
      %v2691 = vpop.f32.mrf.mxu0
      %v2692 = vpop.f32.mrf.mxu0
      %v2693 = vadd.f32 %v2596, %v2692
      %v2694 = vpop.f32.mrf.mxu0
      %2695 = vmatprep.mubr.bf16.mxu0 %v1867
      %2696 = vmatmul.mubr.bf16.gmra.mxu0 %v1866
      %v2697 = vpop.f32.mrf.mxu0
      %v2698 = vadd.f32 %v2601, %v2697
      %v2699 = vpop.f32.mrf.mxu0
      %v2700 = vpop.f32.mrf.mxu0
      %v2701 = vadd.f32 %v2604, %v2700
      %v2702 = vpop.f32.mrf.mxu0
      %2703 = vmatprep.mubr.bf16.mxu0 %v1875
      %2704 = vmatmul.mubr.bf16.gmra.mxu0 %v1874
      %v2705 = vpop.f32.mrf.mxu0
      %v2706 = vadd.f32 %v2609, %v2705
      %v2707 = vpop.f32.mrf.mxu0
      %v2708 = vpop.f32.mrf.mxu0
      %v2709 = vadd.f32 %v2612, %v2708
      %v2710 = vpop.f32.mrf.mxu0
      %2711 = vmatprep.mubr.bf16.mxu0 %v1883
      %2712 = vmatmul.mubr.bf16.gmra.mxu0 %v1882
      %v2713 = vpop.f32.mrf.mxu0
      %v2714 = vadd.f32 %v2617, %v2713
      %v2715 = vpop.f32.mrf.mxu0
      %v2716 = vpop.f32.mrf.mxu0
      %v2717 = vadd.f32 %v2620, %v2716
      %v2718 = vpop.f32.mrf.mxu0
      %2719 = vmatprep.mubr.bf16.mxu0 %v1891
      %2720 = vmatmul.mubr.bf16.gmra.mxu0 %v1890
      %v2721 = vpop.f32.mrf.mxu0
      %v2722 = vadd.f32 %v2625, %v2721
      %v2723 = vpop.f32.mrf.mxu0
      %v2724 = vpop.f32.mrf.mxu0
      %v2725 = vadd.f32 %v2628, %v2724
      %v2726 = vpop.f32.mrf.mxu0
      %2727 = vmatprep.mubr.bf16.mxu0 %v1899
      %2728 = vmatmul.mubr.bf16.gmra.mxu0 %v1898
      %v2729 = vpop.f32.mrf.mxu0
      %v2730 = vadd.f32 %v2633, %v2729
      %v2731 = vpop.f32.mrf.mxu0
      %v2732 = vpop.f32.mrf.mxu0
      %v2733 = vadd.f32 %v2636, %v2732
      %v2734 = vpop.f32.mrf.mxu0
      %2735 = vmatprep.mubr.bf16.mxu0 %v1907
      %2736 = vmatmul.mubr.bf16.gmra.mxu0 %v1906
      %v2737 = vpop.f32.mrf.mxu0
      %v2738 = vadd.f32 %v2641, %v2737
      %v2739 = vpop.f32.mrf.mxu0
      %v2740 = vpop.f32.mrf.mxu0
      %v2741 = vadd.f32 %v2644, %v2740
      %v2742 = vpop.f32.mrf.mxu0
      %2743 = vmatprep.mubr.bf16.mxu0 %v1915
      %2744 = vmatmul.mubr.bf16.gmra.mxu0 %v1914
      %v2745 = vpop.f32.mrf.mxu0
      %v2746 = vadd.f32 %v2649, %v2745
      %v2747 = vpop.f32.mrf.mxu0
      %v2748 = vpop.f32.mrf.mxu0
      %v2749 = vadd.f32 %v2652, %v2748
      %v2750 = vpop.f32.mrf.mxu0
      %2751 = vdwg.mxu0
      %2752 = vst [vmem:[%s177] sm:$0xff] %v2690
      %2753 = vst [vmem:[%s177 + $0x8] sm:$0xff] %v2693
      %2754 = vst [vmem:[%s177 + $0x10] sm:$0xff] %v2698
      %2755 = vst [vmem:[%s177 + $0x18] sm:$0xff] %v2701
      %2756 = vst [vmem:[%s177 + $0x20] sm:$0xff] %v2706
      %2757 = vst [vmem:[%s177 + $0x28] sm:$0xff] %v2709
      %2758 = vst [vmem:[%s177 + $0x30] sm:$0xff] %v2714
      %2759 = vst [vmem:[%s177 + $0x38] sm:$0xff] %v2717
      %2760 = vst [vmem:[%s177 + $0x40] sm:$0xff] %v2722
      %2761 = vst [vmem:[%s177 + $0x48] sm:$0xff] %v2725
      %2762 = vst [vmem:[%s177 + $0x50] sm:$0xff] %v2730
      %2763 = vst [vmem:[%s177 + $0x58] sm:$0xff] %v2733
      %2764 = vst [vmem:[%s177 + $0x60] sm:$0xff] %v2738
      %2765 = vst [vmem:[%s177 + $0x68] sm:$0xff] %v2741
      %2766 = vst [vmem:[%s177 + $0x70] sm:$0xff] %v2746
      %2767 = vst [vmem:[%s177 + $0x78] sm:$0xff] %v2749
      %v2768 = vadd.f32 %v2690, %v2693
      %v2769 = vadd.f32 %v2768, %v2698
      %v2770 = vadd.f32 %v2769, %v2701
      %v2771 = vadd.f32 %v2770, %v2706
      %v2772 = vadd.f32 %v2771, %v2709
      %v2773 = vadd.f32 %v2772, %v2714
      %v2774 = vadd.f32 %v2773, %v2717
      %v2775 = vadd.f32 %v2774, %v2722
      %v2776 = vadd.f32 %v2775, %v2725
      %v2777 = vadd.f32 %v2776, %v2730
      %v2778 = vadd.f32 %v2777, %v2733
      %v2779 = vadd.f32 %v2778, %v2738
      %v2780 = vadd.f32 %v2779, %v2741
      %v2781 = vadd.f32 %v2780, %v2746
      %v2782 = vadd.f32 %v2781, %v2749
      %v2783 = vrot.slane %v2782, 4
      %v2784 = vadd.f32 %v2782, %v2783
      %v2785 = vrot.slane %v2784, 2
      %v2786 = vadd.f32 %v2784, %v2785
      %v2787 = vrot.slane %v2786, 1
      %v2788 = vadd.f32 %v2786, %v2787
      %2789 = vst [vmem:[%s181] sm:$0x1] %v2788
      %v2790 = vmul.f32 %v2690, %v2690
      %v2791 = vmul.f32 %v2693, %v2693
      %v2792 = vmul.f32 %v2698, %v2698
      %v2793 = vmul.f32 %v2701, %v2701
      %v2794 = vmul.f32 %v2706, %v2706
      %v2795 = vmul.f32 %v2709, %v2709
      %v2796 = vmul.f32 %v2714, %v2714
      %v2797 = vmul.f32 %v2717, %v2717
      %v2798 = vmul.f32 %v2722, %v2722
      %v2799 = vmul.f32 %v2725, %v2725
      %v2800 = vmul.f32 %v2730, %v2730
      %v2801 = vmul.f32 %v2733, %v2733
      %v2802 = vmul.f32 %v2738, %v2738
      %v2803 = vmul.f32 %v2741, %v2741
      %v2804 = vmul.f32 %v2746, %v2746
      %v2805 = vmul.f32 %v2749, %v2749
      %v2806 = vadd.f32 %v2790, %v2791
      %v2807 = vadd.f32 %v2806, %v2792
      %v2808 = vadd.f32 %v2807, %v2793
      %v2809 = vadd.f32 %v2808, %v2794
      %v2810 = vadd.f32 %v2809, %v2795
      %v2811 = vadd.f32 %v2810, %v2796
      %v2812 = vadd.f32 %v2811, %v2797
      %v2813 = vadd.f32 %v2812, %v2798
      %v2814 = vadd.f32 %v2813, %v2799
      %v2815 = vadd.f32 %v2814, %v2800
      %v2816 = vadd.f32 %v2815, %v2801
      %v2817 = vadd.f32 %v2816, %v2802
      %v2818 = vadd.f32 %v2817, %v2803
      %v2819 = vadd.f32 %v2818, %v2804
      %v2820 = vadd.f32 %v2819, %v2805
      %v2821 = vrot.slane %v2820, 4
      %v2822 = vadd.f32 %v2820, %v2821
      %v2823 = vrot.slane %v2822, 2
      %v2824 = vadd.f32 %v2822, %v2823
      %v2825 = vrot.slane %v2824, 1
      %v2826 = vadd.f32 %v2824, %v2825
      %2827 = vst [vmem:[%s181 + $0x1] sm:$0x1] %v2826
      %p2828 = scmp.lt.s32.totalorder %s15, 1
      %s2829 = scalar_select %p2828, %s15, 1
      %s2830 = smul.addr %s2829, 16
      %s2831 = smul.addr %s2830, 8
      %s2832 = scalar_lea.vmem %s2, %s2831
      %p2833 = scmp.lt.s32.totalorder %s15, 1
      %s2834 = scalar_select %p2833, %s15, 1
      %s2835 = smul.addr %s2834, 2
      %s2836 = scalar_lea.vmem %s3, %s2835
      // Predicated region
      $region29: #{discriminator_pallas.7} parent=27 // pred_check
        %p2837 = pneg %p80
      $region30: #{discriminator_pallas.7} parent=27 // pred_check_branch
        %2839 = sbr.rel (%p2837) target = $region32
      $region31: #{discriminator_pallas.7} parent=27 // pred_region
        _
      $region32: #{discriminator_pallas.7} parent=27 // pred_fallthru
        _
      // Predicated region
      $region33: #{discriminator_pallas.7} parent=27 // pred_check
        %p2840 = pneg %p106
      $region34: #{discriminator_pallas.7} parent=27 // pred_check_branch
        %2842 = sbr.rel (%p2840) target = $region36
      $region35: #{discriminator_pallas.7} parent=27 // pred_region
        _
      $region36: #{discriminator_pallas.7} parent=27 // pred_fallthru
        _
    $region28: #{discriminator_pallas.7} parent=5 // pred_fallthru
      _
    %p2843 = scmp.le.s32.totalorder 2, %s10
    // Predicated region
    $region37: #{discriminator_pallas.7} parent=5 // pred_check
      %p2844 = pneg %p2843
    $region38: #{discriminator_pallas.7} parent=5 // pred_check_branch
      %2846 = sbr.rel (%p2844) target = $region40
    $region39: #{discriminator_pallas.7} parent=5 // pred_region
      %s2847 = ssub.s32 %s10, 2
      // Predicated region
      $region41: #{discriminator_pallas.7} parent=39 // pred_check
        %p2848 = pneg %p86
      $region42: #{discriminator_pallas.7} parent=39 // pred_check_branch
        %2850 = sbr.rel (%p2848) target = $region44
      $region43: #{discriminator_pallas.7} parent=39 // pred_region
        %p2851 = scmp.lt.s32.totalorder %s16, 1
        %s2852 = scalar_select %p2851, %s16, 1
        %s2853 = smul.addr %s2852, 16
        %s2854 = smul.addr %s2853, 8
        %s2855 = scalar_lea.vmem %s2, %s2854
      $region44: #{discriminator_pallas.7} parent=39 // pred_fallthru
        _
      // Predicated region
      $region45: #{discriminator_pallas.7} parent=39 // pred_check
        %p2856 = pneg %p112
      $region46: #{discriminator_pallas.7} parent=39 // pred_check_branch
        %2858 = sbr.rel (%p2856) target = $region48
      $region47: #{discriminator_pallas.7} parent=39 // pred_region
        %p2859 = scmp.lt.s32.totalorder %s16, 1
        %s2860 = scalar_select %p2859, %s16, 1
        %s2861 = smul.addr %s2860, 2
        %s2862 = scalar_lea.vmem %s3, %s2861
      $region48: #{discriminator_pallas.7} parent=39 // pred_fallthru
        _
    $region40: #{discriminator_pallas.7} parent=5 // pred_fallthru
      _
  $region6: #{discriminator_pallas.7} parent=0 // loop_footer
    %s14 = sadd.s32 1, %s10
  $region7: #{discriminator_pallas.7} parent=0 // loop_footer_branch
    %9 = sbr.rel target = $region3
  $region8: #{discriminator_pallas.7} parent=0 // loop_exit
    _

// kernel: discriminator_pallas.8
$region0: #{discriminator_pallas.8}
  #allocation0 [shape = 'u32[]', space=smem, size = 0x4, offset = 0x4, fixed_abs, tag = 'smem constant byte address 0x4 - core index']
  #allocation1 [shape = 'u32[144,128]{1,0:T(1,128)}', space=vmem, size = 0x12000, scoped, tag = 'internal scratch']
  %s0 = inlined_call_operand.vmem [shape: bf16[2,80,1024], index: 0, kind: input, shape index: {}]
  %s1 = inlined_call_operand.vmem [shape: bf16[2,1024,128], index: 1, kind: input, shape index: {}]
  %s2 = inlined_call_operand.vmem [shape: f32[2,64,128], index: 2, kind: output, shape index: {0}]
  %s3 = inlined_call_operand.vmem [shape: f32[2,2,128], index: 3, kind: output, shape index: {1}]
  %4 = xla_tuple %s2, %s3
  %s5 = sld [smem:[#allocation0]]
  $region49: #{discriminator_pallas.8} parent=0
    _
  %s7 = ssub.s32 1, %s5
  %s8 = scalar_select 0, %s7, %s5
  loop: start=0, step=1, limit=4
  $region2: #{discriminator_pallas.8} parent=0 // loop_pre_header
    _
  $region3: #{discriminator_pallas.8} parent=0 // loop_header
    %s10 = sphi 0, %s14
    %p11 = scmp.ge.s32.totalorder %s10, 4
    %s20 = sphi 0, %s22
    %s23 = sphi 0, %s20
    %s24 = sphi 0, %s23
    %s40 = sphi 0, %s24
    %s44 = sphi 0, %s44
    %s46 = sphi 0, %s44
    %s47 = sphi 0, %s46
    %s61 = sphi 0, %s47
    %s67 = sphi 0, %s69
    %s70 = sphi 0, %s67
    %s71 = sphi 0, %s70
    %s87 = sphi 0, %s71
    %s93 = sphi 0, %s95
    %s96 = sphi 0, %s93
    %s97 = sphi 0, %s96
    %s113 = sphi 0, %s97
  $region4: #{discriminator_pallas.8} parent=0 // loop_header_branch
    %13 = sbr.rel (%p11) target = $region8
  $region5: #{discriminator_pallas.8} parent=0 // loop_body
    %s15 = ssub.s32 %s10, 1
    %s16 = ssub.s32 %s10, 2
    %s17 = sadd.s32 %s10, 1
    %s18 = ssub.s32 %s10, %s17
    %p19 = scmp.eq.s32.totalorder %s18, 0
    %s21 = sadd.s32 %s20, 1
    %s22 = scalar_select %p19, %s20, %s21
    %p25 = pneg %p19
    %p26 = scmp.eq.s32.totalorder %s10, 1
    %p27 = por %p25, %p26
    %p28 = scmp.ne.s32.totalorder %s20, %s23
    %p29 = scmp.eq.s32.totalorder %s10, 0
    %p30 = por %p28, %p29
    %p31 = scmp.ne.s32.totalorder %s20, %s23
    %p32 = scmp.eq.s32.totalorder %s15, 1
    %p33 = por %p31, %p32
    %p34 = scmp.ne.s32.totalorder %s23, %s24
    %p35 = scmp.eq.s32.totalorder %s15, 0
    %p36 = por %p34, %p35
    %p37 = scmp.ne.s32.totalorder %s23, %s24
    %p38 = scmp.eq.s32.totalorder %s16, 1
    %p39 = por %p37, %p38
    %p41 = scmp.ne.s32.totalorder %s24, %s40
    %p42 = scmp.eq.s32.totalorder %s16, 0
    %p43 = por %p41, %p42
    %s45 = sadd.s32 %s44, 1
    %p48 = scmp.eq.s32.totalorder %s10, 1
    %p49 = scmp.ne.s32.totalorder %s44, %s46
    %p50 = scmp.eq.s32.totalorder %s10, 0
    %p51 = por %p49, %p50
    %p52 = scmp.ne.s32.totalorder %s44, %s46
    %p53 = scmp.eq.s32.totalorder %s15, 1
    %p54 = por %p52, %p53
    %p55 = scmp.ne.s32.totalorder %s46, %s47
    %p56 = scmp.eq.s32.totalorder %s15, 0
    %p57 = por %p55, %p56
    %p58 = scmp.ne.s32.totalorder %s46, %s47
    %p59 = scmp.eq.s32.totalorder %s16, 1
    %p60 = por %p58, %p59
    %p62 = scmp.ne.s32.totalorder %s47, %s61
    %p63 = scmp.eq.s32.totalorder %s16, 0
    %p64 = por %p62, %p63
    %s65 = ssub.s32 %s10, %s17
    %p66 = scmp.eq.s32.totalorder %s65, 0
    %s68 = sadd.s32 %s67, 1
    %s69 = scalar_select %p66, %s67, %s68
    %p72 = pneg %p66
    %p73 = scmp.eq.s32.totalorder %s10, 1
    %p74 = por %p72, %p73
    %p75 = scmp.ne.s32.totalorder %s67, %s70
    %p76 = scmp.eq.s32.totalorder %s10, 0
    %p77 = por %p75, %p76
    %p78 = scmp.ne.s32.totalorder %s67, %s70
    %p79 = scmp.eq.s32.totalorder %s15, 1
    %p80 = por %p78, %p79
    %p81 = scmp.ne.s32.totalorder %s70, %s71
    %p82 = scmp.eq.s32.totalorder %s15, 0
    %p83 = por %p81, %p82
    %p84 = scmp.ne.s32.totalorder %s70, %s71
    %p85 = scmp.eq.s32.totalorder %s16, 1
    %p86 = por %p84, %p85
    %p88 = scmp.ne.s32.totalorder %s71, %s87
    %p89 = scmp.eq.s32.totalorder %s16, 0
    %p90 = por %p88, %p89
    %s91 = ssub.s32 %s10, %s17
    %p92 = scmp.eq.s32.totalorder %s91, 0
    %s94 = sadd.s32 %s93, 1
    %s95 = scalar_select %p92, %s93, %s94
    %p98 = pneg %p92
    %p99 = scmp.eq.s32.totalorder %s10, 1
    %p100 = por %p98, %p99
    %p101 = scmp.ne.s32.totalorder %s93, %s96
    %p102 = scmp.eq.s32.totalorder %s10, 0
    %p103 = por %p101, %p102
    %p104 = scmp.ne.s32.totalorder %s93, %s96
    %p105 = scmp.eq.s32.totalorder %s15, 1
    %p106 = por %p104, %p105
    %p107 = scmp.ne.s32.totalorder %s96, %s97
    %p108 = scmp.eq.s32.totalorder %s15, 0
    %p109 = por %p107, %p108
    %p110 = scmp.ne.s32.totalorder %s96, %s97
    %p111 = scmp.eq.s32.totalorder %s16, 1
    %p112 = por %p110, %p111
    %p114 = scmp.ne.s32.totalorder %s97, %s113
    %p115 = scmp.eq.s32.totalorder %s16, 0
    %p116 = por %p114, %p115
    %p117 = scmp.le.s32.totalorder 1, %s10
    %p118 = scmp.lt.s32.totalorder %s10, 3
    %p119 = pnand %p117, %p118
    %p120 = pneg %p119
    // Predicated region
    $region9: #{discriminator_pallas.8} parent=5 // pred_check
      _
    $region10: #{discriminator_pallas.8} parent=5 // pred_check_branch
      %122 = sbr.rel (%p119) target = $region12
    $region11: #{discriminator_pallas.8} parent=5 // pred_region
      %s123 = ssub.s32 %s10, 1
      // Predicated region
      $region13: #{discriminator_pallas.8} parent=11 // pred_check
        %p124 = pneg %p57
      $region14: #{discriminator_pallas.8} parent=11 // pred_check_branch
        %126 = sbr.rel (%p124) target = $region16
      $region15: #{discriminator_pallas.8} parent=11 // pred_region
        _
      $region16: #{discriminator_pallas.8} parent=11 // pred_fallthru
        _
    $region12: #{discriminator_pallas.8} parent=5 // pred_fallthru
      _
    %p127 = scmp.lt.s32.totalorder %s10, 2
    // Predicated region
    $region17: #{discriminator_pallas.8} parent=5 // pred_check
      %p128 = pneg %p127
    $region18: #{discriminator_pallas.8} parent=5 // pred_check_branch
      %130 = sbr.rel (%p128) target = $region20
    $region19: #{discriminator_pallas.8} parent=5 // pred_region
      // Predicated region
      $region21: #{discriminator_pallas.8} parent=19 // pred_check
        %p131 = pneg %p30
      $region22: #{discriminator_pallas.8} parent=19 // pred_check_branch
        %133 = sbr.rel (%p131) target = $region24
      $region23: #{discriminator_pallas.8} parent=19 // pred_region
        %p134 = scmp.lt.s32.totalorder %s10, 1
        %s135 = scalar_select %p134, %s10, 1
        %s136 = smul.addr %s135, 80
        %s137 = smul.addr %s136, 4
        %s138 = scalar_lea.vmem %s0, %s137
      $region24: #{discriminator_pallas.8} parent=19 // pred_fallthru
        _
    $region20: #{discriminator_pallas.8} parent=5 // pred_fallthru
      _
    %p139 = scmp.le.s32.totalorder 1, %s10
    %p140 = scmp.lt.s32.totalorder %s10, 3
    %p141 = pnand %p139, %p140
    %p142 = pneg %p141
    // Predicated region
    $region25: #{discriminator_pallas.8} parent=5 // pred_check
      _
    $region26: #{discriminator_pallas.8} parent=5 // pred_check_branch
      %144 = sbr.rel (%p141) target = $region28
    $region27: #{discriminator_pallas.8} parent=5 // pred_region
      %s145 = ssub.s32 %s10, 1
      %p146 = scmp.lt.s32.totalorder %s15, 1
      %s147 = scalar_select %p146, %s15, 1
      %s148 = smul.addr %s147, 80
      %s149 = smul.addr %s148, 4
      %s150 = scalar_lea.vmem %s0, %s149
      %p151 = pneg %p36
      %p152 = pneg %p33
      %p153 = pneg %p57
      %p154 = pneg %p54
      %p155 = pneg %p83
      %p156 = pneg %p80
      %p157 = scmp.lt.s32.totalorder %s15, 1
      %s158 = scalar_select %p157, %s15, 1
      %s159 = smul.addr %s158, 8
      %s160 = smul.addr %s159, 8
      %s161 = scalar_lea.vmem %s2, %s160
      %p162 = pneg %p109
      %p163 = pneg %p106
      %p164 = scmp.lt.s32.totalorder %s15, 1
      %s165 = scalar_select %p164, %s15, 1
      %s166 = smul.addr %s165, 2
      %s167 = scalar_lea.vmem %s3, %s166
      %p168 = scmp.lt.s32.totalorder %s15, 1
      %s169 = scalar_select %p168, %s15, 1
      %s170 = smul.addr %s169, 80
      %s171 = smul.addr %s170, 4
      %s172 = scalar_lea.vmem %s0, %s171
      %p173 = scmp.lt.s32.totalorder %s15, 1
      %s174 = scalar_select %p173, %s15, 1
      %s175 = smul.addr %s174, 8
      %s176 = smul.addr %s175, 8
      %s177 = scalar_lea.vmem %s2, %s176
      %p178 = scmp.lt.s32.totalorder %s15, 1
      %s179 = scalar_select %p178, %s15, 1
      %s180 = smul.addr %s179, 2
      %s181 = scalar_lea.vmem %s3, %s180
      %v183 = vld [vmem:[%s172] sm:$0xff]
      %v184 = vld [vmem:[%s172 + $0x8] sm:$0xff]
      %v185 = vld [vmem:[%s172 + $0x10] sm:$0xff]
      %v186 = vld [vmem:[%s172 + $0x18] sm:$0xff]
      %v187 = vld [vmem:[%s172 + $0x20] sm:$0xff]
      %v188 = vld [vmem:[%s172 + $0x28] sm:$0xff]
      %v189 = vld [vmem:[%s172 + $0x30] sm:$0xff]
      %v190 = vld [vmem:[%s172 + $0x38] sm:$0xff]
      %v191 = vld [vmem:[%s172 + $0x40] sm:$0xff]
      %v192 = vld [vmem:[%s172 + $0x48] sm:$0xff]
      %v193 = vld [vmem:[%s172 + $0x50] sm:$0xff]
      %v194 = vld [vmem:[%s172 + $0x58] sm:$0xff]
      %v195 = vld [vmem:[%s172 + $0x60] sm:$0xff]
      %v196 = vld [vmem:[%s172 + $0x68] sm:$0xff]
      %v197 = vld [vmem:[%s172 + $0x70] sm:$0xff]
      %v198 = vld [vmem:[%s172 + $0x78] sm:$0xff]
      %v199 = vld [vmem:[%s172 + $0x80] sm:$0xff]
      %v200 = vld [vmem:[%s172 + $0x88] sm:$0xff]
      %v201 = vld [vmem:[%s172 + $0x90] sm:$0xff]
      %v202 = vld [vmem:[%s172 + $0x98] sm:$0xff]
      %v203 = vld [vmem:[%s172 + $0xa0] sm:$0xff]
      %v204 = vld [vmem:[%s172 + $0xa8] sm:$0xff]
      %v205 = vld [vmem:[%s172 + $0xb0] sm:$0xff]
      %v206 = vld [vmem:[%s172 + $0xb8] sm:$0xff]
      %v207 = vld [vmem:[%s172 + $0xc0] sm:$0xff]
      %v208 = vld [vmem:[%s172 + $0xc8] sm:$0xff]
      %v209 = vld [vmem:[%s172 + $0xd0] sm:$0xff]
      %v210 = vld [vmem:[%s172 + $0xd8] sm:$0xff]
      %v211 = vld [vmem:[%s172 + $0xe0] sm:$0xff]
      %v212 = vld [vmem:[%s172 + $0xe8] sm:$0xff]
      %v213 = vld [vmem:[%s172 + $0xf0] sm:$0xff]
      %v214 = vld [vmem:[%s172 + $0xf8] sm:$0xff]
      %v215 = vld [vmem:[%s172 + $0x40] sm:$0xff]
      %v216 = vld [vmem:[%s172 + $0x48] sm:$0xff]
      %v217 = vld [vmem:[%s172 + $0x50] sm:$0xff]
      %v218 = vld [vmem:[%s172 + $0x58] sm:$0xff]
      %v219 = vld [vmem:[%s172 + $0x60] sm:$0xff]
      %v220 = vld [vmem:[%s172 + $0x68] sm:$0xff]
      %v221 = vld [vmem:[%s172 + $0x70] sm:$0xff]
      %v222 = vld [vmem:[%s172 + $0x78] sm:$0xff]
      %v223 = vld [vmem:[%s172 + $0x80] sm:$0xff]
      %v224 = vld [vmem:[%s172 + $0x88] sm:$0xff]
      %v225 = vld [vmem:[%s172 + $0x90] sm:$0xff]
      %v226 = vld [vmem:[%s172 + $0x98] sm:$0xff]
      %v227 = vld [vmem:[%s172 + $0xa0] sm:$0xff]
      %v228 = vld [vmem:[%s172 + $0xa8] sm:$0xff]
      %v229 = vld [vmem:[%s172 + $0xb0] sm:$0xff]
      %v230 = vld [vmem:[%s172 + $0xb8] sm:$0xff]
      %v231 = vld [vmem:[%s172 + $0xc0] sm:$0xff]
      %v232 = vld [vmem:[%s172 + $0xc8] sm:$0xff]
      %v233 = vld [vmem:[%s172 + $0xd0] sm:$0xff]
      %v234 = vld [vmem:[%s172 + $0xd8] sm:$0xff]
      %v235 = vld [vmem:[%s172 + $0xe0] sm:$0xff]
      %v236 = vld [vmem:[%s172 + $0xe8] sm:$0xff]
      %v237 = vld [vmem:[%s172 + $0xf0] sm:$0xff]
      %v238 = vld [vmem:[%s172 + $0xf8] sm:$0xff]
      %v239 = vld [vmem:[%s172 + $0x100] sm:$0xff]
      %v240 = vld [vmem:[%s172 + $0x108] sm:$0xff]
      %v241 = vld [vmem:[%s172 + $0x110] sm:$0xff]
      %v242 = vld [vmem:[%s172 + $0x118] sm:$0xff]
      %v243 = vld [vmem:[%s172 + $0x120] sm:$0xff]
      %v244 = vld [vmem:[%s172 + $0x128] sm:$0xff]
      %v245 = vld [vmem:[%s172 + $0x130] sm:$0xff]
      %v246 = vld [vmem:[%s172 + $0x138] sm:$0xff]
      %v247 = vld [vmem:[%s1] sm:$0xf]
      %v248 = vld [vmem:[%s1 + $0x4] sm:$0xf]
      %v249 = vld [vmem:[%s1 + $0x8] sm:$0xf]
      %v250 = vld [vmem:[%s1 + $0xc] sm:$0xf]
      %v251 = vld [vmem:[%s1 + $0x10] sm:$0xf]
      %v252 = vld [vmem:[%s1 + $0x14] sm:$0xf]
      %v253 = vld [vmem:[%s1 + $0x18] sm:$0xf]
      %v254 = vld [vmem:[%s1 + $0x1c] sm:$0xf]
      %v255 = vld [vmem:[%s1 + $0x20] sm:$0xf]
      %v256 = vld [vmem:[%s1 + $0x24] sm:$0xf]
      %v257 = vld [vmem:[%s1 + $0x28] sm:$0xf]
      %v258 = vld [vmem:[%s1 + $0x2c] sm:$0xf]
      %v259 = vld [vmem:[%s1 + $0x30] sm:$0xf]
      %v260 = vld [vmem:[%s1 + $0x34] sm:$0xf]
      %v261 = vld [vmem:[%s1 + $0x38] sm:$0xf]
      %v262 = vld [vmem:[%s1 + $0x3c] sm:$0xf]
      %v263 = vld [vmem:[%s1 + $0x40] sm:$0xf]
      %v264 = vld [vmem:[%s1 + $0x44] sm:$0xf]
      %v265 = vld [vmem:[%s1 + $0x48] sm:$0xf]
      %v266 = vld [vmem:[%s1 + $0x4c] sm:$0xf]
      %v267 = vld [vmem:[%s1 + $0x50] sm:$0xf]
      %v268 = vld [vmem:[%s1 + $0x54] sm:$0xf]
      %v269 = vld [vmem:[%s1 + $0x58] sm:$0xf]
      %v270 = vld [vmem:[%s1 + $0x5c] sm:$0xf]
      %v271 = vld [vmem:[%s1 + $0x60] sm:$0xf]
      %v272 = vld [vmem:[%s1 + $0x64] sm:$0xf]
      %v273 = vld [vmem:[%s1 + $0x68] sm:$0xf]
      %v274 = vld [vmem:[%s1 + $0x6c] sm:$0xf]
      %v275 = vld [vmem:[%s1 + $0x70] sm:$0xf]
      %v276 = vld [vmem:[%s1 + $0x74] sm:$0xf]
      %v277 = vld [vmem:[%s1 + $0x78] sm:$0xf]
      %v278 = vld [vmem:[%s1 + $0x7c] sm:$0xf]
      %v279 = vld [vmem:[%s1 + $0x80] sm:$0xf]
      %v280 = vld [vmem:[%s1 + $0x84] sm:$0xf]
      %v281 = vld [vmem:[%s1 + $0x88] sm:$0xf]
      %v282 = vld [vmem:[%s1 + $0x8c] sm:$0xf]
      %v283 = vld [vmem:[%s1 + $0x90] sm:$0xf]
      %v284 = vld [vmem:[%s1 + $0x94] sm:$0xf]
      %v285 = vld [vmem:[%s1 + $0x98] sm:$0xf]
      %v286 = vld [vmem:[%s1 + $0x9c] sm:$0xf]
      %v287 = vld [vmem:[%s1 + $0xa0] sm:$0xf]
      %v288 = vld [vmem:[%s1 + $0xa4] sm:$0xf]
      %v289 = vld [vmem:[%s1 + $0xa8] sm:$0xf]
      %v290 = vld [vmem:[%s1 + $0xac] sm:$0xf]
      %v291 = vld [vmem:[%s1 + $0xb0] sm:$0xf]
      %v292 = vld [vmem:[%s1 + $0xb4] sm:$0xf]
      %v293 = vld [vmem:[%s1 + $0xb8] sm:$0xf]
      %v294 = vld [vmem:[%s1 + $0xbc] sm:$0xf]
      %v295 = vld [vmem:[%s1 + $0xc0] sm:$0xf]
      %v296 = vld [vmem:[%s1 + $0xc4] sm:$0xf]
      %v297 = vld [vmem:[%s1 + $0xc8] sm:$0xf]
      %v298 = vld [vmem:[%s1 + $0xcc] sm:$0xf]
      %v299 = vld [vmem:[%s1 + $0xd0] sm:$0xf]
      %v300 = vld [vmem:[%s1 + $0xd4] sm:$0xf]
      %v301 = vld [vmem:[%s1 + $0xd8] sm:$0xf]
      %v302 = vld [vmem:[%s1 + $0xdc] sm:$0xf]
      %v303 = vld [vmem:[%s1 + $0xe0] sm:$0xf]
      %v304 = vld [vmem:[%s1 + $0xe4] sm:$0xf]
      %v305 = vld [vmem:[%s1 + $0xe8] sm:$0xf]
      %v306 = vld [vmem:[%s1 + $0xec] sm:$0xf]
      %v307 = vld [vmem:[%s1 + $0xf0] sm:$0xf]
      %v308 = vld [vmem:[%s1 + $0xf4] sm:$0xf]
      %v309 = vld [vmem:[%s1 + $0xf8] sm:$0xf]
      %v310 = vld [vmem:[%s1 + $0xfc] sm:$0xf]
      %v311 = vld [vmem:[%s1 + $0x100] sm:$0xf]
      %v312 = vld [vmem:[%s1 + $0x104] sm:$0xf]
      %v313 = vld [vmem:[%s1 + $0x108] sm:$0xf]
      %v314 = vld [vmem:[%s1 + $0x10c] sm:$0xf]
      %v315 = vld [vmem:[%s1 + $0x110] sm:$0xf]
      %v316 = vld [vmem:[%s1 + $0x114] sm:$0xf]
      %v317 = vld [vmem:[%s1 + $0x118] sm:$0xf]
      %v318 = vld [vmem:[%s1 + $0x11c] sm:$0xf]
      %v319 = vld [vmem:[%s1 + $0x120] sm:$0xf]
      %v320 = vld [vmem:[%s1 + $0x124] sm:$0xf]
      %v321 = vld [vmem:[%s1 + $0x128] sm:$0xf]
      %v322 = vld [vmem:[%s1 + $0x12c] sm:$0xf]
      %v323 = vld [vmem:[%s1 + $0x130] sm:$0xf]
      %v324 = vld [vmem:[%s1 + $0x134] sm:$0xf]
      %v325 = vld [vmem:[%s1 + $0x138] sm:$0xf]
      %v326 = vld [vmem:[%s1 + $0x13c] sm:$0xf]
      %v327 = vld [vmem:[%s1 + $0x140] sm:$0xf]
      %v328 = vld [vmem:[%s1 + $0x144] sm:$0xf]
      %v329 = vld [vmem:[%s1 + $0x148] sm:$0xf]
      %v330 = vld [vmem:[%s1 + $0x14c] sm:$0xf]
      %v331 = vld [vmem:[%s1 + $0x150] sm:$0xf]
      %v332 = vld [vmem:[%s1 + $0x154] sm:$0xf]
      %v333 = vld [vmem:[%s1 + $0x158] sm:$0xf]
      %v334 = vld [vmem:[%s1 + $0x15c] sm:$0xf]
      %v335 = vld [vmem:[%s1 + $0x160] sm:$0xf]
      %v336 = vld [vmem:[%s1 + $0x164] sm:$0xf]
      %v337 = vld [vmem:[%s1 + $0x168] sm:$0xf]
      %v338 = vld [vmem:[%s1 + $0x16c] sm:$0xf]
      %v339 = vld [vmem:[%s1 + $0x170] sm:$0xf]
      %v340 = vld [vmem:[%s1 + $0x174] sm:$0xf]
      %v341 = vld [vmem:[%s1 + $0x178] sm:$0xf]
      %v342 = vld [vmem:[%s1 + $0x17c] sm:$0xf]
      %v343 = vld [vmem:[%s1 + $0x180] sm:$0xf]
      %v344 = vld [vmem:[%s1 + $0x184] sm:$0xf]
      %v345 = vld [vmem:[%s1 + $0x188] sm:$0xf]
      %v346 = vld [vmem:[%s1 + $0x18c] sm:$0xf]
      %v347 = vld [vmem:[%s1 + $0x190] sm:$0xf]
      %v348 = vld [vmem:[%s1 + $0x194] sm:$0xf]
      %v349 = vld [vmem:[%s1 + $0x198] sm:$0xf]
      %v350 = vld [vmem:[%s1 + $0x19c] sm:$0xf]
      %v351 = vld [vmem:[%s1 + $0x1a0] sm:$0xf]
      %v352 = vld [vmem:[%s1 + $0x1a4] sm:$0xf]
      %v353 = vld [vmem:[%s1 + $0x1a8] sm:$0xf]
      %v354 = vld [vmem:[%s1 + $0x1ac] sm:$0xf]
      %v355 = vld [vmem:[%s1 + $0x1b0] sm:$0xf]
      %v356 = vld [vmem:[%s1 + $0x1b4] sm:$0xf]
      %v357 = vld [vmem:[%s1 + $0x1b8] sm:$0xf]
      %v358 = vld [vmem:[%s1 + $0x1bc] sm:$0xf]
      %v359 = vld [vmem:[%s1 + $0x1c0] sm:$0xf]
      %v360 = vld [vmem:[%s1 + $0x1c4] sm:$0xf]
      %v361 = vld [vmem:[%s1 + $0x1c8] sm:$0xf]
      %v362 = vld [vmem:[%s1 + $0x1cc] sm:$0xf]
      %v363 = vld [vmem:[%s1 + $0x1d0] sm:$0xf]
      %v364 = vld [vmem:[%s1 + $0x1d4] sm:$0xf]
      %v365 = vld [vmem:[%s1 + $0x1d8] sm:$0xf]
      %v366 = vld [vmem:[%s1 + $0x1dc] sm:$0xf]
      %v367 = vld [vmem:[%s1 + $0x1e0] sm:$0xf]
      %v368 = vld [vmem:[%s1 + $0x1e4] sm:$0xf]
      %v369 = vld [vmem:[%s1 + $0x1e8] sm:$0xf]
      %v370 = vld [vmem:[%s1 + $0x1ec] sm:$0xf]
      %v371 = vld [vmem:[%s1 + $0x1f0] sm:$0xf]
      %v372 = vld [vmem:[%s1 + $0x1f4] sm:$0xf]
      %v373 = vld [vmem:[%s1 + $0x1f8] sm:$0xf]
      %v374 = vld [vmem:[%s1 + $0x1fc] sm:$0xf]
      %s375 = scalar_lea.vmem %s1, 512
      %v376 = vld [vmem:[%s375] sm:$0xf]
      %v377 = vld [vmem:[%s375 + $0x4] sm:$0xf]
      %v378 = vld [vmem:[%s375 + $0x8] sm:$0xf]
      %v379 = vld [vmem:[%s375 + $0xc] sm:$0xf]
      %v380 = vld [vmem:[%s375 + $0x10] sm:$0xf]
      %v381 = vld [vmem:[%s375 + $0x14] sm:$0xf]
      %v382 = vld [vmem:[%s375 + $0x18] sm:$0xf]
      %v383 = vld [vmem:[%s375 + $0x1c] sm:$0xf]
      %v384 = vld [vmem:[%s375 + $0x20] sm:$0xf]
      %v385 = vld [vmem:[%s375 + $0x24] sm:$0xf]
      %v386 = vld [vmem:[%s375 + $0x28] sm:$0xf]
      %v387 = vld [vmem:[%s375 + $0x2c] sm:$0xf]
      %v388 = vld [vmem:[%s375 + $0x30] sm:$0xf]
      %v389 = vld [vmem:[%s375 + $0x34] sm:$0xf]
      %v390 = vld [vmem:[%s375 + $0x38] sm:$0xf]
      %v391 = vld [vmem:[%s375 + $0x3c] sm:$0xf]
      %v392 = vld [vmem:[%s375 + $0x40] sm:$0xf]
      %v393 = vld [vmem:[%s375 + $0x44] sm:$0xf]
      %v394 = vld [vmem:[%s375 + $0x48] sm:$0xf]
      %v395 = vld [vmem:[%s375 + $0x4c] sm:$0xf]
      %v396 = vld [vmem:[%s375 + $0x50] sm:$0xf]
      %v397 = vld [vmem:[%s375 + $0x54] sm:$0xf]
      %v398 = vld [vmem:[%s375 + $0x58] sm:$0xf]
      %v399 = vld [vmem:[%s375 + $0x5c] sm:$0xf]
      %v400 = vld [vmem:[%s375 + $0x60] sm:$0xf]
      %v401 = vld [vmem:[%s375 + $0x64] sm:$0xf]
      %v402 = vld [vmem:[%s375 + $0x68] sm:$0xf]
      %v403 = vld [vmem:[%s375 + $0x6c] sm:$0xf]
      %v404 = vld [vmem:[%s375 + $0x70] sm:$0xf]
      %v405 = vld [vmem:[%s375 + $0x74] sm:$0xf]
      %v406 = vld [vmem:[%s375 + $0x78] sm:$0xf]
      %v407 = vld [vmem:[%s375 + $0x7c] sm:$0xf]
      %v408 = vld [vmem:[%s375 + $0x80] sm:$0xf]
      %v409 = vld [vmem:[%s375 + $0x84] sm:$0xf]
      %v410 = vld [vmem:[%s375 + $0x88] sm:$0xf]
      %v411 = vld [vmem:[%s375 + $0x8c] sm:$0xf]
      %v412 = vld [vmem:[%s375 + $0x90] sm:$0xf]
      %v413 = vld [vmem:[%s375 + $0x94] sm:$0xf]
      %v414 = vld [vmem:[%s375 + $0x98] sm:$0xf]
      %v415 = vld [vmem:[%s375 + $0x9c] sm:$0xf]
      %v416 = vld [vmem:[%s375 + $0xa0] sm:$0xf]
      %v417 = vld [vmem:[%s375 + $0xa4] sm:$0xf]
      %v418 = vld [vmem:[%s375 + $0xa8] sm:$0xf]
      %v419 = vld [vmem:[%s375 + $0xac] sm:$0xf]
      %v420 = vld [vmem:[%s375 + $0xb0] sm:$0xf]
      %v421 = vld [vmem:[%s375 + $0xb4] sm:$0xf]
      %v422 = vld [vmem:[%s375 + $0xb8] sm:$0xf]
      %v423 = vld [vmem:[%s375 + $0xbc] sm:$0xf]
      %v424 = vld [vmem:[%s375 + $0xc0] sm:$0xf]
      %v425 = vld [vmem:[%s375 + $0xc4] sm:$0xf]
      %v426 = vld [vmem:[%s375 + $0xc8] sm:$0xf]
      %v427 = vld [vmem:[%s375 + $0xcc] sm:$0xf]
      %v428 = vld [vmem:[%s375 + $0xd0] sm:$0xf]
      %v429 = vld [vmem:[%s375 + $0xd4] sm:$0xf]
      %v430 = vld [vmem:[%s375 + $0xd8] sm:$0xf]
      %v431 = vld [vmem:[%s375 + $0xdc] sm:$0xf]
      %v432 = vld [vmem:[%s375 + $0xe0] sm:$0xf]
      %v433 = vld [vmem:[%s375 + $0xe4] sm:$0xf]
      %v434 = vld [vmem:[%s375 + $0xe8] sm:$0xf]
      %v435 = vld [vmem:[%s375 + $0xec] sm:$0xf]
      %v436 = vld [vmem:[%s375 + $0xf0] sm:$0xf]
      %v437 = vld [vmem:[%s375 + $0xf4] sm:$0xf]
      %v438 = vld [vmem:[%s375 + $0xf8] sm:$0xf]
      %v439 = vld [vmem:[%s375 + $0xfc] sm:$0xf]
      %v440 = vld [vmem:[%s375 + $0x100] sm:$0xf]
      %v441 = vld [vmem:[%s375 + $0x104] sm:$0xf]
      %v442 = vld [vmem:[%s375 + $0x108] sm:$0xf]
      %v443 = vld [vmem:[%s375 + $0x10c] sm:$0xf]
      %v444 = vld [vmem:[%s375 + $0x110] sm:$0xf]
      %v445 = vld [vmem:[%s375 + $0x114] sm:$0xf]
      %v446 = vld [vmem:[%s375 + $0x118] sm:$0xf]
      %v447 = vld [vmem:[%s375 + $0x11c] sm:$0xf]
      %v448 = vld [vmem:[%s375 + $0x120] sm:$0xf]
      %v449 = vld [vmem:[%s375 + $0x124] sm:$0xf]
      %v450 = vld [vmem:[%s375 + $0x128] sm:$0xf]
      %v451 = vld [vmem:[%s375 + $0x12c] sm:$0xf]
      %v452 = vld [vmem:[%s375 + $0x130] sm:$0xf]
      %v453 = vld [vmem:[%s375 + $0x134] sm:$0xf]
      %v454 = vld [vmem:[%s375 + $0x138] sm:$0xf]
      %v455 = vld [vmem:[%s375 + $0x13c] sm:$0xf]
      %v456 = vld [vmem:[%s375 + $0x140] sm:$0xf]
      %v457 = vld [vmem:[%s375 + $0x144] sm:$0xf]
      %v458 = vld [vmem:[%s375 + $0x148] sm:$0xf]
      %v459 = vld [vmem:[%s375 + $0x14c] sm:$0xf]
      %v460 = vld [vmem:[%s375 + $0x150] sm:$0xf]
      %v461 = vld [vmem:[%s375 + $0x154] sm:$0xf]
      %v462 = vld [vmem:[%s375 + $0x158] sm:$0xf]
      %v463 = vld [vmem:[%s375 + $0x15c] sm:$0xf]
      %v464 = vld [vmem:[%s375 + $0x160] sm:$0xf]
      %v465 = vld [vmem:[%s375 + $0x164] sm:$0xf]
      %v466 = vld [vmem:[%s375 + $0x168] sm:$0xf]
      %v467 = vld [vmem:[%s375 + $0x16c] sm:$0xf]
      %v468 = vld [vmem:[%s375 + $0x170] sm:$0xf]
      %v469 = vld [vmem:[%s375 + $0x174] sm:$0xf]
      %v470 = vld [vmem:[%s375 + $0x178] sm:$0xf]
      %v471 = vld [vmem:[%s375 + $0x17c] sm:$0xf]
      %v472 = vld [vmem:[%s375 + $0x180] sm:$0xf]
      %v473 = vld [vmem:[%s375 + $0x184] sm:$0xf]
      %v474 = vld [vmem:[%s375 + $0x188] sm:$0xf]
      %v475 = vld [vmem:[%s375 + $0x18c] sm:$0xf]
      %v476 = vld [vmem:[%s375 + $0x190] sm:$0xf]
      %v477 = vld [vmem:[%s375 + $0x194] sm:$0xf]
      %v478 = vld [vmem:[%s375 + $0x198] sm:$0xf]
      %v479 = vld [vmem:[%s375 + $0x19c] sm:$0xf]
      %v480 = vld [vmem:[%s375 + $0x1a0] sm:$0xf]
      %v481 = vld [vmem:[%s375 + $0x1a4] sm:$0xf]
      %v482 = vld [vmem:[%s375 + $0x1a8] sm:$0xf]
      %v483 = vld [vmem:[%s375 + $0x1ac] sm:$0xf]
      %v484 = vld [vmem:[%s375 + $0x1b0] sm:$0xf]
      %v485 = vld [vmem:[%s375 + $0x1b4] sm:$0xf]
      %v486 = vld [vmem:[%s375 + $0x1b8] sm:$0xf]
      %v487 = vld [vmem:[%s375 + $0x1bc] sm:$0xf]
      %v488 = vld [vmem:[%s375 + $0x1c0] sm:$0xf]
      %v489 = vld [vmem:[%s375 + $0x1c4] sm:$0xf]
      %v490 = vld [vmem:[%s375 + $0x1c8] sm:$0xf]
      %v491 = vld [vmem:[%s375 + $0x1cc] sm:$0xf]
      %v492 = vld [vmem:[%s375 + $0x1d0] sm:$0xf]
      %v493 = vld [vmem:[%s375 + $0x1d4] sm:$0xf]
      %v494 = vld [vmem:[%s375 + $0x1d8] sm:$0xf]
      %v495 = vld [vmem:[%s375 + $0x1dc] sm:$0xf]
      %v496 = vld [vmem:[%s375 + $0x1e0] sm:$0xf]
      %v497 = vld [vmem:[%s375 + $0x1e4] sm:$0xf]
      %v498 = vld [vmem:[%s375 + $0x1e8] sm:$0xf]
      %v499 = vld [vmem:[%s375 + $0x1ec] sm:$0xf]
      %v500 = vld [vmem:[%s375 + $0x1f0] sm:$0xf]
      %v501 = vld [vmem:[%s375 + $0x1f4] sm:$0xf]
      %v502 = vld [vmem:[%s375 + $0x1f8] sm:$0xf]
      %v503 = vld [vmem:[%s375 + $0x1fc] sm:$0xf]
      %v536 = vunpack.c.l.b16 %v215
      %v537 = vunpack.c.h.b16 %v215
      %v538 = vunpack.c.l.b16 %v216
      %v539 = vunpack.c.h.b16 %v216
      %v540 = vunpack.c.l.b16 %v217
      %v541 = vunpack.c.h.b16 %v217
      %v542 = vunpack.c.l.b16 %v218
      %v543 = vunpack.c.h.b16 %v218
      %v544 = vunpack.c.l.b16 %v219
      %v545 = vunpack.c.h.b16 %v219
      %v546 = vunpack.c.l.b16 %v220
      %v547 = vunpack.c.h.b16 %v220
      %v548 = vunpack.c.l.b16 %v221
      %v549 = vunpack.c.h.b16 %v221
      %v550 = vunpack.c.l.b16 %v222
      %v551 = vunpack.c.h.b16 %v222
      %v552 = vunpack.c.l.b16 %v223
      %v553 = vunpack.c.h.b16 %v223
      %v554 = vunpack.c.l.b16 %v224
      %v555 = vunpack.c.h.b16 %v224
      %v556 = vunpack.c.l.b16 %v225
      %v557 = vunpack.c.h.b16 %v225
      %v558 = vunpack.c.l.b16 %v226
      %v559 = vunpack.c.h.b16 %v226
      %v560 = vunpack.c.l.b16 %v227
      %v561 = vunpack.c.h.b16 %v227
      %v562 = vunpack.c.l.b16 %v228
      %v563 = vunpack.c.h.b16 %v228
      %v564 = vunpack.c.l.b16 %v229
      %v565 = vunpack.c.h.b16 %v229
      %v566 = vunpack.c.l.b16 %v230
      %v567 = vunpack.c.h.b16 %v230
      %v568 = vunpack.c.l.b16 %v231
      %v569 = vunpack.c.h.b16 %v231
      %v570 = vunpack.c.l.b16 %v232
      %v571 = vunpack.c.h.b16 %v232
      %v572 = vunpack.c.l.b16 %v233
      %v573 = vunpack.c.h.b16 %v233
      %v574 = vunpack.c.l.b16 %v234
      %v575 = vunpack.c.h.b16 %v234
      %v576 = vunpack.c.l.b16 %v235
      %v577 = vunpack.c.h.b16 %v235
      %v578 = vunpack.c.l.b16 %v236
      %v579 = vunpack.c.h.b16 %v236
      %v580 = vunpack.c.l.b16 %v237
      %v581 = vunpack.c.h.b16 %v237
      %v582 = vunpack.c.l.b16 %v238
      %v583 = vunpack.c.h.b16 %v238
      %v584 = vunpack.c.l.b16 %v239
      %v585 = vunpack.c.h.b16 %v239
      %v586 = vunpack.c.l.b16 %v240
      %v587 = vunpack.c.h.b16 %v240
      %v588 = vunpack.c.l.b16 %v241
      %v589 = vunpack.c.h.b16 %v241
      %v590 = vunpack.c.l.b16 %v242
      %v591 = vunpack.c.h.b16 %v242
      %v592 = vunpack.c.l.b16 %v243
      %v593 = vunpack.c.h.b16 %v243
      %v594 = vunpack.c.l.b16 %v244
      %v595 = vunpack.c.h.b16 %v244
      %v596 = vunpack.c.l.b16 %v245
      %v597 = vunpack.c.h.b16 %v245
      %v598 = vunpack.c.l.b16 %v246
      %v599 = vunpack.c.h.b16 %v246
      %v600 = vpack.c.b16 %v544, %v536
      %v601 = vpack.c.b16 %v545, %v537
      %v602 = vpack.c.b16 %v546, %v538
      %v603 = vpack.c.b16 %v547, %v539
      %v604 = vpack.c.b16 %v548, %v540
      %v605 = vpack.c.b16 %v549, %v541
      %v606 = vpack.c.b16 %v550, %v542
      %v607 = vpack.c.b16 %v551, %v543
      %v608 = vpack.c.b16 %v560, %v552
      %v609 = vpack.c.b16 %v561, %v553
      %v610 = vpack.c.b16 %v562, %v554
      %v611 = vpack.c.b16 %v563, %v555
      %v612 = vpack.c.b16 %v564, %v556
      %v613 = vpack.c.b16 %v565, %v557
      %v614 = vpack.c.b16 %v566, %v558
      %v615 = vpack.c.b16 %v567, %v559
      %v616 = vpack.c.b16 %v576, %v568
      %v617 = vpack.c.b16 %v577, %v569
      %v618 = vpack.c.b16 %v578, %v570
      %v619 = vpack.c.b16 %v579, %v571
      %v620 = vpack.c.b16 %v580, %v572
      %v621 = vpack.c.b16 %v581, %v573
      %v622 = vpack.c.b16 %v582, %v574
      %v623 = vpack.c.b16 %v583, %v575
      %v624 = vpack.c.b16 %v592, %v584
      %v625 = vpack.c.b16 %v593, %v585
      %v626 = vpack.c.b16 %v594, %v586
      %v627 = vpack.c.b16 %v595, %v587
      %v628 = vpack.c.b16 %v596, %v588
      %v629 = vpack.c.b16 %v597, %v589
      %v630 = vpack.c.b16 %v598, %v590
      %v631 = vpack.c.b16 %v599, %v591
      %v792 = vunpack.c.l.b16 %v376
      %v793 = vunpack.c.l.b16 %v377
      %v794 = vunpack.c.l.b16 %v378
      %v795 = vunpack.c.l.b16 %v379
      %v796 = vunpack.c.l.b16 %v380
      %v797 = vunpack.c.l.b16 %v381
      %v798 = vunpack.c.l.b16 %v382
      %v799 = vunpack.c.l.b16 %v383
      %v800 = vunpack.c.l.b16 %v384
      %v801 = vunpack.c.l.b16 %v385
      %v802 = vunpack.c.l.b16 %v386
      %v803 = vunpack.c.l.b16 %v387
      %v804 = vunpack.c.l.b16 %v388
      %v805 = vunpack.c.l.b16 %v389
      %v806 = vunpack.c.l.b16 %v390
      %v807 = vunpack.c.l.b16 %v391
      %v808 = vunpack.c.l.b16 %v392
      %v809 = vunpack.c.l.b16 %v393
      %v810 = vunpack.c.l.b16 %v394
      %v811 = vunpack.c.l.b16 %v395
      %v812 = vunpack.c.l.b16 %v396
      %v813 = vunpack.c.l.b16 %v397
      %v814 = vunpack.c.l.b16 %v398
      %v815 = vunpack.c.l.b16 %v399
      %v816 = vunpack.c.l.b16 %v400
      %v817 = vunpack.c.l.b16 %v401
      %v818 = vunpack.c.l.b16 %v402
      %v819 = vunpack.c.l.b16 %v403
      %v820 = vunpack.c.l.b16 %v404
      %v821 = vunpack.c.l.b16 %v405
      %v822 = vunpack.c.l.b16 %v406
      %v823 = vunpack.c.l.b16 %v407
      %v824 = vunpack.c.l.b16 %v408
      %v825 = vunpack.c.l.b16 %v409
      %v826 = vunpack.c.l.b16 %v410
      %v827 = vunpack.c.l.b16 %v411
      %v828 = vunpack.c.l.b16 %v412
      %v829 = vunpack.c.l.b16 %v413
      %v830 = vunpack.c.l.b16 %v414
      %v831 = vunpack.c.l.b16 %v415
      %v832 = vunpack.c.l.b16 %v416
      %v833 = vunpack.c.l.b16 %v417
      %v834 = vunpack.c.l.b16 %v418
      %v835 = vunpack.c.l.b16 %v419
      %v836 = vunpack.c.l.b16 %v420
      %v837 = vunpack.c.l.b16 %v421
      %v838 = vunpack.c.l.b16 %v422
      %v839 = vunpack.c.l.b16 %v423
      %v840 = vunpack.c.l.b16 %v424
      %v841 = vunpack.c.l.b16 %v425
      %v842 = vunpack.c.l.b16 %v426
      %v843 = vunpack.c.l.b16 %v427
      %v844 = vunpack.c.l.b16 %v428
      %v845 = vunpack.c.l.b16 %v429
      %v846 = vunpack.c.l.b16 %v430
      %v847 = vunpack.c.l.b16 %v431
      %v848 = vunpack.c.l.b16 %v432
      %v849 = vunpack.c.l.b16 %v433
      %v850 = vunpack.c.l.b16 %v434
      %v851 = vunpack.c.l.b16 %v435
      %v852 = vunpack.c.l.b16 %v436
      %v853 = vunpack.c.l.b16 %v437
      %v854 = vunpack.c.l.b16 %v438
      %v855 = vunpack.c.l.b16 %v439
      %v856 = vunpack.c.l.b16 %v440
      %v857 = vunpack.c.l.b16 %v441
      %v858 = vunpack.c.l.b16 %v442
      %v859 = vunpack.c.l.b16 %v443
      %v860 = vunpack.c.l.b16 %v444
      %v861 = vunpack.c.l.b16 %v445
      %v862 = vunpack.c.l.b16 %v446
      %v863 = vunpack.c.l.b16 %v447
      %v864 = vunpack.c.l.b16 %v448
      %v865 = vunpack.c.l.b16 %v449
      %v866 = vunpack.c.l.b16 %v450
      %v867 = vunpack.c.l.b16 %v451
      %v868 = vunpack.c.l.b16 %v452
      %v869 = vunpack.c.l.b16 %v453
      %v870 = vunpack.c.l.b16 %v454
      %v871 = vunpack.c.l.b16 %v455
      %v872 = vunpack.c.l.b16 %v456
      %v873 = vunpack.c.l.b16 %v457
      %v874 = vunpack.c.l.b16 %v458
      %v875 = vunpack.c.l.b16 %v459
      %v876 = vunpack.c.l.b16 %v460
      %v877 = vunpack.c.l.b16 %v461
      %v878 = vunpack.c.l.b16 %v462
      %v879 = vunpack.c.l.b16 %v463
      %v880 = vunpack.c.l.b16 %v464
      %v881 = vunpack.c.l.b16 %v465
      %v882 = vunpack.c.l.b16 %v466
      %v883 = vunpack.c.l.b16 %v467
      %v884 = vunpack.c.l.b16 %v468
      %v885 = vunpack.c.l.b16 %v469
      %v886 = vunpack.c.l.b16 %v470
      %v887 = vunpack.c.l.b16 %v471
      %v888 = vunpack.c.l.b16 %v472
      %v889 = vunpack.c.l.b16 %v473
      %v890 = vunpack.c.l.b16 %v474
      %v891 = vunpack.c.l.b16 %v475
      %v892 = vunpack.c.l.b16 %v476
      %v893 = vunpack.c.l.b16 %v477
      %v894 = vunpack.c.l.b16 %v478
      %v895 = vunpack.c.l.b16 %v479
      %v896 = vunpack.c.l.b16 %v480
      %v897 = vunpack.c.l.b16 %v481
      %v898 = vunpack.c.l.b16 %v482
      %v899 = vunpack.c.l.b16 %v483
      %v900 = vunpack.c.l.b16 %v484
      %v901 = vunpack.c.l.b16 %v485
      %v902 = vunpack.c.l.b16 %v486
      %v903 = vunpack.c.l.b16 %v487
      %v904 = vunpack.c.l.b16 %v488
      %v905 = vunpack.c.l.b16 %v489
      %v906 = vunpack.c.l.b16 %v490
      %v907 = vunpack.c.l.b16 %v491
      %v908 = vunpack.c.l.b16 %v492
      %v909 = vunpack.c.l.b16 %v493
      %v910 = vunpack.c.l.b16 %v494
      %v911 = vunpack.c.l.b16 %v495
      %v912 = vunpack.c.l.b16 %v496
      %v913 = vunpack.c.l.b16 %v497
      %v914 = vunpack.c.l.b16 %v498
      %v915 = vunpack.c.l.b16 %v499
      %v916 = vunpack.c.l.b16 %v500
      %v917 = vunpack.c.l.b16 %v501
      %v918 = vunpack.c.l.b16 %v502
      %v919 = vunpack.c.l.b16 %v503
      %v920 = vpack.c.b16 %v793, %v792
      %v921 = vpack.c.b16 %v795, %v794
      %v922 = vpack.c.b16 %v797, %v796
      %v923 = vpack.c.b16 %v799, %v798
      %v924 = vpack.c.b16 %v801, %v800
      %v925 = vpack.c.b16 %v803, %v802
      %v926 = vpack.c.b16 %v805, %v804
      %v927 = vpack.c.b16 %v807, %v806
      %v928 = vpack.c.b16 %v809, %v808
      %v929 = vpack.c.b16 %v811, %v810
      %v930 = vpack.c.b16 %v813, %v812
      %v931 = vpack.c.b16 %v815, %v814
      %v932 = vpack.c.b16 %v817, %v816
      %v933 = vpack.c.b16 %v819, %v818
      %v934 = vpack.c.b16 %v821, %v820
      %v935 = vpack.c.b16 %v823, %v822
      %v936 = vpack.c.b16 %v825, %v824
      %v937 = vpack.c.b16 %v827, %v826
      %v938 = vpack.c.b16 %v829, %v828
      %v939 = vpack.c.b16 %v831, %v830
      %v940 = vpack.c.b16 %v833, %v832
      %v941 = vpack.c.b16 %v835, %v834
      %v942 = vpack.c.b16 %v837, %v836
      %v943 = vpack.c.b16 %v839, %v838
      %v944 = vpack.c.b16 %v841, %v840
      %v945 = vpack.c.b16 %v843, %v842
      %v946 = vpack.c.b16 %v845, %v844
      %v947 = vpack.c.b16 %v847, %v846
      %v948 = vpack.c.b16 %v849, %v848
      %v949 = vpack.c.b16 %v851, %v850
      %v950 = vpack.c.b16 %v853, %v852
      %v951 = vpack.c.b16 %v855, %v854
      %v952 = vpack.c.b16 %v857, %v856
      %v953 = vpack.c.b16 %v859, %v858
      %v954 = vpack.c.b16 %v861, %v860
      %v955 = vpack.c.b16 %v863, %v862
      %v956 = vpack.c.b16 %v865, %v864
      %v957 = vpack.c.b16 %v867, %v866
      %v958 = vpack.c.b16 %v869, %v868
      %v959 = vpack.c.b16 %v871, %v870
      %v960 = vpack.c.b16 %v873, %v872
      %v961 = vpack.c.b16 %v875, %v874
      %v962 = vpack.c.b16 %v877, %v876
      %v963 = vpack.c.b16 %v879, %v878
      %v964 = vpack.c.b16 %v881, %v880
      %v965 = vpack.c.b16 %v883, %v882
      %v966 = vpack.c.b16 %v885, %v884
      %v967 = vpack.c.b16 %v887, %v886
      %v968 = vpack.c.b16 %v889, %v888
      %v969 = vpack.c.b16 %v891, %v890
      %v970 = vpack.c.b16 %v893, %v892
      %v971 = vpack.c.b16 %v895, %v894
      %v972 = vpack.c.b16 %v897, %v896
      %v973 = vpack.c.b16 %v899, %v898
      %v974 = vpack.c.b16 %v901, %v900
      %v975 = vpack.c.b16 %v903, %v902
      %v976 = vpack.c.b16 %v905, %v904
      %v977 = vpack.c.b16 %v907, %v906
      %v978 = vpack.c.b16 %v909, %v908
      %v979 = vpack.c.b16 %v911, %v910
      %v980 = vpack.c.b16 %v913, %v912
      %v981 = vpack.c.b16 %v915, %v914
      %v982 = vpack.c.b16 %v917, %v916
      %v983 = vpack.c.b16 %v919, %v918
      %1048 = vmatprep.subr.bf16.mxu0 0
      %1049 = vmatpush1.bf16.msra.mxu0 %v927
      %1050 = vmatprep.subr.bf16.mxu0 0
      %1051 = vmatpush1.bf16.msra.mxu0 %v926
      %1052 = vmatprep.subr.bf16.mxu0 0
      %1053 = vmatpush1.bf16.msra.mxu0 %v925
      %1054 = vmatprep.subr.bf16.mxu0 0
      %1055 = vmatpush1.bf16.msra.mxu0 %v924
      %1056 = vmatprep.subr.bf16.mxu0 0
      %1057 = vmatpush1.bf16.msra.mxu0 %v923
      %1058 = vmatprep.subr.bf16.mxu0 0
      %1059 = vmatpush1.bf16.msra.mxu0 %v922
      %1060 = vmatprep.subr.bf16.mxu0 0
      %1061 = vmatpush1.bf16.msra.mxu0 %v921
      %1062 = vmatprep.subr.bf16.mxu0 0
      %1063 = vmatpush1.bf16.msra.mxu0 %v920
      %1064 = vmatprep.subr.bf16.mxu0 0
      %1065 = vmatpush2.bf16.msra.mxu0 %v935
      %1066 = vmatprep.subr.bf16.mxu0 0
      %1067 = vmatpush2.bf16.msra.mxu0 %v934
      %1068 = vmatprep.subr.bf16.mxu0 0
      %1069 = vmatpush2.bf16.msra.mxu0 %v933
      %1070 = vmatprep.subr.bf16.mxu0 0
      %1071 = vmatpush2.bf16.msra.mxu0 %v932
      %1072 = vmatprep.subr.bf16.mxu0 0
      %1073 = vmatpush2.bf16.msra.mxu0 %v931
      %1074 = vmatprep.subr.bf16.mxu0 0
      %1075 = vmatpush2.bf16.msra.mxu0 %v930
      %1076 = vmatprep.subr.bf16.mxu0 0
      %1077 = vmatpush2.bf16.msra.mxu0 %v929
      %1078 = vmatprep.subr.bf16.mxu0 0
      %1079 = vmatpush2.bf16.msra.mxu0 %v928
      %1080 = vmatprep.mubr.bf16.mxu0 %v601
      %1081 = vmatmul.mubr.bf16.gmra.mxu0 %v600
      %v1082 = vpop.f32.mrf.mxu0
      %v1083 = vadd.f32 0.0, %v1082
      %v1084 = vpop.f32.mrf.mxu0
      %v1085 = vpop.f32.mrf.mxu0
      %v1086 = vadd.f32 0.0, %v1085
      %v1087 = vpop.f32.mrf.mxu0
      %1088 = vmatprep.mubr.bf16.mxu0 %v609
      %1089 = vmatmul.mubr.bf16.gmra.mxu0 %v608
      %v1090 = vpop.f32.mrf.mxu0
      %v1091 = vadd.f32 0.0, %v1090
      %v1092 = vpop.f32.mrf.mxu0
      %v1093 = vpop.f32.mrf.mxu0
      %v1094 = vadd.f32 0.0, %v1093
      %v1095 = vpop.f32.mrf.mxu0
      %1096 = vmatprep.mubr.bf16.mxu0 %v617
      %1097 = vmatmul.mubr.bf16.gmra.mxu0 %v616
      %v1098 = vpop.f32.mrf.mxu0
      %v1099 = vadd.f32 0.0, %v1098
      %v1100 = vpop.f32.mrf.mxu0
      %v1101 = vpop.f32.mrf.mxu0
      %v1102 = vadd.f32 0.0, %v1101
      %v1103 = vpop.f32.mrf.mxu0
      %1104 = vmatprep.mubr.bf16.mxu0 %v625
      %1105 = vmatmul.mubr.bf16.gmra.mxu0 %v624
      %v1106 = vpop.f32.mrf.mxu0
      %v1107 = vadd.f32 0.0, %v1106
      %v1108 = vpop.f32.mrf.mxu0
      %v1109 = vpop.f32.mrf.mxu0
      %v1110 = vadd.f32 0.0, %v1109
      %v1111 = vpop.f32.mrf.mxu0
      %1112 = vdwg.mxu0
      %1113 = vmatprep.subr.bf16.mxu0 0
      %1114 = vmatpush1.bf16.msra.mxu0 %v943
      %1115 = vmatprep.subr.bf16.mxu0 0
      %1116 = vmatpush1.bf16.msra.mxu0 %v942
      %1117 = vmatprep.subr.bf16.mxu0 0
      %1118 = vmatpush1.bf16.msra.mxu0 %v941
      %1119 = vmatprep.subr.bf16.mxu0 0
      %1120 = vmatpush1.bf16.msra.mxu0 %v940
      %1121 = vmatprep.subr.bf16.mxu0 0
      %1122 = vmatpush1.bf16.msra.mxu0 %v939
      %1123 = vmatprep.subr.bf16.mxu0 0
      %1124 = vmatpush1.bf16.msra.mxu0 %v938
      %1125 = vmatprep.subr.bf16.mxu0 0
      %1126 = vmatpush1.bf16.msra.mxu0 %v937
      %1127 = vmatprep.subr.bf16.mxu0 0
      %1128 = vmatpush1.bf16.msra.mxu0 %v936
      %1129 = vmatprep.subr.bf16.mxu0 0
      %1130 = vmatpush2.bf16.msra.mxu0 %v951
      %1131 = vmatprep.subr.bf16.mxu0 0
      %1132 = vmatpush2.bf16.msra.mxu0 %v950
      %1133 = vmatprep.subr.bf16.mxu0 0
      %1134 = vmatpush2.bf16.msra.mxu0 %v949
      %1135 = vmatprep.subr.bf16.mxu0 0
      %1136 = vmatpush2.bf16.msra.mxu0 %v948
      %1137 = vmatprep.subr.bf16.mxu0 0
      %1138 = vmatpush2.bf16.msra.mxu0 %v947
      %1139 = vmatprep.subr.bf16.mxu0 0
      %1140 = vmatpush2.bf16.msra.mxu0 %v946
      %1141 = vmatprep.subr.bf16.mxu0 0
      %1142 = vmatpush2.bf16.msra.mxu0 %v945
      %1143 = vmatprep.subr.bf16.mxu0 0
      %1144 = vmatpush2.bf16.msra.mxu0 %v944
      %1145 = vmatprep.mubr.bf16.mxu0 %v603
      %1146 = vmatmul.mubr.bf16.gmra.mxu0 %v602
      %v1147 = vpop.f32.mrf.mxu0
      %v1148 = vadd.f32 %v1083, %v1147
      %v1149 = vpop.f32.mrf.mxu0
      %v1150 = vpop.f32.mrf.mxu0
      %v1151 = vadd.f32 %v1086, %v1150
      %v1152 = vpop.f32.mrf.mxu0
      %1153 = vmatprep.mubr.bf16.mxu0 %v611
      %1154 = vmatmul.mubr.bf16.gmra.mxu0 %v610
      %v1155 = vpop.f32.mrf.mxu0
      %v1156 = vadd.f32 %v1091, %v1155
      %v1157 = vpop.f32.mrf.mxu0
      %v1158 = vpop.f32.mrf.mxu0
      %v1159 = vadd.f32 %v1094, %v1158
      %v1160 = vpop.f32.mrf.mxu0
      %1161 = vmatprep.mubr.bf16.mxu0 %v619
      %1162 = vmatmul.mubr.bf16.gmra.mxu0 %v618
      %v1163 = vpop.f32.mrf.mxu0
      %v1164 = vadd.f32 %v1099, %v1163
      %v1165 = vpop.f32.mrf.mxu0
      %v1166 = vpop.f32.mrf.mxu0
      %v1167 = vadd.f32 %v1102, %v1166
      %v1168 = vpop.f32.mrf.mxu0
      %1169 = vmatprep.mubr.bf16.mxu0 %v627
      %1170 = vmatmul.mubr.bf16.gmra.mxu0 %v626
      %v1171 = vpop.f32.mrf.mxu0
      %v1172 = vadd.f32 %v1107, %v1171
      %v1173 = vpop.f32.mrf.mxu0
      %v1174 = vpop.f32.mrf.mxu0
      %v1175 = vadd.f32 %v1110, %v1174
      %v1176 = vpop.f32.mrf.mxu0
      %1177 = vdwg.mxu0
      %1178 = vmatprep.subr.bf16.mxu0 0
      %1179 = vmatpush1.bf16.msra.mxu0 %v959
      %1180 = vmatprep.subr.bf16.mxu0 0
      %1181 = vmatpush1.bf16.msra.mxu0 %v958
      %1182 = vmatprep.subr.bf16.mxu0 0
      %1183 = vmatpush1.bf16.msra.mxu0 %v957
      %1184 = vmatprep.subr.bf16.mxu0 0
      %1185 = vmatpush1.bf16.msra.mxu0 %v956
      %1186 = vmatprep.subr.bf16.mxu0 0
      %1187 = vmatpush1.bf16.msra.mxu0 %v955
      %1188 = vmatprep.subr.bf16.mxu0 0
      %1189 = vmatpush1.bf16.msra.mxu0 %v954
      %1190 = vmatprep.subr.bf16.mxu0 0
      %1191 = vmatpush1.bf16.msra.mxu0 %v953
      %1192 = vmatprep.subr.bf16.mxu0 0
      %1193 = vmatpush1.bf16.msra.mxu0 %v952
      %1194 = vmatprep.subr.bf16.mxu0 0
      %1195 = vmatpush2.bf16.msra.mxu0 %v967
      %1196 = vmatprep.subr.bf16.mxu0 0
      %1197 = vmatpush2.bf16.msra.mxu0 %v966
      %1198 = vmatprep.subr.bf16.mxu0 0
      %1199 = vmatpush2.bf16.msra.mxu0 %v965
      %1200 = vmatprep.subr.bf16.mxu0 0
      %1201 = vmatpush2.bf16.msra.mxu0 %v964
      %1202 = vmatprep.subr.bf16.mxu0 0
      %1203 = vmatpush2.bf16.msra.mxu0 %v963
      %1204 = vmatprep.subr.bf16.mxu0 0
      %1205 = vmatpush2.bf16.msra.mxu0 %v962
      %1206 = vmatprep.subr.bf16.mxu0 0
      %1207 = vmatpush2.bf16.msra.mxu0 %v961
      %1208 = vmatprep.subr.bf16.mxu0 0
      %1209 = vmatpush2.bf16.msra.mxu0 %v960
      %1210 = vmatprep.mubr.bf16.mxu0 %v605
      %1211 = vmatmul.mubr.bf16.gmra.mxu0 %v604
      %v1212 = vpop.f32.mrf.mxu0
      %v1213 = vadd.f32 %v1148, %v1212
      %v1214 = vpop.f32.mrf.mxu0
      %v1215 = vpop.f32.mrf.mxu0
      %v1216 = vadd.f32 %v1151, %v1215
      %v1217 = vpop.f32.mrf.mxu0
      %1218 = vmatprep.mubr.bf16.mxu0 %v613
      %1219 = vmatmul.mubr.bf16.gmra.mxu0 %v612
      %v1220 = vpop.f32.mrf.mxu0
      %v1221 = vadd.f32 %v1156, %v1220
      %v1222 = vpop.f32.mrf.mxu0
      %v1223 = vpop.f32.mrf.mxu0
      %v1224 = vadd.f32 %v1159, %v1223
      %v1225 = vpop.f32.mrf.mxu0
      %1226 = vmatprep.mubr.bf16.mxu0 %v621
      %1227 = vmatmul.mubr.bf16.gmra.mxu0 %v620
      %v1228 = vpop.f32.mrf.mxu0
      %v1229 = vadd.f32 %v1164, %v1228
      %v1230 = vpop.f32.mrf.mxu0
      %v1231 = vpop.f32.mrf.mxu0
      %v1232 = vadd.f32 %v1167, %v1231
      %v1233 = vpop.f32.mrf.mxu0
      %1234 = vmatprep.mubr.bf16.mxu0 %v629
      %1235 = vmatmul.mubr.bf16.gmra.mxu0 %v628
      %v1236 = vpop.f32.mrf.mxu0
      %v1237 = vadd.f32 %v1172, %v1236
      %v1238 = vpop.f32.mrf.mxu0
      %v1239 = vpop.f32.mrf.mxu0
      %v1240 = vadd.f32 %v1175, %v1239
      %v1241 = vpop.f32.mrf.mxu0
      %1242 = vdwg.mxu0
      %1243 = vmatprep.subr.bf16.mxu0 0
      %1244 = vmatpush1.bf16.msra.mxu0 %v975
      %1245 = vmatprep.subr.bf16.mxu0 0
      %1246 = vmatpush1.bf16.msra.mxu0 %v974
      %1247 = vmatprep.subr.bf16.mxu0 0
      %1248 = vmatpush1.bf16.msra.mxu0 %v973
      %1249 = vmatprep.subr.bf16.mxu0 0
      %1250 = vmatpush1.bf16.msra.mxu0 %v972
      %1251 = vmatprep.subr.bf16.mxu0 0
      %1252 = vmatpush1.bf16.msra.mxu0 %v971
      %1253 = vmatprep.subr.bf16.mxu0 0
      %1254 = vmatpush1.bf16.msra.mxu0 %v970
      %1255 = vmatprep.subr.bf16.mxu0 0
      %1256 = vmatpush1.bf16.msra.mxu0 %v969
      %1257 = vmatprep.subr.bf16.mxu0 0
      %1258 = vmatpush1.bf16.msra.mxu0 %v968
      %1259 = vmatprep.subr.bf16.mxu0 0
      %1260 = vmatpush2.bf16.msra.mxu0 %v983
      %1261 = vmatprep.subr.bf16.mxu0 0
      %1262 = vmatpush2.bf16.msra.mxu0 %v982
      %1263 = vmatprep.subr.bf16.mxu0 0
      %1264 = vmatpush2.bf16.msra.mxu0 %v981
      %1265 = vmatprep.subr.bf16.mxu0 0
      %1266 = vmatpush2.bf16.msra.mxu0 %v980
      %1267 = vmatprep.subr.bf16.mxu0 0
      %1268 = vmatpush2.bf16.msra.mxu0 %v979
      %1269 = vmatprep.subr.bf16.mxu0 0
      %1270 = vmatpush2.bf16.msra.mxu0 %v978
      %1271 = vmatprep.subr.bf16.mxu0 0
      %1272 = vmatpush2.bf16.msra.mxu0 %v977
      %1273 = vmatprep.subr.bf16.mxu0 0
      %1274 = vmatpush2.bf16.msra.mxu0 %v976
      %1275 = vmatprep.mubr.bf16.mxu0 %v607
      %1276 = vmatmul.mubr.bf16.gmra.mxu0 %v606
      %v1277 = vpop.f32.mrf.mxu0
      %v1278 = vadd.f32 %v1213, %v1277
      %v1279 = vpop.f32.mrf.mxu0
      %v1280 = vpop.f32.mrf.mxu0
      %v1281 = vadd.f32 %v1216, %v1280
      %v1282 = vpop.f32.mrf.mxu0
      %1283 = vmatprep.mubr.bf16.mxu0 %v615
      %1284 = vmatmul.mubr.bf16.gmra.mxu0 %v614
      %v1285 = vpop.f32.mrf.mxu0
      %v1286 = vadd.f32 %v1221, %v1285
      %v1287 = vpop.f32.mrf.mxu0
      %v1288 = vpop.f32.mrf.mxu0
      %v1289 = vadd.f32 %v1224, %v1288
      %v1290 = vpop.f32.mrf.mxu0
      %1291 = vmatprep.mubr.bf16.mxu0 %v623
      %1292 = vmatmul.mubr.bf16.gmra.mxu0 %v622
      %v1293 = vpop.f32.mrf.mxu0
      %v1294 = vadd.f32 %v1229, %v1293
      %v1295 = vpop.f32.mrf.mxu0
      %v1296 = vpop.f32.mrf.mxu0
      %v1297 = vadd.f32 %v1232, %v1296
      %v1298 = vpop.f32.mrf.mxu0
      %1299 = vmatprep.mubr.bf16.mxu0 %v631
      %1300 = vmatmul.mubr.bf16.gmra.mxu0 %v630
      %v1301 = vpop.f32.mrf.mxu0
      %v1302 = vadd.f32 %v1237, %v1301
      %v1303 = vpop.f32.mrf.mxu0
      %v1304 = vpop.f32.mrf.mxu0
      %v1305 = vadd.f32 %v1240, %v1304
      %v1306 = vpop.f32.mrf.mxu0
      %1307 = vdwg.mxu0
      %v1340 = vunpack.c.l.b16 %v183
      %v1341 = vunpack.c.h.b16 %v183
      %v1342 = vunpack.c.l.b16 %v184
      %v1343 = vunpack.c.h.b16 %v184
      %v1344 = vunpack.c.l.b16 %v185
      %v1345 = vunpack.c.h.b16 %v185
      %v1346 = vunpack.c.l.b16 %v186
      %v1347 = vunpack.c.h.b16 %v186
      %v1348 = vunpack.c.l.b16 %v187
      %v1349 = vunpack.c.h.b16 %v187
      %v1350 = vunpack.c.l.b16 %v188
      %v1351 = vunpack.c.h.b16 %v188
      %v1352 = vunpack.c.l.b16 %v189
      %v1353 = vunpack.c.h.b16 %v189
      %v1354 = vunpack.c.l.b16 %v190
      %v1355 = vunpack.c.h.b16 %v190
      %v1356 = vunpack.c.l.b16 %v191
      %v1357 = vunpack.c.h.b16 %v191
      %v1358 = vunpack.c.l.b16 %v192
      %v1359 = vunpack.c.h.b16 %v192
      %v1360 = vunpack.c.l.b16 %v193
      %v1361 = vunpack.c.h.b16 %v193
      %v1362 = vunpack.c.l.b16 %v194
      %v1363 = vunpack.c.h.b16 %v194
      %v1364 = vunpack.c.l.b16 %v195
      %v1365 = vunpack.c.h.b16 %v195
      %v1366 = vunpack.c.l.b16 %v196
      %v1367 = vunpack.c.h.b16 %v196
      %v1368 = vunpack.c.l.b16 %v197
      %v1369 = vunpack.c.h.b16 %v197
      %v1370 = vunpack.c.l.b16 %v198
      %v1371 = vunpack.c.h.b16 %v198
      %v1372 = vunpack.c.l.b16 %v199
      %v1373 = vunpack.c.h.b16 %v199
      %v1374 = vunpack.c.l.b16 %v200
      %v1375 = vunpack.c.h.b16 %v200
      %v1376 = vunpack.c.l.b16 %v201
      %v1377 = vunpack.c.h.b16 %v201
      %v1378 = vunpack.c.l.b16 %v202
      %v1379 = vunpack.c.h.b16 %v202
      %v1380 = vunpack.c.l.b16 %v203
      %v1381 = vunpack.c.h.b16 %v203
      %v1382 = vunpack.c.l.b16 %v204
      %v1383 = vunpack.c.h.b16 %v204
      %v1384 = vunpack.c.l.b16 %v205
      %v1385 = vunpack.c.h.b16 %v205
      %v1386 = vunpack.c.l.b16 %v206
      %v1387 = vunpack.c.h.b16 %v206
      %v1388 = vunpack.c.l.b16 %v207
      %v1389 = vunpack.c.h.b16 %v207
      %v1390 = vunpack.c.l.b16 %v208
      %v1391 = vunpack.c.h.b16 %v208
      %v1392 = vunpack.c.l.b16 %v209
      %v1393 = vunpack.c.h.b16 %v209
      %v1394 = vunpack.c.l.b16 %v210
      %v1395 = vunpack.c.h.b16 %v210
      %v1396 = vunpack.c.l.b16 %v211
      %v1397 = vunpack.c.h.b16 %v211
      %v1398 = vunpack.c.l.b16 %v212
      %v1399 = vunpack.c.h.b16 %v212
      %v1400 = vunpack.c.l.b16 %v213
      %v1401 = vunpack.c.h.b16 %v213
      %v1402 = vunpack.c.l.b16 %v214
      %v1403 = vunpack.c.h.b16 %v214
      %v1404 = vpack.c.b16 %v1348, %v1340
      %v1405 = vpack.c.b16 %v1349, %v1341
      %v1406 = vpack.c.b16 %v1350, %v1342
      %v1407 = vpack.c.b16 %v1351, %v1343
      %v1408 = vpack.c.b16 %v1352, %v1344
      %v1409 = vpack.c.b16 %v1353, %v1345
      %v1410 = vpack.c.b16 %v1354, %v1346
      %v1411 = vpack.c.b16 %v1355, %v1347
      %v1412 = vpack.c.b16 %v1364, %v1356
      %v1413 = vpack.c.b16 %v1365, %v1357
      %v1414 = vpack.c.b16 %v1366, %v1358
      %v1415 = vpack.c.b16 %v1367, %v1359
      %v1416 = vpack.c.b16 %v1368, %v1360
      %v1417 = vpack.c.b16 %v1369, %v1361
      %v1418 = vpack.c.b16 %v1370, %v1362
      %v1419 = vpack.c.b16 %v1371, %v1363
      %v1420 = vpack.c.b16 %v1380, %v1372
      %v1421 = vpack.c.b16 %v1381, %v1373
      %v1422 = vpack.c.b16 %v1382, %v1374
      %v1423 = vpack.c.b16 %v1383, %v1375
      %v1424 = vpack.c.b16 %v1384, %v1376
      %v1425 = vpack.c.b16 %v1385, %v1377
      %v1426 = vpack.c.b16 %v1386, %v1378
      %v1427 = vpack.c.b16 %v1387, %v1379
      %v1428 = vpack.c.b16 %v1396, %v1388
      %v1429 = vpack.c.b16 %v1397, %v1389
      %v1430 = vpack.c.b16 %v1398, %v1390
      %v1431 = vpack.c.b16 %v1399, %v1391
      %v1432 = vpack.c.b16 %v1400, %v1392
      %v1433 = vpack.c.b16 %v1401, %v1393
      %v1434 = vpack.c.b16 %v1402, %v1394
      %v1435 = vpack.c.b16 %v1403, %v1395
      %v1596 = vunpack.c.l.b16 %v247
      %v1597 = vunpack.c.l.b16 %v248
      %v1598 = vunpack.c.l.b16 %v249
      %v1599 = vunpack.c.l.b16 %v250
      %v1600 = vunpack.c.l.b16 %v251
      %v1601 = vunpack.c.l.b16 %v252
      %v1602 = vunpack.c.l.b16 %v253
      %v1603 = vunpack.c.l.b16 %v254
      %v1604 = vunpack.c.l.b16 %v255
      %v1605 = vunpack.c.l.b16 %v256
      %v1606 = vunpack.c.l.b16 %v257
      %v1607 = vunpack.c.l.b16 %v258
      %v1608 = vunpack.c.l.b16 %v259
      %v1609 = vunpack.c.l.b16 %v260
      %v1610 = vunpack.c.l.b16 %v261
      %v1611 = vunpack.c.l.b16 %v262
      %v1612 = vunpack.c.l.b16 %v263
      %v1613 = vunpack.c.l.b16 %v264
      %v1614 = vunpack.c.l.b16 %v265
      %v1615 = vunpack.c.l.b16 %v266
      %v1616 = vunpack.c.l.b16 %v267
      %v1617 = vunpack.c.l.b16 %v268
      %v1618 = vunpack.c.l.b16 %v269
      %v1619 = vunpack.c.l.b16 %v270
      %v1620 = vunpack.c.l.b16 %v271
      %v1621 = vunpack.c.l.b16 %v272
      %v1622 = vunpack.c.l.b16 %v273
      %v1623 = vunpack.c.l.b16 %v274
      %v1624 = vunpack.c.l.b16 %v275
      %v1625 = vunpack.c.l.b16 %v276
      %v1626 = vunpack.c.l.b16 %v277
      %v1627 = vunpack.c.l.b16 %v278
      %v1628 = vunpack.c.l.b16 %v279
      %v1629 = vunpack.c.l.b16 %v280
      %v1630 = vunpack.c.l.b16 %v281
      %v1631 = vunpack.c.l.b16 %v282
      %v1632 = vunpack.c.l.b16 %v283
      %v1633 = vunpack.c.l.b16 %v284
      %v1634 = vunpack.c.l.b16 %v285
      %v1635 = vunpack.c.l.b16 %v286
      %v1636 = vunpack.c.l.b16 %v287
      %v1637 = vunpack.c.l.b16 %v288
      %v1638 = vunpack.c.l.b16 %v289
      %v1639 = vunpack.c.l.b16 %v290
      %v1640 = vunpack.c.l.b16 %v291
      %v1641 = vunpack.c.l.b16 %v292
      %v1642 = vunpack.c.l.b16 %v293
      %v1643 = vunpack.c.l.b16 %v294
      %v1644 = vunpack.c.l.b16 %v295
      %v1645 = vunpack.c.l.b16 %v296
      %v1646 = vunpack.c.l.b16 %v297
      %v1647 = vunpack.c.l.b16 %v298
      %v1648 = vunpack.c.l.b16 %v299
      %v1649 = vunpack.c.l.b16 %v300
      %v1650 = vunpack.c.l.b16 %v301
      %v1651 = vunpack.c.l.b16 %v302
      %v1652 = vunpack.c.l.b16 %v303
      %v1653 = vunpack.c.l.b16 %v304
      %v1654 = vunpack.c.l.b16 %v305
      %v1655 = vunpack.c.l.b16 %v306
      %v1656 = vunpack.c.l.b16 %v307
      %v1657 = vunpack.c.l.b16 %v308
      %v1658 = vunpack.c.l.b16 %v309
      %v1659 = vunpack.c.l.b16 %v310
      %v1660 = vunpack.c.l.b16 %v311
      %v1661 = vunpack.c.l.b16 %v312
      %v1662 = vunpack.c.l.b16 %v313
      %v1663 = vunpack.c.l.b16 %v314
      %v1664 = vunpack.c.l.b16 %v315
      %v1665 = vunpack.c.l.b16 %v316
      %v1666 = vunpack.c.l.b16 %v317
      %v1667 = vunpack.c.l.b16 %v318
      %v1668 = vunpack.c.l.b16 %v319
      %v1669 = vunpack.c.l.b16 %v320
      %v1670 = vunpack.c.l.b16 %v321
      %v1671 = vunpack.c.l.b16 %v322
      %v1672 = vunpack.c.l.b16 %v323
      %v1673 = vunpack.c.l.b16 %v324
      %v1674 = vunpack.c.l.b16 %v325
      %v1675 = vunpack.c.l.b16 %v326
      %v1676 = vunpack.c.l.b16 %v327
      %v1677 = vunpack.c.l.b16 %v328
      %v1678 = vunpack.c.l.b16 %v329
      %v1679 = vunpack.c.l.b16 %v330
      %v1680 = vunpack.c.l.b16 %v331
      %v1681 = vunpack.c.l.b16 %v332
      %v1682 = vunpack.c.l.b16 %v333
      %v1683 = vunpack.c.l.b16 %v334
      %v1684 = vunpack.c.l.b16 %v335
      %v1685 = vunpack.c.l.b16 %v336
      %v1686 = vunpack.c.l.b16 %v337
      %v1687 = vunpack.c.l.b16 %v338
      %v1688 = vunpack.c.l.b16 %v339
      %v1689 = vunpack.c.l.b16 %v340
      %v1690 = vunpack.c.l.b16 %v341
      %v1691 = vunpack.c.l.b16 %v342
      %v1692 = vunpack.c.l.b16 %v343
      %v1693 = vunpack.c.l.b16 %v344
      %v1694 = vunpack.c.l.b16 %v345
      %v1695 = vunpack.c.l.b16 %v346
      %v1696 = vunpack.c.l.b16 %v347
      %v1697 = vunpack.c.l.b16 %v348
      %v1698 = vunpack.c.l.b16 %v349
      %v1699 = vunpack.c.l.b16 %v350
      %v1700 = vunpack.c.l.b16 %v351
      %v1701 = vunpack.c.l.b16 %v352
      %v1702 = vunpack.c.l.b16 %v353
      %v1703 = vunpack.c.l.b16 %v354
      %v1704 = vunpack.c.l.b16 %v355
      %v1705 = vunpack.c.l.b16 %v356
      %v1706 = vunpack.c.l.b16 %v357
      %v1707 = vunpack.c.l.b16 %v358
      %v1708 = vunpack.c.l.b16 %v359
      %v1709 = vunpack.c.l.b16 %v360
      %v1710 = vunpack.c.l.b16 %v361
      %v1711 = vunpack.c.l.b16 %v362
      %v1712 = vunpack.c.l.b16 %v363
      %v1713 = vunpack.c.l.b16 %v364
      %v1714 = vunpack.c.l.b16 %v365
      %v1715 = vunpack.c.l.b16 %v366
      %v1716 = vunpack.c.l.b16 %v367
      %v1717 = vunpack.c.l.b16 %v368
      %v1718 = vunpack.c.l.b16 %v369
      %v1719 = vunpack.c.l.b16 %v370
      %v1720 = vunpack.c.l.b16 %v371
      %v1721 = vunpack.c.l.b16 %v372
      %v1722 = vunpack.c.l.b16 %v373
      %v1723 = vunpack.c.l.b16 %v374
      %v1724 = vpack.c.b16 %v1597, %v1596
      %v1725 = vpack.c.b16 %v1599, %v1598
      %v1726 = vpack.c.b16 %v1601, %v1600
      %v1727 = vpack.c.b16 %v1603, %v1602
      %v1728 = vpack.c.b16 %v1605, %v1604
      %v1729 = vpack.c.b16 %v1607, %v1606
      %v1730 = vpack.c.b16 %v1609, %v1608
      %v1731 = vpack.c.b16 %v1611, %v1610
      %v1732 = vpack.c.b16 %v1613, %v1612
      %v1733 = vpack.c.b16 %v1615, %v1614
      %v1734 = vpack.c.b16 %v1617, %v1616
      %v1735 = vpack.c.b16 %v1619, %v1618
      %v1736 = vpack.c.b16 %v1621, %v1620
      %v1737 = vpack.c.b16 %v1623, %v1622
      %v1738 = vpack.c.b16 %v1625, %v1624
      %v1739 = vpack.c.b16 %v1627, %v1626
      %v1740 = vpack.c.b16 %v1629, %v1628
      %v1741 = vpack.c.b16 %v1631, %v1630
      %v1742 = vpack.c.b16 %v1633, %v1632
      %v1743 = vpack.c.b16 %v1635, %v1634
      %v1744 = vpack.c.b16 %v1637, %v1636
      %v1745 = vpack.c.b16 %v1639, %v1638
      %v1746 = vpack.c.b16 %v1641, %v1640
      %v1747 = vpack.c.b16 %v1643, %v1642
      %v1748 = vpack.c.b16 %v1645, %v1644
      %v1749 = vpack.c.b16 %v1647, %v1646
      %v1750 = vpack.c.b16 %v1649, %v1648
      %v1751 = vpack.c.b16 %v1651, %v1650
      %v1752 = vpack.c.b16 %v1653, %v1652
      %v1753 = vpack.c.b16 %v1655, %v1654
      %v1754 = vpack.c.b16 %v1657, %v1656
      %v1755 = vpack.c.b16 %v1659, %v1658
      %v1756 = vpack.c.b16 %v1661, %v1660
      %v1757 = vpack.c.b16 %v1663, %v1662
      %v1758 = vpack.c.b16 %v1665, %v1664
      %v1759 = vpack.c.b16 %v1667, %v1666
      %v1760 = vpack.c.b16 %v1669, %v1668
      %v1761 = vpack.c.b16 %v1671, %v1670
      %v1762 = vpack.c.b16 %v1673, %v1672
      %v1763 = vpack.c.b16 %v1675, %v1674
      %v1764 = vpack.c.b16 %v1677, %v1676
      %v1765 = vpack.c.b16 %v1679, %v1678
      %v1766 = vpack.c.b16 %v1681, %v1680
      %v1767 = vpack.c.b16 %v1683, %v1682
      %v1768 = vpack.c.b16 %v1685, %v1684
      %v1769 = vpack.c.b16 %v1687, %v1686
      %v1770 = vpack.c.b16 %v1689, %v1688
      %v1771 = vpack.c.b16 %v1691, %v1690
      %v1772 = vpack.c.b16 %v1693, %v1692
      %v1773 = vpack.c.b16 %v1695, %v1694
      %v1774 = vpack.c.b16 %v1697, %v1696
      %v1775 = vpack.c.b16 %v1699, %v1698
      %v1776 = vpack.c.b16 %v1701, %v1700
      %v1777 = vpack.c.b16 %v1703, %v1702
      %v1778 = vpack.c.b16 %v1705, %v1704
      %v1779 = vpack.c.b16 %v1707, %v1706
      %v1780 = vpack.c.b16 %v1709, %v1708
      %v1781 = vpack.c.b16 %v1711, %v1710
      %v1782 = vpack.c.b16 %v1713, %v1712
      %v1783 = vpack.c.b16 %v1715, %v1714
      %v1784 = vpack.c.b16 %v1717, %v1716
      %v1785 = vpack.c.b16 %v1719, %v1718
      %v1786 = vpack.c.b16 %v1721, %v1720
      %v1787 = vpack.c.b16 %v1723, %v1722
      %1852 = vmatprep.subr.bf16.mxu0 0
      %1853 = vmatpush1.bf16.msra.mxu0 %v1731
      %1854 = vmatprep.subr.bf16.mxu0 0
      %1855 = vmatpush1.bf16.msra.mxu0 %v1730
      %1856 = vmatprep.subr.bf16.mxu0 0
      %1857 = vmatpush1.bf16.msra.mxu0 %v1729
      %1858 = vmatprep.subr.bf16.mxu0 0
      %1859 = vmatpush1.bf16.msra.mxu0 %v1728
      %1860 = vmatprep.subr.bf16.mxu0 0
      %1861 = vmatpush1.bf16.msra.mxu0 %v1727
      %1862 = vmatprep.subr.bf16.mxu0 0
      %1863 = vmatpush1.bf16.msra.mxu0 %v1726
      %1864 = vmatprep.subr.bf16.mxu0 0
      %1865 = vmatpush1.bf16.msra.mxu0 %v1725
      %1866 = vmatprep.subr.bf16.mxu0 0
      %1867 = vmatpush1.bf16.msra.mxu0 %v1724
      %1868 = vmatprep.subr.bf16.mxu0 0
      %1869 = vmatpush2.bf16.msra.mxu0 %v1739
      %1870 = vmatprep.subr.bf16.mxu0 0
      %1871 = vmatpush2.bf16.msra.mxu0 %v1738
      %1872 = vmatprep.subr.bf16.mxu0 0
      %1873 = vmatpush2.bf16.msra.mxu0 %v1737
      %1874 = vmatprep.subr.bf16.mxu0 0
      %1875 = vmatpush2.bf16.msra.mxu0 %v1736
      %1876 = vmatprep.subr.bf16.mxu0 0
      %1877 = vmatpush2.bf16.msra.mxu0 %v1735
      %1878 = vmatprep.subr.bf16.mxu0 0
      %1879 = vmatpush2.bf16.msra.mxu0 %v1734
      %1880 = vmatprep.subr.bf16.mxu0 0
      %1881 = vmatpush2.bf16.msra.mxu0 %v1733
      %1882 = vmatprep.subr.bf16.mxu0 0
      %1883 = vmatpush2.bf16.msra.mxu0 %v1732
      %1884 = vmatprep.mubr.bf16.mxu0 %v1405
      %1885 = vmatmul.mubr.bf16.gmra.mxu0 %v1404
      %v1886 = vpop.f32.mrf.mxu0
      %v1887 = vadd.f32 %v1278, %v1886
      %v1888 = vpop.f32.mrf.mxu0
      %v1889 = vpop.f32.mrf.mxu0
      %v1890 = vadd.f32 %v1281, %v1889
      %v1891 = vpop.f32.mrf.mxu0
      %1892 = vmatprep.mubr.bf16.mxu0 %v1413
      %1893 = vmatmul.mubr.bf16.gmra.mxu0 %v1412
      %v1894 = vpop.f32.mrf.mxu0
      %v1895 = vadd.f32 %v1286, %v1894
      %v1896 = vpop.f32.mrf.mxu0
      %v1897 = vpop.f32.mrf.mxu0
      %v1898 = vadd.f32 %v1289, %v1897
      %v1899 = vpop.f32.mrf.mxu0
      %1900 = vmatprep.mubr.bf16.mxu0 %v1421
      %1901 = vmatmul.mubr.bf16.gmra.mxu0 %v1420
      %v1902 = vpop.f32.mrf.mxu0
      %v1903 = vadd.f32 %v1294, %v1902
      %v1904 = vpop.f32.mrf.mxu0
      %v1905 = vpop.f32.mrf.mxu0
      %v1906 = vadd.f32 %v1297, %v1905
      %v1907 = vpop.f32.mrf.mxu0
      %1908 = vmatprep.mubr.bf16.mxu0 %v1429
      %1909 = vmatmul.mubr.bf16.gmra.mxu0 %v1428
      %v1910 = vpop.f32.mrf.mxu0
      %v1911 = vadd.f32 %v1302, %v1910
      %v1912 = vpop.f32.mrf.mxu0
      %v1913 = vpop.f32.mrf.mxu0
      %v1914 = vadd.f32 %v1305, %v1913
      %v1915 = vpop.f32.mrf.mxu0
      %1916 = vdwg.mxu0
      %1917 = vmatprep.subr.bf16.mxu0 0
      %1918 = vmatpush1.bf16.msra.mxu0 %v1747
      %1919 = vmatprep.subr.bf16.mxu0 0
      %1920 = vmatpush1.bf16.msra.mxu0 %v1746
      %1921 = vmatprep.subr.bf16.mxu0 0
      %1922 = vmatpush1.bf16.msra.mxu0 %v1745
      %1923 = vmatprep.subr.bf16.mxu0 0
      %1924 = vmatpush1.bf16.msra.mxu0 %v1744
      %1925 = vmatprep.subr.bf16.mxu0 0
      %1926 = vmatpush1.bf16.msra.mxu0 %v1743
      %1927 = vmatprep.subr.bf16.mxu0 0
      %1928 = vmatpush1.bf16.msra.mxu0 %v1742
      %1929 = vmatprep.subr.bf16.mxu0 0
      %1930 = vmatpush1.bf16.msra.mxu0 %v1741
      %1931 = vmatprep.subr.bf16.mxu0 0
      %1932 = vmatpush1.bf16.msra.mxu0 %v1740
      %1933 = vmatprep.subr.bf16.mxu0 0
      %1934 = vmatpush2.bf16.msra.mxu0 %v1755
      %1935 = vmatprep.subr.bf16.mxu0 0
      %1936 = vmatpush2.bf16.msra.mxu0 %v1754
      %1937 = vmatprep.subr.bf16.mxu0 0
      %1938 = vmatpush2.bf16.msra.mxu0 %v1753
      %1939 = vmatprep.subr.bf16.mxu0 0
      %1940 = vmatpush2.bf16.msra.mxu0 %v1752
      %1941 = vmatprep.subr.bf16.mxu0 0
      %1942 = vmatpush2.bf16.msra.mxu0 %v1751
      %1943 = vmatprep.subr.bf16.mxu0 0
      %1944 = vmatpush2.bf16.msra.mxu0 %v1750
      %1945 = vmatprep.subr.bf16.mxu0 0
      %1946 = vmatpush2.bf16.msra.mxu0 %v1749
      %1947 = vmatprep.subr.bf16.mxu0 0
      %1948 = vmatpush2.bf16.msra.mxu0 %v1748
      %1949 = vmatprep.mubr.bf16.mxu0 %v1407
      %1950 = vmatmul.mubr.bf16.gmra.mxu0 %v1406
      %v1951 = vpop.f32.mrf.mxu0
      %v1952 = vadd.f32 %v1887, %v1951
      %v1953 = vpop.f32.mrf.mxu0
      %v1954 = vpop.f32.mrf.mxu0
      %v1955 = vadd.f32 %v1890, %v1954
      %v1956 = vpop.f32.mrf.mxu0
      %1957 = vmatprep.mubr.bf16.mxu0 %v1415
      %1958 = vmatmul.mubr.bf16.gmra.mxu0 %v1414
      %v1959 = vpop.f32.mrf.mxu0
      %v1960 = vadd.f32 %v1895, %v1959
      %v1961 = vpop.f32.mrf.mxu0
      %v1962 = vpop.f32.mrf.mxu0
      %v1963 = vadd.f32 %v1898, %v1962
      %v1964 = vpop.f32.mrf.mxu0
      %1965 = vmatprep.mubr.bf16.mxu0 %v1423
      %1966 = vmatmul.mubr.bf16.gmra.mxu0 %v1422
      %v1967 = vpop.f32.mrf.mxu0
      %v1968 = vadd.f32 %v1903, %v1967
      %v1969 = vpop.f32.mrf.mxu0
      %v1970 = vpop.f32.mrf.mxu0
      %v1971 = vadd.f32 %v1906, %v1970
      %v1972 = vpop.f32.mrf.mxu0
      %1973 = vmatprep.mubr.bf16.mxu0 %v1431
      %1974 = vmatmul.mubr.bf16.gmra.mxu0 %v1430
      %v1975 = vpop.f32.mrf.mxu0
      %v1976 = vadd.f32 %v1911, %v1975
      %v1977 = vpop.f32.mrf.mxu0
      %v1978 = vpop.f32.mrf.mxu0
      %v1979 = vadd.f32 %v1914, %v1978
      %v1980 = vpop.f32.mrf.mxu0
      %1981 = vdwg.mxu0
      %1982 = vmatprep.subr.bf16.mxu0 0
      %1983 = vmatpush1.bf16.msra.mxu0 %v1763
      %1984 = vmatprep.subr.bf16.mxu0 0
      %1985 = vmatpush1.bf16.msra.mxu0 %v1762
      %1986 = vmatprep.subr.bf16.mxu0 0
      %1987 = vmatpush1.bf16.msra.mxu0 %v1761
      %1988 = vmatprep.subr.bf16.mxu0 0
      %1989 = vmatpush1.bf16.msra.mxu0 %v1760
      %1990 = vmatprep.subr.bf16.mxu0 0
      %1991 = vmatpush1.bf16.msra.mxu0 %v1759
      %1992 = vmatprep.subr.bf16.mxu0 0
      %1993 = vmatpush1.bf16.msra.mxu0 %v1758
      %1994 = vmatprep.subr.bf16.mxu0 0
      %1995 = vmatpush1.bf16.msra.mxu0 %v1757
      %1996 = vmatprep.subr.bf16.mxu0 0
      %1997 = vmatpush1.bf16.msra.mxu0 %v1756
      %1998 = vmatprep.subr.bf16.mxu0 0
      %1999 = vmatpush2.bf16.msra.mxu0 %v1771
      %2000 = vmatprep.subr.bf16.mxu0 0
      %2001 = vmatpush2.bf16.msra.mxu0 %v1770
      %2002 = vmatprep.subr.bf16.mxu0 0
      %2003 = vmatpush2.bf16.msra.mxu0 %v1769
      %2004 = vmatprep.subr.bf16.mxu0 0
      %2005 = vmatpush2.bf16.msra.mxu0 %v1768
      %2006 = vmatprep.subr.bf16.mxu0 0
      %2007 = vmatpush2.bf16.msra.mxu0 %v1767
      %2008 = vmatprep.subr.bf16.mxu0 0
      %2009 = vmatpush2.bf16.msra.mxu0 %v1766
      %2010 = vmatprep.subr.bf16.mxu0 0
      %2011 = vmatpush2.bf16.msra.mxu0 %v1765
      %2012 = vmatprep.subr.bf16.mxu0 0
      %2013 = vmatpush2.bf16.msra.mxu0 %v1764
      %2014 = vmatprep.mubr.bf16.mxu0 %v1409
      %2015 = vmatmul.mubr.bf16.gmra.mxu0 %v1408
      %v2016 = vpop.f32.mrf.mxu0
      %v2017 = vadd.f32 %v1952, %v2016
      %v2018 = vpop.f32.mrf.mxu0
      %v2019 = vpop.f32.mrf.mxu0
      %v2020 = vadd.f32 %v1955, %v2019
      %v2021 = vpop.f32.mrf.mxu0
      %2022 = vmatprep.mubr.bf16.mxu0 %v1417
      %2023 = vmatmul.mubr.bf16.gmra.mxu0 %v1416
      %v2024 = vpop.f32.mrf.mxu0
      %v2025 = vadd.f32 %v1960, %v2024
      %v2026 = vpop.f32.mrf.mxu0
      %v2027 = vpop.f32.mrf.mxu0
      %v2028 = vadd.f32 %v1963, %v2027
      %v2029 = vpop.f32.mrf.mxu0
      %2030 = vmatprep.mubr.bf16.mxu0 %v1425
      %2031 = vmatmul.mubr.bf16.gmra.mxu0 %v1424
      %v2032 = vpop.f32.mrf.mxu0
      %v2033 = vadd.f32 %v1968, %v2032
      %v2034 = vpop.f32.mrf.mxu0
      %v2035 = vpop.f32.mrf.mxu0
      %v2036 = vadd.f32 %v1971, %v2035
      %v2037 = vpop.f32.mrf.mxu0
      %2038 = vmatprep.mubr.bf16.mxu0 %v1433
      %2039 = vmatmul.mubr.bf16.gmra.mxu0 %v1432
      %v2040 = vpop.f32.mrf.mxu0
      %v2041 = vadd.f32 %v1976, %v2040
      %v2042 = vpop.f32.mrf.mxu0
      %v2043 = vpop.f32.mrf.mxu0
      %v2044 = vadd.f32 %v1979, %v2043
      %v2045 = vpop.f32.mrf.mxu0
      %2046 = vdwg.mxu0
      %2047 = vmatprep.subr.bf16.mxu0 0
      %2048 = vmatpush1.bf16.msra.mxu0 %v1779
      %2049 = vmatprep.subr.bf16.mxu0 0
      %2050 = vmatpush1.bf16.msra.mxu0 %v1778
      %2051 = vmatprep.subr.bf16.mxu0 0
      %2052 = vmatpush1.bf16.msra.mxu0 %v1777
      %2053 = vmatprep.subr.bf16.mxu0 0
      %2054 = vmatpush1.bf16.msra.mxu0 %v1776
      %2055 = vmatprep.subr.bf16.mxu0 0
      %2056 = vmatpush1.bf16.msra.mxu0 %v1775
      %2057 = vmatprep.subr.bf16.mxu0 0
      %2058 = vmatpush1.bf16.msra.mxu0 %v1774
      %2059 = vmatprep.subr.bf16.mxu0 0
      %2060 = vmatpush1.bf16.msra.mxu0 %v1773
      %2061 = vmatprep.subr.bf16.mxu0 0
      %2062 = vmatpush1.bf16.msra.mxu0 %v1772
      %2063 = vmatprep.subr.bf16.mxu0 0
      %2064 = vmatpush2.bf16.msra.mxu0 %v1787
      %2065 = vmatprep.subr.bf16.mxu0 0
      %2066 = vmatpush2.bf16.msra.mxu0 %v1786
      %2067 = vmatprep.subr.bf16.mxu0 0
      %2068 = vmatpush2.bf16.msra.mxu0 %v1785
      %2069 = vmatprep.subr.bf16.mxu0 0
      %2070 = vmatpush2.bf16.msra.mxu0 %v1784
      %2071 = vmatprep.subr.bf16.mxu0 0
      %2072 = vmatpush2.bf16.msra.mxu0 %v1783
      %2073 = vmatprep.subr.bf16.mxu0 0
      %2074 = vmatpush2.bf16.msra.mxu0 %v1782
      %2075 = vmatprep.subr.bf16.mxu0 0
      %2076 = vmatpush2.bf16.msra.mxu0 %v1781
      %2077 = vmatprep.subr.bf16.mxu0 0
      %2078 = vmatpush2.bf16.msra.mxu0 %v1780
      %2079 = vmatprep.mubr.bf16.mxu0 %v1411
      %2080 = vmatmul.mubr.bf16.gmra.mxu0 %v1410
      %v2081 = vpop.f32.mrf.mxu0
      %v2082 = vadd.f32 %v2017, %v2081
      %v2083 = vpop.f32.mrf.mxu0
      %v2084 = vpop.f32.mrf.mxu0
      %v2085 = vadd.f32 %v2020, %v2084
      %v2086 = vpop.f32.mrf.mxu0
      %2087 = vmatprep.mubr.bf16.mxu0 %v1419
      %2088 = vmatmul.mubr.bf16.gmra.mxu0 %v1418
      %v2089 = vpop.f32.mrf.mxu0
      %v2090 = vadd.f32 %v2025, %v2089
      %v2091 = vpop.f32.mrf.mxu0
      %v2092 = vpop.f32.mrf.mxu0
      %v2093 = vadd.f32 %v2028, %v2092
      %v2094 = vpop.f32.mrf.mxu0
      %2095 = vmatprep.mubr.bf16.mxu0 %v1427
      %2096 = vmatmul.mubr.bf16.gmra.mxu0 %v1426
      %v2097 = vpop.f32.mrf.mxu0
      %v2098 = vadd.f32 %v2033, %v2097
      %v2099 = vpop.f32.mrf.mxu0
      %v2100 = vpop.f32.mrf.mxu0
      %v2101 = vadd.f32 %v2036, %v2100
      %v2102 = vpop.f32.mrf.mxu0
      %2103 = vmatprep.mubr.bf16.mxu0 %v1435
      %2104 = vmatmul.mubr.bf16.gmra.mxu0 %v1434
      %v2105 = vpop.f32.mrf.mxu0
      %v2106 = vadd.f32 %v2041, %v2105
      %v2107 = vpop.f32.mrf.mxu0
      %v2108 = vpop.f32.mrf.mxu0
      %v2109 = vadd.f32 %v2044, %v2108
      %v2110 = vpop.f32.mrf.mxu0
      %2111 = vdwg.mxu0
      %2112 = vst [vmem:[%s177] sm:$0xff] %v2082
      %2113 = vst [vmem:[%s177 + $0x8] sm:$0xff] %v2085
      %2114 = vst [vmem:[%s177 + $0x10] sm:$0xff] %v2090
      %2115 = vst [vmem:[%s177 + $0x18] sm:$0xff] %v2093
      %2116 = vst [vmem:[%s177 + $0x20] sm:$0xff] %v2098
      %2117 = vst [vmem:[%s177 + $0x28] sm:$0xff] %v2101
      %2118 = vst [vmem:[%s177 + $0x30] sm:$0xff] %v2106
      %2119 = vst [vmem:[%s177 + $0x38] sm:$0xff] %v2109
      %v2120 = vadd.f32 %v2082, %v2085
      %v2121 = vadd.f32 %v2120, %v2090
      %v2122 = vadd.f32 %v2121, %v2093
      %v2123 = vadd.f32 %v2122, %v2098
      %v2124 = vadd.f32 %v2123, %v2101
      %v2125 = vadd.f32 %v2124, %v2106
      %v2126 = vadd.f32 %v2125, %v2109
      %v2127 = vrot.slane %v2126, 4
      %v2128 = vadd.f32 %v2126, %v2127
      %v2129 = vrot.slane %v2128, 2
      %v2130 = vadd.f32 %v2128, %v2129
      %v2131 = vrot.slane %v2130, 1
      %v2132 = vadd.f32 %v2130, %v2131
      %2133 = vst [vmem:[%s181] sm:$0x1] %v2132
      %v2134 = vmul.f32 %v2082, %v2082
      %v2135 = vmul.f32 %v2085, %v2085
      %v2136 = vmul.f32 %v2090, %v2090
      %v2137 = vmul.f32 %v2093, %v2093
      %v2138 = vmul.f32 %v2098, %v2098
      %v2139 = vmul.f32 %v2101, %v2101
      %v2140 = vmul.f32 %v2106, %v2106
      %v2141 = vmul.f32 %v2109, %v2109
      %v2142 = vadd.f32 %v2134, %v2135
      %v2143 = vadd.f32 %v2142, %v2136
      %v2144 = vadd.f32 %v2143, %v2137
      %v2145 = vadd.f32 %v2144, %v2138
      %v2146 = vadd.f32 %v2145, %v2139
      %v2147 = vadd.f32 %v2146, %v2140
      %v2148 = vadd.f32 %v2147, %v2141
      %v2149 = vrot.slane %v2148, 4
      %v2150 = vadd.f32 %v2148, %v2149
      %v2151 = vrot.slane %v2150, 2
      %v2152 = vadd.f32 %v2150, %v2151
      %v2153 = vrot.slane %v2152, 1
      %v2154 = vadd.f32 %v2152, %v2153
      %2155 = vst [vmem:[%s181 + $0x1] sm:$0x1] %v2154
      %p2156 = scmp.lt.s32.totalorder %s15, 1
      %s2157 = scalar_select %p2156, %s15, 1
      %s2158 = smul.addr %s2157, 8
      %s2159 = smul.addr %s2158, 8
      %s2160 = scalar_lea.vmem %s2, %s2159
      %p2161 = scmp.lt.s32.totalorder %s15, 1
      %s2162 = scalar_select %p2161, %s15, 1
      %s2163 = smul.addr %s2162, 2
      %s2164 = scalar_lea.vmem %s3, %s2163
      // Predicated region
      $region29: #{discriminator_pallas.8} parent=27 // pred_check
        %p2165 = pneg %p80
      $region30: #{discriminator_pallas.8} parent=27 // pred_check_branch
        %2167 = sbr.rel (%p2165) target = $region32
      $region31: #{discriminator_pallas.8} parent=27 // pred_region
        _
      $region32: #{discriminator_pallas.8} parent=27 // pred_fallthru
        _
      // Predicated region
      $region33: #{discriminator_pallas.8} parent=27 // pred_check
        %p2168 = pneg %p106
      $region34: #{discriminator_pallas.8} parent=27 // pred_check_branch
        %2170 = sbr.rel (%p2168) target = $region36
      $region35: #{discriminator_pallas.8} parent=27 // pred_region
        _
      $region36: #{discriminator_pallas.8} parent=27 // pred_fallthru
        _
    $region28: #{discriminator_pallas.8} parent=5 // pred_fallthru
      _
    %p2171 = scmp.le.s32.totalorder 2, %s10
    // Predicated region
    $region37: #{discriminator_pallas.8} parent=5 // pred_check
      %p2172 = pneg %p2171
    $region38: #{discriminator_pallas.8} parent=5 // pred_check_branch
      %2174 = sbr.rel (%p2172) target = $region40
    $region39: #{discriminator_pallas.8} parent=5 // pred_region
      %s2175 = ssub.s32 %s10, 2
      // Predicated region
      $region41: #{discriminator_pallas.8} parent=39 // pred_check
        %p2176 = pneg %p86
      $region42: #{discriminator_pallas.8} parent=39 // pred_check_branch
        %2178 = sbr.rel (%p2176) target = $region44
      $region43: #{discriminator_pallas.8} parent=39 // pred_region
        %p2179 = scmp.lt.s32.totalorder %s16, 1
        %s2180 = scalar_select %p2179, %s16, 1
        %s2181 = smul.addr %s2180, 8
        %s2182 = smul.addr %s2181, 8
        %s2183 = scalar_lea.vmem %s2, %s2182
      $region44: #{discriminator_pallas.8} parent=39 // pred_fallthru
        _
      // Predicated region
      $region45: #{discriminator_pallas.8} parent=39 // pred_check
        %p2184 = pneg %p112
      $region46: #{discriminator_pallas.8} parent=39 // pred_check_branch
        %2186 = sbr.rel (%p2184) target = $region48
      $region47: #{discriminator_pallas.8} parent=39 // pred_region
        %p2187 = scmp.lt.s32.totalorder %s16, 1
        %s2188 = scalar_select %p2187, %s16, 1
        %s2189 = smul.addr %s2188, 2
        %s2190 = scalar_lea.vmem %s3, %s2189
      $region48: #{discriminator_pallas.8} parent=39 // pred_fallthru
        _
    $region40: #{discriminator_pallas.8} parent=5 // pred_fallthru
      _
  $region6: #{discriminator_pallas.8} parent=0 // loop_footer
    %s14 = sadd.s32 1, %s10
  $region7: #{discriminator_pallas.8} parent=0 // loop_footer_branch
    %9 = sbr.rel target = $region3
  $region8: #{discriminator_pallas.8} parent=0 // loop_exit
    _

// kernel: discriminator_pallas.9
$region0: #{discriminator_pallas.9}
  #allocation0 [shape = 'u32[]', space=smem, size = 0x4, offset = 0x4, fixed_abs, tag = 'smem constant byte address 0x4 - core index']
  #allocation1 [shape = 'u32[144,128]{1,0:T(1,128)}', space=vmem, size = 0x12000, scoped, tag = 'internal scratch']
  %s0 = inlined_call_operand.vmem [shape: bf16[2,2048], index: 0, kind: input, shape index: {}]
  %s1 = inlined_call_operand.vmem [shape: bf16[2048,128], index: 1, kind: input, shape index: {}]
  %s2 = inlined_call_operand.vmem [shape: f32[2,128], index: 2, kind: output, shape index: {}]
  %s3 = sld [smem:[#allocation0]]
  $region18: #{discriminator_pallas.9} parent=0
    _
  %s5 = ssub.s32 1, %s3
  %s6 = scalar_select 0, %s5, %s3
  // Predicated region
  $region2: #{discriminator_pallas.9} parent=0 // pred_check
    _
  $region3: #{discriminator_pallas.9} parent=0 // pred_check_branch
    %8 = sbr.rel (0) target = $region5
  $region4: #{discriminator_pallas.9} parent=0 // pred_region
    _
  $region5: #{discriminator_pallas.9} parent=0 // pred_fallthru
    _
  // Predicated region
  $region6: #{discriminator_pallas.9} parent=0 // pred_check
    _
  $region7: #{discriminator_pallas.9} parent=0 // pred_check_branch
    %10 = sbr.rel (0) target = $region9
  $region8: #{discriminator_pallas.9} parent=0 // pred_region
    _
  $region9: #{discriminator_pallas.9} parent=0 // pred_fallthru
    _
  %v12 = vld [vmem:[%s0] sm:$0xff]
  %v13 = vld [vmem:[%s0 + $0x8] sm:$0xff]
  %v14 = vld [vmem:[%s1] sm:$0xf]
  %v15 = vld [vmem:[%s1 + $0x4] sm:$0xf]
  %v16 = vld [vmem:[%s1 + $0x8] sm:$0xf]
  %v17 = vld [vmem:[%s1 + $0xc] sm:$0xf]
  %v18 = vld [vmem:[%s1 + $0x10] sm:$0xf]
  %v19 = vld [vmem:[%s1 + $0x14] sm:$0xf]
  %v20 = vld [vmem:[%s1 + $0x18] sm:$0xf]
  %v21 = vld [vmem:[%s1 + $0x1c] sm:$0xf]
  %v22 = vld [vmem:[%s1 + $0x20] sm:$0xf]
  %v23 = vld [vmem:[%s1 + $0x24] sm:$0xf]
  %v24 = vld [vmem:[%s1 + $0x28] sm:$0xf]
  %v25 = vld [vmem:[%s1 + $0x2c] sm:$0xf]
  %v26 = vld [vmem:[%s1 + $0x30] sm:$0xf]
  %v27 = vld [vmem:[%s1 + $0x34] sm:$0xf]
  %v28 = vld [vmem:[%s1 + $0x38] sm:$0xf]
  %v29 = vld [vmem:[%s1 + $0x3c] sm:$0xf]
  %v30 = vld [vmem:[%s1 + $0x40] sm:$0xf]
  %v31 = vld [vmem:[%s1 + $0x44] sm:$0xf]
  %v32 = vld [vmem:[%s1 + $0x48] sm:$0xf]
  %v33 = vld [vmem:[%s1 + $0x4c] sm:$0xf]
  %v34 = vld [vmem:[%s1 + $0x50] sm:$0xf]
  %v35 = vld [vmem:[%s1 + $0x54] sm:$0xf]
  %v36 = vld [vmem:[%s1 + $0x58] sm:$0xf]
  %v37 = vld [vmem:[%s1 + $0x5c] sm:$0xf]
  %v38 = vld [vmem:[%s1 + $0x60] sm:$0xf]
  %v39 = vld [vmem:[%s1 + $0x64] sm:$0xf]
  %v40 = vld [vmem:[%s1 + $0x68] sm:$0xf]
  %v41 = vld [vmem:[%s1 + $0x6c] sm:$0xf]
  %v42 = vld [vmem:[%s1 + $0x70] sm:$0xf]
  %v43 = vld [vmem:[%s1 + $0x74] sm:$0xf]
  %v44 = vld [vmem:[%s1 + $0x78] sm:$0xf]
  %v45 = vld [vmem:[%s1 + $0x7c] sm:$0xf]
  %v46 = vld [vmem:[%s1 + $0x80] sm:$0xf]
  %v47 = vld [vmem:[%s1 + $0x84] sm:$0xf]
  %v48 = vld [vmem:[%s1 + $0x88] sm:$0xf]
  %v49 = vld [vmem:[%s1 + $0x8c] sm:$0xf]
  %v50 = vld [vmem:[%s1 + $0x90] sm:$0xf]
  %v51 = vld [vmem:[%s1 + $0x94] sm:$0xf]
  %v52 = vld [vmem:[%s1 + $0x98] sm:$0xf]
  %v53 = vld [vmem:[%s1 + $0x9c] sm:$0xf]
  %v54 = vld [vmem:[%s1 + $0xa0] sm:$0xf]
  %v55 = vld [vmem:[%s1 + $0xa4] sm:$0xf]
  %v56 = vld [vmem:[%s1 + $0xa8] sm:$0xf]
  %v57 = vld [vmem:[%s1 + $0xac] sm:$0xf]
  %v58 = vld [vmem:[%s1 + $0xb0] sm:$0xf]
  %v59 = vld [vmem:[%s1 + $0xb4] sm:$0xf]
  %v60 = vld [vmem:[%s1 + $0xb8] sm:$0xf]
  %v61 = vld [vmem:[%s1 + $0xbc] sm:$0xf]
  %v62 = vld [vmem:[%s1 + $0xc0] sm:$0xf]
  %v63 = vld [vmem:[%s1 + $0xc4] sm:$0xf]
  %v64 = vld [vmem:[%s1 + $0xc8] sm:$0xf]
  %v65 = vld [vmem:[%s1 + $0xcc] sm:$0xf]
  %v66 = vld [vmem:[%s1 + $0xd0] sm:$0xf]
  %v67 = vld [vmem:[%s1 + $0xd4] sm:$0xf]
  %v68 = vld [vmem:[%s1 + $0xd8] sm:$0xf]
  %v69 = vld [vmem:[%s1 + $0xdc] sm:$0xf]
  %v70 = vld [vmem:[%s1 + $0xe0] sm:$0xf]
  %v71 = vld [vmem:[%s1 + $0xe4] sm:$0xf]
  %v72 = vld [vmem:[%s1 + $0xe8] sm:$0xf]
  %v73 = vld [vmem:[%s1 + $0xec] sm:$0xf]
  %v74 = vld [vmem:[%s1 + $0xf0] sm:$0xf]
  %v75 = vld [vmem:[%s1 + $0xf4] sm:$0xf]
  %v76 = vld [vmem:[%s1 + $0xf8] sm:$0xf]
  %v77 = vld [vmem:[%s1 + $0xfc] sm:$0xf]
  %v78 = vld [vmem:[%s1 + $0x100] sm:$0xf]
  %v79 = vld [vmem:[%s1 + $0x104] sm:$0xf]
  %v80 = vld [vmem:[%s1 + $0x108] sm:$0xf]
  %v81 = vld [vmem:[%s1 + $0x10c] sm:$0xf]
  %v82 = vld [vmem:[%s1 + $0x110] sm:$0xf]
  %v83 = vld [vmem:[%s1 + $0x114] sm:$0xf]
  %v84 = vld [vmem:[%s1 + $0x118] sm:$0xf]
  %v85 = vld [vmem:[%s1 + $0x11c] sm:$0xf]
  %v86 = vld [vmem:[%s1 + $0x120] sm:$0xf]
  %v87 = vld [vmem:[%s1 + $0x124] sm:$0xf]
  %v88 = vld [vmem:[%s1 + $0x128] sm:$0xf]
  %v89 = vld [vmem:[%s1 + $0x12c] sm:$0xf]
  %v90 = vld [vmem:[%s1 + $0x130] sm:$0xf]
  %v91 = vld [vmem:[%s1 + $0x134] sm:$0xf]
  %v92 = vld [vmem:[%s1 + $0x138] sm:$0xf]
  %v93 = vld [vmem:[%s1 + $0x13c] sm:$0xf]
  %v94 = vld [vmem:[%s1 + $0x140] sm:$0xf]
  %v95 = vld [vmem:[%s1 + $0x144] sm:$0xf]
  %v96 = vld [vmem:[%s1 + $0x148] sm:$0xf]
  %v97 = vld [vmem:[%s1 + $0x14c] sm:$0xf]
  %v98 = vld [vmem:[%s1 + $0x150] sm:$0xf]
  %v99 = vld [vmem:[%s1 + $0x154] sm:$0xf]
  %v100 = vld [vmem:[%s1 + $0x158] sm:$0xf]
  %v101 = vld [vmem:[%s1 + $0x15c] sm:$0xf]
  %v102 = vld [vmem:[%s1 + $0x160] sm:$0xf]
  %v103 = vld [vmem:[%s1 + $0x164] sm:$0xf]
  %v104 = vld [vmem:[%s1 + $0x168] sm:$0xf]
  %v105 = vld [vmem:[%s1 + $0x16c] sm:$0xf]
  %v106 = vld [vmem:[%s1 + $0x170] sm:$0xf]
  %v107 = vld [vmem:[%s1 + $0x174] sm:$0xf]
  %v108 = vld [vmem:[%s1 + $0x178] sm:$0xf]
  %v109 = vld [vmem:[%s1 + $0x17c] sm:$0xf]
  %v110 = vld [vmem:[%s1 + $0x180] sm:$0xf]
  %v111 = vld [vmem:[%s1 + $0x184] sm:$0xf]
  %v112 = vld [vmem:[%s1 + $0x188] sm:$0xf]
  %v113 = vld [vmem:[%s1 + $0x18c] sm:$0xf]
  %v114 = vld [vmem:[%s1 + $0x190] sm:$0xf]
  %v115 = vld [vmem:[%s1 + $0x194] sm:$0xf]
  %v116 = vld [vmem:[%s1 + $0x198] sm:$0xf]
  %v117 = vld [vmem:[%s1 + $0x19c] sm:$0xf]
  %v118 = vld [vmem:[%s1 + $0x1a0] sm:$0xf]
  %v119 = vld [vmem:[%s1 + $0x1a4] sm:$0xf]
  %v120 = vld [vmem:[%s1 + $0x1a8] sm:$0xf]
  %v121 = vld [vmem:[%s1 + $0x1ac] sm:$0xf]
  %v122 = vld [vmem:[%s1 + $0x1b0] sm:$0xf]
  %v123 = vld [vmem:[%s1 + $0x1b4] sm:$0xf]
  %v124 = vld [vmem:[%s1 + $0x1b8] sm:$0xf]
  %v125 = vld [vmem:[%s1 + $0x1bc] sm:$0xf]
  %v126 = vld [vmem:[%s1 + $0x1c0] sm:$0xf]
  %v127 = vld [vmem:[%s1 + $0x1c4] sm:$0xf]
  %v128 = vld [vmem:[%s1 + $0x1c8] sm:$0xf]
  %v129 = vld [vmem:[%s1 + $0x1cc] sm:$0xf]
  %v130 = vld [vmem:[%s1 + $0x1d0] sm:$0xf]
  %v131 = vld [vmem:[%s1 + $0x1d4] sm:$0xf]
  %v132 = vld [vmem:[%s1 + $0x1d8] sm:$0xf]
  %v133 = vld [vmem:[%s1 + $0x1dc] sm:$0xf]
  %v134 = vld [vmem:[%s1 + $0x1e0] sm:$0xf]
  %v135 = vld [vmem:[%s1 + $0x1e4] sm:$0xf]
  %v136 = vld [vmem:[%s1 + $0x1e8] sm:$0xf]
  %v137 = vld [vmem:[%s1 + $0x1ec] sm:$0xf]
  %v138 = vld [vmem:[%s1 + $0x1f0] sm:$0xf]
  %v139 = vld [vmem:[%s1 + $0x1f4] sm:$0xf]
  %v140 = vld [vmem:[%s1 + $0x1f8] sm:$0xf]
  %v141 = vld [vmem:[%s1 + $0x1fc] sm:$0xf]
  %v142 = vld [vmem:[%s1 + $0x200] sm:$0xf]
  %v143 = vld [vmem:[%s1 + $0x204] sm:$0xf]
  %v144 = vld [vmem:[%s1 + $0x208] sm:$0xf]
  %v145 = vld [vmem:[%s1 + $0x20c] sm:$0xf]
  %v146 = vld [vmem:[%s1 + $0x210] sm:$0xf]
  %v147 = vld [vmem:[%s1 + $0x214] sm:$0xf]
  %v148 = vld [vmem:[%s1 + $0x218] sm:$0xf]
  %v149 = vld [vmem:[%s1 + $0x21c] sm:$0xf]
  %v150 = vld [vmem:[%s1 + $0x220] sm:$0xf]
  %v151 = vld [vmem:[%s1 + $0x224] sm:$0xf]
  %v152 = vld [vmem:[%s1 + $0x228] sm:$0xf]
  %v153 = vld [vmem:[%s1 + $0x22c] sm:$0xf]
  %v154 = vld [vmem:[%s1 + $0x230] sm:$0xf]
  %v155 = vld [vmem:[%s1 + $0x234] sm:$0xf]
  %v156 = vld [vmem:[%s1 + $0x238] sm:$0xf]
  %v157 = vld [vmem:[%s1 + $0x23c] sm:$0xf]
  %v158 = vld [vmem:[%s1 + $0x240] sm:$0xf]
  %v159 = vld [vmem:[%s1 + $0x244] sm:$0xf]
  %v160 = vld [vmem:[%s1 + $0x248] sm:$0xf]
  %v161 = vld [vmem:[%s1 + $0x24c] sm:$0xf]
  %v162 = vld [vmem:[%s1 + $0x250] sm:$0xf]
  %v163 = vld [vmem:[%s1 + $0x254] sm:$0xf]
  %v164 = vld [vmem:[%s1 + $0x258] sm:$0xf]
  %v165 = vld [vmem:[%s1 + $0x25c] sm:$0xf]
  %v166 = vld [vmem:[%s1 + $0x260] sm:$0xf]
  %v167 = vld [vmem:[%s1 + $0x264] sm:$0xf]
  %v168 = vld [vmem:[%s1 + $0x268] sm:$0xf]
  %v169 = vld [vmem:[%s1 + $0x26c] sm:$0xf]
  %v170 = vld [vmem:[%s1 + $0x270] sm:$0xf]
  %v171 = vld [vmem:[%s1 + $0x274] sm:$0xf]
  %v172 = vld [vmem:[%s1 + $0x278] sm:$0xf]
  %v173 = vld [vmem:[%s1 + $0x27c] sm:$0xf]
  %v174 = vld [vmem:[%s1 + $0x280] sm:$0xf]
  %v175 = vld [vmem:[%s1 + $0x284] sm:$0xf]
  %v176 = vld [vmem:[%s1 + $0x288] sm:$0xf]
  %v177 = vld [vmem:[%s1 + $0x28c] sm:$0xf]
  %v178 = vld [vmem:[%s1 + $0x290] sm:$0xf]
  %v179 = vld [vmem:[%s1 + $0x294] sm:$0xf]
  %v180 = vld [vmem:[%s1 + $0x298] sm:$0xf]
  %v181 = vld [vmem:[%s1 + $0x29c] sm:$0xf]
  %v182 = vld [vmem:[%s1 + $0x2a0] sm:$0xf]
  %v183 = vld [vmem:[%s1 + $0x2a4] sm:$0xf]
  %v184 = vld [vmem:[%s1 + $0x2a8] sm:$0xf]
  %v185 = vld [vmem:[%s1 + $0x2ac] sm:$0xf]
  %v186 = vld [vmem:[%s1 + $0x2b0] sm:$0xf]
  %v187 = vld [vmem:[%s1 + $0x2b4] sm:$0xf]
  %v188 = vld [vmem:[%s1 + $0x2b8] sm:$0xf]
  %v189 = vld [vmem:[%s1 + $0x2bc] sm:$0xf]
  %v190 = vld [vmem:[%s1 + $0x2c0] sm:$0xf]
  %v191 = vld [vmem:[%s1 + $0x2c4] sm:$0xf]
  %v192 = vld [vmem:[%s1 + $0x2c8] sm:$0xf]
  %v193 = vld [vmem:[%s1 + $0x2cc] sm:$0xf]
  %v194 = vld [vmem:[%s1 + $0x2d0] sm:$0xf]
  %v195 = vld [vmem:[%s1 + $0x2d4] sm:$0xf]
  %v196 = vld [vmem:[%s1 + $0x2d8] sm:$0xf]
  %v197 = vld [vmem:[%s1 + $0x2dc] sm:$0xf]
  %v198 = vld [vmem:[%s1 + $0x2e0] sm:$0xf]
  %v199 = vld [vmem:[%s1 + $0x2e4] sm:$0xf]
  %v200 = vld [vmem:[%s1 + $0x2e8] sm:$0xf]
  %v201 = vld [vmem:[%s1 + $0x2ec] sm:$0xf]
  %v202 = vld [vmem:[%s1 + $0x2f0] sm:$0xf]
  %v203 = vld [vmem:[%s1 + $0x2f4] sm:$0xf]
  %v204 = vld [vmem:[%s1 + $0x2f8] sm:$0xf]
  %v205 = vld [vmem:[%s1 + $0x2fc] sm:$0xf]
  %v206 = vld [vmem:[%s1 + $0x300] sm:$0xf]
  %v207 = vld [vmem:[%s1 + $0x304] sm:$0xf]
  %v208 = vld [vmem:[%s1 + $0x308] sm:$0xf]
  %v209 = vld [vmem:[%s1 + $0x30c] sm:$0xf]
  %v210 = vld [vmem:[%s1 + $0x310] sm:$0xf]
  %v211 = vld [vmem:[%s1 + $0x314] sm:$0xf]
  %v212 = vld [vmem:[%s1 + $0x318] sm:$0xf]
  %v213 = vld [vmem:[%s1 + $0x31c] sm:$0xf]
  %v214 = vld [vmem:[%s1 + $0x320] sm:$0xf]
  %v215 = vld [vmem:[%s1 + $0x324] sm:$0xf]
  %v216 = vld [vmem:[%s1 + $0x328] sm:$0xf]
  %v217 = vld [vmem:[%s1 + $0x32c] sm:$0xf]
  %v218 = vld [vmem:[%s1 + $0x330] sm:$0xf]
  %v219 = vld [vmem:[%s1 + $0x334] sm:$0xf]
  %v220 = vld [vmem:[%s1 + $0x338] sm:$0xf]
  %v221 = vld [vmem:[%s1 + $0x33c] sm:$0xf]
  %v222 = vld [vmem:[%s1 + $0x340] sm:$0xf]
  %v223 = vld [vmem:[%s1 + $0x344] sm:$0xf]
  %v224 = vld [vmem:[%s1 + $0x348] sm:$0xf]
  %v225 = vld [vmem:[%s1 + $0x34c] sm:$0xf]
  %v226 = vld [vmem:[%s1 + $0x350] sm:$0xf]
  %v227 = vld [vmem:[%s1 + $0x354] sm:$0xf]
  %v228 = vld [vmem:[%s1 + $0x358] sm:$0xf]
  %v229 = vld [vmem:[%s1 + $0x35c] sm:$0xf]
  %v230 = vld [vmem:[%s1 + $0x360] sm:$0xf]
  %v231 = vld [vmem:[%s1 + $0x364] sm:$0xf]
  %v232 = vld [vmem:[%s1 + $0x368] sm:$0xf]
  %v233 = vld [vmem:[%s1 + $0x36c] sm:$0xf]
  %v234 = vld [vmem:[%s1 + $0x370] sm:$0xf]
  %v235 = vld [vmem:[%s1 + $0x374] sm:$0xf]
  %v236 = vld [vmem:[%s1 + $0x378] sm:$0xf]
  %v237 = vld [vmem:[%s1 + $0x37c] sm:$0xf]
  %v238 = vld [vmem:[%s1 + $0x380] sm:$0xf]
  %v239 = vld [vmem:[%s1 + $0x384] sm:$0xf]
  %v240 = vld [vmem:[%s1 + $0x388] sm:$0xf]
  %v241 = vld [vmem:[%s1 + $0x38c] sm:$0xf]
  %v242 = vld [vmem:[%s1 + $0x390] sm:$0xf]
  %v243 = vld [vmem:[%s1 + $0x394] sm:$0xf]
  %v244 = vld [vmem:[%s1 + $0x398] sm:$0xf]
  %v245 = vld [vmem:[%s1 + $0x39c] sm:$0xf]
  %v246 = vld [vmem:[%s1 + $0x3a0] sm:$0xf]
  %v247 = vld [vmem:[%s1 + $0x3a4] sm:$0xf]
  %v248 = vld [vmem:[%s1 + $0x3a8] sm:$0xf]
  %v249 = vld [vmem:[%s1 + $0x3ac] sm:$0xf]
  %v250 = vld [vmem:[%s1 + $0x3b0] sm:$0xf]
  %v251 = vld [vmem:[%s1 + $0x3b4] sm:$0xf]
  %v252 = vld [vmem:[%s1 + $0x3b8] sm:$0xf]
  %v253 = vld [vmem:[%s1 + $0x3bc] sm:$0xf]
  %v254 = vld [vmem:[%s1 + $0x3c0] sm:$0xf]
  %v255 = vld [vmem:[%s1 + $0x3c4] sm:$0xf]
  %v256 = vld [vmem:[%s1 + $0x3c8] sm:$0xf]
  %v257 = vld [vmem:[%s1 + $0x3cc] sm:$0xf]
  %v258 = vld [vmem:[%s1 + $0x3d0] sm:$0xf]
  %v259 = vld [vmem:[%s1 + $0x3d4] sm:$0xf]
  %v260 = vld [vmem:[%s1 + $0x3d8] sm:$0xf]
  %v261 = vld [vmem:[%s1 + $0x3dc] sm:$0xf]
  %v262 = vld [vmem:[%s1 + $0x3e0] sm:$0xf]
  %v263 = vld [vmem:[%s1 + $0x3e4] sm:$0xf]
  %v264 = vld [vmem:[%s1 + $0x3e8] sm:$0xf]
  %v265 = vld [vmem:[%s1 + $0x3ec] sm:$0xf]
  %v266 = vld [vmem:[%s1 + $0x3f0] sm:$0xf]
  %v267 = vld [vmem:[%s1 + $0x3f4] sm:$0xf]
  %v268 = vld [vmem:[%s1 + $0x3f8] sm:$0xf]
  %v269 = vld [vmem:[%s1 + $0x3fc] sm:$0xf]
  %v272 = vcombine.high %v12, %v12
  %v274 = vunpack.c.l.s4 1966171168
  %v275 = vunpack.c.0.s8 %v274
  %v276 = vlaneseq
  %v277 = vshrl.u32 %v276, 7
  %v278 = vsub.s32 %v275, %v277
  %v279 = vrot.slane %v12, %v278
  %v281 = vunpack.c.l.s4 1966171168
  %v282 = vunpack.c.0.s8 %v281
  %v283 = vlaneseq
  %v284 = vshrl.u32 %v283, 7
  %v285 = vsub.s32 %v282, %v284
  %v286 = vrot.slane %v272, %v285
  %v287 = vcombine.high %v279, %v279
  %v288 = vcombine.high %v286, %v286
  %v290 = vunpack.c.l.s4 1966171168
  %v291 = vunpack.c.0.s8 %v290
  %v292 = vlaneseq
  %v293 = vshrl.u32 %v292, 7
  %v294 = vsub.s32 %v291, %v293
  %v295 = vrot.slane %v279, %v294
  %v297 = vunpack.c.l.s4 1966171168
  %v298 = vunpack.c.0.s8 %v297
  %v299 = vlaneseq
  %v300 = vshrl.u32 %v299, 7
  %v301 = vsub.s32 %v298, %v300
  %v302 = vrot.slane %v286, %v301
  %v304 = vunpack.c.l.s4 1966171168
  %v305 = vunpack.c.0.s8 %v304
  %v306 = vlaneseq
  %v307 = vshrl.u32 %v306, 7
  %v308 = vsub.s32 %v305, %v307
  %v309 = vrot.slane %v287, %v308
  %v311 = vunpack.c.l.s4 1966171168
  %v312 = vunpack.c.0.s8 %v311
  %v313 = vlaneseq
  %v314 = vshrl.u32 %v313, 7
  %v315 = vsub.s32 %v312, %v314
  %v316 = vrot.slane %v288, %v315
  %v317 = vcombine.high %v295, %v295
  %v318 = vcombine.high %v302, %v302
  %v319 = vcombine.high %v309, %v309
  %v320 = vcombine.high %v316, %v316
  %v321 = vcombine.high %v13, %v13
  %v323 = vunpack.c.l.s4 1966171168
  %v324 = vunpack.c.0.s8 %v323
  %v325 = vlaneseq
  %v326 = vshrl.u32 %v325, 7
  %v327 = vsub.s32 %v324, %v326
  %v328 = vrot.slane %v13, %v327
  %v330 = vunpack.c.l.s4 1966171168
  %v331 = vunpack.c.0.s8 %v330
  %v332 = vlaneseq
  %v333 = vshrl.u32 %v332, 7
  %v334 = vsub.s32 %v331, %v333
  %v335 = vrot.slane %v321, %v334
  %v336 = vcombine.high %v328, %v328
  %v337 = vcombine.high %v335, %v335
  %v339 = vunpack.c.l.s4 1966171168
  %v340 = vunpack.c.0.s8 %v339
  %v341 = vlaneseq
  %v342 = vshrl.u32 %v341, 7
  %v343 = vsub.s32 %v340, %v342
  %v344 = vrot.slane %v328, %v343
  %v346 = vunpack.c.l.s4 1966171168
  %v347 = vunpack.c.0.s8 %v346
  %v348 = vlaneseq
  %v349 = vshrl.u32 %v348, 7
  %v350 = vsub.s32 %v347, %v349
  %v351 = vrot.slane %v335, %v350
  %v353 = vunpack.c.l.s4 1966171168
  %v354 = vunpack.c.0.s8 %v353
  %v355 = vlaneseq
  %v356 = vshrl.u32 %v355, 7
  %v357 = vsub.s32 %v354, %v356
  %v358 = vrot.slane %v336, %v357
  %v360 = vunpack.c.l.s4 1966171168
  %v361 = vunpack.c.0.s8 %v360
  %v362 = vlaneseq
  %v363 = vshrl.u32 %v362, 7
  %v364 = vsub.s32 %v361, %v363
  %v365 = vrot.slane %v337, %v364
  %v366 = vcombine.high %v344, %v344
  %v367 = vcombine.high %v351, %v351
  %v368 = vcombine.high %v358, %v358
  %v369 = vcombine.high %v365, %v365
  %v642 = vunpack.c.l.b16 %v14
  %v643 = vunpack.c.l.b16 %v15
  %v644 = vunpack.c.l.b16 %v16
  %v645 = vunpack.c.l.b16 %v17
  %v646 = vunpack.c.l.b16 %v18
  %v647 = vunpack.c.l.b16 %v19
  %v648 = vunpack.c.l.b16 %v20
  %v649 = vunpack.c.l.b16 %v21
  %v650 = vunpack.c.l.b16 %v22
  %v651 = vunpack.c.l.b16 %v23
  %v652 = vunpack.c.l.b16 %v24
  %v653 = vunpack.c.l.b16 %v25
  %v654 = vunpack.c.l.b16 %v26
  %v655 = vunpack.c.l.b16 %v27
  %v656 = vunpack.c.l.b16 %v28
  %v657 = vunpack.c.l.b16 %v29
  %v658 = vunpack.c.l.b16 %v30
  %v659 = vunpack.c.l.b16 %v31
  %v660 = vunpack.c.l.b16 %v32
  %v661 = vunpack.c.l.b16 %v33
  %v662 = vunpack.c.l.b16 %v34
  %v663 = vunpack.c.l.b16 %v35
  %v664 = vunpack.c.l.b16 %v36
  %v665 = vunpack.c.l.b16 %v37
  %v666 = vunpack.c.l.b16 %v38
  %v667 = vunpack.c.l.b16 %v39
  %v668 = vunpack.c.l.b16 %v40
  %v669 = vunpack.c.l.b16 %v41
  %v670 = vunpack.c.l.b16 %v42
  %v671 = vunpack.c.l.b16 %v43
  %v672 = vunpack.c.l.b16 %v44
  %v673 = vunpack.c.l.b16 %v45
  %v674 = vunpack.c.l.b16 %v46
  %v675 = vunpack.c.l.b16 %v47
  %v676 = vunpack.c.l.b16 %v48
  %v677 = vunpack.c.l.b16 %v49
  %v678 = vunpack.c.l.b16 %v50
  %v679 = vunpack.c.l.b16 %v51
  %v680 = vunpack.c.l.b16 %v52
  %v681 = vunpack.c.l.b16 %v53
  %v682 = vunpack.c.l.b16 %v54
  %v683 = vunpack.c.l.b16 %v55
  %v684 = vunpack.c.l.b16 %v56
  %v685 = vunpack.c.l.b16 %v57
  %v686 = vunpack.c.l.b16 %v58
  %v687 = vunpack.c.l.b16 %v59
  %v688 = vunpack.c.l.b16 %v60
  %v689 = vunpack.c.l.b16 %v61
  %v690 = vunpack.c.l.b16 %v62
  %v691 = vunpack.c.l.b16 %v63
  %v692 = vunpack.c.l.b16 %v64
  %v693 = vunpack.c.l.b16 %v65
  %v694 = vunpack.c.l.b16 %v66
  %v695 = vunpack.c.l.b16 %v67
  %v696 = vunpack.c.l.b16 %v68
  %v697 = vunpack.c.l.b16 %v69
  %v698 = vunpack.c.l.b16 %v70
  %v699 = vunpack.c.l.b16 %v71
  %v700 = vunpack.c.l.b16 %v72
  %v701 = vunpack.c.l.b16 %v73
  %v702 = vunpack.c.l.b16 %v74
  %v703 = vunpack.c.l.b16 %v75
  %v704 = vunpack.c.l.b16 %v76
  %v705 = vunpack.c.l.b16 %v77
  %v706 = vunpack.c.l.b16 %v78
  %v707 = vunpack.c.l.b16 %v79
  %v708 = vunpack.c.l.b16 %v80
  %v709 = vunpack.c.l.b16 %v81
  %v710 = vunpack.c.l.b16 %v82
  %v711 = vunpack.c.l.b16 %v83
  %v712 = vunpack.c.l.b16 %v84
  %v713 = vunpack.c.l.b16 %v85
  %v714 = vunpack.c.l.b16 %v86
  %v715 = vunpack.c.l.b16 %v87
  %v716 = vunpack.c.l.b16 %v88
  %v717 = vunpack.c.l.b16 %v89
  %v718 = vunpack.c.l.b16 %v90
  %v719 = vunpack.c.l.b16 %v91
  %v720 = vunpack.c.l.b16 %v92
  %v721 = vunpack.c.l.b16 %v93
  %v722 = vunpack.c.l.b16 %v94
  %v723 = vunpack.c.l.b16 %v95
  %v724 = vunpack.c.l.b16 %v96
  %v725 = vunpack.c.l.b16 %v97
  %v726 = vunpack.c.l.b16 %v98
  %v727 = vunpack.c.l.b16 %v99
  %v728 = vunpack.c.l.b16 %v100
  %v729 = vunpack.c.l.b16 %v101
  %v730 = vunpack.c.l.b16 %v102
  %v731 = vunpack.c.l.b16 %v103
  %v732 = vunpack.c.l.b16 %v104
  %v733 = vunpack.c.l.b16 %v105
  %v734 = vunpack.c.l.b16 %v106
  %v735 = vunpack.c.l.b16 %v107
  %v736 = vunpack.c.l.b16 %v108
  %v737 = vunpack.c.l.b16 %v109
  %v738 = vunpack.c.l.b16 %v110
  %v739 = vunpack.c.l.b16 %v111
  %v740 = vunpack.c.l.b16 %v112
  %v741 = vunpack.c.l.b16 %v113
  %v742 = vunpack.c.l.b16 %v114
  %v743 = vunpack.c.l.b16 %v115
  %v744 = vunpack.c.l.b16 %v116
  %v745 = vunpack.c.l.b16 %v117
  %v746 = vunpack.c.l.b16 %v118
  %v747 = vunpack.c.l.b16 %v119
  %v748 = vunpack.c.l.b16 %v120
  %v749 = vunpack.c.l.b16 %v121
  %v750 = vunpack.c.l.b16 %v122
  %v751 = vunpack.c.l.b16 %v123
  %v752 = vunpack.c.l.b16 %v124
  %v753 = vunpack.c.l.b16 %v125
  %v754 = vunpack.c.l.b16 %v126
  %v755 = vunpack.c.l.b16 %v127
  %v756 = vunpack.c.l.b16 %v128
  %v757 = vunpack.c.l.b16 %v129
  %v758 = vunpack.c.l.b16 %v130
  %v759 = vunpack.c.l.b16 %v131
  %v760 = vunpack.c.l.b16 %v132
  %v761 = vunpack.c.l.b16 %v133
  %v762 = vunpack.c.l.b16 %v134
  %v763 = vunpack.c.l.b16 %v135
  %v764 = vunpack.c.l.b16 %v136
  %v765 = vunpack.c.l.b16 %v137
  %v766 = vunpack.c.l.b16 %v138
  %v767 = vunpack.c.l.b16 %v139
  %v768 = vunpack.c.l.b16 %v140
  %v769 = vunpack.c.l.b16 %v141
  %v770 = vunpack.c.l.b16 %v142
  %v771 = vunpack.c.l.b16 %v143
  %v772 = vunpack.c.l.b16 %v144
  %v773 = vunpack.c.l.b16 %v145
  %v774 = vunpack.c.l.b16 %v146
  %v775 = vunpack.c.l.b16 %v147
  %v776 = vunpack.c.l.b16 %v148
  %v777 = vunpack.c.l.b16 %v149
  %v778 = vunpack.c.l.b16 %v150
  %v779 = vunpack.c.l.b16 %v151
  %v780 = vunpack.c.l.b16 %v152
  %v781 = vunpack.c.l.b16 %v153
  %v782 = vunpack.c.l.b16 %v154
  %v783 = vunpack.c.l.b16 %v155
  %v784 = vunpack.c.l.b16 %v156
  %v785 = vunpack.c.l.b16 %v157
  %v786 = vunpack.c.l.b16 %v158
  %v787 = vunpack.c.l.b16 %v159
  %v788 = vunpack.c.l.b16 %v160
  %v789 = vunpack.c.l.b16 %v161
  %v790 = vunpack.c.l.b16 %v162
  %v791 = vunpack.c.l.b16 %v163
  %v792 = vunpack.c.l.b16 %v164
  %v793 = vunpack.c.l.b16 %v165
  %v794 = vunpack.c.l.b16 %v166
  %v795 = vunpack.c.l.b16 %v167
  %v796 = vunpack.c.l.b16 %v168
  %v797 = vunpack.c.l.b16 %v169
  %v798 = vunpack.c.l.b16 %v170
  %v799 = vunpack.c.l.b16 %v171
  %v800 = vunpack.c.l.b16 %v172
  %v801 = vunpack.c.l.b16 %v173
  %v802 = vunpack.c.l.b16 %v174
  %v803 = vunpack.c.l.b16 %v175
  %v804 = vunpack.c.l.b16 %v176
  %v805 = vunpack.c.l.b16 %v177
  %v806 = vunpack.c.l.b16 %v178
  %v807 = vunpack.c.l.b16 %v179
  %v808 = vunpack.c.l.b16 %v180
  %v809 = vunpack.c.l.b16 %v181
  %v810 = vunpack.c.l.b16 %v182
  %v811 = vunpack.c.l.b16 %v183
  %v812 = vunpack.c.l.b16 %v184
  %v813 = vunpack.c.l.b16 %v185
  %v814 = vunpack.c.l.b16 %v186
  %v815 = vunpack.c.l.b16 %v187
  %v816 = vunpack.c.l.b16 %v188
  %v817 = vunpack.c.l.b16 %v189
  %v818 = vunpack.c.l.b16 %v190
  %v819 = vunpack.c.l.b16 %v191
  %v820 = vunpack.c.l.b16 %v192
  %v821 = vunpack.c.l.b16 %v193
  %v822 = vunpack.c.l.b16 %v194
  %v823 = vunpack.c.l.b16 %v195
  %v824 = vunpack.c.l.b16 %v196
  %v825 = vunpack.c.l.b16 %v197
  %v826 = vunpack.c.l.b16 %v198
  %v827 = vunpack.c.l.b16 %v199
  %v828 = vunpack.c.l.b16 %v200
  %v829 = vunpack.c.l.b16 %v201
  %v830 = vunpack.c.l.b16 %v202
  %v831 = vunpack.c.l.b16 %v203
  %v832 = vunpack.c.l.b16 %v204
  %v833 = vunpack.c.l.b16 %v205
  %v834 = vunpack.c.l.b16 %v206
  %v835 = vunpack.c.l.b16 %v207
  %v836 = vunpack.c.l.b16 %v208
  %v837 = vunpack.c.l.b16 %v209
  %v838 = vunpack.c.l.b16 %v210
  %v839 = vunpack.c.l.b16 %v211
  %v840 = vunpack.c.l.b16 %v212
  %v841 = vunpack.c.l.b16 %v213
  %v842 = vunpack.c.l.b16 %v214
  %v843 = vunpack.c.l.b16 %v215
  %v844 = vunpack.c.l.b16 %v216
  %v845 = vunpack.c.l.b16 %v217
  %v846 = vunpack.c.l.b16 %v218
  %v847 = vunpack.c.l.b16 %v219
  %v848 = vunpack.c.l.b16 %v220
  %v849 = vunpack.c.l.b16 %v221
  %v850 = vunpack.c.l.b16 %v222
  %v851 = vunpack.c.l.b16 %v223
  %v852 = vunpack.c.l.b16 %v224
  %v853 = vunpack.c.l.b16 %v225
  %v854 = vunpack.c.l.b16 %v226
  %v855 = vunpack.c.l.b16 %v227
  %v856 = vunpack.c.l.b16 %v228
  %v857 = vunpack.c.l.b16 %v229
  %v858 = vunpack.c.l.b16 %v230
  %v859 = vunpack.c.l.b16 %v231
  %v860 = vunpack.c.l.b16 %v232
  %v861 = vunpack.c.l.b16 %v233
  %v862 = vunpack.c.l.b16 %v234
  %v863 = vunpack.c.l.b16 %v235
  %v864 = vunpack.c.l.b16 %v236
  %v865 = vunpack.c.l.b16 %v237
  %v866 = vunpack.c.l.b16 %v238
  %v867 = vunpack.c.l.b16 %v239
  %v868 = vunpack.c.l.b16 %v240
  %v869 = vunpack.c.l.b16 %v241
  %v870 = vunpack.c.l.b16 %v242
  %v871 = vunpack.c.l.b16 %v243
  %v872 = vunpack.c.l.b16 %v244
  %v873 = vunpack.c.l.b16 %v245
  %v874 = vunpack.c.l.b16 %v246
  %v875 = vunpack.c.l.b16 %v247
  %v876 = vunpack.c.l.b16 %v248
  %v877 = vunpack.c.l.b16 %v249
  %v878 = vunpack.c.l.b16 %v250
  %v879 = vunpack.c.l.b16 %v251
  %v880 = vunpack.c.l.b16 %v252
  %v881 = vunpack.c.l.b16 %v253
  %v882 = vunpack.c.l.b16 %v254
  %v883 = vunpack.c.l.b16 %v255
  %v884 = vunpack.c.l.b16 %v256
  %v885 = vunpack.c.l.b16 %v257
  %v886 = vunpack.c.l.b16 %v258
  %v887 = vunpack.c.l.b16 %v259
  %v888 = vunpack.c.l.b16 %v260
  %v889 = vunpack.c.l.b16 %v261
  %v890 = vunpack.c.l.b16 %v262
  %v891 = vunpack.c.l.b16 %v263
  %v892 = vunpack.c.l.b16 %v264
  %v893 = vunpack.c.l.b16 %v265
  %v894 = vunpack.c.l.b16 %v266
  %v895 = vunpack.c.l.b16 %v267
  %v896 = vunpack.c.l.b16 %v268
  %v897 = vunpack.c.l.b16 %v269
  %v898 = vpack.c.b16 %v643, %v642
  %v899 = vpack.c.b16 %v645, %v644
  %v900 = vpack.c.b16 %v647, %v646
  %v901 = vpack.c.b16 %v649, %v648
  %v902 = vpack.c.b16 %v651, %v650
  %v903 = vpack.c.b16 %v653, %v652
  %v904 = vpack.c.b16 %v655, %v654
  %v905 = vpack.c.b16 %v657, %v656
  %v906 = vpack.c.b16 %v659, %v658
  %v907 = vpack.c.b16 %v661, %v660
  %v908 = vpack.c.b16 %v663, %v662
  %v909 = vpack.c.b16 %v665, %v664
  %v910 = vpack.c.b16 %v667, %v666
  %v911 = vpack.c.b16 %v669, %v668
  %v912 = vpack.c.b16 %v671, %v670
  %v913 = vpack.c.b16 %v673, %v672
  %v914 = vpack.c.b16 %v675, %v674
  %v915 = vpack.c.b16 %v677, %v676
  %v916 = vpack.c.b16 %v679, %v678
  %v917 = vpack.c.b16 %v681, %v680
  %v918 = vpack.c.b16 %v683, %v682
  %v919 = vpack.c.b16 %v685, %v684
  %v920 = vpack.c.b16 %v687, %v686
  %v921 = vpack.c.b16 %v689, %v688
  %v922 = vpack.c.b16 %v691, %v690
  %v923 = vpack.c.b16 %v693, %v692
  %v924 = vpack.c.b16 %v695, %v694
  %v925 = vpack.c.b16 %v697, %v696
  %v926 = vpack.c.b16 %v699, %v698
  %v927 = vpack.c.b16 %v701, %v700
  %v928 = vpack.c.b16 %v703, %v702
  %v929 = vpack.c.b16 %v705, %v704
  %v930 = vpack.c.b16 %v707, %v706
  %v931 = vpack.c.b16 %v709, %v708
  %v932 = vpack.c.b16 %v711, %v710
  %v933 = vpack.c.b16 %v713, %v712
  %v934 = vpack.c.b16 %v715, %v714
  %v935 = vpack.c.b16 %v717, %v716
  %v936 = vpack.c.b16 %v719, %v718
  %v937 = vpack.c.b16 %v721, %v720
  %v938 = vpack.c.b16 %v723, %v722
  %v939 = vpack.c.b16 %v725, %v724
  %v940 = vpack.c.b16 %v727, %v726
  %v941 = vpack.c.b16 %v729, %v728
  %v942 = vpack.c.b16 %v731, %v730
  %v943 = vpack.c.b16 %v733, %v732
  %v944 = vpack.c.b16 %v735, %v734
  %v945 = vpack.c.b16 %v737, %v736
  %v946 = vpack.c.b16 %v739, %v738
  %v947 = vpack.c.b16 %v741, %v740
  %v948 = vpack.c.b16 %v743, %v742
  %v949 = vpack.c.b16 %v745, %v744
  %v950 = vpack.c.b16 %v747, %v746
  %v951 = vpack.c.b16 %v749, %v748
  %v952 = vpack.c.b16 %v751, %v750
  %v953 = vpack.c.b16 %v753, %v752
  %v954 = vpack.c.b16 %v755, %v754
  %v955 = vpack.c.b16 %v757, %v756
  %v956 = vpack.c.b16 %v759, %v758
  %v957 = vpack.c.b16 %v761, %v760
  %v958 = vpack.c.b16 %v763, %v762
  %v959 = vpack.c.b16 %v765, %v764
  %v960 = vpack.c.b16 %v767, %v766
  %v961 = vpack.c.b16 %v769, %v768
  %v962 = vpack.c.b16 %v771, %v770
  %v963 = vpack.c.b16 %v773, %v772
  %v964 = vpack.c.b16 %v775, %v774
  %v965 = vpack.c.b16 %v777, %v776
  %v966 = vpack.c.b16 %v779, %v778
  %v967 = vpack.c.b16 %v781, %v780
  %v968 = vpack.c.b16 %v783, %v782
  %v969 = vpack.c.b16 %v785, %v784
  %v970 = vpack.c.b16 %v787, %v786
  %v971 = vpack.c.b16 %v789, %v788
  %v972 = vpack.c.b16 %v791, %v790
  %v973 = vpack.c.b16 %v793, %v792
  %v974 = vpack.c.b16 %v795, %v794
  %v975 = vpack.c.b16 %v797, %v796
  %v976 = vpack.c.b16 %v799, %v798
  %v977 = vpack.c.b16 %v801, %v800
  %v978 = vpack.c.b16 %v803, %v802
  %v979 = vpack.c.b16 %v805, %v804
  %v980 = vpack.c.b16 %v807, %v806
  %v981 = vpack.c.b16 %v809, %v808
  %v982 = vpack.c.b16 %v811, %v810
  %v983 = vpack.c.b16 %v813, %v812
  %v984 = vpack.c.b16 %v815, %v814
  %v985 = vpack.c.b16 %v817, %v816
  %v986 = vpack.c.b16 %v819, %v818
  %v987 = vpack.c.b16 %v821, %v820
  %v988 = vpack.c.b16 %v823, %v822
  %v989 = vpack.c.b16 %v825, %v824
  %v990 = vpack.c.b16 %v827, %v826
  %v991 = vpack.c.b16 %v829, %v828
  %v992 = vpack.c.b16 %v831, %v830
  %v993 = vpack.c.b16 %v833, %v832
  %v994 = vpack.c.b16 %v835, %v834
  %v995 = vpack.c.b16 %v837, %v836
  %v996 = vpack.c.b16 %v839, %v838
  %v997 = vpack.c.b16 %v841, %v840
  %v998 = vpack.c.b16 %v843, %v842
  %v999 = vpack.c.b16 %v845, %v844
  %v1000 = vpack.c.b16 %v847, %v846
  %v1001 = vpack.c.b16 %v849, %v848
  %v1002 = vpack.c.b16 %v851, %v850
  %v1003 = vpack.c.b16 %v853, %v852
  %v1004 = vpack.c.b16 %v855, %v854
  %v1005 = vpack.c.b16 %v857, %v856
  %v1006 = vpack.c.b16 %v859, %v858
  %v1007 = vpack.c.b16 %v861, %v860
  %v1008 = vpack.c.b16 %v863, %v862
  %v1009 = vpack.c.b16 %v865, %v864
  %v1010 = vpack.c.b16 %v867, %v866
  %v1011 = vpack.c.b16 %v869, %v868
  %v1012 = vpack.c.b16 %v871, %v870
  %v1013 = vpack.c.b16 %v873, %v872
  %v1014 = vpack.c.b16 %v875, %v874
  %v1015 = vpack.c.b16 %v877, %v876
  %v1016 = vpack.c.b16 %v879, %v878
  %v1017 = vpack.c.b16 %v881, %v880
  %v1018 = vpack.c.b16 %v883, %v882
  %v1019 = vpack.c.b16 %v885, %v884
  %v1020 = vpack.c.b16 %v887, %v886
  %v1021 = vpack.c.b16 %v889, %v888
  %v1022 = vpack.c.b16 %v891, %v890
  %v1023 = vpack.c.b16 %v893, %v892
  %v1024 = vpack.c.b16 %v895, %v894
  %v1025 = vpack.c.b16 %v897, %v896
  %1154 = vmatprep.subr.bf16.mxu0 0
  %1155 = vmatpush1.bf16.msra.mxu0 %v905
  %1156 = vmatprep.subr.bf16.mxu0 0
  %1157 = vmatpush1.bf16.msra.mxu0 %v904
  %1158 = vmatprep.subr.bf16.mxu0 0
  %1159 = vmatpush1.bf16.msra.mxu0 %v903
  %1160 = vmatprep.subr.bf16.mxu0 0
  %1161 = vmatpush1.bf16.msra.mxu0 %v902
  %1162 = vmatprep.subr.bf16.mxu0 0
  %1163 = vmatpush1.bf16.msra.mxu0 %v901
  %1164 = vmatprep.subr.bf16.mxu0 0
  %1165 = vmatpush1.bf16.msra.mxu0 %v900
  %1166 = vmatprep.subr.bf16.mxu0 0
  %1167 = vmatpush1.bf16.msra.mxu0 %v899
  %1168 = vmatprep.subr.bf16.mxu0 0
  %1169 = vmatpush1.bf16.msra.mxu0 %v898
  %1170 = vmatprep.subr.bf16.mxu0 0
  %1171 = vmatpush2.bf16.msra.mxu0 %v913
  %1172 = vmatprep.subr.bf16.mxu0 0
  %1173 = vmatpush2.bf16.msra.mxu0 %v912
  %1174 = vmatprep.subr.bf16.mxu0 0
  %1175 = vmatpush2.bf16.msra.mxu0 %v911
  %1176 = vmatprep.subr.bf16.mxu0 0
  %1177 = vmatpush2.bf16.msra.mxu0 %v910
  %1178 = vmatprep.subr.bf16.mxu0 0
  %1179 = vmatpush2.bf16.msra.mxu0 %v909
  %1180 = vmatprep.subr.bf16.mxu0 0
  %1181 = vmatpush2.bf16.msra.mxu0 %v908
  %1182 = vmatprep.subr.bf16.mxu0 0
  %1183 = vmatpush2.bf16.msra.mxu0 %v907
  %1184 = vmatprep.subr.bf16.mxu0 0
  %1185 = vmatpush2.bf16.msra.mxu0 %v906
  %1186 = vmatprep.mubr.bf16.mxu0 %v309
  %1187 = vmatmul.mubr.bf16.gmra.mxu0 %v295
  %v1188 = vpop.f32.mrf.mxu0
  %v1189 = vadd.f32 0.0, %v1188
  %v1190 = vpop.f32.mrf.mxu0
  %v1191 = vpop.f32.mrf.mxu0
  %v1192 = vpop.f32.mrf.mxu0
  %1193 = vdwg.mxu0
  %1194 = vmatprep.subr.bf16.mxu0 0
  %1195 = vmatpush1.bf16.msra.mxu0 %v921
  %1196 = vmatprep.subr.bf16.mxu0 0
  %1197 = vmatpush1.bf16.msra.mxu0 %v920
  %1198 = vmatprep.subr.bf16.mxu0 0
  %1199 = vmatpush1.bf16.msra.mxu0 %v919
  %1200 = vmatprep.subr.bf16.mxu0 0
  %1201 = vmatpush1.bf16.msra.mxu0 %v918
  %1202 = vmatprep.subr.bf16.mxu0 0
  %1203 = vmatpush1.bf16.msra.mxu0 %v917
  %1204 = vmatprep.subr.bf16.mxu0 0
  %1205 = vmatpush1.bf16.msra.mxu0 %v916
  %1206 = vmatprep.subr.bf16.mxu0 0
  %1207 = vmatpush1.bf16.msra.mxu0 %v915
  %1208 = vmatprep.subr.bf16.mxu0 0
  %1209 = vmatpush1.bf16.msra.mxu0 %v914
  %1210 = vmatprep.subr.bf16.mxu0 0
  %1211 = vmatpush2.bf16.msra.mxu0 %v929
  %1212 = vmatprep.subr.bf16.mxu0 0
  %1213 = vmatpush2.bf16.msra.mxu0 %v928
  %1214 = vmatprep.subr.bf16.mxu0 0
  %1215 = vmatpush2.bf16.msra.mxu0 %v927
  %1216 = vmatprep.subr.bf16.mxu0 0
  %1217 = vmatpush2.bf16.msra.mxu0 %v926
  %1218 = vmatprep.subr.bf16.mxu0 0
  %1219 = vmatpush2.bf16.msra.mxu0 %v925
  %1220 = vmatprep.subr.bf16.mxu0 0
  %1221 = vmatpush2.bf16.msra.mxu0 %v924
  %1222 = vmatprep.subr.bf16.mxu0 0
  %1223 = vmatpush2.bf16.msra.mxu0 %v923
  %1224 = vmatprep.subr.bf16.mxu0 0
  %1225 = vmatpush2.bf16.msra.mxu0 %v922
  %1226 = vmatprep.mubr.bf16.mxu0 %v319
  %1227 = vmatmul.mubr.bf16.gmra.mxu0 %v317
  %v1228 = vpop.f32.mrf.mxu0
  %v1229 = vadd.f32 %v1189, %v1228
  %v1230 = vpop.f32.mrf.mxu0
  %v1231 = vpop.f32.mrf.mxu0
  %v1232 = vpop.f32.mrf.mxu0
  %1233 = vdwg.mxu0
  %1234 = vmatprep.subr.bf16.mxu0 0
  %1235 = vmatpush1.bf16.msra.mxu0 %v937
  %1236 = vmatprep.subr.bf16.mxu0 0
  %1237 = vmatpush1.bf16.msra.mxu0 %v936
  %1238 = vmatprep.subr.bf16.mxu0 0
  %1239 = vmatpush1.bf16.msra.mxu0 %v935
  %1240 = vmatprep.subr.bf16.mxu0 0
  %1241 = vmatpush1.bf16.msra.mxu0 %v934
  %1242 = vmatprep.subr.bf16.mxu0 0
  %1243 = vmatpush1.bf16.msra.mxu0 %v933
  %1244 = vmatprep.subr.bf16.mxu0 0
  %1245 = vmatpush1.bf16.msra.mxu0 %v932
  %1246 = vmatprep.subr.bf16.mxu0 0
  %1247 = vmatpush1.bf16.msra.mxu0 %v931
  %1248 = vmatprep.subr.bf16.mxu0 0
  %1249 = vmatpush1.bf16.msra.mxu0 %v930
  %1250 = vmatprep.subr.bf16.mxu0 0
  %1251 = vmatpush2.bf16.msra.mxu0 %v945
  %1252 = vmatprep.subr.bf16.mxu0 0
  %1253 = vmatpush2.bf16.msra.mxu0 %v944
  %1254 = vmatprep.subr.bf16.mxu0 0
  %1255 = vmatpush2.bf16.msra.mxu0 %v943
  %1256 = vmatprep.subr.bf16.mxu0 0
  %1257 = vmatpush2.bf16.msra.mxu0 %v942
  %1258 = vmatprep.subr.bf16.mxu0 0
  %1259 = vmatpush2.bf16.msra.mxu0 %v941
  %1260 = vmatprep.subr.bf16.mxu0 0
  %1261 = vmatpush2.bf16.msra.mxu0 %v940
  %1262 = vmatprep.subr.bf16.mxu0 0
  %1263 = vmatpush2.bf16.msra.mxu0 %v939
  %1264 = vmatprep.subr.bf16.mxu0 0
  %1265 = vmatpush2.bf16.msra.mxu0 %v938
  %1266 = vmatprep.mubr.bf16.mxu0 %v316
  %1267 = vmatmul.mubr.bf16.gmra.mxu0 %v302
  %v1268 = vpop.f32.mrf.mxu0
  %v1269 = vadd.f32 %v1229, %v1268
  %v1270 = vpop.f32.mrf.mxu0
  %v1271 = vpop.f32.mrf.mxu0
  %v1272 = vpop.f32.mrf.mxu0
  %1273 = vdwg.mxu0
  %1274 = vmatprep.subr.bf16.mxu0 0
  %1275 = vmatpush1.bf16.msra.mxu0 %v953
  %1276 = vmatprep.subr.bf16.mxu0 0
  %1277 = vmatpush1.bf16.msra.mxu0 %v952
  %1278 = vmatprep.subr.bf16.mxu0 0
  %1279 = vmatpush1.bf16.msra.mxu0 %v951
  %1280 = vmatprep.subr.bf16.mxu0 0
  %1281 = vmatpush1.bf16.msra.mxu0 %v950
  %1282 = vmatprep.subr.bf16.mxu0 0
  %1283 = vmatpush1.bf16.msra.mxu0 %v949
  %1284 = vmatprep.subr.bf16.mxu0 0
  %1285 = vmatpush1.bf16.msra.mxu0 %v948
  %1286 = vmatprep.subr.bf16.mxu0 0
  %1287 = vmatpush1.bf16.msra.mxu0 %v947
  %1288 = vmatprep.subr.bf16.mxu0 0
  %1289 = vmatpush1.bf16.msra.mxu0 %v946
  %1290 = vmatprep.subr.bf16.mxu0 0
  %1291 = vmatpush2.bf16.msra.mxu0 %v961
  %1292 = vmatprep.subr.bf16.mxu0 0
  %1293 = vmatpush2.bf16.msra.mxu0 %v960
  %1294 = vmatprep.subr.bf16.mxu0 0
  %1295 = vmatpush2.bf16.msra.mxu0 %v959
  %1296 = vmatprep.subr.bf16.mxu0 0
  %1297 = vmatpush2.bf16.msra.mxu0 %v958
  %1298 = vmatprep.subr.bf16.mxu0 0
  %1299 = vmatpush2.bf16.msra.mxu0 %v957
  %1300 = vmatprep.subr.bf16.mxu0 0
  %1301 = vmatpush2.bf16.msra.mxu0 %v956
  %1302 = vmatprep.subr.bf16.mxu0 0
  %1303 = vmatpush2.bf16.msra.mxu0 %v955
  %1304 = vmatprep.subr.bf16.mxu0 0
  %1305 = vmatpush2.bf16.msra.mxu0 %v954
  %1306 = vmatprep.mubr.bf16.mxu0 %v320
  %1307 = vmatmul.mubr.bf16.gmra.mxu0 %v318
  %v1308 = vpop.f32.mrf.mxu0
  %v1309 = vadd.f32 %v1269, %v1308
  %v1310 = vpop.f32.mrf.mxu0
  %v1311 = vpop.f32.mrf.mxu0
  %v1312 = vpop.f32.mrf.mxu0
  %1313 = vdwg.mxu0
  %1314 = vmatprep.subr.bf16.mxu0 0
  %1315 = vmatpush1.bf16.msra.mxu0 %v969
  %1316 = vmatprep.subr.bf16.mxu0 0
  %1317 = vmatpush1.bf16.msra.mxu0 %v968
  %1318 = vmatprep.subr.bf16.mxu0 0
  %1319 = vmatpush1.bf16.msra.mxu0 %v967
  %1320 = vmatprep.subr.bf16.mxu0 0
  %1321 = vmatpush1.bf16.msra.mxu0 %v966
  %1322 = vmatprep.subr.bf16.mxu0 0
  %1323 = vmatpush1.bf16.msra.mxu0 %v965
  %1324 = vmatprep.subr.bf16.mxu0 0
  %1325 = vmatpush1.bf16.msra.mxu0 %v964
  %1326 = vmatprep.subr.bf16.mxu0 0
  %1327 = vmatpush1.bf16.msra.mxu0 %v963
  %1328 = vmatprep.subr.bf16.mxu0 0
  %1329 = vmatpush1.bf16.msra.mxu0 %v962
  %1330 = vmatprep.subr.bf16.mxu0 0
  %1331 = vmatpush2.bf16.msra.mxu0 %v977
  %1332 = vmatprep.subr.bf16.mxu0 0
  %1333 = vmatpush2.bf16.msra.mxu0 %v976
  %1334 = vmatprep.subr.bf16.mxu0 0
  %1335 = vmatpush2.bf16.msra.mxu0 %v975
  %1336 = vmatprep.subr.bf16.mxu0 0
  %1337 = vmatpush2.bf16.msra.mxu0 %v974
  %1338 = vmatprep.subr.bf16.mxu0 0
  %1339 = vmatpush2.bf16.msra.mxu0 %v973
  %1340 = vmatprep.subr.bf16.mxu0 0
  %1341 = vmatpush2.bf16.msra.mxu0 %v972
  %1342 = vmatprep.subr.bf16.mxu0 0
  %1343 = vmatpush2.bf16.msra.mxu0 %v971
  %1344 = vmatprep.subr.bf16.mxu0 0
  %1345 = vmatpush2.bf16.msra.mxu0 %v970
  %1346 = vmatprep.mubr.bf16.mxu0 %v358
  %1347 = vmatmul.mubr.bf16.gmra.mxu0 %v344
  %v1348 = vpop.f32.mrf.mxu0
  %v1349 = vadd.f32 %v1309, %v1348
  %v1350 = vpop.f32.mrf.mxu0
  %v1351 = vpop.f32.mrf.mxu0
  %v1352 = vpop.f32.mrf.mxu0
  %1353 = vdwg.mxu0
  %1354 = vmatprep.subr.bf16.mxu0 0
  %1355 = vmatpush1.bf16.msra.mxu0 %v985
  %1356 = vmatprep.subr.bf16.mxu0 0
  %1357 = vmatpush1.bf16.msra.mxu0 %v984
  %1358 = vmatprep.subr.bf16.mxu0 0
  %1359 = vmatpush1.bf16.msra.mxu0 %v983
  %1360 = vmatprep.subr.bf16.mxu0 0
  %1361 = vmatpush1.bf16.msra.mxu0 %v982
  %1362 = vmatprep.subr.bf16.mxu0 0
  %1363 = vmatpush1.bf16.msra.mxu0 %v981
  %1364 = vmatprep.subr.bf16.mxu0 0
  %1365 = vmatpush1.bf16.msra.mxu0 %v980
  %1366 = vmatprep.subr.bf16.mxu0 0
  %1367 = vmatpush1.bf16.msra.mxu0 %v979
  %1368 = vmatprep.subr.bf16.mxu0 0
  %1369 = vmatpush1.bf16.msra.mxu0 %v978
  %1370 = vmatprep.subr.bf16.mxu0 0
  %1371 = vmatpush2.bf16.msra.mxu0 %v993
  %1372 = vmatprep.subr.bf16.mxu0 0
  %1373 = vmatpush2.bf16.msra.mxu0 %v992
  %1374 = vmatprep.subr.bf16.mxu0 0
  %1375 = vmatpush2.bf16.msra.mxu0 %v991
  %1376 = vmatprep.subr.bf16.mxu0 0
  %1377 = vmatpush2.bf16.msra.mxu0 %v990
  %1378 = vmatprep.subr.bf16.mxu0 0
  %1379 = vmatpush2.bf16.msra.mxu0 %v989
  %1380 = vmatprep.subr.bf16.mxu0 0
  %1381 = vmatpush2.bf16.msra.mxu0 %v988
  %1382 = vmatprep.subr.bf16.mxu0 0
  %1383 = vmatpush2.bf16.msra.mxu0 %v987
  %1384 = vmatprep.subr.bf16.mxu0 0
  %1385 = vmatpush2.bf16.msra.mxu0 %v986
  %1386 = vmatprep.mubr.bf16.mxu0 %v368
  %1387 = vmatmul.mubr.bf16.gmra.mxu0 %v366
  %v1388 = vpop.f32.mrf.mxu0
  %v1389 = vadd.f32 %v1349, %v1388
  %v1390 = vpop.f32.mrf.mxu0
  %v1391 = vpop.f32.mrf.mxu0
  %v1392 = vpop.f32.mrf.mxu0
  %1393 = vdwg.mxu0
  %1394 = vmatprep.subr.bf16.mxu0 0
  %1395 = vmatpush1.bf16.msra.mxu0 %v1001
  %1396 = vmatprep.subr.bf16.mxu0 0
  %1397 = vmatpush1.bf16.msra.mxu0 %v1000
  %1398 = vmatprep.subr.bf16.mxu0 0
  %1399 = vmatpush1.bf16.msra.mxu0 %v999
  %1400 = vmatprep.subr.bf16.mxu0 0
  %1401 = vmatpush1.bf16.msra.mxu0 %v998
  %1402 = vmatprep.subr.bf16.mxu0 0
  %1403 = vmatpush1.bf16.msra.mxu0 %v997
  %1404 = vmatprep.subr.bf16.mxu0 0
  %1405 = vmatpush1.bf16.msra.mxu0 %v996
  %1406 = vmatprep.subr.bf16.mxu0 0
  %1407 = vmatpush1.bf16.msra.mxu0 %v995
  %1408 = vmatprep.subr.bf16.mxu0 0
  %1409 = vmatpush1.bf16.msra.mxu0 %v994
  %1410 = vmatprep.subr.bf16.mxu0 0
  %1411 = vmatpush2.bf16.msra.mxu0 %v1009
  %1412 = vmatprep.subr.bf16.mxu0 0
  %1413 = vmatpush2.bf16.msra.mxu0 %v1008
  %1414 = vmatprep.subr.bf16.mxu0 0
  %1415 = vmatpush2.bf16.msra.mxu0 %v1007
  %1416 = vmatprep.subr.bf16.mxu0 0
  %1417 = vmatpush2.bf16.msra.mxu0 %v1006
  %1418 = vmatprep.subr.bf16.mxu0 0
  %1419 = vmatpush2.bf16.msra.mxu0 %v1005
  %1420 = vmatprep.subr.bf16.mxu0 0
  %1421 = vmatpush2.bf16.msra.mxu0 %v1004
  %1422 = vmatprep.subr.bf16.mxu0 0
  %1423 = vmatpush2.bf16.msra.mxu0 %v1003
  %1424 = vmatprep.subr.bf16.mxu0 0
  %1425 = vmatpush2.bf16.msra.mxu0 %v1002
  %1426 = vmatprep.mubr.bf16.mxu0 %v365
  %1427 = vmatmul.mubr.bf16.gmra.mxu0 %v351
  %v1428 = vpop.f32.mrf.mxu0
  %v1429 = vadd.f32 %v1389, %v1428
  %v1430 = vpop.f32.mrf.mxu0
  %v1431 = vpop.f32.mrf.mxu0
  %v1432 = vpop.f32.mrf.mxu0
  %1433 = vdwg.mxu0
  %1434 = vmatprep.subr.bf16.mxu0 0
  %1435 = vmatpush1.bf16.msra.mxu0 %v1017
  %1436 = vmatprep.subr.bf16.mxu0 0
  %1437 = vmatpush1.bf16.msra.mxu0 %v1016
  %1438 = vmatprep.subr.bf16.mxu0 0
  %1439 = vmatpush1.bf16.msra.mxu0 %v1015
  %1440 = vmatprep.subr.bf16.mxu0 0
  %1441 = vmatpush1.bf16.msra.mxu0 %v1014
  %1442 = vmatprep.subr.bf16.mxu0 0
  %1443 = vmatpush1.bf16.msra.mxu0 %v1013
  %1444 = vmatprep.subr.bf16.mxu0 0
  %1445 = vmatpush1.bf16.msra.mxu0 %v1012
  %1446 = vmatprep.subr.bf16.mxu0 0
  %1447 = vmatpush1.bf16.msra.mxu0 %v1011
  %1448 = vmatprep.subr.bf16.mxu0 0
  %1449 = vmatpush1.bf16.msra.mxu0 %v1010
  %1450 = vmatprep.subr.bf16.mxu0 0
  %1451 = vmatpush2.bf16.msra.mxu0 %v1025
  %1452 = vmatprep.subr.bf16.mxu0 0
  %1453 = vmatpush2.bf16.msra.mxu0 %v1024
  %1454 = vmatprep.subr.bf16.mxu0 0
  %1455 = vmatpush2.bf16.msra.mxu0 %v1023
  %1456 = vmatprep.subr.bf16.mxu0 0
  %1457 = vmatpush2.bf16.msra.mxu0 %v1022
  %1458 = vmatprep.subr.bf16.mxu0 0
  %1459 = vmatpush2.bf16.msra.mxu0 %v1021
  %1460 = vmatprep.subr.bf16.mxu0 0
  %1461 = vmatpush2.bf16.msra.mxu0 %v1020
  %1462 = vmatprep.subr.bf16.mxu0 0
  %1463 = vmatpush2.bf16.msra.mxu0 %v1019
  %1464 = vmatprep.subr.bf16.mxu0 0
  %1465 = vmatpush2.bf16.msra.mxu0 %v1018
  %1466 = vmatprep.mubr.bf16.mxu0 %v369
  %1467 = vmatmul.mubr.bf16.gmra.mxu0 %v367
  %v1468 = vpop.f32.mrf.mxu0
  %v1469 = vadd.f32 %v1429, %v1468
  %v1470 = vpop.f32.mrf.mxu0
  %v1471 = vpop.f32.mrf.mxu0
  %v1472 = vpop.f32.mrf.mxu0
  %1473 = vdwg.mxu0
  %v1474 = vxor.u32 %v1469, 2147483648
  %v1475 = vmul.f32 %v1474, 1.442695
  %v1476 = vpow.pop %v1475
  %v1477 = vadd.f32 %v1476, 1.0
  %v1478 = vrcp.pop %v1477
  %v1479 = vmul.f32 1.0, %v1478
  %1480 = vst [vmem:[%s2] sm:$0x3] %v1479
  // Predicated region
  $region10: #{discriminator_pallas.9} parent=0 // pred_check
    _
  $region11: #{discriminator_pallas.9} parent=0 // pred_check_branch
    %1482 = sbr.rel (0) target = $region13
  $region12: #{discriminator_pallas.9} parent=0 // pred_region
    _
  $region13: #{discriminator_pallas.9} parent=0 // pred_fallthru
    _
  // Predicated region
  $region14: #{discriminator_pallas.9} parent=0 // pred_check
    _
  $region15: #{discriminator_pallas.9} parent=0 // pred_check_branch
    %1484 = sbr.rel (0) target = $region17
  $region16: #{discriminator_pallas.9} parent=0 // pred_region
    _
  $region17: #{discriminator_pallas.9} parent=0 // pred_fallthru
    _

</llo_original>
